<compile_context>
chip_gen: v7x
topology: tpu7x:2x2x1
jax: 0.10.0
libtpu: 0.0.40
codegen_flags: <defaults>
</compile_context>

<pallas_src>
import jax
import jax.numpy as jnp
import numpy as np
from jax.experimental import pallas as pl
from jax.experimental.pallas import tpu as pltpu


# ---------------------------------------------------------------------------
# Fused kernel: conv1+ReLU+pool -> conv2+ReLU+pool -> folded (fc1 o fc2 o fc3)
# ---------------------------------------------------------------------------
def cnn_fused_kernel(xrows_ref, a1e_ref, a1o_ref, b1_ref,
                     a2e_ref, a2o_ref, b2_ref, wf_ref, bf_ref, o_ref):
    f32 = jnp.float32
    bf16 = jnp.bfloat16
    bblk = o_ref.shape[0]

    # ---- layer1: Conv2d(1,32,k=3,pad=1) + ReLU + MaxPool(2,2) --------------
    # Input rows arrive pre-gathered from the wrapper as (bblk*28, 84) bf16
    # with lane = dy*28 + w: the three H-taps are merged into one K=84 matmul
    # per even/odd output-column bank (W zero-padding folded into the Toeplitz).
    rows = xrows_ref[...]
    acc_e = jnp.dot(rows, a1e_ref[...], preferred_element_type=f32)   # even cols
    acc_o = jnp.dot(rows, a1o_ref[...], preferred_element_type=f32)   # odd cols
    z1 = jnp.maximum(acc_e, acc_o) + b1_ref[...]       # column pool + bias
    z1 = jnp.maximum(z1, 0.0)                          # ReLU (commutes with max)
    pool1 = jnp.max(z1.reshape(bblk, 14, 2, 14 * 32), axis=2)   # row pool (bblk,14,448)

    # ---- layer2: Conv2d(32,64,k=3,pad=0) + ReLU + MaxPool(2) ---------------
    # Three H-taps, each a K=448 banded-Toeplitz matmul (even/odd out cols).
    p1 = pool1.astype(bf16)
    r0 = p1[:, 0:12, :].reshape(bblk * 12, 14 * 32)
    acc_e = jnp.dot(r0, a2e_ref[0], preferred_element_type=f32)
    acc_o = jnp.dot(r0, a2o_ref[0], preferred_element_type=f32)
    for dy in (1, 2):
        rdy = p1[:, dy:dy + 12, :].reshape(bblk * 12, 14 * 32)
        acc_e = acc_e + jnp.dot(rdy, a2e_ref[dy], preferred_element_type=f32)
        acc_o = acc_o + jnp.dot(rdy, a2o_ref[dy], preferred_element_type=f32)
    z2 = jnp.maximum(acc_e, acc_o) + b2_ref[...]
    z2 = jnp.maximum(z2, 0.0)
    pool2 = jnp.max(z2.reshape(bblk, 6, 2, 6 * 64), axis=2)     # (bblk,6,384) f32

    # ---- fc1 -> fc2 -> fc3: the original module applies NO nonlinearity ----
    # between the fc layers, so they were folded offline into a single affine
    # map; one accumulating f32 matmul per pooled row h (K=384, N=128).
    out = jnp.dot(pool2[:, 0, :], wf_ref[0], preferred_element_type=f32)
    for r in range(1, 6):
        out = out + jnp.dot(pool2[:, r, :], wf_ref[r], preferred_element_type=f32)
    out = out + bf_ref[...]
    o_ref[...] = out.astype(o_ref.dtype)               # (bblk, 128) lane-dense


# ---------------------------------------------------------------------------
# Wrapper: batch blocking, H-pad + conv1 tap-gather hoisted into XLA.
# ---------------------------------------------------------------------------
def cnn_forward(x_nchw, kp, block_b=32):
    """block_b: images per grid step (multiple of 8 recommended; 32 is safe on
    v5e/v6e/v7x, 64 also fits the 48 MiB VMEM budget on v5e/v6e)."""
    B = x_nchw.shape[0]
    bblk = min(block_b, B)
    bpad = ((B + bblk - 1) // bblk) * bblk

    x = x_nchw.reshape(B, 28, 28).astype(jnp.float32)
    if bpad != B:
        x = jnp.pad(x, ((0, bpad - B), (0, 0), (0, 0)))
    # H zero-pad (pad=1) and merge the 3 conv1 H-taps into the lane axis:
    # x_rows[b*28+i, dy*28+w] = x_padH[b, i+dy, w].
    xp = jnp.pad(x, ((0, 0), (1, 1), (0, 0)))                    # (bpad, 30, 28)
    x_rows = jnp.concatenate(
        [xp[:, 0:28, :], xp[:, 1:29, :], xp[:, 2:30, :]], axis=-1)  # (bpad,28,84)
    x_rows = x_rows.reshape(bpad * 28, 84).astype(jnp.bfloat16)

    cw = lambda i: (0, 0)
    cw3 = lambda i: (0, 0, 0)

    out = pl.pallas_call(
        cnn_fused_kernel,
        out_shape=jax.ShapeDtypeStruct((bpad, 128), jnp.float32),
        grid=(bpad // bblk,),
        in_specs=[
            pl.BlockSpec((bblk * 28, 84), lambda i: (i, 0)),  # gathered conv1 rows (bf16)
            pl.BlockSpec((84, 448), cw),                      # conv1 Toeplitz, even cols (bf16)
            pl.BlockSpec((84, 448), cw),                      # conv1 Toeplitz, odd cols (bf16)
            pl.BlockSpec((1, 448), cw),                       # conv1 bias (f32, tiled)
            pl.BlockSpec((3, 448, 384), cw3),                 # conv2 Toeplitz, even cols (bf16)
            pl.BlockSpec((3, 448, 384), cw3),                 # conv2 Toeplitz, odd cols (bf16)
            pl.BlockSpec((1, 384), cw),                       # conv2 bias (f32, tiled)
            pl.BlockSpec((6, 384, 128), cw3),                 # folded fc weight (f32)
            pl.BlockSpec((1, 128), cw),                       # folded fc bias (f32, padded)
        ],
        out_specs=pl.BlockSpec((bblk, 128), lambda i: (i, 0)),
        compiler_params=pltpu.CompilerParams(
            dimension_semantics=("parallel",),
            vmem_limit_bytes=48 * 1024 * 1024),
    )(x_rows, kp["a1_even"], kp["a1_odd"], kp["b1"],
      kp["a2_even"], kp["a2_odd"], kp["b2"], kp["fc_w"], kp["fc_b"])
    return out[:B, :10]


# ---------------------------------------------------------------------------
# Parameter preparation: PyTorch-layout params -> kernel operands.
# ---------------------------------------------------------------------------
def prepare_params(p):
    f64 = np.float64

    # conv1 as a merged 3-tap banded Toeplitz over (dy, W); W zero-pad folded in.
    w1 = np.transpose(np.asarray(p["conv1_w"], f64)[:, 0], (1, 2, 0))  # (dy,dx,c)
    a1 = np.zeros((3, 28, 28, 32), f64)                                # [dy,q,j,c]
    for dy in range(3):
        for dx in range(3):
            for j in range(28):
                q = j + dx - 1
                if 0 <= q < 28:
                    a1[dy, q, j, :] = w1[dy, dx, :]
    a1 = a1.reshape(3 * 28, 28, 32)
    a1_even = a1[:, 0::2, :].reshape(84, 14 * 32)
    a1_odd = a1[:, 1::2, :].reshape(84, 14 * 32)

    # conv2 (valid conv) Toeplitz: A2[dy, q*32+ci, j*64+co] = w2[dy,q-j,ci,co].
    w2 = np.transpose(np.asarray(p["conv2_w"], f64), (2, 3, 1, 0))     # (dy,dx,ci,co)
    a2 = np.zeros((3, 14, 32, 12, 64), f64)
    for dy in range(3):
        for dx in range(3):
            for j in range(12):
                a2[dy, j + dx, :, j, :] = w2[dy, dx, :, :]
    a2 = a2.reshape(3, 14 * 32, 12, 64)
    a2_even = a2[:, :, 0::2, :].reshape(3, 448, 6 * 64)
    a2_odd = a2[:, :, 1::2, :].reshape(3, 448, 6 * 64)

    # fc1/fc2/fc3 have no intervening nonlinearity in the original module ->
    # fold into one affine map in float64, with the PyTorch (C,H,W) flatten
    # permutation folded in; split by pooled row h -> (6, 384, 128).
    W1 = np.asarray(p["fc1_w"], f64); b1 = np.asarray(p["fc1_b"], f64)
    W2 = np.asarray(p["fc2_w"], f64); b2 = np.asarray(p["fc2_b"], f64)
    W3 = np.asarray(p["fc3_w"], f64); b3 = np.asarray(p["fc3_b"], f64)
    Wf = W3 @ W2 @ W1                                   # (10, 2304), in idx = c*36+h*6+w
    bf = W3 @ (W2 @ b1 + b2) + b3                       # (10,)
    Wf = Wf.reshape(10, 64, 6, 6).transpose(2, 3, 1, 0).reshape(6, 6 * 64, 10)
    fc_w = np.zeros((6, 384, 128), np.float32); fc_w[..., :10] = Wf
    fc_b = np.zeros((1, 128), np.float32); fc_b[0, :10] = bf

    return {
        "a1_even": jnp.asarray(a1_even, dtype=jnp.bfloat16),
        "a1_odd": jnp.asarray(a1_odd, dtype=jnp.bfloat16),
        "b1": jnp.asarray(np.tile(np.asarray(p["conv1_b"], np.float32), 14)[None, :]),
        "a2_even": jnp.asarray(a2_even, dtype=jnp.bfloat16),
        "a2_odd": jnp.asarray(a2_odd, dtype=jnp.bfloat16),
        "b2": jnp.asarray(np.tile(np.asarray(p["conv2_b"], np.float32), 6)[None, :]),
        "fc_w": jnp.asarray(fc_w),
        "fc_b": jnp.asarray(fc_b),
    }


# ---------------------------------------------------------------------------
# Pure-JAX reference (PyTorch layouts / exact forward) for self-check.
# ---------------------------------------------------------------------------
def reference_forward(x_nchw, p):
    x = jnp.transpose(x_nchw, (0, 2, 3, 1)).astype(jnp.float32)

    def conv(x, w_oihw, b, pad):
        w = jnp.transpose(w_oihw, (2, 3, 1, 0))   # OIHW -> HWIO
        y = jax.lax.conv_general_dilated(
            x, w, window_strides=(1, 1), padding=[(pad, pad), (pad, pad)],
            dimension_numbers=("NHWC", "HWIO", "NHWC"))
        return y + b.reshape(1, 1, 1, -1)

    def pool(x):
        return jax.lax.reduce_window(x, -jnp.inf, jax.lax.max,
                                     (1, 2, 2, 1), (1, 2, 2, 1), "VALID")

    h = pool(jnp.maximum(conv(x, p["conv1_w"], p["conv1_b"], 1), 0.0))
    h = pool(jnp.maximum(conv(h, p["conv2_w"], p["conv2_b"], 0), 0.0))
    h = jnp.transpose(h, (0, 3, 1, 2)).reshape(h.shape[0], -1)   # (C,H,W) flatten
    h = h @ p["fc1_w"].T + p["fc1_b"]
    h = h @ p["fc2_w"].T + p["fc2_b"]            # no ReLU between fcs (matches module)
    return h @ p["fc3_w"].T + p["fc3_b"]


def init_params(key):
    ks = jax.random.split(key, 10)
    s = 0.1
    return {  # PyTorch layouts: conv OIHW, linear (out, in)
        "conv1_w": s * jax.random.normal(ks[0], (32, 1, 3, 3), jnp.float32),
        "conv1_b": s * jax.random.normal(ks[1], (32,), jnp.float32),
        "conv2_w": s * jax.random.normal(ks[2], (64, 32, 3, 3), jnp.float32),
        "conv2_b": s * jax.random.normal(ks[3], (64,), jnp.float32),
        "fc1_w": s * jax.random.normal(ks[4], (600, 64 * 6 * 6), jnp.float32),
        "fc1_b": s * jax.random.normal(ks[5], (600,), jnp.float32),
        "fc2_w": s * jax.random.normal(ks[6], (120, 600), jnp.float32),
        "fc2_b": s * jax.random.normal(ks[7], (120,), jnp.float32),
        "fc3_w": s * jax.random.normal(ks[8], (10, 120), jnp.float32),
        "fc3_b": s * jax.random.normal(ks[9], (10,), jnp.float32),
    }


def _check(out, ref, name):
    # bf16 MXU inputs in the conv stages -> tolerance scaled to output magnitude.
    err = float(jnp.max(jnp.abs(out - ref)))
    scale = float(jnp.max(jnp.abs(ref)))
    assert err <= 2e-2 * scale + 1e-3, f"{name}: max err {err} vs scale {scale}"


if __name__ == "__main__":
    key = jax.random.PRNGKey(0)
    k_x, k_p = jax.random.split(key)

    params = init_params(k_p)
    kparams = prepare_params(params)

    # Spatial size 28x28 is fixed by fc1 = Linear(64*6*6, 600); small batch.
    x = jax.random.normal(k_x, (2, 1, 28, 28), jnp.float32)
    out = jax.block_until_ready(cnn_forward(x, kparams))
    assert out.shape == (2, 10) and out.dtype == jnp.float32
    _check(out, reference_forward(x, params), "B=2")

    # Also exercise the batch-blocked multi-step (grid > 1) path.
    x2 = jax.random.normal(jax.random.PRNGKey(1), (33, 1, 28, 28), jnp.float32)
    out2 = jax.block_until_ready(cnn_forward(x2, kparams, block_b=16))
    _check(out2, reference_forward(x2, params), "B=33")

    print("KERNEL_OK")
</pallas_src>

<mosaic_0001>
module attributes {stable_mosaic.version = 11 : i64} {
  func.func @cnn_fused_kernel(%arg0: i32, %arg1: memref<56x84xbf16, #tpu.memory_space<vmem>>, %arg2: memref<84x448xbf16, #tpu.memory_space<vmem>>, %arg3: memref<84x448xbf16, #tpu.memory_space<vmem>>, %arg4: memref<1x448xf32, #tpu.memory_space<vmem>>, %arg5: memref<3x448x384xbf16, #tpu.memory_space<vmem>>, %arg6: memref<3x448x384xbf16, #tpu.memory_space<vmem>>, %arg7: memref<1x384xf32, #tpu.memory_space<vmem>>, %arg8: memref<6x384x128xf32, #tpu.memory_space<vmem>>, %arg9: memref<1x128xf32, #tpu.memory_space<vmem>>, %arg10: memref<2x128xf32, #tpu.memory_space<vmem>>) attributes {dimension_semantics = [#tpu.dimension_semantics<parallel>], iteration_bounds = array<i64: 1>, scalar_prefetch = 0 : i64, scratch_operands = 0 : i64, tpu.core_type = #tpu.core_type<tc>, window_params = [{transform_indices = @transform_0, window_bounds = array<i64: 56, 84>}, {pipeline_mode = #tpu.pipeline_mode<synchronous>, transform_indices = @transform_1, window_bounds = array<i64: 84, 448>}, {pipeline_mode = #tpu.pipeline_mode<synchronous>, transform_indices = @transform_2, window_bounds = array<i64: 84, 448>}, {pipeline_mode = #tpu.pipeline_mode<synchronous>, transform_indices = @transform_3, window_bounds = array<i64: 1, 448>}, {pipeline_mode = #tpu.pipeline_mode<synchronous>, transform_indices = @transform_4, window_bounds = array<i64: 3, 448, 384>}, {pipeline_mode = #tpu.pipeline_mode<synchronous>, transform_indices = @transform_5, window_bounds = array<i64: 3, 448, 384>}, {pipeline_mode = #tpu.pipeline_mode<synchronous>, transform_indices = @transform_6, window_bounds = array<i64: 1, 384>}, {pipeline_mode = #tpu.pipeline_mode<synchronous>, transform_indices = @transform_7, window_bounds = array<i64: 6, 384, 128>}, {pipeline_mode = #tpu.pipeline_mode<synchronous>, transform_indices = @transform_8, window_bounds = array<i64: 1, 128>}, {transform_indices = @transform_9, window_bounds = array<i64: 2, 128>}]} {
    %c0 = arith.constant 0 : index
    %c0_0 = arith.constant 0 : index
    %0 = vector.load %arg1[%c0, %c0_0] : memref<56x84xbf16, #tpu.memory_space<vmem>>, vector<56x84xbf16>
    %c0_1 = arith.constant 0 : index
    %c0_2 = arith.constant 0 : index
    %1 = vector.load %arg2[%c0_1, %c0_2] : memref<84x448xbf16, #tpu.memory_space<vmem>>, vector<84x448xbf16>
    %cst = arith.constant dense<0.000000e+00> : vector<56x448xf32>
    %2 = tpu.matmul %0, %1, %cst {dimension_numbers = #tpu.dot_dimension_numbers<[1], [0], [0], [1], [0, 0, 1, 1], [], []>} : vector<56x84xbf16>, vector<84x448xbf16>, vector<56x448xf32> -> vector<56x448xf32>
    %c0_3 = arith.constant 0 : index
    %c0_4 = arith.constant 0 : index
    %3 = vector.load %arg3[%c0_3, %c0_4] : memref<84x448xbf16, #tpu.memory_space<vmem>>, vector<84x448xbf16>
    %cst_5 = arith.constant dense<0.000000e+00> : vector<56x448xf32>
    %4 = tpu.matmul %0, %3, %cst_5 {dimension_numbers = #tpu.dot_dimension_numbers<[1], [0], [0], [1], [0, 0, 1, 1], [], []>} : vector<56x84xbf16>, vector<84x448xbf16>, vector<56x448xf32> -> vector<56x448xf32>
    %5 = arith.maximumf %2, %4 : vector<56x448xf32>
    %c0_6 = arith.constant 0 : index
    %c0_7 = arith.constant 0 : index
    %6 = vector.load %arg4[%c0_6, %c0_7] : memref<1x448xf32, #tpu.memory_space<vmem>>, vector<1x448xf32>
    %7 = vector.broadcast %6 : vector<1x448xf32> to vector<56x448xf32>
    %8 = arith.addf %5, %7 : vector<56x448xf32>
    %cst_8 = arith.constant 0.000000e+00 : f32
    %9 = vector.broadcast %cst_8 : f32 to vector<56x448xf32>
    %10 = arith.maximumf %8, %9 : vector<56x448xf32>
    %11 = vector.shape_cast %10 : vector<56x448xf32> to vector<2x14x2x448xf32>
    %cst_9 = arith.constant dense<0xFF800000> : vector<2x14x448xf32>
    %12 = vector.multi_reduction <maximumf>, %11, %cst_9 [2] : vector<2x14x2x448xf32> to vector<2x14x448xf32>
    %13 = arith.truncf %12 : vector<2x14x448xf32> to vector<2x14x448xbf16>
    %14 = vector.extract_strided_slice %13 {offsets = [0, 0, 0], sizes = [2, 12, 448], strides = [1, 1, 1]} : vector<2x14x448xbf16> to vector<2x12x448xbf16>
    %15 = vector.shape_cast %14 : vector<2x12x448xbf16> to vector<24x448xbf16>
    %c0_10 = arith.constant 0 : index
    %c0_11 = arith.constant 0 : index
    %c0_12 = arith.constant 0 : index
    %16 = vector.load %arg5[%c0_10, %c0_11, %c0_12] : memref<3x448x384xbf16, #tpu.memory_space<vmem>>, vector<1x448x384xbf16>
    %17 = vector.shape_cast %16 : vector<1x448x384xbf16> to vector<448x384xbf16>
    %cst_13 = arith.constant dense<0.000000e+00> : vector<24x384xf32>
    %18 = tpu.matmul %15, %17, %cst_13 {dimension_numbers = #tpu.dot_dimension_numbers<[1], [0], [0], [1], [0, 0, 1, 1], [], []>} : vector<24x448xbf16>, vector<448x384xbf16>, vector<24x384xf32> -> vector<24x384xf32>
    %c0_14 = arith.constant 0 : index
    %c0_15 = arith.constant 0 : index
    %c0_16 = arith.constant 0 : index
    %19 = vector.load %arg6[%c0_14, %c0_15, %c0_16] : memref<3x448x384xbf16, #tpu.memory_space<vmem>>, vector<1x448x384xbf16>
    %20 = vector.shape_cast %19 : vector<1x448x384xbf16> to vector<448x384xbf16>
    %cst_17 = arith.constant dense<0.000000e+00> : vector<24x384xf32>
    %21 = tpu.matmul %15, %20, %cst_17 {dimension_numbers = #tpu.dot_dimension_numbers<[1], [0], [0], [1], [0, 0, 1, 1], [], []>} : vector<24x448xbf16>, vector<448x384xbf16>, vector<24x384xf32> -> vector<24x384xf32>
    %22 = vector.extract_strided_slice %13 {offsets = [0, 1, 0], sizes = [2, 12, 448], strides = [1, 1, 1]} : vector<2x14x448xbf16> to vector<2x12x448xbf16>
    %23 = vector.shape_cast %22 : vector<2x12x448xbf16> to vector<24x448xbf16>
    %c1 = arith.constant 1 : index
    %c0_18 = arith.constant 0 : index
    %c0_19 = arith.constant 0 : index
    %24 = vector.load %arg5[%c1, %c0_18, %c0_19] : memref<3x448x384xbf16, #tpu.memory_space<vmem>>, vector<1x448x384xbf16>
    %25 = vector.shape_cast %24 : vector<1x448x384xbf16> to vector<448x384xbf16>
    %cst_20 = arith.constant dense<0.000000e+00> : vector<24x384xf32>
    %26 = tpu.matmul %23, %25, %cst_20 {dimension_numbers = #tpu.dot_dimension_numbers<[1], [0], [0], [1], [0, 0, 1, 1], [], []>} : vector<24x448xbf16>, vector<448x384xbf16>, vector<24x384xf32> -> vector<24x384xf32>
    %27 = arith.addf %18, %26 : vector<24x384xf32>
    %c1_21 = arith.constant 1 : index
    %c0_22 = arith.constant 0 : index
    %c0_23 = arith.constant 0 : index
    %28 = vector.load %arg6[%c1_21, %c0_22, %c0_23] : memref<3x448x384xbf16, #tpu.memory_space<vmem>>, vector<1x448x384xbf16>
    %29 = vector.shape_cast %28 : vector<1x448x384xbf16> to vector<448x384xbf16>
    %cst_24 = arith.constant dense<0.000000e+00> : vector<24x384xf32>
    %30 = tpu.matmul %23, %29, %cst_24 {dimension_numbers = #tpu.dot_dimension_numbers<[1], [0], [0], [1], [0, 0, 1, 1], [], []>} : vector<24x448xbf16>, vector<448x384xbf16>, vector<24x384xf32> -> vector<24x384xf32>
    %31 = arith.addf %21, %30 : vector<24x384xf32>
    %32 = vector.extract_strided_slice %13 {offsets = [0, 2, 0], sizes = [2, 12, 448], strides = [1, 1, 1]} : vector<2x14x448xbf16> to vector<2x12x448xbf16>
    %33 = vector.shape_cast %32 : vector<2x12x448xbf16> to vector<24x448xbf16>
    %c2 = arith.constant 2 : index
    %c0_25 = arith.constant 0 : index
    %c0_26 = arith.constant 0 : index
    %34 = vector.load %arg5[%c2, %c0_25, %c0_26] : memref<3x448x384xbf16, #tpu.memory_space<vmem>>, vector<1x448x384xbf16>
    %35 = vector.shape_cast %34 : vector<1x448x384xbf16> to vector<448x384xbf16>
    %cst_27 = arith.constant dense<0.000000e+00> : vector<24x384xf32>
    %36 = tpu.matmul %33, %35, %cst_27 {dimension_numbers = #tpu.dot_dimension_numbers<[1], [0], [0], [1], [0, 0, 1, 1], [], []>} : vector<24x448xbf16>, vector<448x384xbf16>, vector<24x384xf32> -> vector<24x384xf32>
    %37 = arith.addf %27, %36 : vector<24x384xf32>
    %c2_28 = arith.constant 2 : index
    %c0_29 = arith.constant 0 : index
    %c0_30 = arith.constant 0 : index
    %38 = vector.load %arg6[%c2_28, %c0_29, %c0_30] : memref<3x448x384xbf16, #tpu.memory_space<vmem>>, vector<1x448x384xbf16>
    %39 = vector.shape_cast %38 : vector<1x448x384xbf16> to vector<448x384xbf16>
    %cst_31 = arith.constant dense<0.000000e+00> : vector<24x384xf32>
    %40 = tpu.matmul %33, %39, %cst_31 {dimension_numbers = #tpu.dot_dimension_numbers<[1], [0], [0], [1], [0, 0, 1, 1], [], []>} : vector<24x448xbf16>, vector<448x384xbf16>, vector<24x384xf32> -> vector<24x384xf32>
    %41 = arith.addf %31, %40 : vector<24x384xf32>
    %42 = arith.maximumf %37, %41 : vector<24x384xf32>
    %c0_32 = arith.constant 0 : index
    %c0_33 = arith.constant 0 : index
    %43 = vector.load %arg7[%c0_32, %c0_33] : memref<1x384xf32, #tpu.memory_space<vmem>>, vector<1x384xf32>
    %44 = vector.broadcast %43 : vector<1x384xf32> to vector<24x384xf32>
    %45 = arith.addf %42, %44 : vector<24x384xf32>
    %cst_34 = arith.constant 0.000000e+00 : f32
    %46 = vector.broadcast %cst_34 : f32 to vector<24x384xf32>
    %47 = arith.maximumf %45, %46 : vector<24x384xf32>
    %48 = vector.shape_cast %47 : vector<24x384xf32> to vector<2x6x2x384xf32>
    %cst_35 = arith.constant dense<0xFF800000> : vector<2x6x384xf32>
    %49 = vector.multi_reduction <maximumf>, %48, %cst_35 [2] : vector<2x6x2x384xf32> to vector<2x6x384xf32>
    %50 = vector.extract_strided_slice %49 {offsets = [0, 0, 0], sizes = [2, 1, 384], strides = [1, 1, 1]} : vector<2x6x384xf32> to vector<2x1x384xf32>
    %51 = vector.shape_cast %50 : vector<2x1x384xf32> to vector<2x384xf32>
    %c0_36 = arith.constant 0 : index
    %c0_37 = arith.constant 0 : index
    %c0_38 = arith.constant 0 : index
    %52 = vector.load %arg8[%c0_36, %c0_37, %c0_38] : memref<6x384x128xf32, #tpu.memory_space<vmem>>, vector<1x384x128xf32>
    %53 = vector.shape_cast %52 : vector<1x384x128xf32> to vector<384x128xf32>
    %cst_39 = arith.constant dense<0.000000e+00> : vector<2x128xf32>
    %54 = tpu.matmul %51, %53, %cst_39 {dimension_numbers = #tpu.dot_dimension_numbers<[1], [0], [0], [1], [0, 0, 1, 1], [], []>} : vector<2x384xf32>, vector<384x128xf32>, vector<2x128xf32> -> vector<2x128xf32>
    %55 = vector.extract_strided_slice %49 {offsets = [0, 1, 0], sizes = [2, 1, 384], strides = [1, 1, 1]} : vector<2x6x384xf32> to vector<2x1x384xf32>
    %56 = vector.shape_cast %55 : vector<2x1x384xf32> to vector<2x384xf32>
    %c1_40 = arith.constant 1 : index
    %c0_41 = arith.constant 0 : index
    %c0_42 = arith.constant 0 : index
    %57 = vector.load %arg8[%c1_40, %c0_41, %c0_42] : memref<6x384x128xf32, #tpu.memory_space<vmem>>, vector<1x384x128xf32>
    %58 = vector.shape_cast %57 : vector<1x384x128xf32> to vector<384x128xf32>
    %cst_43 = arith.constant dense<0.000000e+00> : vector<2x128xf32>
    %59 = tpu.matmul %56, %58, %cst_43 {dimension_numbers = #tpu.dot_dimension_numbers<[1], [0], [0], [1], [0, 0, 1, 1], [], []>} : vector<2x384xf32>, vector<384x128xf32>, vector<2x128xf32> -> vector<2x128xf32>
    %60 = arith.addf %54, %59 : vector<2x128xf32>
    %61 = vector.extract_strided_slice %49 {offsets = [0, 2, 0], sizes = [2, 1, 384], strides = [1, 1, 1]} : vector<2x6x384xf32> to vector<2x1x384xf32>
    %62 = vector.shape_cast %61 : vector<2x1x384xf32> to vector<2x384xf32>
    %c2_44 = arith.constant 2 : index
    %c0_45 = arith.constant 0 : index
    %c0_46 = arith.constant 0 : index
    %63 = vector.load %arg8[%c2_44, %c0_45, %c0_46] : memref<6x384x128xf32, #tpu.memory_space<vmem>>, vector<1x384x128xf32>
    %64 = vector.shape_cast %63 : vector<1x384x128xf32> to vector<384x128xf32>
    %cst_47 = arith.constant dense<0.000000e+00> : vector<2x128xf32>
    %65 = tpu.matmul %62, %64, %cst_47 {dimension_numbers = #tpu.dot_dimension_numbers<[1], [0], [0], [1], [0, 0, 1, 1], [], []>} : vector<2x384xf32>, vector<384x128xf32>, vector<2x128xf32> -> vector<2x128xf32>
    %66 = arith.addf %60, %65 : vector<2x128xf32>
    %67 = vector.extract_strided_slice %49 {offsets = [0, 3, 0], sizes = [2, 1, 384], strides = [1, 1, 1]} : vector<2x6x384xf32> to vector<2x1x384xf32>
    %68 = vector.shape_cast %67 : vector<2x1x384xf32> to vector<2x384xf32>
    %c3 = arith.constant 3 : index
    %c0_48 = arith.constant 0 : index
    %c0_49 = arith.constant 0 : index
    %69 = vector.load %arg8[%c3, %c0_48, %c0_49] : memref<6x384x128xf32, #tpu.memory_space<vmem>>, vector<1x384x128xf32>
    %70 = vector.shape_cast %69 : vector<1x384x128xf32> to vector<384x128xf32>
    %cst_50 = arith.constant dense<0.000000e+00> : vector<2x128xf32>
    %71 = tpu.matmul %68, %70, %cst_50 {dimension_numbers = #tpu.dot_dimension_numbers<[1], [0], [0], [1], [0, 0, 1, 1], [], []>} : vector<2x384xf32>, vector<384x128xf32>, vector<2x128xf32> -> vector<2x128xf32>
    %72 = arith.addf %66, %71 : vector<2x128xf32>
    %73 = vector.extract_strided_slice %49 {offsets = [0, 4, 0], sizes = [2, 1, 384], strides = [1, 1, 1]} : vector<2x6x384xf32> to vector<2x1x384xf32>
    %74 = vector.shape_cast %73 : vector<2x1x384xf32> to vector<2x384xf32>
    %c4 = arith.constant 4 : index
    %c0_51 = arith.constant 0 : index
    %c0_52 = arith.constant 0 : index
    %75 = vector.load %arg8[%c4, %c0_51, %c0_52] : memref<6x384x128xf32, #tpu.memory_space<vmem>>, vector<1x384x128xf32>
    %76 = vector.shape_cast %75 : vector<1x384x128xf32> to vector<384x128xf32>
    %cst_53 = arith.constant dense<0.000000e+00> : vector<2x128xf32>
    %77 = tpu.matmul %74, %76, %cst_53 {dimension_numbers = #tpu.dot_dimension_numbers<[1], [0], [0], [1], [0, 0, 1, 1], [], []>} : vector<2x384xf32>, vector<384x128xf32>, vector<2x128xf32> -> vector<2x128xf32>
    %78 = arith.addf %72, %77 : vector<2x128xf32>
    %79 = vector.extract_strided_slice %49 {offsets = [0, 5, 0], sizes = [2, 1, 384], strides = [1, 1, 1]} : vector<2x6x384xf32> to vector<2x1x384xf32>
    %80 = vector.shape_cast %79 : vector<2x1x384xf32> to vector<2x384xf32>
    %c5 = arith.constant 5 : index
    %c0_54 = arith.constant 0 : index
    %c0_55 = arith.constant 0 : index
    %81 = vector.load %arg8[%c5, %c0_54, %c0_55] : memref<6x384x128xf32, #tpu.memory_space<vmem>>, vector<1x384x128xf32>
    %82 = vector.shape_cast %81 : vector<1x384x128xf32> to vector<384x128xf32>
    %cst_56 = arith.constant dense<0.000000e+00> : vector<2x128xf32>
    %83 = tpu.matmul %80, %82, %cst_56 {dimension_numbers = #tpu.dot_dimension_numbers<[1], [0], [0], [1], [0, 0, 1, 1], [], []>} : vector<2x384xf32>, vector<384x128xf32>, vector<2x128xf32> -> vector<2x128xf32>
    %84 = arith.addf %78, %83 : vector<2x128xf32>
    %c0_57 = arith.constant 0 : index
    %c0_58 = arith.constant 0 : index
    %85 = vector.load %arg9[%c0_57, %c0_58] : memref<1x128xf32, #tpu.memory_space<vmem>>, vector<1x128xf32>
    %86 = vector.broadcast %85 : vector<1x128xf32> to vector<2x128xf32>
    %87 = arith.addf %84, %86 : vector<2x128xf32>
    %c0_59 = arith.constant 0 : index
    %c0_60 = arith.constant 0 : index
    %88 = vector.load %arg10[%c0_59, %c0_60] : memref<2x128xf32, #tpu.memory_space<vmem>>, vector<2x128xf32>
    tpu.vector_store %arg10[%c0_59, %c0_60], %87 {strides = array<i32>} : memref<2x128xf32, #tpu.memory_space<vmem>>, vector<2x128xf32>,
    return
  }
  func.func @transform_0(%arg0: i32) -> (i32, i32) {
    %c0_i32 = arith.constant 0 : i32
    %c0_i32_0 = arith.constant 0 : i32
    return %arg0, %c0_i32 : i32, i32
  }
  func.func @transform_1(%arg0: i32) -> (i32, i32) {
    %c0_i32 = arith.constant 0 : i32
    %c0_i32_0 = arith.constant 0 : i32
    %c0_i32_1 = arith.constant 0 : i32
    return %c0_i32, %c0_i32_0 : i32, i32
  }
  func.func @transform_2(%arg0: i32) -> (i32, i32) {
    %c0_i32 = arith.constant 0 : i32
    %c0_i32_0 = arith.constant 0 : i32
    %c0_i32_1 = arith.constant 0 : i32
    return %c0_i32, %c0_i32_0 : i32, i32
  }
  func.func @transform_3(%arg0: i32) -> (i32, i32) {
    %c0_i32 = arith.constant 0 : i32
    %c0_i32_0 = arith.constant 0 : i32
    %c0_i32_1 = arith.constant 0 : i32
    return %c0_i32, %c0_i32_0 : i32, i32
  }
  func.func @transform_4(%arg0: i32) -> (i32, i32, i32) {
    %c0_i32 = arith.constant 0 : i32
    %c0_i32_0 = arith.constant 0 : i32
    %c0_i32_1 = arith.constant 0 : i32
    %c0_i32_2 = arith.constant 0 : i32
    return %c0_i32, %c0_i32_0, %c0_i32_1 : i32, i32, i32
  }
  func.func @transform_5(%arg0: i32) -> (i32, i32, i32) {
    %c0_i32 = arith.constant 0 : i32
    %c0_i32_0 = arith.constant 0 : i32
    %c0_i32_1 = arith.constant 0 : i32
    %c0_i32_2 = arith.constant 0 : i32
    return %c0_i32, %c0_i32_0, %c0_i32_1 : i32, i32, i32
  }
  func.func @transform_6(%arg0: i32) -> (i32, i32) {
    %c0_i32 = arith.constant 0 : i32
    %c0_i32_0 = arith.constant 0 : i32
    %c0_i32_1 = arith.constant 0 : i32
    return %c0_i32, %c0_i32_0 : i32, i32
  }
  func.func @transform_7(%arg0: i32) -> (i32, i32, i32) {
    %c0_i32 = arith.constant 0 : i32
    %c0_i32_0 = arith.constant 0 : i32
    %c0_i32_1 = arith.constant 0 : i32
    %c0_i32_2 = arith.constant 0 : i32
    return %c0_i32, %c0_i32_0, %c0_i32_1 : i32, i32, i32
  }
  func.func @transform_8(%arg0: i32) -> (i32, i32) {
    %c0_i32 = arith.constant 0 : i32
    %c0_i32_0 = arith.constant 0 : i32
    %c0_i32_1 = arith.constant 0 : i32
    return %c0_i32, %c0_i32_0 : i32, i32
  }
  func.func @transform_9(%arg0: i32) -> (i32, i32) {
    %c0_i32 = arith.constant 0 : i32
    %c0_i32_0 = arith.constant 0 : i32
    return %arg0, %c0_i32 : i32, i32
  }
}

</mosaic_0001>

<llo_original>
// kernel: tpu_custom_call.1
$region0: #{tpu_custom_call.1}
  #allocation0 [shape = 'u32[]', space=smem, size = 0x4, offset = 0x4, fixed_abs, tag = 'smem constant byte address 0x4 - core index']
  #allocation1 [shape = 'u32[144,128]{1,0:T(1,128)}', space=vmem, size = 0x12000, scoped, tag = 'internal scratch']
  %s0 = inlined_call_operand.hbm [shape: bf16[56,84], index: 0, kind: input, shape index: {}]
  %s1 = inlined_call_operand.hbm [shape: bf16[84,448], index: 1, kind: input, shape index: {}]
  %s2 = inlined_call_operand.hbm [shape: bf16[84,448], index: 2, kind: input, shape index: {}]
  %s3 = inlined_call_operand.hbm [shape: f32[1,448], index: 3, kind: input, shape index: {}]
  %s4 = inlined_call_operand.hbm [shape: bf16[3,448,384], index: 4, kind: input, shape index: {}]
  %s5 = inlined_call_operand.hbm [shape: bf16[3,448,384], index: 5, kind: input, shape index: {}]
  %s6 = inlined_call_operand.hbm [shape: f32[1,384], index: 6, kind: input, shape index: {}]
  %s7 = inlined_call_operand.hbm [shape: f32[6,384,128], index: 7, kind: input, shape index: {}]
  %s8 = inlined_call_operand.hbm [shape: f32[1,128], index: 8, kind: input, shape index: {}]
  %s9 = inlined_call_operand.hbm [shape: f32[2,128], index: 9, kind: output, shape index: {}]
  %s10 = sld [smem:[#allocation0]]
  $region82: #{tpu_custom_call.1} parent=0
    _
  %s12 = ssub.s32 1, %s10
  %s13 = scalar_select 0, %s12, %s10
  $region1: #{tpu_custom_call.1} parent=0
    #allocation2 [shape = 'u8[14336]{0}', space=vmem, size = 0x3800, scoped, tag = 'input window, operand 0, single buffered']
    #allocation3 [shape = 's32[1]{0}', space=sflag, size = 0x4, scoped, tag = 'scoped memory for tpu_custom_call.1']
    #allocation4 [shape = 's32[1]{0}', space=sflag, size = 0x4, scoped, tag = 'scoped memory for tpu_custom_call.1']
    #allocation5 [shape = 'u8[90112]{0}', space=vmem, size = 0x16000, scoped, tag = 'input window, operand 1, single buffered']
    #allocation6 [shape = 's32[1]{0}', space=sflag, size = 0x4, scoped, tag = 'scoped memory for tpu_custom_call.1']
    #allocation7 [shape = 'u8[90112]{0}', space=vmem, size = 0x16000, scoped, tag = 'input window, operand 2, single buffered']
    #allocation8 [shape = 'u8[2048]{0}', space=vmem, size = 0x800, scoped, tag = 'input window, operand 3, single buffered']
    #allocation9 [shape = 's32[1]{0}', space=sflag, size = 0x4, scoped, tag = 'scoped memory for tpu_custom_call.1']
    #allocation10 [shape = 'u8[1032192]{0}', space=vmem, size = 0xfc000, scoped, tag = 'input window, operand 4, single buffered']
    #allocation11 [shape = 'u8[1032192]{0}', space=vmem, size = 0xfc000, scoped, tag = 'input window, operand 5, single buffered']
    #allocation12 [shape = 's32[1]{0}', space=sflag, size = 0x4, scoped, tag = 'scoped memory for tpu_custom_call.1']
    #allocation13 [shape = 'u8[1536]{0}', space=vmem, size = 0x800, scoped, tag = 'input window, operand 6, single buffered']
    #allocation14 [shape = 'u8[1179648]{0}', space=vmem, size = 0x120000, scoped, tag = 'input window, operand 7, single buffered']
    #allocation15 [shape = 's32[1]{0}', space=sflag, size = 0x4, scoped, tag = 'scoped memory for tpu_custom_call.1']
    #allocation16 [shape = 'u8[512]{0}', space=vmem, size = 0x400, scoped, tag = 'input window, operand 8, single buffered']
    #allocation17 [shape = 'u8[1024]{0}', space=vmem, size = 0x400, scoped, tag = 'output window, operand 0, single buffered']
    %14 = vsyncpa [#allocation3], 0
    %15 = vsyncpa [#allocation6], 0
    %16 = vsyncpa [#allocation9], 0
    %17 = vsyncpa [#allocation12], 0
    %18 = vsyncpa [#allocation15], 0
    %19 = vsyncpa [#allocation4], 0
    // Predicated region
    $region2: #{tpu_custom_call.1} parent=1 // pred_check
      _
    $region3: #{tpu_custom_call.1} parent=1 // pred_check_branch
      %21 = sbr.rel (0) target = $region5
    $region4: #{tpu_custom_call.1} parent=1 // pred_region
      %s23 = ssub.s32 448, 448
      %24 = vsyncadd [#allocation3], %s23
      %s25 = sshll.u32 [#allocation2], 4
      %s26 = int_to_ptr.vmem [resolvable:$true] %s25
      %31 = dma.hbm_to_vmem [thread:$0]  %s0, 448, %s26, [#allocation3], 64, 64, 4
    $region5: #{tpu_custom_call.1} parent=1 // pred_fallthru
      _
    // Predicated region
    $region6: #{tpu_custom_call.1} parent=1 // pred_check
      _
    $region7: #{tpu_custom_call.1} parent=1 // pred_check_branch
      %33 = sbr.rel (0) target = $region9
    $region8: #{tpu_custom_call.1} parent=1 // pred_region
      %s35 = ssub.s32 2816, 2816
      %36 = vsyncadd [#allocation6], %s35
      %s37 = sshll.u32 [#allocation5], 4
      %s38 = int_to_ptr.vmem [resolvable:$true] %s37
      %43 = dma.hbm_to_vmem [thread:$0]  %s1, 2816, %s38, [#allocation6], 256, 256, 16
    $region9: #{tpu_custom_call.1} parent=1 // pred_fallthru
      _
    // Predicated region
    $region10: #{tpu_custom_call.1} parent=1 // pred_check
      _
    $region11: #{tpu_custom_call.1} parent=1 // pred_check_branch
      %45 = sbr.rel (0) target = $region13
    $region12: #{tpu_custom_call.1} parent=1 // pred_region
      %s47 = ssub.s32 2816, 2816
      %48 = vsyncadd [#allocation6], %s47
      %s49 = sshll.u32 [#allocation7], 4
      %s50 = int_to_ptr.vmem [resolvable:$true] %s49
      %55 = dma.hbm_to_vmem [thread:$0]  %s2, 2816, %s50, [#allocation6], 256, 256, 16
    $region13: #{tpu_custom_call.1} parent=1 // pred_fallthru
      _
    // Predicated region
    $region14: #{tpu_custom_call.1} parent=1 // pred_check
      _
    $region15: #{tpu_custom_call.1} parent=1 // pred_check_branch
      %57 = sbr.rel (0) target = $region17
    $region16: #{tpu_custom_call.1} parent=1 // pred_region
      %s59 = ssub.s32 64, 64
      %60 = vsyncadd [#allocation9], %s59
      %s62 = sshll.u32 [#allocation8], 4
      %s63 = int_to_ptr.vmem [resolvable:$true] %s62
      %65 = dma.hbm_to_vmem [thread:$0]  %s3, 64, %s63, [#allocation9]
    $region17: #{tpu_custom_call.1} parent=1 // pred_fallthru
      _
    // Predicated region
    $region18: #{tpu_custom_call.1} parent=1 // pred_check
      _
    $region19: #{tpu_custom_call.1} parent=1 // pred_check_branch
      %67 = sbr.rel (0) target = $region21
    $region20: #{tpu_custom_call.1} parent=1 // pred_region
      %s69 = ssub.s32 32256, 32256
      %70 = vsyncadd [#allocation9], %s69
      %s71 = sshll.u32 [#allocation10], 4
      %s72 = int_to_ptr.vmem [resolvable:$true] %s71
      %77 = dma.hbm_to_vmem [thread:$0]  %s4, 32256, %s72, [#allocation9], 192, 192, 12
    $region21: #{tpu_custom_call.1} parent=1 // pred_fallthru
      _
    // Predicated region
    $region22: #{tpu_custom_call.1} parent=1 // pred_check
      _
    $region23: #{tpu_custom_call.1} parent=1 // pred_check_branch
      %79 = sbr.rel (0) target = $region25
    $region24: #{tpu_custom_call.1} parent=1 // pred_region
      %s81 = ssub.s32 32256, 32256
      %82 = vsyncadd [#allocation12], %s81
      %s83 = sshll.u32 [#allocation11], 4
      %s84 = int_to_ptr.vmem [resolvable:$true] %s83
      %89 = dma.hbm_to_vmem [thread:$0]  %s5, 32256, %s84, [#allocation12], 192, 192, 12
    $region25: #{tpu_custom_call.1} parent=1 // pred_fallthru
      _
    // Predicated region
    $region26: #{tpu_custom_call.1} parent=1 // pred_check
      _
    $region27: #{tpu_custom_call.1} parent=1 // pred_check_branch
      %91 = sbr.rel (0) target = $region29
    $region28: #{tpu_custom_call.1} parent=1 // pred_region
      %s93 = ssub.s32 48, 48
      %94 = vsyncadd [#allocation12], %s93
      %s96 = sshll.u32 [#allocation13], 4
      %s97 = int_to_ptr.vmem [resolvable:$true] %s96
      %99 = dma.hbm_to_vmem [thread:$0]  %s6, 48, %s97, [#allocation12]
    $region29: #{tpu_custom_call.1} parent=1 // pred_fallthru
      _
    // Predicated region
    $region30: #{tpu_custom_call.1} parent=1 // pred_check
      _
    $region31: #{tpu_custom_call.1} parent=1 // pred_check_branch
      %101 = sbr.rel (0) target = $region33
    $region32: #{tpu_custom_call.1} parent=1 // pred_region
      %s103 = ssub.s32 36864, 36864
      %104 = vsyncadd [#allocation15], %s103
      %s105 = sshll.u32 [#allocation14], 4
      %s106 = int_to_ptr.vmem [resolvable:$true] %s105
      %111 = dma.hbm_to_vmem [thread:$0]  %s7, 36864, %s106, [#allocation15], 128, 128, 8
    $region33: #{tpu_custom_call.1} parent=1 // pred_fallthru
      _
    // Predicated region
    $region34: #{tpu_custom_call.1} parent=1 // pred_check
      _
    $region35: #{tpu_custom_call.1} parent=1 // pred_check_branch
      %113 = sbr.rel (0) target = $region37
    $region36: #{tpu_custom_call.1} parent=1 // pred_region
      %s115 = ssub.s32 16, 16
      %116 = vsyncadd [#allocation15], %s115
      %s118 = sshll.u32 [#allocation16], 4
      %s119 = int_to_ptr.vmem [resolvable:$true] %s118
      %121 = dma.hbm_to_vmem [thread:$0]  %s8, 16, %s119, [#allocation15]
    $region37: #{tpu_custom_call.1} parent=1 // pred_fallthru
      _
    // Predicated region
    $region38: #{tpu_custom_call.1} parent=1 // pred_check
      _
    $region39: #{tpu_custom_call.1} parent=1 // pred_check_branch
      %123 = sbr.rel (0) target = $region41
    $region40: #{tpu_custom_call.1} parent=1 // pred_region
      %124 = dma.done [#allocation3], 448
    $region41: #{tpu_custom_call.1} parent=1 // pred_fallthru
      _
    // Predicated region
    $region42: #{tpu_custom_call.1} parent=1 // pred_check
      _
    $region43: #{tpu_custom_call.1} parent=1 // pred_check_branch
      %126 = sbr.rel (0) target = $region45
    $region44: #{tpu_custom_call.1} parent=1 // pred_region
      %127 = dma.done [#allocation6], 2816
    $region45: #{tpu_custom_call.1} parent=1 // pred_fallthru
      _
    // Predicated region
    $region46: #{tpu_custom_call.1} parent=1 // pred_check
      _
    $region47: #{tpu_custom_call.1} parent=1 // pred_check_branch
      %129 = sbr.rel (0) target = $region49
    $region48: #{tpu_custom_call.1} parent=1 // pred_region
      %130 = dma.done [#allocation6], 2816
    $region49: #{tpu_custom_call.1} parent=1 // pred_fallthru
      _
    // Predicated region
    $region50: #{tpu_custom_call.1} parent=1 // pred_check
      _
    $region51: #{tpu_custom_call.1} parent=1 // pred_check_branch
      %132 = sbr.rel (0) target = $region53
    $region52: #{tpu_custom_call.1} parent=1 // pred_region
      %133 = dma.done [#allocation9], 64
    $region53: #{tpu_custom_call.1} parent=1 // pred_fallthru
      _
    // Predicated region
    $region54: #{tpu_custom_call.1} parent=1 // pred_check
      _
    $region55: #{tpu_custom_call.1} parent=1 // pred_check_branch
      %135 = sbr.rel (0) target = $region57
    $region56: #{tpu_custom_call.1} parent=1 // pred_region
      %136 = dma.done [#allocation9], 32256
    $region57: #{tpu_custom_call.1} parent=1 // pred_fallthru
      _
    // Predicated region
    $region58: #{tpu_custom_call.1} parent=1 // pred_check
      _
    $region59: #{tpu_custom_call.1} parent=1 // pred_check_branch
      %138 = sbr.rel (0) target = $region61
    $region60: #{tpu_custom_call.1} parent=1 // pred_region
      %139 = dma.done [#allocation12], 32256
    $region61: #{tpu_custom_call.1} parent=1 // pred_fallthru
      _
    // Predicated region
    $region62: #{tpu_custom_call.1} parent=1 // pred_check
      _
    $region63: #{tpu_custom_call.1} parent=1 // pred_check_branch
      %141 = sbr.rel (0) target = $region65
    $region64: #{tpu_custom_call.1} parent=1 // pred_region
      %142 = dma.done [#allocation12], 48
    $region65: #{tpu_custom_call.1} parent=1 // pred_fallthru
      _
    // Predicated region
    $region66: #{tpu_custom_call.1} parent=1 // pred_check
      _
    $region67: #{tpu_custom_call.1} parent=1 // pred_check_branch
      %144 = sbr.rel (0) target = $region69
    $region68: #{tpu_custom_call.1} parent=1 // pred_region
      %145 = dma.done [#allocation15], 36864
    $region69: #{tpu_custom_call.1} parent=1 // pred_fallthru
      _
    // Predicated region
    $region70: #{tpu_custom_call.1} parent=1 // pred_check
      _
    $region71: #{tpu_custom_call.1} parent=1 // pred_check_branch
      %147 = sbr.rel (0) target = $region73
    $region72: #{tpu_custom_call.1} parent=1 // pred_region
      %148 = dma.done [#allocation15], 16
    $region73: #{tpu_custom_call.1} parent=1 // pred_fallthru
      _
    %v150 = vld [vmem:[#allocation2] sm:$0xf]
    %v151 = vld [vmem:[#allocation2 + $0x4] sm:$0xf]
    %v152 = vld [vmem:[#allocation2 + $0x8] sm:$0xf]
    %v153 = vld [vmem:[#allocation2 + $0xc] sm:$0xf]
    %v154 = vld [vmem:[#allocation2 + $0x10] sm:$0xf]
    %v155 = vld [vmem:[#allocation2 + $0x14] sm:$0xf]
    %v156 = vld [vmem:[#allocation2 + $0x18] sm:$0xf]
    %v157 = vld [vmem:[#allocation5] sm:$0xff]
    %v158 = vld [vmem:[#allocation5 + $0x8] sm:$0xff]
    %v159 = vld [vmem:[#allocation5 + $0x10] sm:$0xff]
    %v160 = vld [vmem:[#allocation5 + $0x18] sm:$0xff]
    %v161 = vld [vmem:[#allocation5 + $0x20] sm:$0xff]
    %v162 = vld [vmem:[#allocation5 + $0x28] sm:$0xff]
    %v163 = vld [vmem:[#allocation5 + $0x30] sm:$0xff]
    %v164 = vld [vmem:[#allocation5 + $0x38] sm:$0xff]
    %v165 = vld [vmem:[#allocation5 + $0x40] sm:$0xff]
    %v166 = vld [vmem:[#allocation5 + $0x48] sm:$0xff]
    %v167 = vld [vmem:[#allocation5 + $0x50] sm:$0xff]
    %v168 = vld [vmem:[#allocation5 + $0x58] sm:$0xff]
    %v169 = vld [vmem:[#allocation5 + $0x60] sm:$0xff]
    %v170 = vld [vmem:[#allocation5 + $0x68] sm:$0xff]
    %v171 = vld [vmem:[#allocation5 + $0x70] sm:$0xff]
    %v172 = vld [vmem:[#allocation5 + $0x78] sm:$0xff]
    %v173 = vld [vmem:[#allocation5 + $0x80] sm:$0xff]
    %v174 = vld [vmem:[#allocation5 + $0x88] sm:$0xff]
    %v175 = vld [vmem:[#allocation5 + $0x90] sm:$0xff]
    %v176 = vld [vmem:[#allocation5 + $0x98] sm:$0xff]
    %v177 = vld [vmem:[#allocation5 + $0xa0] sm:$0x33]
    %v178 = vld [vmem:[#allocation5 + $0xa8] sm:$0x33]
    %v186 = vunpack.c.l.b16 %v150
    %v187 = vunpack.c.l.b16 %v151
    %v188 = vunpack.c.l.b16 %v152
    %v189 = vunpack.c.l.b16 %v153
    %v190 = vunpack.c.l.b16 %v154
    %v191 = vunpack.c.l.b16 %v155
    %v192 = vunpack.c.l.b16 %v156
    %v193 = vpack.c.b16 %v187, %v186
    %v194 = vpack.c.b16 %v189, %v188
    %v195 = vpack.c.b16 %v191, %v190
    %v196 = vpack.c.b16 %v192, %v192
    %v219 = vunpack.c.l.b16 %v157
    %v220 = vunpack.c.h.b16 %v157
    %v221 = vunpack.c.l.b16 %v158
    %v222 = vunpack.c.h.b16 %v158
    %v223 = vunpack.c.l.b16 %v159
    %v224 = vunpack.c.h.b16 %v159
    %v225 = vunpack.c.l.b16 %v160
    %v226 = vunpack.c.h.b16 %v160
    %v227 = vunpack.c.l.b16 %v161
    %v228 = vunpack.c.h.b16 %v161
    %v229 = vunpack.c.l.b16 %v162
    %v230 = vunpack.c.h.b16 %v162
    %v231 = vunpack.c.l.b16 %v163
    %v232 = vunpack.c.h.b16 %v163
    %v233 = vunpack.c.l.b16 %v164
    %v234 = vunpack.c.h.b16 %v164
    %v235 = vunpack.c.l.b16 %v165
    %v236 = vunpack.c.h.b16 %v165
    %v237 = vunpack.c.l.b16 %v166
    %v238 = vunpack.c.h.b16 %v166
    %v239 = vunpack.c.l.b16 %v167
    %v240 = vunpack.c.h.b16 %v167
    %v241 = vunpack.c.l.b16 %v168
    %v242 = vunpack.c.h.b16 %v168
    %v243 = vunpack.c.l.b16 %v169
    %v244 = vunpack.c.h.b16 %v169
    %v245 = vunpack.c.l.b16 %v170
    %v246 = vunpack.c.h.b16 %v170
    %v247 = vunpack.c.l.b16 %v171
    %v248 = vunpack.c.h.b16 %v171
    %v249 = vunpack.c.l.b16 %v172
    %v250 = vunpack.c.h.b16 %v172
    %v251 = vunpack.c.l.b16 %v173
    %v252 = vunpack.c.h.b16 %v173
    %v253 = vunpack.c.l.b16 %v174
    %v254 = vunpack.c.h.b16 %v174
    %v255 = vunpack.c.l.b16 %v175
    %v256 = vunpack.c.h.b16 %v175
    %v257 = vunpack.c.l.b16 %v176
    %v258 = vunpack.c.h.b16 %v176
    %v259 = vunpack.c.l.b16 %v177
    %v260 = vunpack.c.h.b16 %v177
    %v261 = vunpack.c.l.b16 %v178
    %v262 = vunpack.c.h.b16 %v178
    %v263 = vpack.c.b16 %v223, %v219
    %v264 = vpack.c.b16 %v224, %v220
    %v265 = vpack.c.b16 %v225, %v221
    %v266 = vpack.c.b16 %v226, %v222
    %v267 = vpack.c.b16 %v231, %v227
    %v268 = vpack.c.b16 %v232, %v228
    %v269 = vpack.c.b16 %v233, %v229
    %v270 = vpack.c.b16 %v234, %v230
    %v271 = vpack.c.b16 %v239, %v235
    %v272 = vpack.c.b16 %v240, %v236
    %v273 = vpack.c.b16 %v241, %v237
    %v274 = vpack.c.b16 %v242, %v238
    %v275 = vpack.c.b16 %v247, %v243
    %v276 = vpack.c.b16 %v248, %v244
    %v277 = vpack.c.b16 %v249, %v245
    %v278 = vpack.c.b16 %v250, %v246
    %v279 = vpack.c.b16 %v255, %v251
    %v280 = vpack.c.b16 %v256, %v252
    %v281 = vpack.c.b16 %v257, %v253
    %v282 = vpack.c.b16 %v258, %v254
    %v283 = vpack.c.b16 %v259, %v259
    %v284 = vpack.c.b16 %v260, %v260
    %v285 = vpack.c.b16 %v261, %v261
    %v286 = vpack.c.b16 %v262, %v262
    %vm307 = vcmask 687104
    %v309 = vsel %vm307, %v193, 0
    %v312 = vsel %vm307, %v194, 0
    %v315 = vsel %vm307, %v195, 0
    %v318 = vsel %vm307, %v196, 0
    %vm320 = vcmask 1041408
    %v322 = vsel %vm320, %v283, 0
    %v325 = vsel %vm320, %v284, 0
    %v328 = vsel %vm320, %v285, 0
    %v331 = vsel %vm320, %v286, 0
    %333 = vmatprep.subr.bf16.mxu0 %v264
    %334 = vmatpush1.bf16.msra.mxu0 %v263
    %335 = vmatprep.subr.bf16.mxu0 %v268
    %336 = vmatpush1.bf16.msra.mxu0 %v267
    %337 = vmatprep.subr.bf16.mxu0 %v272
    %338 = vmatpush1.bf16.msra.mxu0 %v271
    %339 = vmatprep.subr.bf16.mxu0 %v276
    %340 = vmatpush1.bf16.msra.mxu0 %v275
    %341 = vmatprep.subr.bf16.mxu0 %v280
    %342 = vmatpush1.bf16.msra.mxu0 %v279
    %343 = vmatprep.subr.bf16.mxu0 %v325
    %344 = vmatpush1.bf16.msra.mxu0 %v322
    %345 = vmatprep.subr.bf16.mxu0 0
    %346 = vmatpush1.bf16.msra.mxu0 0
    %347 = vmatprep.subr.bf16.mxu0 0
    %348 = vmatpush1.bf16.msra.mxu0 0
    %349 = vmatprep.subr.bf16.mxu0 0
    %350 = vmatpush1.bf16.msra.mxu0 0
    %351 = vmatprep.subr.bf16.mxu0 0
    %352 = vmatpush1.bf16.msra.mxu0 0
    %353 = vmatprep.subr.bf16.mxu0 0
    %354 = vmatpush1.bf16.msra.mxu0 0
    %355 = vmatprep.subr.bf16.mxu0 0
    %356 = vmatpush1.bf16.msra.mxu0 0
    %357 = vmatprep.subr.bf16.mxu0 0
    %358 = vmatpush1.bf16.msra.mxu0 0
    %359 = vmatprep.subr.bf16.mxu0 0
    %360 = vmatpush1.bf16.msra.mxu0 0
    %361 = vmatprep.subr.bf16.mxu0 0
    %362 = vmatpush1.bf16.msra.mxu0 0
    %363 = vmatprep.subr.bf16.mxu0 0
    %364 = vmatpush1.bf16.msra.mxu0 0
    %365 = vmatprep.mubr.bf16.mxu0 0
    %366 = vmatmul.mubr.bf16.gmra.mrb[0].mxu0 %v309
    %v367 = vpop.f32.mrb[0].mxu0
    %v368 = vadd.f32 0.0, %v367
    %v369 = vpop.f32.mrb[0].mxu0
    %v370 = vadd.f32 0.0, %v369
    %v371 = vpop.f32.mrb[0].mxu0
    %v372 = vadd.f32 0.0, %v371
    %v373 = vpop.f32.mrb[0].mxu0
    %v374 = vadd.f32 0.0, %v373
    %375 = vmatprep.mubr.bf16.mxu0 0
    %376 = vmatmul.mubr.bf16.gmra.mrb[0].mxu0 %v312
    %v377 = vpop.f32.mrb[0].mxu0
    %v378 = vadd.f32 0.0, %v377
    %v379 = vpop.f32.mrb[0].mxu0
    %v380 = vadd.f32 0.0, %v379
    %v381 = vpop.f32.mrb[0].mxu0
    %v382 = vadd.f32 0.0, %v381
    %v383 = vpop.f32.mrb[0].mxu0
    %v384 = vadd.f32 0.0, %v383
    %385 = vmatprep.mubr.bf16.mxu0 0
    %386 = vmatmul.mubr.bf16.gmra.mrb[0].mxu0 %v315
    %v387 = vpop.f32.mrb[0].mxu0
    %v388 = vadd.f32 0.0, %v387
    %v389 = vpop.f32.mrb[0].mxu0
    %v390 = vadd.f32 0.0, %v389
    %v391 = vpop.f32.mrb[0].mxu0
    %v392 = vadd.f32 0.0, %v391
    %v393 = vpop.f32.mrb[0].mxu0
    %v394 = vadd.f32 0.0, %v393
    %395 = vmatprep.mubr.bf16.mxu0 0
    %396 = vmatmul.mubr.bf16.gmra.mrb[0].mxu0 %v318
    %v397 = vpop.f32.mrb[0].mxu0
    %v398 = vadd.f32 0.0, %v397
    %v399 = vpop.f32.mrb[0].mxu0
    %v400 = vadd.f32 0.0, %v399
    %v401 = vpop.f32.mrb[0].mxu0
    %v402 = vpop.f32.mrb[0].mxu0
    %403 = vdwg.mxu0
    %404 = vmatprep.subr.bf16.mxu0 %v266
    %405 = vmatpush1.bf16.msra.mxu0 %v265
    %406 = vmatprep.subr.bf16.mxu0 %v270
    %407 = vmatpush1.bf16.msra.mxu0 %v269
    %408 = vmatprep.subr.bf16.mxu0 %v274
    %409 = vmatpush1.bf16.msra.mxu0 %v273
    %410 = vmatprep.subr.bf16.mxu0 %v278
    %411 = vmatpush1.bf16.msra.mxu0 %v277
    %412 = vmatprep.subr.bf16.mxu0 %v282
    %413 = vmatpush1.bf16.msra.mxu0 %v281
    %414 = vmatprep.subr.bf16.mxu0 %v331
    %415 = vmatpush1.bf16.msra.mxu0 %v328
    %416 = vmatprep.subr.bf16.mxu0 0
    %417 = vmatpush1.bf16.msra.mxu0 0
    %418 = vmatprep.subr.bf16.mxu0 0
    %419 = vmatpush1.bf16.msra.mxu0 0
    %420 = vmatprep.subr.bf16.mxu0 0
    %421 = vmatpush1.bf16.msra.mxu0 0
    %422 = vmatprep.subr.bf16.mxu0 0
    %423 = vmatpush1.bf16.msra.mxu0 0
    %424 = vmatprep.subr.bf16.mxu0 0
    %425 = vmatpush1.bf16.msra.mxu0 0
    %426 = vmatprep.subr.bf16.mxu0 0
    %427 = vmatpush1.bf16.msra.mxu0 0
    %428 = vmatprep.subr.bf16.mxu0 0
    %429 = vmatpush1.bf16.msra.mxu0 0
    %430 = vmatprep.subr.bf16.mxu0 0
    %431 = vmatpush1.bf16.msra.mxu0 0
    %432 = vmatprep.subr.bf16.mxu0 0
    %433 = vmatpush1.bf16.msra.mxu0 0
    %434 = vmatprep.subr.bf16.mxu0 0
    %435 = vmatpush1.bf16.msra.mxu0 0
    %436 = vmatprep.mubr.bf16.mxu0 0
    %437 = vmatmul.mubr.bf16.gmra.mrb[0].mxu0 %v309
    %v438 = vpop.f32.mrb[0].mxu0
    %v439 = vadd.f32 0.0, %v438
    %v440 = vpop.f32.mrb[0].mxu0
    %v441 = vadd.f32 0.0, %v440
    %v442 = vpop.f32.mrb[0].mxu0
    %v443 = vadd.f32 0.0, %v442
    %v444 = vpop.f32.mrb[0].mxu0
    %v445 = vadd.f32 0.0, %v444
    %446 = vmatprep.mubr.bf16.mxu0 0
    %447 = vmatmul.mubr.bf16.gmra.mrb[0].mxu0 %v312
    %v448 = vpop.f32.mrb[0].mxu0
    %v449 = vadd.f32 0.0, %v448
    %v450 = vpop.f32.mrb[0].mxu0
    %v451 = vadd.f32 0.0, %v450
    %v452 = vpop.f32.mrb[0].mxu0
    %v453 = vadd.f32 0.0, %v452
    %v454 = vpop.f32.mrb[0].mxu0
    %v455 = vadd.f32 0.0, %v454
    %456 = vmatprep.mubr.bf16.mxu0 0
    %457 = vmatmul.mubr.bf16.gmra.mrb[0].mxu0 %v315
    %v458 = vpop.f32.mrb[0].mxu0
    %v459 = vadd.f32 0.0, %v458
    %v460 = vpop.f32.mrb[0].mxu0
    %v461 = vadd.f32 0.0, %v460
    %v462 = vpop.f32.mrb[0].mxu0
    %v463 = vadd.f32 0.0, %v462
    %v464 = vpop.f32.mrb[0].mxu0
    %v465 = vadd.f32 0.0, %v464
    %466 = vmatprep.mubr.bf16.mxu0 0
    %467 = vmatmul.mubr.bf16.gmra.mrb[0].mxu0 %v318
    %v468 = vpop.f32.mrb[0].mxu0
    %v469 = vadd.f32 0.0, %v468
    %v470 = vpop.f32.mrb[0].mxu0
    %v471 = vadd.f32 0.0, %v470
    %v472 = vpop.f32.mrb[0].mxu0
    %v473 = vpop.f32.mrb[0].mxu0
    %474 = vdwg.mxu0
    %v475 = vld [vmem:[#allocation7] sm:$0xff]
    %v476 = vld [vmem:[#allocation7 + $0x8] sm:$0xff]
    %v477 = vld [vmem:[#allocation7 + $0x10] sm:$0xff]
    %v478 = vld [vmem:[#allocation7 + $0x18] sm:$0xff]
    %v479 = vld [vmem:[#allocation7 + $0x20] sm:$0xff]
    %v480 = vld [vmem:[#allocation7 + $0x28] sm:$0xff]
    %v481 = vld [vmem:[#allocation7 + $0x30] sm:$0xff]
    %v482 = vld [vmem:[#allocation7 + $0x38] sm:$0xff]
    %v483 = vld [vmem:[#allocation7 + $0x40] sm:$0xff]
    %v484 = vld [vmem:[#allocation7 + $0x48] sm:$0xff]
    %v485 = vld [vmem:[#allocation7 + $0x50] sm:$0xff]
    %v486 = vld [vmem:[#allocation7 + $0x58] sm:$0xff]
    %v487 = vld [vmem:[#allocation7 + $0x60] sm:$0xff]
    %v488 = vld [vmem:[#allocation7 + $0x68] sm:$0xff]
    %v489 = vld [vmem:[#allocation7 + $0x70] sm:$0xff]
    %v490 = vld [vmem:[#allocation7 + $0x78] sm:$0xff]
    %v491 = vld [vmem:[#allocation7 + $0x80] sm:$0xff]
    %v492 = vld [vmem:[#allocation7 + $0x88] sm:$0xff]
    %v493 = vld [vmem:[#allocation7 + $0x90] sm:$0xff]
    %v494 = vld [vmem:[#allocation7 + $0x98] sm:$0xff]
    %v495 = vld [vmem:[#allocation7 + $0xa0] sm:$0x33]
    %v496 = vld [vmem:[#allocation7 + $0xa8] sm:$0x33]
    %v519 = vunpack.c.l.b16 %v475
    %v520 = vunpack.c.h.b16 %v475
    %v521 = vunpack.c.l.b16 %v476
    %v522 = vunpack.c.h.b16 %v476
    %v523 = vunpack.c.l.b16 %v477
    %v524 = vunpack.c.h.b16 %v477
    %v525 = vunpack.c.l.b16 %v478
    %v526 = vunpack.c.h.b16 %v478
    %v527 = vunpack.c.l.b16 %v479
    %v528 = vunpack.c.h.b16 %v479
    %v529 = vunpack.c.l.b16 %v480
    %v530 = vunpack.c.h.b16 %v480
    %v531 = vunpack.c.l.b16 %v481
    %v532 = vunpack.c.h.b16 %v481
    %v533 = vunpack.c.l.b16 %v482
    %v534 = vunpack.c.h.b16 %v482
    %v535 = vunpack.c.l.b16 %v483
    %v536 = vunpack.c.h.b16 %v483
    %v537 = vunpack.c.l.b16 %v484
    %v538 = vunpack.c.h.b16 %v484
    %v539 = vunpack.c.l.b16 %v485
    %v540 = vunpack.c.h.b16 %v485
    %v541 = vunpack.c.l.b16 %v486
    %v542 = vunpack.c.h.b16 %v486
    %v543 = vunpack.c.l.b16 %v487
    %v544 = vunpack.c.h.b16 %v487
    %v545 = vunpack.c.l.b16 %v488
    %v546 = vunpack.c.h.b16 %v488
    %v547 = vunpack.c.l.b16 %v489
    %v548 = vunpack.c.h.b16 %v489
    %v549 = vunpack.c.l.b16 %v490
    %v550 = vunpack.c.h.b16 %v490
    %v551 = vunpack.c.l.b16 %v491
    %v552 = vunpack.c.h.b16 %v491
    %v553 = vunpack.c.l.b16 %v492
    %v554 = vunpack.c.h.b16 %v492
    %v555 = vunpack.c.l.b16 %v493
    %v556 = vunpack.c.h.b16 %v493
    %v557 = vunpack.c.l.b16 %v494
    %v558 = vunpack.c.h.b16 %v494
    %v559 = vunpack.c.l.b16 %v495
    %v560 = vunpack.c.h.b16 %v495
    %v561 = vunpack.c.l.b16 %v496
    %v562 = vunpack.c.h.b16 %v496
    %v563 = vpack.c.b16 %v523, %v519
    %v564 = vpack.c.b16 %v524, %v520
    %v565 = vpack.c.b16 %v525, %v521
    %v566 = vpack.c.b16 %v526, %v522
    %v567 = vpack.c.b16 %v531, %v527
    %v568 = vpack.c.b16 %v532, %v528
    %v569 = vpack.c.b16 %v533, %v529
    %v570 = vpack.c.b16 %v534, %v530
    %v571 = vpack.c.b16 %v539, %v535
    %v572 = vpack.c.b16 %v540, %v536
    %v573 = vpack.c.b16 %v541, %v537
    %v574 = vpack.c.b16 %v542, %v538
    %v575 = vpack.c.b16 %v547, %v543
    %v576 = vpack.c.b16 %v548, %v544
    %v577 = vpack.c.b16 %v549, %v545
    %v578 = vpack.c.b16 %v550, %v546
    %v579 = vpack.c.b16 %v555, %v551
    %v580 = vpack.c.b16 %v556, %v552
    %v581 = vpack.c.b16 %v557, %v553
    %v582 = vpack.c.b16 %v558, %v554
    %v583 = vpack.c.b16 %v559, %v559
    %v584 = vpack.c.b16 %v560, %v560
    %v585 = vpack.c.b16 %v561, %v561
    %v586 = vpack.c.b16 %v562, %v562
    %v608 = vsel %vm320, %v583, 0
    %v611 = vsel %vm320, %v584, 0
    %v614 = vsel %vm320, %v585, 0
    %v617 = vsel %vm320, %v586, 0
    %619 = vmatprep.subr.bf16.mxu0 %v564
    %620 = vmatpush1.bf16.msra.mxu0 %v563
    %621 = vmatprep.subr.bf16.mxu0 %v568
    %622 = vmatpush1.bf16.msra.mxu0 %v567
    %623 = vmatprep.subr.bf16.mxu0 %v572
    %624 = vmatpush1.bf16.msra.mxu0 %v571
    %625 = vmatprep.subr.bf16.mxu0 %v576
    %626 = vmatpush1.bf16.msra.mxu0 %v575
    %627 = vmatprep.subr.bf16.mxu0 %v580
    %628 = vmatpush1.bf16.msra.mxu0 %v579
    %629 = vmatprep.subr.bf16.mxu0 %v611
    %630 = vmatpush1.bf16.msra.mxu0 %v608
    %631 = vmatprep.subr.bf16.mxu0 0
    %632 = vmatpush1.bf16.msra.mxu0 0
    %633 = vmatprep.subr.bf16.mxu0 0
    %634 = vmatpush1.bf16.msra.mxu0 0
    %635 = vmatprep.subr.bf16.mxu0 0
    %636 = vmatpush1.bf16.msra.mxu0 0
    %637 = vmatprep.subr.bf16.mxu0 0
    %638 = vmatpush1.bf16.msra.mxu0 0
    %639 = vmatprep.subr.bf16.mxu0 0
    %640 = vmatpush1.bf16.msra.mxu0 0
    %641 = vmatprep.subr.bf16.mxu0 0
    %642 = vmatpush1.bf16.msra.mxu0 0
    %643 = vmatprep.subr.bf16.mxu0 0
    %644 = vmatpush1.bf16.msra.mxu0 0
    %645 = vmatprep.subr.bf16.mxu0 0
    %646 = vmatpush1.bf16.msra.mxu0 0
    %647 = vmatprep.subr.bf16.mxu0 0
    %648 = vmatpush1.bf16.msra.mxu0 0
    %649 = vmatprep.subr.bf16.mxu0 0
    %650 = vmatpush1.bf16.msra.mxu0 0
    %651 = vmatprep.mubr.bf16.mxu0 0
    %652 = vmatmul.mubr.bf16.gmra.mrb[0].mxu0 %v309
    %v653 = vpop.f32.mrb[0].mxu0
    %v654 = vadd.f32 0.0, %v653
    %v655 = vpop.f32.mrb[0].mxu0
    %v656 = vadd.f32 0.0, %v655
    %v657 = vpop.f32.mrb[0].mxu0
    %v658 = vadd.f32 0.0, %v657
    %v659 = vpop.f32.mrb[0].mxu0
    %v660 = vadd.f32 0.0, %v659
    %661 = vmatprep.mubr.bf16.mxu0 0
    %662 = vmatmul.mubr.bf16.gmra.mrb[0].mxu0 %v312
    %v663 = vpop.f32.mrb[0].mxu0
    %v664 = vadd.f32 0.0, %v663
    %v665 = vpop.f32.mrb[0].mxu0
    %v666 = vadd.f32 0.0, %v665
    %v667 = vpop.f32.mrb[0].mxu0
    %v668 = vadd.f32 0.0, %v667
    %v669 = vpop.f32.mrb[0].mxu0
    %v670 = vadd.f32 0.0, %v669
    %671 = vmatprep.mubr.bf16.mxu0 0
    %672 = vmatmul.mubr.bf16.gmra.mrb[0].mxu0 %v315
    %v673 = vpop.f32.mrb[0].mxu0
    %v674 = vadd.f32 0.0, %v673
    %v675 = vpop.f32.mrb[0].mxu0
    %v676 = vadd.f32 0.0, %v675
    %v677 = vpop.f32.mrb[0].mxu0
    %v678 = vadd.f32 0.0, %v677
    %v679 = vpop.f32.mrb[0].mxu0
    %v680 = vadd.f32 0.0, %v679
    %681 = vmatprep.mubr.bf16.mxu0 0
    %682 = vmatmul.mubr.bf16.gmra.mrb[0].mxu0 %v318
    %v683 = vpop.f32.mrb[0].mxu0
    %v684 = vadd.f32 0.0, %v683
    %v685 = vpop.f32.mrb[0].mxu0
    %v686 = vadd.f32 0.0, %v685
    %v687 = vpop.f32.mrb[0].mxu0
    %v688 = vpop.f32.mrb[0].mxu0
    %689 = vdwg.mxu0
    %690 = vmatprep.subr.bf16.mxu0 %v566
    %691 = vmatpush1.bf16.msra.mxu0 %v565
    %692 = vmatprep.subr.bf16.mxu0 %v570
    %693 = vmatpush1.bf16.msra.mxu0 %v569
    %694 = vmatprep.subr.bf16.mxu0 %v574
    %695 = vmatpush1.bf16.msra.mxu0 %v573
    %696 = vmatprep.subr.bf16.mxu0 %v578
    %697 = vmatpush1.bf16.msra.mxu0 %v577
    %698 = vmatprep.subr.bf16.mxu0 %v582
    %699 = vmatpush1.bf16.msra.mxu0 %v581
    %700 = vmatprep.subr.bf16.mxu0 %v617
    %701 = vmatpush1.bf16.msra.mxu0 %v614
    %702 = vmatprep.subr.bf16.mxu0 0
    %703 = vmatpush1.bf16.msra.mxu0 0
    %704 = vmatprep.subr.bf16.mxu0 0
    %705 = vmatpush1.bf16.msra.mxu0 0
    %706 = vmatprep.subr.bf16.mxu0 0
    %707 = vmatpush1.bf16.msra.mxu0 0
    %708 = vmatprep.subr.bf16.mxu0 0
    %709 = vmatpush1.bf16.msra.mxu0 0
    %710 = vmatprep.subr.bf16.mxu0 0
    %711 = vmatpush1.bf16.msra.mxu0 0
    %712 = vmatprep.subr.bf16.mxu0 0
    %713 = vmatpush1.bf16.msra.mxu0 0
    %714 = vmatprep.subr.bf16.mxu0 0
    %715 = vmatpush1.bf16.msra.mxu0 0
    %716 = vmatprep.subr.bf16.mxu0 0
    %717 = vmatpush1.bf16.msra.mxu0 0
    %718 = vmatprep.subr.bf16.mxu0 0
    %719 = vmatpush1.bf16.msra.mxu0 0
    %720 = vmatprep.subr.bf16.mxu0 0
    %721 = vmatpush1.bf16.msra.mxu0 0
    %722 = vmatprep.mubr.bf16.mxu0 0
    %723 = vmatmul.mubr.bf16.gmra.mrb[0].mxu0 %v309
    %v724 = vpop.f32.mrb[0].mxu0
    %v725 = vadd.f32 0.0, %v724
    %v726 = vpop.f32.mrb[0].mxu0
    %v727 = vadd.f32 0.0, %v726
    %v728 = vpop.f32.mrb[0].mxu0
    %v729 = vadd.f32 0.0, %v728
    %v730 = vpop.f32.mrb[0].mxu0
    %v731 = vadd.f32 0.0, %v730
    %732 = vmatprep.mubr.bf16.mxu0 0
    %733 = vmatmul.mubr.bf16.gmra.mrb[0].mxu0 %v312
    %v734 = vpop.f32.mrb[0].mxu0
    %v735 = vadd.f32 0.0, %v734
    %v736 = vpop.f32.mrb[0].mxu0
    %v737 = vadd.f32 0.0, %v736
    %v738 = vpop.f32.mrb[0].mxu0
    %v739 = vadd.f32 0.0, %v738
    %v740 = vpop.f32.mrb[0].mxu0
    %v741 = vadd.f32 0.0, %v740
    %742 = vmatprep.mubr.bf16.mxu0 0
    %743 = vmatmul.mubr.bf16.gmra.mrb[0].mxu0 %v315
    %v744 = vpop.f32.mrb[0].mxu0
    %v745 = vadd.f32 0.0, %v744
    %v746 = vpop.f32.mrb[0].mxu0
    %v747 = vadd.f32 0.0, %v746
    %v748 = vpop.f32.mrb[0].mxu0
    %v749 = vadd.f32 0.0, %v748
    %v750 = vpop.f32.mrb[0].mxu0
    %v751 = vadd.f32 0.0, %v750
    %752 = vmatprep.mubr.bf16.mxu0 0
    %753 = vmatmul.mubr.bf16.gmra.mrb[0].mxu0 %v318
    %v754 = vpop.f32.mrb[0].mxu0
    %v755 = vadd.f32 0.0, %v754
    %v756 = vpop.f32.mrb[0].mxu0
    %v757 = vadd.f32 0.0, %v756
    %v758 = vpop.f32.mrb[0].mxu0
    %v759 = vpop.f32.mrb[0].mxu0
    %760 = vdwg.mxu0
    %v761 = vmax.f32 %v368, %v654
    %v762 = vmax.f32 %v370, %v656
    %v763 = vmax.f32 %v439, %v725
    %v764 = vmax.f32 %v441, %v727
    %v765 = vmax.f32 %v372, %v658
    %v766 = vmax.f32 %v374, %v660
    %v767 = vmax.f32 %v443, %v729
    %v768 = vmax.f32 %v445, %v731
    %v769 = vmax.f32 %v378, %v664
    %v770 = vmax.f32 %v380, %v666
    %v771 = vmax.f32 %v449, %v735
    %v772 = vmax.f32 %v451, %v737
    %v773 = vmax.f32 %v382, %v668
    %v774 = vmax.f32 %v384, %v670
    %v775 = vmax.f32 %v453, %v739
    %v776 = vmax.f32 %v455, %v741
    %v777 = vmax.f32 %v388, %v674
    %v778 = vmax.f32 %v390, %v676
    %v779 = vmax.f32 %v459, %v745
    %v780 = vmax.f32 %v461, %v747
    %v781 = vmax.f32 %v392, %v678
    %v782 = vmax.f32 %v394, %v680
    %v783 = vmax.f32 %v463, %v749
    %v784 = vmax.f32 %v465, %v751
    %v785 = vmax.f32 %v398, %v684
    %v786 = vmax.f32 %v400, %v686
    %v787 = vmax.f32 %v469, %v755
    %v788 = vmax.f32 %v471, %v757
    %v789 = vld [vmem:[#allocation8] sm:$0xf]
    %v791 = vlaneseq
    %v792 = vshrl.u32 %v791, 7
    %v793 = vsub.s32 0, %v792
    %v794 = vrot.slane %v789, %v793
    %v795 = vlaneseq
    %v796 = vshrl.u32 %v795, 7
    %v797 = vsub.s32 1, %v796
    %v798 = vrot.slane %v789, %v797
    %v799 = vlaneseq
    %v800 = vshrl.u32 %v799, 7
    %v801 = vsub.s32 2, %v800
    %v802 = vrot.slane %v789, %v801
    %v803 = vlaneseq
    %v804 = vshrl.u32 %v803, 7
    %v805 = vsub.s32 3, %v804
    %v806 = vrot.slane %v789, %v805
    %v811 = vadd.f32 %v761, %v794
    %v812 = vadd.f32 %v762, %v798
    %v813 = vadd.f32 %v763, %v802
    %v814 = vadd.f32 %v764, %v806
    %v815 = vadd.f32 %v765, %v794
    %v816 = vadd.f32 %v766, %v798
    %v817 = vadd.f32 %v767, %v802
    %v818 = vadd.f32 %v768, %v806
    %v819 = vadd.f32 %v769, %v794
    %v820 = vadd.f32 %v770, %v798
    %v821 = vadd.f32 %v771, %v802
    %v822 = vadd.f32 %v772, %v806
    %v823 = vadd.f32 %v773, %v794
    %v824 = vadd.f32 %v774, %v798
    %v825 = vadd.f32 %v775, %v802
    %v826 = vadd.f32 %v776, %v806
    %v827 = vadd.f32 %v777, %v794
    %v828 = vadd.f32 %v778, %v798
    %v829 = vadd.f32 %v779, %v802
    %v830 = vadd.f32 %v780, %v806
    %v831 = vadd.f32 %v781, %v794
    %v832 = vadd.f32 %v782, %v798
    %v833 = vadd.f32 %v783, %v802
    %v834 = vadd.f32 %v784, %v806
    %v835 = vadd.f32 %v785, %v794
    %v836 = vadd.f32 %v786, %v798
    %v837 = vadd.f32 %v787, %v802
    %v838 = vadd.f32 %v788, %v806
    %v839 = vmax.f32 %v811, 0.0
    %v840 = vmax.f32 %v812, 0.0
    %v841 = vmax.f32 %v813, 0.0
    %v842 = vmax.f32 %v814, 0.0
    %v843 = vmax.f32 %v815, 0.0
    %v844 = vmax.f32 %v816, 0.0
    %v845 = vmax.f32 %v817, 0.0
    %v846 = vmax.f32 %v818, 0.0
    %v847 = vmax.f32 %v819, 0.0
    %v848 = vmax.f32 %v820, 0.0
    %v849 = vmax.f32 %v821, 0.0
    %v850 = vmax.f32 %v822, 0.0
    %v851 = vmax.f32 %v823, 0.0
    %v852 = vmax.f32 %v824, 0.0
    %v853 = vmax.f32 %v825, 0.0
    %v854 = vmax.f32 %v826, 0.0
    %v855 = vmax.f32 %v827, 0.0
    %v856 = vmax.f32 %v828, 0.0
    %v857 = vmax.f32 %v829, 0.0
    %v858 = vmax.f32 %v830, 0.0
    %v859 = vmax.f32 %v831, 0.0
    %v860 = vmax.f32 %v832, 0.0
    %v861 = vmax.f32 %v833, 0.0
    %v862 = vmax.f32 %v834, 0.0
    %v863 = vmax.f32 %v835, 0.0
    %v864 = vmax.f32 %v836, 0.0
    %v865 = vmax.f32 %v837, 0.0
    %v866 = vmax.f32 %v838, 0.0
    %v895 = vcombine.low %v839, %v840
    %v896 = vcombine.high %v839, %v840
    %v897 = vcombine.low %v841, %v842
    %v898 = vcombine.high %v841, %v842
    %v900 = vunpack.c.l.s4 1983009808
    %v901 = vunpack.c.0.s8 %v900
    %v902 = vlaneseq
    %v903 = vshrl.u32 %v902, 7
    %v904 = vsub.s32 %v901, %v903
    %v905 = vrot.slane %v895, %v904
    %v907 = vunpack.c.l.s4 1983009808
    %v908 = vunpack.c.0.s8 %v907
    %v909 = vlaneseq
    %v910 = vshrl.u32 %v909, 7
    %v911 = vsub.s32 %v908, %v910
    %v912 = vrot.slane %v896, %v911
    %v914 = vunpack.c.l.s4 1983009808
    %v915 = vunpack.c.0.s8 %v914
    %v916 = vlaneseq
    %v917 = vshrl.u32 %v916, 7
    %v918 = vsub.s32 %v915, %v917
    %v919 = vrot.slane %v897, %v918
    %v921 = vunpack.c.l.s4 1983009808
    %v922 = vunpack.c.0.s8 %v921
    %v923 = vlaneseq
    %v924 = vshrl.u32 %v923, 7
    %v925 = vsub.s32 %v922, %v924
    %v926 = vrot.slane %v898, %v925
    %v927 = vcombine.low %v905, %v919
    %v928 = vcombine.high %v905, %v919
    %v929 = vcombine.low %v912, %v926
    %v930 = vcombine.high %v912, %v926
    %v931 = vcombine.low %v843, %v844
    %v932 = vcombine.high %v843, %v844
    %v933 = vcombine.low %v845, %v846
    %v934 = vcombine.high %v845, %v846
    %v936 = vunpack.c.l.s4 1983009808
    %v937 = vunpack.c.0.s8 %v936
    %v938 = vlaneseq
    %v939 = vshrl.u32 %v938, 7
    %v940 = vsub.s32 %v937, %v939
    %v941 = vrot.slane %v931, %v940
    %v943 = vunpack.c.l.s4 1983009808
    %v944 = vunpack.c.0.s8 %v943
    %v945 = vlaneseq
    %v946 = vshrl.u32 %v945, 7
    %v947 = vsub.s32 %v944, %v946
    %v948 = vrot.slane %v932, %v947
    %v950 = vunpack.c.l.s4 1983009808
    %v951 = vunpack.c.0.s8 %v950
    %v952 = vlaneseq
    %v953 = vshrl.u32 %v952, 7
    %v954 = vsub.s32 %v951, %v953
    %v955 = vrot.slane %v933, %v954
    %v957 = vunpack.c.l.s4 1983009808
    %v958 = vunpack.c.0.s8 %v957
    %v959 = vlaneseq
    %v960 = vshrl.u32 %v959, 7
    %v961 = vsub.s32 %v958, %v960
    %v962 = vrot.slane %v934, %v961
    %v963 = vcombine.low %v941, %v955
    %v964 = vcombine.high %v941, %v955
    %v965 = vcombine.low %v948, %v962
    %v966 = vcombine.high %v948, %v962
    %v967 = vcombine.low %v847, %v848
    %v968 = vcombine.high %v847, %v848
    %v969 = vcombine.low %v849, %v850
    %v970 = vcombine.high %v849, %v850
    %v972 = vunpack.c.l.s4 1983009808
    %v973 = vunpack.c.0.s8 %v972
    %v974 = vlaneseq
    %v975 = vshrl.u32 %v974, 7
    %v976 = vsub.s32 %v973, %v975
    %v977 = vrot.slane %v967, %v976
    %v979 = vunpack.c.l.s4 1983009808
    %v980 = vunpack.c.0.s8 %v979
    %v981 = vlaneseq
    %v982 = vshrl.u32 %v981, 7
    %v983 = vsub.s32 %v980, %v982
    %v984 = vrot.slane %v968, %v983
    %v986 = vunpack.c.l.s4 1983009808
    %v987 = vunpack.c.0.s8 %v986
    %v988 = vlaneseq
    %v989 = vshrl.u32 %v988, 7
    %v990 = vsub.s32 %v987, %v989
    %v991 = vrot.slane %v969, %v990
    %v993 = vunpack.c.l.s4 1983009808
    %v994 = vunpack.c.0.s8 %v993
    %v995 = vlaneseq
    %v996 = vshrl.u32 %v995, 7
    %v997 = vsub.s32 %v994, %v996
    %v998 = vrot.slane %v970, %v997
    %v999 = vcombine.low %v977, %v991
    %v1000 = vcombine.high %v977, %v991
    %v1001 = vcombine.low %v984, %v998
    %v1002 = vcombine.high %v984, %v998
    %v1003 = vcombine.low %v851, %v852
    %v1004 = vcombine.high %v851, %v852
    %v1005 = vcombine.low %v853, %v854
    %v1006 = vcombine.high %v853, %v854
    %v1008 = vunpack.c.l.s4 1983009808
    %v1009 = vunpack.c.0.s8 %v1008
    %v1010 = vlaneseq
    %v1011 = vshrl.u32 %v1010, 7
    %v1012 = vsub.s32 %v1009, %v1011
    %v1013 = vrot.slane %v1003, %v1012
    %v1015 = vunpack.c.l.s4 1983009808
    %v1016 = vunpack.c.0.s8 %v1015
    %v1017 = vlaneseq
    %v1018 = vshrl.u32 %v1017, 7
    %v1019 = vsub.s32 %v1016, %v1018
    %v1020 = vrot.slane %v1004, %v1019
    %v1022 = vunpack.c.l.s4 1983009808
    %v1023 = vunpack.c.0.s8 %v1022
    %v1024 = vlaneseq
    %v1025 = vshrl.u32 %v1024, 7
    %v1026 = vsub.s32 %v1023, %v1025
    %v1027 = vrot.slane %v1005, %v1026
    %v1029 = vunpack.c.l.s4 1983009808
    %v1030 = vunpack.c.0.s8 %v1029
    %v1031 = vlaneseq
    %v1032 = vshrl.u32 %v1031, 7
    %v1033 = vsub.s32 %v1030, %v1032
    %v1034 = vrot.slane %v1006, %v1033
    %v1035 = vcombine.low %v1013, %v1027
    %v1036 = vcombine.high %v1013, %v1027
    %v1037 = vcombine.low %v1020, %v1034
    %v1038 = vcombine.high %v1020, %v1034
    %v1039 = vcombine.low %v855, %v856
    %v1040 = vcombine.high %v855, %v856
    %v1041 = vcombine.low %v857, %v858
    %v1042 = vcombine.high %v857, %v858
    %v1044 = vunpack.c.l.s4 1983009808
    %v1045 = vunpack.c.0.s8 %v1044
    %v1046 = vlaneseq
    %v1047 = vshrl.u32 %v1046, 7
    %v1048 = vsub.s32 %v1045, %v1047
    %v1049 = vrot.slane %v1039, %v1048
    %v1051 = vunpack.c.l.s4 1983009808
    %v1052 = vunpack.c.0.s8 %v1051
    %v1053 = vlaneseq
    %v1054 = vshrl.u32 %v1053, 7
    %v1055 = vsub.s32 %v1052, %v1054
    %v1056 = vrot.slane %v1040, %v1055
    %v1058 = vunpack.c.l.s4 1983009808
    %v1059 = vunpack.c.0.s8 %v1058
    %v1060 = vlaneseq
    %v1061 = vshrl.u32 %v1060, 7
    %v1062 = vsub.s32 %v1059, %v1061
    %v1063 = vrot.slane %v1041, %v1062
    %v1065 = vunpack.c.l.s4 1983009808
    %v1066 = vunpack.c.0.s8 %v1065
    %v1067 = vlaneseq
    %v1068 = vshrl.u32 %v1067, 7
    %v1069 = vsub.s32 %v1066, %v1068
    %v1070 = vrot.slane %v1042, %v1069
    %v1071 = vcombine.low %v1049, %v1063
    %v1072 = vcombine.high %v1049, %v1063
    %v1073 = vcombine.low %v1056, %v1070
    %v1074 = vcombine.high %v1056, %v1070
    %v1075 = vcombine.low %v859, %v860
    %v1076 = vcombine.high %v859, %v860
    %v1077 = vcombine.low %v861, %v862
    %v1078 = vcombine.high %v861, %v862
    %v1080 = vunpack.c.l.s4 1983009808
    %v1081 = vunpack.c.0.s8 %v1080
    %v1082 = vlaneseq
    %v1083 = vshrl.u32 %v1082, 7
    %v1084 = vsub.s32 %v1081, %v1083
    %v1085 = vrot.slane %v1075, %v1084
    %v1087 = vunpack.c.l.s4 1983009808
    %v1088 = vunpack.c.0.s8 %v1087
    %v1089 = vlaneseq
    %v1090 = vshrl.u32 %v1089, 7
    %v1091 = vsub.s32 %v1088, %v1090
    %v1092 = vrot.slane %v1076, %v1091
    %v1094 = vunpack.c.l.s4 1983009808
    %v1095 = vunpack.c.0.s8 %v1094
    %v1096 = vlaneseq
    %v1097 = vshrl.u32 %v1096, 7
    %v1098 = vsub.s32 %v1095, %v1097
    %v1099 = vrot.slane %v1077, %v1098
    %v1101 = vunpack.c.l.s4 1983009808
    %v1102 = vunpack.c.0.s8 %v1101
    %v1103 = vlaneseq
    %v1104 = vshrl.u32 %v1103, 7
    %v1105 = vsub.s32 %v1102, %v1104
    %v1106 = vrot.slane %v1078, %v1105
    %v1107 = vcombine.low %v1085, %v1099
    %v1108 = vcombine.high %v1085, %v1099
    %v1109 = vcombine.low %v1092, %v1106
    %v1110 = vcombine.high %v1092, %v1106
    %v1111 = vcombine.low %v863, %v864
    %v1112 = vcombine.high %v863, %v864
    %v1113 = vcombine.low %v865, %v866
    %v1114 = vcombine.high %v865, %v866
    %v1116 = vunpack.c.l.s4 1983009808
    %v1117 = vunpack.c.0.s8 %v1116
    %v1118 = vlaneseq
    %v1119 = vshrl.u32 %v1118, 7
    %v1120 = vsub.s32 %v1117, %v1119
    %v1121 = vrot.slane %v1111, %v1120
    %v1123 = vunpack.c.l.s4 1983009808
    %v1124 = vunpack.c.0.s8 %v1123
    %v1125 = vlaneseq
    %v1126 = vshrl.u32 %v1125, 7
    %v1127 = vsub.s32 %v1124, %v1126
    %v1128 = vrot.slane %v1112, %v1127
    %v1130 = vunpack.c.l.s4 1983009808
    %v1131 = vunpack.c.0.s8 %v1130
    %v1132 = vlaneseq
    %v1133 = vshrl.u32 %v1132, 7
    %v1134 = vsub.s32 %v1131, %v1133
    %v1135 = vrot.slane %v1113, %v1134
    %v1137 = vunpack.c.l.s4 1983009808
    %v1138 = vunpack.c.0.s8 %v1137
    %v1139 = vlaneseq
    %v1140 = vshrl.u32 %v1139, 7
    %v1141 = vsub.s32 %v1138, %v1140
    %v1142 = vrot.slane %v1114, %v1141
    %v1143 = vcombine.low %v1121, %v1135
    %v1144 = vcombine.high %v1121, %v1135
    %v1145 = vcombine.low %v1128, %v1142
    %v1146 = vcombine.high %v1128, %v1142
    %v1147 = vcombine.high %v927, %v927
    %v1149 = vunpack.c.l.s4 1983009808
    %v1150 = vunpack.c.0.s8 %v1149
    %v1151 = vlaneseq
    %v1152 = vshrl.u32 %v1151, 7
    %v1153 = vsub.s32 %v1150, %v1152
    %v1154 = vrot.slane %v927, %v1153
    %v1156 = vunpack.c.l.s4 1983009808
    %v1157 = vunpack.c.0.s8 %v1156
    %v1158 = vlaneseq
    %v1159 = vshrl.u32 %v1158, 7
    %v1160 = vsub.s32 %v1157, %v1159
    %v1161 = vrot.slane %v1147, %v1160
    %v1162 = vcombine.high %v1154, %v1154
    %v1163 = vcombine.high %v1161, %v1161
    %v1164 = vcombine.high %v928, %v928
    %v1166 = vunpack.c.l.s4 1983009808
    %v1167 = vunpack.c.0.s8 %v1166
    %v1168 = vlaneseq
    %v1169 = vshrl.u32 %v1168, 7
    %v1170 = vsub.s32 %v1167, %v1169
    %v1171 = vrot.slane %v928, %v1170
    %v1173 = vunpack.c.l.s4 1983009808
    %v1174 = vunpack.c.0.s8 %v1173
    %v1175 = vlaneseq
    %v1176 = vshrl.u32 %v1175, 7
    %v1177 = vsub.s32 %v1174, %v1176
    %v1178 = vrot.slane %v1164, %v1177
    %v1179 = vcombine.high %v1171, %v1171
    %v1180 = vcombine.high %v1178, %v1178
    %v1181 = vcombine.high %v929, %v929
    %v1183 = vunpack.c.l.s4 1983009808
    %v1184 = vunpack.c.0.s8 %v1183
    %v1185 = vlaneseq
    %v1186 = vshrl.u32 %v1185, 7
    %v1187 = vsub.s32 %v1184, %v1186
    %v1188 = vrot.slane %v929, %v1187
    %v1190 = vunpack.c.l.s4 1983009808
    %v1191 = vunpack.c.0.s8 %v1190
    %v1192 = vlaneseq
    %v1193 = vshrl.u32 %v1192, 7
    %v1194 = vsub.s32 %v1191, %v1193
    %v1195 = vrot.slane %v1181, %v1194
    %v1196 = vcombine.high %v1188, %v1188
    %v1197 = vcombine.high %v1195, %v1195
    %v1198 = vcombine.high %v930, %v930
    %v1200 = vunpack.c.l.s4 1983009808
    %v1201 = vunpack.c.0.s8 %v1200
    %v1202 = vlaneseq
    %v1203 = vshrl.u32 %v1202, 7
    %v1204 = vsub.s32 %v1201, %v1203
    %v1205 = vrot.slane %v930, %v1204
    %v1207 = vunpack.c.l.s4 1983009808
    %v1208 = vunpack.c.0.s8 %v1207
    %v1209 = vlaneseq
    %v1210 = vshrl.u32 %v1209, 7
    %v1211 = vsub.s32 %v1208, %v1210
    %v1212 = vrot.slane %v1198, %v1211
    %v1213 = vcombine.high %v1205, %v1205
    %v1214 = vcombine.high %v1212, %v1212
    %v1215 = vcombine.high %v963, %v963
    %v1217 = vunpack.c.l.s4 1983009808
    %v1218 = vunpack.c.0.s8 %v1217
    %v1219 = vlaneseq
    %v1220 = vshrl.u32 %v1219, 7
    %v1221 = vsub.s32 %v1218, %v1220
    %v1222 = vrot.slane %v963, %v1221
    %v1224 = vunpack.c.l.s4 1983009808
    %v1225 = vunpack.c.0.s8 %v1224
    %v1226 = vlaneseq
    %v1227 = vshrl.u32 %v1226, 7
    %v1228 = vsub.s32 %v1225, %v1227
    %v1229 = vrot.slane %v1215, %v1228
    %v1230 = vcombine.high %v1222, %v1222
    %v1231 = vcombine.high %v1229, %v1229
    %v1232 = vcombine.high %v964, %v964
    %v1234 = vunpack.c.l.s4 1983009808
    %v1235 = vunpack.c.0.s8 %v1234
    %v1236 = vlaneseq
    %v1237 = vshrl.u32 %v1236, 7
    %v1238 = vsub.s32 %v1235, %v1237
    %v1239 = vrot.slane %v964, %v1238
    %v1241 = vunpack.c.l.s4 1983009808
    %v1242 = vunpack.c.0.s8 %v1241
    %v1243 = vlaneseq
    %v1244 = vshrl.u32 %v1243, 7
    %v1245 = vsub.s32 %v1242, %v1244
    %v1246 = vrot.slane %v1232, %v1245
    %v1247 = vcombine.high %v1239, %v1239
    %v1248 = vcombine.high %v1246, %v1246
    %v1249 = vcombine.high %v965, %v965
    %v1251 = vunpack.c.l.s4 1983009808
    %v1252 = vunpack.c.0.s8 %v1251
    %v1253 = vlaneseq
    %v1254 = vshrl.u32 %v1253, 7
    %v1255 = vsub.s32 %v1252, %v1254
    %v1256 = vrot.slane %v965, %v1255
    %v1258 = vunpack.c.l.s4 1983009808
    %v1259 = vunpack.c.0.s8 %v1258
    %v1260 = vlaneseq
    %v1261 = vshrl.u32 %v1260, 7
    %v1262 = vsub.s32 %v1259, %v1261
    %v1263 = vrot.slane %v1249, %v1262
    %v1264 = vcombine.high %v1256, %v1256
    %v1265 = vcombine.high %v1263, %v1263
    %v1266 = vcombine.high %v966, %v966
    %v1268 = vunpack.c.l.s4 1983009808
    %v1269 = vunpack.c.0.s8 %v1268
    %v1270 = vlaneseq
    %v1271 = vshrl.u32 %v1270, 7
    %v1272 = vsub.s32 %v1269, %v1271
    %v1273 = vrot.slane %v966, %v1272
    %v1275 = vunpack.c.l.s4 1983009808
    %v1276 = vunpack.c.0.s8 %v1275
    %v1277 = vlaneseq
    %v1278 = vshrl.u32 %v1277, 7
    %v1279 = vsub.s32 %v1276, %v1278
    %v1280 = vrot.slane %v1266, %v1279
    %v1281 = vcombine.high %v1273, %v1273
    %v1282 = vcombine.high %v1280, %v1280
    %v1283 = vcombine.high %v999, %v999
    %v1285 = vunpack.c.l.s4 1983009808
    %v1286 = vunpack.c.0.s8 %v1285
    %v1287 = vlaneseq
    %v1288 = vshrl.u32 %v1287, 7
    %v1289 = vsub.s32 %v1286, %v1288
    %v1290 = vrot.slane %v999, %v1289
    %v1292 = vunpack.c.l.s4 1983009808
    %v1293 = vunpack.c.0.s8 %v1292
    %v1294 = vlaneseq
    %v1295 = vshrl.u32 %v1294, 7
    %v1296 = vsub.s32 %v1293, %v1295
    %v1297 = vrot.slane %v1283, %v1296
    %v1298 = vcombine.high %v1290, %v1290
    %v1299 = vcombine.high %v1297, %v1297
    %v1300 = vcombine.high %v1000, %v1000
    %v1302 = vunpack.c.l.s4 1983009808
    %v1303 = vunpack.c.0.s8 %v1302
    %v1304 = vlaneseq
    %v1305 = vshrl.u32 %v1304, 7
    %v1306 = vsub.s32 %v1303, %v1305
    %v1307 = vrot.slane %v1000, %v1306
    %v1309 = vunpack.c.l.s4 1983009808
    %v1310 = vunpack.c.0.s8 %v1309
    %v1311 = vlaneseq
    %v1312 = vshrl.u32 %v1311, 7
    %v1313 = vsub.s32 %v1310, %v1312
    %v1314 = vrot.slane %v1300, %v1313
    %v1315 = vcombine.high %v1307, %v1307
    %v1316 = vcombine.high %v1314, %v1314
    %v1317 = vcombine.high %v1001, %v1001
    %v1319 = vunpack.c.l.s4 1983009808
    %v1320 = vunpack.c.0.s8 %v1319
    %v1321 = vlaneseq
    %v1322 = vshrl.u32 %v1321, 7
    %v1323 = vsub.s32 %v1320, %v1322
    %v1324 = vrot.slane %v1001, %v1323
    %v1326 = vunpack.c.l.s4 1983009808
    %v1327 = vunpack.c.0.s8 %v1326
    %v1328 = vlaneseq
    %v1329 = vshrl.u32 %v1328, 7
    %v1330 = vsub.s32 %v1327, %v1329
    %v1331 = vrot.slane %v1317, %v1330
    %v1332 = vcombine.high %v1324, %v1324
    %v1333 = vcombine.high %v1331, %v1331
    %v1334 = vcombine.high %v1002, %v1002
    %v1336 = vunpack.c.l.s4 1983009808
    %v1337 = vunpack.c.0.s8 %v1336
    %v1338 = vlaneseq
    %v1339 = vshrl.u32 %v1338, 7
    %v1340 = vsub.s32 %v1337, %v1339
    %v1341 = vrot.slane %v1002, %v1340
    %v1343 = vunpack.c.l.s4 1983009808
    %v1344 = vunpack.c.0.s8 %v1343
    %v1345 = vlaneseq
    %v1346 = vshrl.u32 %v1345, 7
    %v1347 = vsub.s32 %v1344, %v1346
    %v1348 = vrot.slane %v1334, %v1347
    %v1349 = vcombine.high %v1341, %v1341
    %v1350 = vcombine.high %v1348, %v1348
    %v1351 = vcombine.high %v1035, %v1035
    %v1353 = vunpack.c.l.s4 1983009808
    %v1354 = vunpack.c.0.s8 %v1353
    %v1355 = vlaneseq
    %v1356 = vshrl.u32 %v1355, 7
    %v1357 = vsub.s32 %v1354, %v1356
    %v1358 = vrot.slane %v1035, %v1357
    %v1360 = vunpack.c.l.s4 1983009808
    %v1361 = vunpack.c.0.s8 %v1360
    %v1362 = vlaneseq
    %v1363 = vshrl.u32 %v1362, 7
    %v1364 = vsub.s32 %v1361, %v1363
    %v1365 = vrot.slane %v1351, %v1364
    %v1366 = vcombine.high %v1358, %v1358
    %v1367 = vcombine.high %v1365, %v1365
    %v1368 = vcombine.high %v1036, %v1036
    %v1370 = vunpack.c.l.s4 1983009808
    %v1371 = vunpack.c.0.s8 %v1370
    %v1372 = vlaneseq
    %v1373 = vshrl.u32 %v1372, 7
    %v1374 = vsub.s32 %v1371, %v1373
    %v1375 = vrot.slane %v1036, %v1374
    %v1377 = vunpack.c.l.s4 1983009808
    %v1378 = vunpack.c.0.s8 %v1377
    %v1379 = vlaneseq
    %v1380 = vshrl.u32 %v1379, 7
    %v1381 = vsub.s32 %v1378, %v1380
    %v1382 = vrot.slane %v1368, %v1381
    %v1383 = vcombine.high %v1375, %v1375
    %v1384 = vcombine.high %v1382, %v1382
    %v1385 = vcombine.high %v1037, %v1037
    %v1387 = vunpack.c.l.s4 1983009808
    %v1388 = vunpack.c.0.s8 %v1387
    %v1389 = vlaneseq
    %v1390 = vshrl.u32 %v1389, 7
    %v1391 = vsub.s32 %v1388, %v1390
    %v1392 = vrot.slane %v1037, %v1391
    %v1394 = vunpack.c.l.s4 1983009808
    %v1395 = vunpack.c.0.s8 %v1394
    %v1396 = vlaneseq
    %v1397 = vshrl.u32 %v1396, 7
    %v1398 = vsub.s32 %v1395, %v1397
    %v1399 = vrot.slane %v1385, %v1398
    %v1400 = vcombine.high %v1392, %v1392
    %v1401 = vcombine.high %v1399, %v1399
    %v1402 = vcombine.high %v1038, %v1038
    %v1404 = vunpack.c.l.s4 1983009808
    %v1405 = vunpack.c.0.s8 %v1404
    %v1406 = vlaneseq
    %v1407 = vshrl.u32 %v1406, 7
    %v1408 = vsub.s32 %v1405, %v1407
    %v1409 = vrot.slane %v1038, %v1408
    %v1411 = vunpack.c.l.s4 1983009808
    %v1412 = vunpack.c.0.s8 %v1411
    %v1413 = vlaneseq
    %v1414 = vshrl.u32 %v1413, 7
    %v1415 = vsub.s32 %v1412, %v1414
    %v1416 = vrot.slane %v1402, %v1415
    %v1417 = vcombine.high %v1409, %v1409
    %v1418 = vcombine.high %v1416, %v1416
    %v1419 = vcombine.high %v1071, %v1071
    %v1421 = vunpack.c.l.s4 1983009808
    %v1422 = vunpack.c.0.s8 %v1421
    %v1423 = vlaneseq
    %v1424 = vshrl.u32 %v1423, 7
    %v1425 = vsub.s32 %v1422, %v1424
    %v1426 = vrot.slane %v1071, %v1425
    %v1428 = vunpack.c.l.s4 1983009808
    %v1429 = vunpack.c.0.s8 %v1428
    %v1430 = vlaneseq
    %v1431 = vshrl.u32 %v1430, 7
    %v1432 = vsub.s32 %v1429, %v1431
    %v1433 = vrot.slane %v1419, %v1432
    %v1434 = vcombine.high %v1426, %v1426
    %v1435 = vcombine.high %v1433, %v1433
    %v1436 = vcombine.high %v1072, %v1072
    %v1438 = vunpack.c.l.s4 1983009808
    %v1439 = vunpack.c.0.s8 %v1438
    %v1440 = vlaneseq
    %v1441 = vshrl.u32 %v1440, 7
    %v1442 = vsub.s32 %v1439, %v1441
    %v1443 = vrot.slane %v1072, %v1442
    %v1445 = vunpack.c.l.s4 1983009808
    %v1446 = vunpack.c.0.s8 %v1445
    %v1447 = vlaneseq
    %v1448 = vshrl.u32 %v1447, 7
    %v1449 = vsub.s32 %v1446, %v1448
    %v1450 = vrot.slane %v1436, %v1449
    %v1451 = vcombine.high %v1443, %v1443
    %v1452 = vcombine.high %v1450, %v1450
    %v1453 = vcombine.high %v1073, %v1073
    %v1455 = vunpack.c.l.s4 1983009808
    %v1456 = vunpack.c.0.s8 %v1455
    %v1457 = vlaneseq
    %v1458 = vshrl.u32 %v1457, 7
    %v1459 = vsub.s32 %v1456, %v1458
    %v1460 = vrot.slane %v1073, %v1459
    %v1462 = vunpack.c.l.s4 1983009808
    %v1463 = vunpack.c.0.s8 %v1462
    %v1464 = vlaneseq
    %v1465 = vshrl.u32 %v1464, 7
    %v1466 = vsub.s32 %v1463, %v1465
    %v1467 = vrot.slane %v1453, %v1466
    %v1468 = vcombine.high %v1460, %v1460
    %v1469 = vcombine.high %v1467, %v1467
    %v1470 = vcombine.high %v1074, %v1074
    %v1472 = vunpack.c.l.s4 1983009808
    %v1473 = vunpack.c.0.s8 %v1472
    %v1474 = vlaneseq
    %v1475 = vshrl.u32 %v1474, 7
    %v1476 = vsub.s32 %v1473, %v1475
    %v1477 = vrot.slane %v1074, %v1476
    %v1479 = vunpack.c.l.s4 1983009808
    %v1480 = vunpack.c.0.s8 %v1479
    %v1481 = vlaneseq
    %v1482 = vshrl.u32 %v1481, 7
    %v1483 = vsub.s32 %v1480, %v1482
    %v1484 = vrot.slane %v1470, %v1483
    %v1485 = vcombine.high %v1477, %v1477
    %v1486 = vcombine.high %v1484, %v1484
    %v1487 = vcombine.high %v1107, %v1107
    %v1489 = vunpack.c.l.s4 1983009808
    %v1490 = vunpack.c.0.s8 %v1489
    %v1491 = vlaneseq
    %v1492 = vshrl.u32 %v1491, 7
    %v1493 = vsub.s32 %v1490, %v1492
    %v1494 = vrot.slane %v1107, %v1493
    %v1496 = vunpack.c.l.s4 1983009808
    %v1497 = vunpack.c.0.s8 %v1496
    %v1498 = vlaneseq
    %v1499 = vshrl.u32 %v1498, 7
    %v1500 = vsub.s32 %v1497, %v1499
    %v1501 = vrot.slane %v1487, %v1500
    %v1502 = vcombine.high %v1494, %v1494
    %v1503 = vcombine.high %v1501, %v1501
    %v1504 = vcombine.high %v1108, %v1108
    %v1506 = vunpack.c.l.s4 1983009808
    %v1507 = vunpack.c.0.s8 %v1506
    %v1508 = vlaneseq
    %v1509 = vshrl.u32 %v1508, 7
    %v1510 = vsub.s32 %v1507, %v1509
    %v1511 = vrot.slane %v1108, %v1510
    %v1513 = vunpack.c.l.s4 1983009808
    %v1514 = vunpack.c.0.s8 %v1513
    %v1515 = vlaneseq
    %v1516 = vshrl.u32 %v1515, 7
    %v1517 = vsub.s32 %v1514, %v1516
    %v1518 = vrot.slane %v1504, %v1517
    %v1519 = vcombine.high %v1511, %v1511
    %v1520 = vcombine.high %v1518, %v1518
    %v1521 = vcombine.high %v1109, %v1109
    %v1523 = vunpack.c.l.s4 1983009808
    %v1524 = vunpack.c.0.s8 %v1523
    %v1525 = vlaneseq
    %v1526 = vshrl.u32 %v1525, 7
    %v1527 = vsub.s32 %v1524, %v1526
    %v1528 = vrot.slane %v1109, %v1527
    %v1530 = vunpack.c.l.s4 1983009808
    %v1531 = vunpack.c.0.s8 %v1530
    %v1532 = vlaneseq
    %v1533 = vshrl.u32 %v1532, 7
    %v1534 = vsub.s32 %v1531, %v1533
    %v1535 = vrot.slane %v1521, %v1534
    %v1536 = vcombine.high %v1528, %v1528
    %v1537 = vcombine.high %v1535, %v1535
    %v1538 = vcombine.high %v1110, %v1110
    %v1540 = vunpack.c.l.s4 1983009808
    %v1541 = vunpack.c.0.s8 %v1540
    %v1542 = vlaneseq
    %v1543 = vshrl.u32 %v1542, 7
    %v1544 = vsub.s32 %v1541, %v1543
    %v1545 = vrot.slane %v1110, %v1544
    %v1547 = vunpack.c.l.s4 1983009808
    %v1548 = vunpack.c.0.s8 %v1547
    %v1549 = vlaneseq
    %v1550 = vshrl.u32 %v1549, 7
    %v1551 = vsub.s32 %v1548, %v1550
    %v1552 = vrot.slane %v1538, %v1551
    %v1553 = vcombine.high %v1545, %v1545
    %v1554 = vcombine.high %v1552, %v1552
    %v1555 = vcombine.high %v1143, %v1143
    %v1557 = vunpack.c.l.s4 1983009808
    %v1558 = vunpack.c.0.s8 %v1557
    %v1559 = vlaneseq
    %v1560 = vshrl.u32 %v1559, 7
    %v1561 = vsub.s32 %v1558, %v1560
    %v1562 = vrot.slane %v1143, %v1561
    %v1564 = vunpack.c.l.s4 1983009808
    %v1565 = vunpack.c.0.s8 %v1564
    %v1566 = vlaneseq
    %v1567 = vshrl.u32 %v1566, 7
    %v1568 = vsub.s32 %v1565, %v1567
    %v1569 = vrot.slane %v1555, %v1568
    %v1570 = vcombine.high %v1562, %v1562
    %v1571 = vcombine.high %v1569, %v1569
    %v1572 = vcombine.high %v1144, %v1144
    %v1574 = vunpack.c.l.s4 1983009808
    %v1575 = vunpack.c.0.s8 %v1574
    %v1576 = vlaneseq
    %v1577 = vshrl.u32 %v1576, 7
    %v1578 = vsub.s32 %v1575, %v1577
    %v1579 = vrot.slane %v1144, %v1578
    %v1581 = vunpack.c.l.s4 1983009808
    %v1582 = vunpack.c.0.s8 %v1581
    %v1583 = vlaneseq
    %v1584 = vshrl.u32 %v1583, 7
    %v1585 = vsub.s32 %v1582, %v1584
    %v1586 = vrot.slane %v1572, %v1585
    %v1587 = vcombine.high %v1579, %v1579
    %v1588 = vcombine.high %v1586, %v1586
    %v1589 = vcombine.high %v1145, %v1145
    %v1591 = vunpack.c.l.s4 1983009808
    %v1592 = vunpack.c.0.s8 %v1591
    %v1593 = vlaneseq
    %v1594 = vshrl.u32 %v1593, 7
    %v1595 = vsub.s32 %v1592, %v1594
    %v1596 = vrot.slane %v1145, %v1595
    %v1598 = vunpack.c.l.s4 1983009808
    %v1599 = vunpack.c.0.s8 %v1598
    %v1600 = vlaneseq
    %v1601 = vshrl.u32 %v1600, 7
    %v1602 = vsub.s32 %v1599, %v1601
    %v1603 = vrot.slane %v1589, %v1602
    %v1604 = vcombine.high %v1596, %v1596
    %v1605 = vcombine.high %v1603, %v1603
    %v1606 = vcombine.high %v1146, %v1146
    %v1608 = vunpack.c.l.s4 1983009808
    %v1609 = vunpack.c.0.s8 %v1608
    %v1610 = vlaneseq
    %v1611 = vshrl.u32 %v1610, 7
    %v1612 = vsub.s32 %v1609, %v1611
    %v1613 = vrot.slane %v1146, %v1612
    %v1615 = vunpack.c.l.s4 1983009808
    %v1616 = vunpack.c.0.s8 %v1615
    %v1617 = vlaneseq
    %v1618 = vshrl.u32 %v1617, 7
    %v1619 = vsub.s32 %v1616, %v1618
    %v1620 = vrot.slane %v1606, %v1619
    %v1621 = vcombine.high %v1613, %v1613
    %v1622 = vcombine.high %v1620, %v1620
    %v1735 = vsel %vm320, %v1154, -inf
    %v1736 = vrot.slane %v1735, 4
    %v1737 = vmax.f32 %v1735, %v1736
    %v1738 = vrot.slane %v1737, 2
    %v1739 = vmax.f32 %v1737, %v1738
    %v1740 = vrot.slane %v1739, 1
    %v1741 = vmax.f32 %v1739, %v1740
    %v1742 = vsel %vm320, %v1162, -inf
    %v1743 = vrot.slane %v1742, 4
    %v1744 = vmax.f32 %v1742, %v1743
    %v1745 = vrot.slane %v1744, 2
    %v1746 = vmax.f32 %v1744, %v1745
    %v1747 = vrot.slane %v1746, 1
    %v1748 = vmax.f32 %v1746, %v1747
    %v1749 = vsel %vm320, %v1161, -inf
    %v1750 = vrot.slane %v1749, 4
    %v1751 = vmax.f32 %v1749, %v1750
    %v1752 = vrot.slane %v1751, 2
    %v1753 = vmax.f32 %v1751, %v1752
    %v1754 = vrot.slane %v1753, 1
    %v1755 = vmax.f32 %v1753, %v1754
    %vm1756 = vcmask 517120
    %v1757 = vsel %vm1756, %v1163, -inf
    %v1758 = vrot.slane %v1757, 4
    %v1759 = vmax.f32 %v1757, %v1758
    %v1760 = vrot.slane %v1759, 2
    %v1761 = vmax.f32 %v1759, %v1760
    %v1762 = vrot.slane %v1761, 1
    %v1763 = vmax.f32 %v1761, %v1762
    %v1764 = vsel %vm320, %v1171, -inf
    %v1765 = vrot.slane %v1764, 4
    %v1766 = vmax.f32 %v1764, %v1765
    %v1767 = vrot.slane %v1766, 2
    %v1768 = vmax.f32 %v1766, %v1767
    %v1769 = vrot.slane %v1768, 1
    %v1770 = vmax.f32 %v1768, %v1769
    %v1771 = vsel %vm320, %v1179, -inf
    %v1772 = vrot.slane %v1771, 4
    %v1773 = vmax.f32 %v1771, %v1772
    %v1774 = vrot.slane %v1773, 2
    %v1775 = vmax.f32 %v1773, %v1774
    %v1776 = vrot.slane %v1775, 1
    %v1777 = vmax.f32 %v1775, %v1776
    %v1778 = vsel %vm320, %v1178, -inf
    %v1779 = vrot.slane %v1778, 4
    %v1780 = vmax.f32 %v1778, %v1779
    %v1781 = vrot.slane %v1780, 2
    %v1782 = vmax.f32 %v1780, %v1781
    %v1783 = vrot.slane %v1782, 1
    %v1784 = vmax.f32 %v1782, %v1783
    %v1785 = vsel %vm1756, %v1180, -inf
    %v1786 = vrot.slane %v1785, 4
    %v1787 = vmax.f32 %v1785, %v1786
    %v1788 = vrot.slane %v1787, 2
    %v1789 = vmax.f32 %v1787, %v1788
    %v1790 = vrot.slane %v1789, 1
    %v1791 = vmax.f32 %v1789, %v1790
    %v1792 = vsel %vm320, %v1188, -inf
    %v1793 = vrot.slane %v1792, 4
    %v1794 = vmax.f32 %v1792, %v1793
    %v1795 = vrot.slane %v1794, 2
    %v1796 = vmax.f32 %v1794, %v1795
    %v1797 = vrot.slane %v1796, 1
    %v1798 = vmax.f32 %v1796, %v1797
    %v1799 = vsel %vm320, %v1196, -inf
    %v1800 = vrot.slane %v1799, 4
    %v1801 = vmax.f32 %v1799, %v1800
    %v1802 = vrot.slane %v1801, 2
    %v1803 = vmax.f32 %v1801, %v1802
    %v1804 = vrot.slane %v1803, 1
    %v1805 = vmax.f32 %v1803, %v1804
    %v1806 = vsel %vm320, %v1195, -inf
    %v1807 = vrot.slane %v1806, 4
    %v1808 = vmax.f32 %v1806, %v1807
    %v1809 = vrot.slane %v1808, 2
    %v1810 = vmax.f32 %v1808, %v1809
    %v1811 = vrot.slane %v1810, 1
    %v1812 = vmax.f32 %v1810, %v1811
    %v1813 = vsel %vm1756, %v1197, -inf
    %v1814 = vrot.slane %v1813, 4
    %v1815 = vmax.f32 %v1813, %v1814
    %v1816 = vrot.slane %v1815, 2
    %v1817 = vmax.f32 %v1815, %v1816
    %v1818 = vrot.slane %v1817, 1
    %v1819 = vmax.f32 %v1817, %v1818
    %v1820 = vsel %vm320, %v1205, -inf
    %v1821 = vrot.slane %v1820, 4
    %v1822 = vmax.f32 %v1820, %v1821
    %v1823 = vrot.slane %v1822, 2
    %v1824 = vmax.f32 %v1822, %v1823
    %v1825 = vrot.slane %v1824, 1
    %v1826 = vmax.f32 %v1824, %v1825
    %v1827 = vsel %vm320, %v1213, -inf
    %v1828 = vrot.slane %v1827, 4
    %v1829 = vmax.f32 %v1827, %v1828
    %v1830 = vrot.slane %v1829, 2
    %v1831 = vmax.f32 %v1829, %v1830
    %v1832 = vrot.slane %v1831, 1
    %v1833 = vmax.f32 %v1831, %v1832
    %v1834 = vsel %vm320, %v1212, -inf
    %v1835 = vrot.slane %v1834, 4
    %v1836 = vmax.f32 %v1834, %v1835
    %v1837 = vrot.slane %v1836, 2
    %v1838 = vmax.f32 %v1836, %v1837
    %v1839 = vrot.slane %v1838, 1
    %v1840 = vmax.f32 %v1838, %v1839
    %v1841 = vsel %vm1756, %v1214, -inf
    %v1842 = vrot.slane %v1841, 4
    %v1843 = vmax.f32 %v1841, %v1842
    %v1844 = vrot.slane %v1843, 2
    %v1845 = vmax.f32 %v1843, %v1844
    %v1846 = vrot.slane %v1845, 1
    %v1847 = vmax.f32 %v1845, %v1846
    %v1848 = vsel %vm320, %v1222, -inf
    %v1849 = vrot.slane %v1848, 4
    %v1850 = vmax.f32 %v1848, %v1849
    %v1851 = vrot.slane %v1850, 2
    %v1852 = vmax.f32 %v1850, %v1851
    %v1853 = vrot.slane %v1852, 1
    %v1854 = vmax.f32 %v1852, %v1853
    %v1855 = vsel %vm320, %v1230, -inf
    %v1856 = vrot.slane %v1855, 4
    %v1857 = vmax.f32 %v1855, %v1856
    %v1858 = vrot.slane %v1857, 2
    %v1859 = vmax.f32 %v1857, %v1858
    %v1860 = vrot.slane %v1859, 1
    %v1861 = vmax.f32 %v1859, %v1860
    %v1862 = vsel %vm320, %v1229, -inf
    %v1863 = vrot.slane %v1862, 4
    %v1864 = vmax.f32 %v1862, %v1863
    %v1865 = vrot.slane %v1864, 2
    %v1866 = vmax.f32 %v1864, %v1865
    %v1867 = vrot.slane %v1866, 1
    %v1868 = vmax.f32 %v1866, %v1867
    %v1869 = vsel %vm1756, %v1231, -inf
    %v1870 = vrot.slane %v1869, 4
    %v1871 = vmax.f32 %v1869, %v1870
    %v1872 = vrot.slane %v1871, 2
    %v1873 = vmax.f32 %v1871, %v1872
    %v1874 = vrot.slane %v1873, 1
    %v1875 = vmax.f32 %v1873, %v1874
    %v1876 = vsel %vm320, %v1239, -inf
    %v1877 = vrot.slane %v1876, 4
    %v1878 = vmax.f32 %v1876, %v1877
    %v1879 = vrot.slane %v1878, 2
    %v1880 = vmax.f32 %v1878, %v1879
    %v1881 = vrot.slane %v1880, 1
    %v1882 = vmax.f32 %v1880, %v1881
    %v1883 = vsel %vm320, %v1247, -inf
    %v1884 = vrot.slane %v1883, 4
    %v1885 = vmax.f32 %v1883, %v1884
    %v1886 = vrot.slane %v1885, 2
    %v1887 = vmax.f32 %v1885, %v1886
    %v1888 = vrot.slane %v1887, 1
    %v1889 = vmax.f32 %v1887, %v1888
    %v1890 = vsel %vm320, %v1246, -inf
    %v1891 = vrot.slane %v1890, 4
    %v1892 = vmax.f32 %v1890, %v1891
    %v1893 = vrot.slane %v1892, 2
    %v1894 = vmax.f32 %v1892, %v1893
    %v1895 = vrot.slane %v1894, 1
    %v1896 = vmax.f32 %v1894, %v1895
    %v1897 = vsel %vm1756, %v1248, -inf
    %v1898 = vrot.slane %v1897, 4
    %v1899 = vmax.f32 %v1897, %v1898
    %v1900 = vrot.slane %v1899, 2
    %v1901 = vmax.f32 %v1899, %v1900
    %v1902 = vrot.slane %v1901, 1
    %v1903 = vmax.f32 %v1901, %v1902
    %v1904 = vsel %vm320, %v1256, -inf
    %v1905 = vrot.slane %v1904, 4
    %v1906 = vmax.f32 %v1904, %v1905
    %v1907 = vrot.slane %v1906, 2
    %v1908 = vmax.f32 %v1906, %v1907
    %v1909 = vrot.slane %v1908, 1
    %v1910 = vmax.f32 %v1908, %v1909
    %v1911 = vsel %vm320, %v1264, -inf
    %v1912 = vrot.slane %v1911, 4
    %v1913 = vmax.f32 %v1911, %v1912
    %v1914 = vrot.slane %v1913, 2
    %v1915 = vmax.f32 %v1913, %v1914
    %v1916 = vrot.slane %v1915, 1
    %v1917 = vmax.f32 %v1915, %v1916
    %v1918 = vsel %vm320, %v1263, -inf
    %v1919 = vrot.slane %v1918, 4
    %v1920 = vmax.f32 %v1918, %v1919
    %v1921 = vrot.slane %v1920, 2
    %v1922 = vmax.f32 %v1920, %v1921
    %v1923 = vrot.slane %v1922, 1
    %v1924 = vmax.f32 %v1922, %v1923
    %v1925 = vsel %vm1756, %v1265, -inf
    %v1926 = vrot.slane %v1925, 4
    %v1927 = vmax.f32 %v1925, %v1926
    %v1928 = vrot.slane %v1927, 2
    %v1929 = vmax.f32 %v1927, %v1928
    %v1930 = vrot.slane %v1929, 1
    %v1931 = vmax.f32 %v1929, %v1930
    %v1932 = vsel %vm320, %v1273, -inf
    %v1933 = vrot.slane %v1932, 4
    %v1934 = vmax.f32 %v1932, %v1933
    %v1935 = vrot.slane %v1934, 2
    %v1936 = vmax.f32 %v1934, %v1935
    %v1937 = vrot.slane %v1936, 1
    %v1938 = vmax.f32 %v1936, %v1937
    %v1939 = vsel %vm320, %v1281, -inf
    %v1940 = vrot.slane %v1939, 4
    %v1941 = vmax.f32 %v1939, %v1940
    %v1942 = vrot.slane %v1941, 2
    %v1943 = vmax.f32 %v1941, %v1942
    %v1944 = vrot.slane %v1943, 1
    %v1945 = vmax.f32 %v1943, %v1944
    %v1946 = vsel %vm320, %v1280, -inf
    %v1947 = vrot.slane %v1946, 4
    %v1948 = vmax.f32 %v1946, %v1947
    %v1949 = vrot.slane %v1948, 2
    %v1950 = vmax.f32 %v1948, %v1949
    %v1951 = vrot.slane %v1950, 1
    %v1952 = vmax.f32 %v1950, %v1951
    %v1953 = vsel %vm1756, %v1282, -inf
    %v1954 = vrot.slane %v1953, 4
    %v1955 = vmax.f32 %v1953, %v1954
    %v1956 = vrot.slane %v1955, 2
    %v1957 = vmax.f32 %v1955, %v1956
    %v1958 = vrot.slane %v1957, 1
    %v1959 = vmax.f32 %v1957, %v1958
    %v1960 = vsel %vm320, %v1290, -inf
    %v1961 = vrot.slane %v1960, 4
    %v1962 = vmax.f32 %v1960, %v1961
    %v1963 = vrot.slane %v1962, 2
    %v1964 = vmax.f32 %v1962, %v1963
    %v1965 = vrot.slane %v1964, 1
    %v1966 = vmax.f32 %v1964, %v1965
    %v1967 = vsel %vm320, %v1298, -inf
    %v1968 = vrot.slane %v1967, 4
    %v1969 = vmax.f32 %v1967, %v1968
    %v1970 = vrot.slane %v1969, 2
    %v1971 = vmax.f32 %v1969, %v1970
    %v1972 = vrot.slane %v1971, 1
    %v1973 = vmax.f32 %v1971, %v1972
    %v1974 = vsel %vm320, %v1297, -inf
    %v1975 = vrot.slane %v1974, 4
    %v1976 = vmax.f32 %v1974, %v1975
    %v1977 = vrot.slane %v1976, 2
    %v1978 = vmax.f32 %v1976, %v1977
    %v1979 = vrot.slane %v1978, 1
    %v1980 = vmax.f32 %v1978, %v1979
    %v1981 = vsel %vm1756, %v1299, -inf
    %v1982 = vrot.slane %v1981, 4
    %v1983 = vmax.f32 %v1981, %v1982
    %v1984 = vrot.slane %v1983, 2
    %v1985 = vmax.f32 %v1983, %v1984
    %v1986 = vrot.slane %v1985, 1
    %v1987 = vmax.f32 %v1985, %v1986
    %v1988 = vsel %vm320, %v1307, -inf
    %v1989 = vrot.slane %v1988, 4
    %v1990 = vmax.f32 %v1988, %v1989
    %v1991 = vrot.slane %v1990, 2
    %v1992 = vmax.f32 %v1990, %v1991
    %v1993 = vrot.slane %v1992, 1
    %v1994 = vmax.f32 %v1992, %v1993
    %v1995 = vsel %vm320, %v1315, -inf
    %v1996 = vrot.slane %v1995, 4
    %v1997 = vmax.f32 %v1995, %v1996
    %v1998 = vrot.slane %v1997, 2
    %v1999 = vmax.f32 %v1997, %v1998
    %v2000 = vrot.slane %v1999, 1
    %v2001 = vmax.f32 %v1999, %v2000
    %v2002 = vsel %vm320, %v1314, -inf
    %v2003 = vrot.slane %v2002, 4
    %v2004 = vmax.f32 %v2002, %v2003
    %v2005 = vrot.slane %v2004, 2
    %v2006 = vmax.f32 %v2004, %v2005
    %v2007 = vrot.slane %v2006, 1
    %v2008 = vmax.f32 %v2006, %v2007
    %v2009 = vsel %vm1756, %v1316, -inf
    %v2010 = vrot.slane %v2009, 4
    %v2011 = vmax.f32 %v2009, %v2010
    %v2012 = vrot.slane %v2011, 2
    %v2013 = vmax.f32 %v2011, %v2012
    %v2014 = vrot.slane %v2013, 1
    %v2015 = vmax.f32 %v2013, %v2014
    %v2016 = vsel %vm320, %v1324, -inf
    %v2017 = vrot.slane %v2016, 4
    %v2018 = vmax.f32 %v2016, %v2017
    %v2019 = vrot.slane %v2018, 2
    %v2020 = vmax.f32 %v2018, %v2019
    %v2021 = vrot.slane %v2020, 1
    %v2022 = vmax.f32 %v2020, %v2021
    %v2023 = vsel %vm320, %v1332, -inf
    %v2024 = vrot.slane %v2023, 4
    %v2025 = vmax.f32 %v2023, %v2024
    %v2026 = vrot.slane %v2025, 2
    %v2027 = vmax.f32 %v2025, %v2026
    %v2028 = vrot.slane %v2027, 1
    %v2029 = vmax.f32 %v2027, %v2028
    %v2030 = vsel %vm320, %v1331, -inf
    %v2031 = vrot.slane %v2030, 4
    %v2032 = vmax.f32 %v2030, %v2031
    %v2033 = vrot.slane %v2032, 2
    %v2034 = vmax.f32 %v2032, %v2033
    %v2035 = vrot.slane %v2034, 1
    %v2036 = vmax.f32 %v2034, %v2035
    %v2037 = vsel %vm1756, %v1333, -inf
    %v2038 = vrot.slane %v2037, 4
    %v2039 = vmax.f32 %v2037, %v2038
    %v2040 = vrot.slane %v2039, 2
    %v2041 = vmax.f32 %v2039, %v2040
    %v2042 = vrot.slane %v2041, 1
    %v2043 = vmax.f32 %v2041, %v2042
    %v2044 = vsel %vm320, %v1341, -inf
    %v2045 = vrot.slane %v2044, 4
    %v2046 = vmax.f32 %v2044, %v2045
    %v2047 = vrot.slane %v2046, 2
    %v2048 = vmax.f32 %v2046, %v2047
    %v2049 = vrot.slane %v2048, 1
    %v2050 = vmax.f32 %v2048, %v2049
    %v2051 = vsel %vm320, %v1349, -inf
    %v2052 = vrot.slane %v2051, 4
    %v2053 = vmax.f32 %v2051, %v2052
    %v2054 = vrot.slane %v2053, 2
    %v2055 = vmax.f32 %v2053, %v2054
    %v2056 = vrot.slane %v2055, 1
    %v2057 = vmax.f32 %v2055, %v2056
    %v2058 = vsel %vm320, %v1348, -inf
    %v2059 = vrot.slane %v2058, 4
    %v2060 = vmax.f32 %v2058, %v2059
    %v2061 = vrot.slane %v2060, 2
    %v2062 = vmax.f32 %v2060, %v2061
    %v2063 = vrot.slane %v2062, 1
    %v2064 = vmax.f32 %v2062, %v2063
    %v2065 = vsel %vm1756, %v1350, -inf
    %v2066 = vrot.slane %v2065, 4
    %v2067 = vmax.f32 %v2065, %v2066
    %v2068 = vrot.slane %v2067, 2
    %v2069 = vmax.f32 %v2067, %v2068
    %v2070 = vrot.slane %v2069, 1
    %v2071 = vmax.f32 %v2069, %v2070
    %v2072 = vsel %vm320, %v1358, -inf
    %v2073 = vrot.slane %v2072, 4
    %v2074 = vmax.f32 %v2072, %v2073
    %v2075 = vrot.slane %v2074, 2
    %v2076 = vmax.f32 %v2074, %v2075
    %v2077 = vrot.slane %v2076, 1
    %v2078 = vmax.f32 %v2076, %v2077
    %v2079 = vsel %vm320, %v1366, -inf
    %v2080 = vrot.slane %v2079, 4
    %v2081 = vmax.f32 %v2079, %v2080
    %v2082 = vrot.slane %v2081, 2
    %v2083 = vmax.f32 %v2081, %v2082
    %v2084 = vrot.slane %v2083, 1
    %v2085 = vmax.f32 %v2083, %v2084
    %v2086 = vsel %vm320, %v1365, -inf
    %v2087 = vrot.slane %v2086, 4
    %v2088 = vmax.f32 %v2086, %v2087
    %v2089 = vrot.slane %v2088, 2
    %v2090 = vmax.f32 %v2088, %v2089
    %v2091 = vrot.slane %v2090, 1
    %v2092 = vmax.f32 %v2090, %v2091
    %v2093 = vsel %vm1756, %v1367, -inf
    %v2094 = vrot.slane %v2093, 4
    %v2095 = vmax.f32 %v2093, %v2094
    %v2096 = vrot.slane %v2095, 2
    %v2097 = vmax.f32 %v2095, %v2096
    %v2098 = vrot.slane %v2097, 1
    %v2099 = vmax.f32 %v2097, %v2098
    %v2100 = vsel %vm320, %v1375, -inf
    %v2101 = vrot.slane %v2100, 4
    %v2102 = vmax.f32 %v2100, %v2101
    %v2103 = vrot.slane %v2102, 2
    %v2104 = vmax.f32 %v2102, %v2103
    %v2105 = vrot.slane %v2104, 1
    %v2106 = vmax.f32 %v2104, %v2105
    %v2107 = vsel %vm320, %v1383, -inf
    %v2108 = vrot.slane %v2107, 4
    %v2109 = vmax.f32 %v2107, %v2108
    %v2110 = vrot.slane %v2109, 2
    %v2111 = vmax.f32 %v2109, %v2110
    %v2112 = vrot.slane %v2111, 1
    %v2113 = vmax.f32 %v2111, %v2112
    %v2114 = vsel %vm320, %v1382, -inf
    %v2115 = vrot.slane %v2114, 4
    %v2116 = vmax.f32 %v2114, %v2115
    %v2117 = vrot.slane %v2116, 2
    %v2118 = vmax.f32 %v2116, %v2117
    %v2119 = vrot.slane %v2118, 1
    %v2120 = vmax.f32 %v2118, %v2119
    %v2121 = vsel %vm1756, %v1384, -inf
    %v2122 = vrot.slane %v2121, 4
    %v2123 = vmax.f32 %v2121, %v2122
    %v2124 = vrot.slane %v2123, 2
    %v2125 = vmax.f32 %v2123, %v2124
    %v2126 = vrot.slane %v2125, 1
    %v2127 = vmax.f32 %v2125, %v2126
    %v2128 = vsel %vm320, %v1392, -inf
    %v2129 = vrot.slane %v2128, 4
    %v2130 = vmax.f32 %v2128, %v2129
    %v2131 = vrot.slane %v2130, 2
    %v2132 = vmax.f32 %v2130, %v2131
    %v2133 = vrot.slane %v2132, 1
    %v2134 = vmax.f32 %v2132, %v2133
    %v2135 = vsel %vm320, %v1400, -inf
    %v2136 = vrot.slane %v2135, 4
    %v2137 = vmax.f32 %v2135, %v2136
    %v2138 = vrot.slane %v2137, 2
    %v2139 = vmax.f32 %v2137, %v2138
    %v2140 = vrot.slane %v2139, 1
    %v2141 = vmax.f32 %v2139, %v2140
    %v2142 = vsel %vm320, %v1399, -inf
    %v2143 = vrot.slane %v2142, 4
    %v2144 = vmax.f32 %v2142, %v2143
    %v2145 = vrot.slane %v2144, 2
    %v2146 = vmax.f32 %v2144, %v2145
    %v2147 = vrot.slane %v2146, 1
    %v2148 = vmax.f32 %v2146, %v2147
    %v2149 = vsel %vm1756, %v1401, -inf
    %v2150 = vrot.slane %v2149, 4
    %v2151 = vmax.f32 %v2149, %v2150
    %v2152 = vrot.slane %v2151, 2
    %v2153 = vmax.f32 %v2151, %v2152
    %v2154 = vrot.slane %v2153, 1
    %v2155 = vmax.f32 %v2153, %v2154
    %v2156 = vsel %vm320, %v1409, -inf
    %v2157 = vrot.slane %v2156, 4
    %v2158 = vmax.f32 %v2156, %v2157
    %v2159 = vrot.slane %v2158, 2
    %v2160 = vmax.f32 %v2158, %v2159
    %v2161 = vrot.slane %v2160, 1
    %v2162 = vmax.f32 %v2160, %v2161
    %v2163 = vsel %vm320, %v1417, -inf
    %v2164 = vrot.slane %v2163, 4
    %v2165 = vmax.f32 %v2163, %v2164
    %v2166 = vrot.slane %v2165, 2
    %v2167 = vmax.f32 %v2165, %v2166
    %v2168 = vrot.slane %v2167, 1
    %v2169 = vmax.f32 %v2167, %v2168
    %v2170 = vsel %vm320, %v1416, -inf
    %v2171 = vrot.slane %v2170, 4
    %v2172 = vmax.f32 %v2170, %v2171
    %v2173 = vrot.slane %v2172, 2
    %v2174 = vmax.f32 %v2172, %v2173
    %v2175 = vrot.slane %v2174, 1
    %v2176 = vmax.f32 %v2174, %v2175
    %v2177 = vsel %vm1756, %v1418, -inf
    %v2178 = vrot.slane %v2177, 4
    %v2179 = vmax.f32 %v2177, %v2178
    %v2180 = vrot.slane %v2179, 2
    %v2181 = vmax.f32 %v2179, %v2180
    %v2182 = vrot.slane %v2181, 1
    %v2183 = vmax.f32 %v2181, %v2182
    %v2184 = vsel %vm320, %v1426, -inf
    %v2185 = vrot.slane %v2184, 4
    %v2186 = vmax.f32 %v2184, %v2185
    %v2187 = vrot.slane %v2186, 2
    %v2188 = vmax.f32 %v2186, %v2187
    %v2189 = vrot.slane %v2188, 1
    %v2190 = vmax.f32 %v2188, %v2189
    %v2191 = vsel %vm320, %v1434, -inf
    %v2192 = vrot.slane %v2191, 4
    %v2193 = vmax.f32 %v2191, %v2192
    %v2194 = vrot.slane %v2193, 2
    %v2195 = vmax.f32 %v2193, %v2194
    %v2196 = vrot.slane %v2195, 1
    %v2197 = vmax.f32 %v2195, %v2196
    %v2198 = vsel %vm320, %v1433, -inf
    %v2199 = vrot.slane %v2198, 4
    %v2200 = vmax.f32 %v2198, %v2199
    %v2201 = vrot.slane %v2200, 2
    %v2202 = vmax.f32 %v2200, %v2201
    %v2203 = vrot.slane %v2202, 1
    %v2204 = vmax.f32 %v2202, %v2203
    %v2205 = vsel %vm1756, %v1435, -inf
    %v2206 = vrot.slane %v2205, 4
    %v2207 = vmax.f32 %v2205, %v2206
    %v2208 = vrot.slane %v2207, 2
    %v2209 = vmax.f32 %v2207, %v2208
    %v2210 = vrot.slane %v2209, 1
    %v2211 = vmax.f32 %v2209, %v2210
    %v2212 = vsel %vm320, %v1443, -inf
    %v2213 = vrot.slane %v2212, 4
    %v2214 = vmax.f32 %v2212, %v2213
    %v2215 = vrot.slane %v2214, 2
    %v2216 = vmax.f32 %v2214, %v2215
    %v2217 = vrot.slane %v2216, 1
    %v2218 = vmax.f32 %v2216, %v2217
    %v2219 = vsel %vm320, %v1451, -inf
    %v2220 = vrot.slane %v2219, 4
    %v2221 = vmax.f32 %v2219, %v2220
    %v2222 = vrot.slane %v2221, 2
    %v2223 = vmax.f32 %v2221, %v2222
    %v2224 = vrot.slane %v2223, 1
    %v2225 = vmax.f32 %v2223, %v2224
    %v2226 = vsel %vm320, %v1450, -inf
    %v2227 = vrot.slane %v2226, 4
    %v2228 = vmax.f32 %v2226, %v2227
    %v2229 = vrot.slane %v2228, 2
    %v2230 = vmax.f32 %v2228, %v2229
    %v2231 = vrot.slane %v2230, 1
    %v2232 = vmax.f32 %v2230, %v2231
    %v2233 = vsel %vm1756, %v1452, -inf
    %v2234 = vrot.slane %v2233, 4
    %v2235 = vmax.f32 %v2233, %v2234
    %v2236 = vrot.slane %v2235, 2
    %v2237 = vmax.f32 %v2235, %v2236
    %v2238 = vrot.slane %v2237, 1
    %v2239 = vmax.f32 %v2237, %v2238
    %v2240 = vsel %vm320, %v1460, -inf
    %v2241 = vrot.slane %v2240, 4
    %v2242 = vmax.f32 %v2240, %v2241
    %v2243 = vrot.slane %v2242, 2
    %v2244 = vmax.f32 %v2242, %v2243
    %v2245 = vrot.slane %v2244, 1
    %v2246 = vmax.f32 %v2244, %v2245
    %v2247 = vsel %vm320, %v1468, -inf
    %v2248 = vrot.slane %v2247, 4
    %v2249 = vmax.f32 %v2247, %v2248
    %v2250 = vrot.slane %v2249, 2
    %v2251 = vmax.f32 %v2249, %v2250
    %v2252 = vrot.slane %v2251, 1
    %v2253 = vmax.f32 %v2251, %v2252
    %v2254 = vsel %vm320, %v1467, -inf
    %v2255 = vrot.slane %v2254, 4
    %v2256 = vmax.f32 %v2254, %v2255
    %v2257 = vrot.slane %v2256, 2
    %v2258 = vmax.f32 %v2256, %v2257
    %v2259 = vrot.slane %v2258, 1
    %v2260 = vmax.f32 %v2258, %v2259
    %v2261 = vsel %vm1756, %v1469, -inf
    %v2262 = vrot.slane %v2261, 4
    %v2263 = vmax.f32 %v2261, %v2262
    %v2264 = vrot.slane %v2263, 2
    %v2265 = vmax.f32 %v2263, %v2264
    %v2266 = vrot.slane %v2265, 1
    %v2267 = vmax.f32 %v2265, %v2266
    %v2268 = vsel %vm320, %v1477, -inf
    %v2269 = vrot.slane %v2268, 4
    %v2270 = vmax.f32 %v2268, %v2269
    %v2271 = vrot.slane %v2270, 2
    %v2272 = vmax.f32 %v2270, %v2271
    %v2273 = vrot.slane %v2272, 1
    %v2274 = vmax.f32 %v2272, %v2273
    %v2275 = vsel %vm320, %v1485, -inf
    %v2276 = vrot.slane %v2275, 4
    %v2277 = vmax.f32 %v2275, %v2276
    %v2278 = vrot.slane %v2277, 2
    %v2279 = vmax.f32 %v2277, %v2278
    %v2280 = vrot.slane %v2279, 1
    %v2281 = vmax.f32 %v2279, %v2280
    %v2282 = vsel %vm320, %v1484, -inf
    %v2283 = vrot.slane %v2282, 4
    %v2284 = vmax.f32 %v2282, %v2283
    %v2285 = vrot.slane %v2284, 2
    %v2286 = vmax.f32 %v2284, %v2285
    %v2287 = vrot.slane %v2286, 1
    %v2288 = vmax.f32 %v2286, %v2287
    %v2289 = vsel %vm1756, %v1486, -inf
    %v2290 = vrot.slane %v2289, 4
    %v2291 = vmax.f32 %v2289, %v2290
    %v2292 = vrot.slane %v2291, 2
    %v2293 = vmax.f32 %v2291, %v2292
    %v2294 = vrot.slane %v2293, 1
    %v2295 = vmax.f32 %v2293, %v2294
    %v2296 = vsel %vm320, %v1494, -inf
    %v2297 = vrot.slane %v2296, 4
    %v2298 = vmax.f32 %v2296, %v2297
    %v2299 = vrot.slane %v2298, 2
    %v2300 = vmax.f32 %v2298, %v2299
    %v2301 = vrot.slane %v2300, 1
    %v2302 = vmax.f32 %v2300, %v2301
    %v2303 = vsel %vm320, %v1502, -inf
    %v2304 = vrot.slane %v2303, 4
    %v2305 = vmax.f32 %v2303, %v2304
    %v2306 = vrot.slane %v2305, 2
    %v2307 = vmax.f32 %v2305, %v2306
    %v2308 = vrot.slane %v2307, 1
    %v2309 = vmax.f32 %v2307, %v2308
    %v2310 = vsel %vm320, %v1501, -inf
    %v2311 = vrot.slane %v2310, 4
    %v2312 = vmax.f32 %v2310, %v2311
    %v2313 = vrot.slane %v2312, 2
    %v2314 = vmax.f32 %v2312, %v2313
    %v2315 = vrot.slane %v2314, 1
    %v2316 = vmax.f32 %v2314, %v2315
    %v2317 = vsel %vm1756, %v1503, -inf
    %v2318 = vrot.slane %v2317, 4
    %v2319 = vmax.f32 %v2317, %v2318
    %v2320 = vrot.slane %v2319, 2
    %v2321 = vmax.f32 %v2319, %v2320
    %v2322 = vrot.slane %v2321, 1
    %v2323 = vmax.f32 %v2321, %v2322
    %v2324 = vsel %vm320, %v1511, -inf
    %v2325 = vrot.slane %v2324, 4
    %v2326 = vmax.f32 %v2324, %v2325
    %v2327 = vrot.slane %v2326, 2
    %v2328 = vmax.f32 %v2326, %v2327
    %v2329 = vrot.slane %v2328, 1
    %v2330 = vmax.f32 %v2328, %v2329
    %v2331 = vsel %vm320, %v1519, -inf
    %v2332 = vrot.slane %v2331, 4
    %v2333 = vmax.f32 %v2331, %v2332
    %v2334 = vrot.slane %v2333, 2
    %v2335 = vmax.f32 %v2333, %v2334
    %v2336 = vrot.slane %v2335, 1
    %v2337 = vmax.f32 %v2335, %v2336
    %v2338 = vsel %vm320, %v1518, -inf
    %v2339 = vrot.slane %v2338, 4
    %v2340 = vmax.f32 %v2338, %v2339
    %v2341 = vrot.slane %v2340, 2
    %v2342 = vmax.f32 %v2340, %v2341
    %v2343 = vrot.slane %v2342, 1
    %v2344 = vmax.f32 %v2342, %v2343
    %v2345 = vsel %vm1756, %v1520, -inf
    %v2346 = vrot.slane %v2345, 4
    %v2347 = vmax.f32 %v2345, %v2346
    %v2348 = vrot.slane %v2347, 2
    %v2349 = vmax.f32 %v2347, %v2348
    %v2350 = vrot.slane %v2349, 1
    %v2351 = vmax.f32 %v2349, %v2350
    %v2352 = vsel %vm320, %v1528, -inf
    %v2353 = vrot.slane %v2352, 4
    %v2354 = vmax.f32 %v2352, %v2353
    %v2355 = vrot.slane %v2354, 2
    %v2356 = vmax.f32 %v2354, %v2355
    %v2357 = vrot.slane %v2356, 1
    %v2358 = vmax.f32 %v2356, %v2357
    %v2359 = vsel %vm320, %v1536, -inf
    %v2360 = vrot.slane %v2359, 4
    %v2361 = vmax.f32 %v2359, %v2360
    %v2362 = vrot.slane %v2361, 2
    %v2363 = vmax.f32 %v2361, %v2362
    %v2364 = vrot.slane %v2363, 1
    %v2365 = vmax.f32 %v2363, %v2364
    %v2366 = vsel %vm320, %v1535, -inf
    %v2367 = vrot.slane %v2366, 4
    %v2368 = vmax.f32 %v2366, %v2367
    %v2369 = vrot.slane %v2368, 2
    %v2370 = vmax.f32 %v2368, %v2369
    %v2371 = vrot.slane %v2370, 1
    %v2372 = vmax.f32 %v2370, %v2371
    %v2373 = vsel %vm1756, %v1537, -inf
    %v2374 = vrot.slane %v2373, 4
    %v2375 = vmax.f32 %v2373, %v2374
    %v2376 = vrot.slane %v2375, 2
    %v2377 = vmax.f32 %v2375, %v2376
    %v2378 = vrot.slane %v2377, 1
    %v2379 = vmax.f32 %v2377, %v2378
    %v2380 = vsel %vm320, %v1545, -inf
    %v2381 = vrot.slane %v2380, 4
    %v2382 = vmax.f32 %v2380, %v2381
    %v2383 = vrot.slane %v2382, 2
    %v2384 = vmax.f32 %v2382, %v2383
    %v2385 = vrot.slane %v2384, 1
    %v2386 = vmax.f32 %v2384, %v2385
    %v2387 = vsel %vm320, %v1553, -inf
    %v2388 = vrot.slane %v2387, 4
    %v2389 = vmax.f32 %v2387, %v2388
    %v2390 = vrot.slane %v2389, 2
    %v2391 = vmax.f32 %v2389, %v2390
    %v2392 = vrot.slane %v2391, 1
    %v2393 = vmax.f32 %v2391, %v2392
    %v2394 = vsel %vm320, %v1552, -inf
    %v2395 = vrot.slane %v2394, 4
    %v2396 = vmax.f32 %v2394, %v2395
    %v2397 = vrot.slane %v2396, 2
    %v2398 = vmax.f32 %v2396, %v2397
    %v2399 = vrot.slane %v2398, 1
    %v2400 = vmax.f32 %v2398, %v2399
    %v2401 = vsel %vm1756, %v1554, -inf
    %v2402 = vrot.slane %v2401, 4
    %v2403 = vmax.f32 %v2401, %v2402
    %v2404 = vrot.slane %v2403, 2
    %v2405 = vmax.f32 %v2403, %v2404
    %v2406 = vrot.slane %v2405, 1
    %v2407 = vmax.f32 %v2405, %v2406
    %v2408 = vsel %vm320, %v1562, -inf
    %v2409 = vrot.slane %v2408, 4
    %v2410 = vmax.f32 %v2408, %v2409
    %v2411 = vrot.slane %v2410, 2
    %v2412 = vmax.f32 %v2410, %v2411
    %v2413 = vrot.slane %v2412, 1
    %v2414 = vmax.f32 %v2412, %v2413
    %v2415 = vsel %vm320, %v1570, -inf
    %v2416 = vrot.slane %v2415, 4
    %v2417 = vmax.f32 %v2415, %v2416
    %v2418 = vrot.slane %v2417, 2
    %v2419 = vmax.f32 %v2417, %v2418
    %v2420 = vrot.slane %v2419, 1
    %v2421 = vmax.f32 %v2419, %v2420
    %v2422 = vsel %vm320, %v1569, -inf
    %v2423 = vrot.slane %v2422, 4
    %v2424 = vmax.f32 %v2422, %v2423
    %v2425 = vrot.slane %v2424, 2
    %v2426 = vmax.f32 %v2424, %v2425
    %v2427 = vrot.slane %v2426, 1
    %v2428 = vmax.f32 %v2426, %v2427
    %v2429 = vsel %vm1756, %v1571, -inf
    %v2430 = vrot.slane %v2429, 4
    %v2431 = vmax.f32 %v2429, %v2430
    %v2432 = vrot.slane %v2431, 2
    %v2433 = vmax.f32 %v2431, %v2432
    %v2434 = vrot.slane %v2433, 1
    %v2435 = vmax.f32 %v2433, %v2434
    %v2436 = vsel %vm320, %v1579, -inf
    %v2437 = vrot.slane %v2436, 4
    %v2438 = vmax.f32 %v2436, %v2437
    %v2439 = vrot.slane %v2438, 2
    %v2440 = vmax.f32 %v2438, %v2439
    %v2441 = vrot.slane %v2440, 1
    %v2442 = vmax.f32 %v2440, %v2441
    %v2443 = vsel %vm320, %v1587, -inf
    %v2444 = vrot.slane %v2443, 4
    %v2445 = vmax.f32 %v2443, %v2444
    %v2446 = vrot.slane %v2445, 2
    %v2447 = vmax.f32 %v2445, %v2446
    %v2448 = vrot.slane %v2447, 1
    %v2449 = vmax.f32 %v2447, %v2448
    %v2450 = vsel %vm320, %v1586, -inf
    %v2451 = vrot.slane %v2450, 4
    %v2452 = vmax.f32 %v2450, %v2451
    %v2453 = vrot.slane %v2452, 2
    %v2454 = vmax.f32 %v2452, %v2453
    %v2455 = vrot.slane %v2454, 1
    %v2456 = vmax.f32 %v2454, %v2455
    %v2457 = vsel %vm1756, %v1588, -inf
    %v2458 = vrot.slane %v2457, 4
    %v2459 = vmax.f32 %v2457, %v2458
    %v2460 = vrot.slane %v2459, 2
    %v2461 = vmax.f32 %v2459, %v2460
    %v2462 = vrot.slane %v2461, 1
    %v2463 = vmax.f32 %v2461, %v2462
    %v2464 = vsel %vm320, %v1596, -inf
    %v2465 = vrot.slane %v2464, 4
    %v2466 = vmax.f32 %v2464, %v2465
    %v2467 = vrot.slane %v2466, 2
    %v2468 = vmax.f32 %v2466, %v2467
    %v2469 = vrot.slane %v2468, 1
    %v2470 = vmax.f32 %v2468, %v2469
    %v2471 = vsel %vm320, %v1604, -inf
    %v2472 = vrot.slane %v2471, 4
    %v2473 = vmax.f32 %v2471, %v2472
    %v2474 = vrot.slane %v2473, 2
    %v2475 = vmax.f32 %v2473, %v2474
    %v2476 = vrot.slane %v2475, 1
    %v2477 = vmax.f32 %v2475, %v2476
    %v2478 = vsel %vm320, %v1603, -inf
    %v2479 = vrot.slane %v2478, 4
    %v2480 = vmax.f32 %v2478, %v2479
    %v2481 = vrot.slane %v2480, 2
    %v2482 = vmax.f32 %v2480, %v2481
    %v2483 = vrot.slane %v2482, 1
    %v2484 = vmax.f32 %v2482, %v2483
    %v2485 = vsel %vm1756, %v1605, -inf
    %v2486 = vrot.slane %v2485, 4
    %v2487 = vmax.f32 %v2485, %v2486
    %v2488 = vrot.slane %v2487, 2
    %v2489 = vmax.f32 %v2487, %v2488
    %v2490 = vrot.slane %v2489, 1
    %v2491 = vmax.f32 %v2489, %v2490
    %v2492 = vsel %vm320, %v1613, -inf
    %v2493 = vrot.slane %v2492, 4
    %v2494 = vmax.f32 %v2492, %v2493
    %v2495 = vrot.slane %v2494, 2
    %v2496 = vmax.f32 %v2494, %v2495
    %v2497 = vrot.slane %v2496, 1
    %v2498 = vmax.f32 %v2496, %v2497
    %v2499 = vsel %vm320, %v1621, -inf
    %v2500 = vrot.slane %v2499, 4
    %v2501 = vmax.f32 %v2499, %v2500
    %v2502 = vrot.slane %v2501, 2
    %v2503 = vmax.f32 %v2501, %v2502
    %v2504 = vrot.slane %v2503, 1
    %v2505 = vmax.f32 %v2503, %v2504
    %v2506 = vsel %vm320, %v1620, -inf
    %v2507 = vrot.slane %v2506, 4
    %v2508 = vmax.f32 %v2506, %v2507
    %v2509 = vrot.slane %v2508, 2
    %v2510 = vmax.f32 %v2508, %v2509
    %v2511 = vrot.slane %v2510, 1
    %v2512 = vmax.f32 %v2510, %v2511
    %v2513 = vsel %vm1756, %v1622, -inf
    %v2514 = vrot.slane %v2513, 4
    %v2515 = vmax.f32 %v2513, %v2514
    %v2516 = vrot.slane %v2515, 2
    %v2517 = vmax.f32 %v2515, %v2516
    %v2518 = vrot.slane %v2517, 1
    %v2519 = vmax.f32 %v2517, %v2518
    %v2520 = vpack.c.bf16 %v1741, %v1741
    %v2521 = vpack.c.bf16 %v1748, %v1748
    %v2522 = vpack.c.bf16 %v1755, %v1755
    %v2523 = vpack.c.bf16 %v1763, %v1763
    %v2524 = vpack.c.bf16 %v1770, %v1770
    %v2525 = vpack.c.bf16 %v1777, %v1777
    %v2526 = vpack.c.bf16 %v1784, %v1784
    %v2527 = vpack.c.bf16 %v1791, %v1791
    %v2528 = vpack.c.bf16 %v1798, %v1798
    %v2529 = vpack.c.bf16 %v1805, %v1805
    %v2530 = vpack.c.bf16 %v1812, %v1812
    %v2531 = vpack.c.bf16 %v1819, %v1819
    %v2532 = vpack.c.bf16 %v1826, %v1826
    %v2533 = vpack.c.bf16 %v1833, %v1833
    %v2534 = vpack.c.bf16 %v1840, %v1840
    %v2535 = vpack.c.bf16 %v1847, %v1847
    %v2536 = vpack.c.bf16 %v1854, %v1854
    %v2537 = vpack.c.bf16 %v1861, %v1861
    %v2538 = vpack.c.bf16 %v1868, %v1868
    %v2539 = vpack.c.bf16 %v1875, %v1875
    %v2540 = vpack.c.bf16 %v1882, %v1882
    %v2541 = vpack.c.bf16 %v1889, %v1889
    %v2542 = vpack.c.bf16 %v1896, %v1896
    %v2543 = vpack.c.bf16 %v1903, %v1903
    %v2544 = vpack.c.bf16 %v1910, %v1910
    %v2545 = vpack.c.bf16 %v1917, %v1917
    %v2546 = vpack.c.bf16 %v1924, %v1924
    %v2547 = vpack.c.bf16 %v1931, %v1931
    %v2548 = vpack.c.bf16 %v1938, %v1938
    %v2549 = vpack.c.bf16 %v1945, %v1945
    %v2550 = vpack.c.bf16 %v1952, %v1952
    %v2551 = vpack.c.bf16 %v1959, %v1959
    %v2552 = vpack.c.bf16 %v1966, %v1966
    %v2553 = vpack.c.bf16 %v1973, %v1973
    %v2554 = vpack.c.bf16 %v1980, %v1980
    %v2555 = vpack.c.bf16 %v1987, %v1987
    %v2556 = vpack.c.bf16 %v1994, %v1994
    %v2557 = vpack.c.bf16 %v2001, %v2001
    %v2558 = vpack.c.bf16 %v2008, %v2008
    %v2559 = vpack.c.bf16 %v2015, %v2015
    %v2560 = vpack.c.bf16 %v2022, %v2022
    %v2561 = vpack.c.bf16 %v2029, %v2029
    %v2562 = vpack.c.bf16 %v2036, %v2036
    %v2563 = vpack.c.bf16 %v2043, %v2043
    %v2564 = vpack.c.bf16 %v2050, %v2050
    %v2565 = vpack.c.bf16 %v2057, %v2057
    %v2566 = vpack.c.bf16 %v2064, %v2064
    %v2567 = vpack.c.bf16 %v2071, %v2071
    %v2568 = vpack.c.bf16 %v2078, %v2078
    %v2569 = vpack.c.bf16 %v2085, %v2085
    %v2570 = vpack.c.bf16 %v2092, %v2092
    %v2571 = vpack.c.bf16 %v2099, %v2099
    %v2572 = vpack.c.bf16 %v2106, %v2106
    %v2573 = vpack.c.bf16 %v2113, %v2113
    %v2574 = vpack.c.bf16 %v2120, %v2120
    %v2575 = vpack.c.bf16 %v2127, %v2127
    %v2576 = vpack.c.bf16 %v2134, %v2134
    %v2577 = vpack.c.bf16 %v2141, %v2141
    %v2578 = vpack.c.bf16 %v2148, %v2148
    %v2579 = vpack.c.bf16 %v2155, %v2155
    %v2580 = vpack.c.bf16 %v2162, %v2162
    %v2581 = vpack.c.bf16 %v2169, %v2169
    %v2582 = vpack.c.bf16 %v2176, %v2176
    %v2583 = vpack.c.bf16 %v2183, %v2183
    %v2584 = vpack.c.bf16 %v2190, %v2190
    %v2585 = vpack.c.bf16 %v2197, %v2197
    %v2586 = vpack.c.bf16 %v2204, %v2204
    %v2587 = vpack.c.bf16 %v2211, %v2211
    %v2588 = vpack.c.bf16 %v2218, %v2218
    %v2589 = vpack.c.bf16 %v2225, %v2225
    %v2590 = vpack.c.bf16 %v2232, %v2232
    %v2591 = vpack.c.bf16 %v2239, %v2239
    %v2592 = vpack.c.bf16 %v2246, %v2246
    %v2593 = vpack.c.bf16 %v2253, %v2253
    %v2594 = vpack.c.bf16 %v2260, %v2260
    %v2595 = vpack.c.bf16 %v2267, %v2267
    %v2596 = vpack.c.bf16 %v2274, %v2274
    %v2597 = vpack.c.bf16 %v2281, %v2281
    %v2598 = vpack.c.bf16 %v2288, %v2288
    %v2599 = vpack.c.bf16 %v2295, %v2295
    %v2600 = vpack.c.bf16 %v2302, %v2302
    %v2601 = vpack.c.bf16 %v2309, %v2309
    %v2602 = vpack.c.bf16 %v2316, %v2316
    %v2603 = vpack.c.bf16 %v2323, %v2323
    %v2604 = vpack.c.bf16 %v2330, %v2330
    %v2605 = vpack.c.bf16 %v2337, %v2337
    %v2606 = vpack.c.bf16 %v2344, %v2344
    %v2607 = vpack.c.bf16 %v2351, %v2351
    %v2608 = vpack.c.bf16 %v2358, %v2358
    %v2609 = vpack.c.bf16 %v2365, %v2365
    %v2610 = vpack.c.bf16 %v2372, %v2372
    %v2611 = vpack.c.bf16 %v2379, %v2379
    %v2612 = vpack.c.bf16 %v2386, %v2386
    %v2613 = vpack.c.bf16 %v2393, %v2393
    %v2614 = vpack.c.bf16 %v2400, %v2400
    %v2615 = vpack.c.bf16 %v2407, %v2407
    %v2616 = vpack.c.bf16 %v2414, %v2414
    %v2617 = vpack.c.bf16 %v2421, %v2421
    %v2618 = vpack.c.bf16 %v2428, %v2428
    %v2619 = vpack.c.bf16 %v2435, %v2435
    %v2620 = vpack.c.bf16 %v2442, %v2442
    %v2621 = vpack.c.bf16 %v2449, %v2449
    %v2622 = vpack.c.bf16 %v2456, %v2456
    %v2623 = vpack.c.bf16 %v2463, %v2463
    %v2624 = vpack.c.bf16 %v2470, %v2470
    %v2625 = vpack.c.bf16 %v2477, %v2477
    %v2626 = vpack.c.bf16 %v2484, %v2484
    %v2627 = vpack.c.bf16 %v2491, %v2491
    %v2628 = vpack.c.bf16 %v2498, %v2498
    %v2629 = vpack.c.bf16 %v2505, %v2505
    %v2630 = vpack.c.bf16 %v2512, %v2512
    %v2631 = vpack.c.bf16 %v2519, %v2519
    %v2632 = vld [vmem:[#allocation10] sm:$0xff]
    %v2633 = vld [vmem:[#allocation10 + $0x8] sm:$0xf]
    %v2634 = vld [vmem:[#allocation10 + $0xc] sm:$0xff]
    %v2635 = vld [vmem:[#allocation10 + $0x14] sm:$0xf]
    %v2636 = vld [vmem:[#allocation10 + $0x18] sm:$0xff]
    %v2637 = vld [vmem:[#allocation10 + $0x20] sm:$0xf]
    %v2638 = vld [vmem:[#allocation10 + $0x24] sm:$0xff]
    %v2639 = vld [vmem:[#allocation10 + $0x2c] sm:$0xf]
    %v2640 = vld [vmem:[#allocation10 + $0x30] sm:$0xff]
    %v2641 = vld [vmem:[#allocation10 + $0x38] sm:$0xf]
    %v2642 = vld [vmem:[#allocation10 + $0x3c] sm:$0xff]
    %v2643 = vld [vmem:[#allocation10 + $0x44] sm:$0xf]
    %v2644 = vld [vmem:[#allocation10 + $0x48] sm:$0xff]
    %v2645 = vld [vmem:[#allocation10 + $0x50] sm:$0xf]
    %v2646 = vld [vmem:[#allocation10 + $0x54] sm:$0xff]
    %v2647 = vld [vmem:[#allocation10 + $0x5c] sm:$0xf]
    %v2648 = vld [vmem:[#allocation10 + $0x60] sm:$0xff]
    %v2649 = vld [vmem:[#allocation10 + $0x68] sm:$0xf]
    %v2650 = vld [vmem:[#allocation10 + $0x6c] sm:$0xff]
    %v2651 = vld [vmem:[#allocation10 + $0x74] sm:$0xf]
    %v2652 = vld [vmem:[#allocation10 + $0x78] sm:$0xff]
    %v2653 = vld [vmem:[#allocation10 + $0x80] sm:$0xf]
    %v2654 = vld [vmem:[#allocation10 + $0x84] sm:$0xff]
    %v2655 = vld [vmem:[#allocation10 + $0x8c] sm:$0xf]
    %v2656 = vld [vmem:[#allocation10 + $0x90] sm:$0xff]
    %v2657 = vld [vmem:[#allocation10 + $0x98] sm:$0xf]
    %v2658 = vld [vmem:[#allocation10 + $0x9c] sm:$0xff]
    %v2659 = vld [vmem:[#allocation10 + $0xa4] sm:$0xf]
    %v2660 = vld [vmem:[#allocation10 + $0xa8] sm:$0xff]
    %v2661 = vld [vmem:[#allocation10 + $0xb0] sm:$0xf]
    %v2662 = vld [vmem:[#allocation10 + $0xb4] sm:$0xff]
    %v2663 = vld [vmem:[#allocation10 + $0xbc] sm:$0xf]
    %v2664 = vld [vmem:[#allocation10 + $0xc0] sm:$0xff]
    %v2665 = vld [vmem:[#allocation10 + $0xc8] sm:$0xf]
    %v2666 = vld [vmem:[#allocation10 + $0xcc] sm:$0xff]
    %v2667 = vld [vmem:[#allocation10 + $0xd4] sm:$0xf]
    %v2668 = vld [vmem:[#allocation10 + $0xd8] sm:$0xff]
    %v2669 = vld [vmem:[#allocation10 + $0xe0] sm:$0xf]
    %v2670 = vld [vmem:[#allocation10 + $0xe4] sm:$0xff]
    %v2671 = vld [vmem:[#allocation10 + $0xec] sm:$0xf]
    %v2672 = vld [vmem:[#allocation10 + $0xf0] sm:$0xff]
    %v2673 = vld [vmem:[#allocation10 + $0xf8] sm:$0xf]
    %v2674 = vld [vmem:[#allocation10 + $0xfc] sm:$0xff]
    %v2675 = vld [vmem:[#allocation10 + $0x104] sm:$0xf]
    %v2676 = vld [vmem:[#allocation10 + $0x108] sm:$0xff]
    %v2677 = vld [vmem:[#allocation10 + $0x110] sm:$0xf]
    %v2678 = vld [vmem:[#allocation10 + $0x114] sm:$0xff]
    %v2679 = vld [vmem:[#allocation10 + $0x11c] sm:$0xf]
    %v2680 = vld [vmem:[#allocation10 + $0x120] sm:$0xff]
    %v2681 = vld [vmem:[#allocation10 + $0x128] sm:$0xf]
    %v2682 = vld [vmem:[#allocation10 + $0x12c] sm:$0xff]
    %v2683 = vld [vmem:[#allocation10 + $0x134] sm:$0xf]
    %v2684 = vld [vmem:[#allocation10 + $0x138] sm:$0xff]
    %v2685 = vld [vmem:[#allocation10 + $0x140] sm:$0xf]
    %v2686 = vld [vmem:[#allocation10 + $0x144] sm:$0xff]
    %v2687 = vld [vmem:[#allocation10 + $0x14c] sm:$0xf]
    %v2688 = vld [vmem:[#allocation10 + $0x150] sm:$0xff]
    %v2689 = vld [vmem:[#allocation10 + $0x158] sm:$0xf]
    %v2690 = vld [vmem:[#allocation10 + $0x15c] sm:$0xff]
    %v2691 = vld [vmem:[#allocation10 + $0x164] sm:$0xf]
    %v2692 = vld [vmem:[#allocation10 + $0x168] sm:$0xff]
    %v2693 = vld [vmem:[#allocation10 + $0x170] sm:$0xf]
    %v2694 = vld [vmem:[#allocation10 + $0x174] sm:$0xff]
    %v2695 = vld [vmem:[#allocation10 + $0x17c] sm:$0xf]
    %v2696 = vld [vmem:[#allocation10 + $0x180] sm:$0xff]
    %v2697 = vld [vmem:[#allocation10 + $0x188] sm:$0xf]
    %v2698 = vld [vmem:[#allocation10 + $0x18c] sm:$0xff]
    %v2699 = vld [vmem:[#allocation10 + $0x194] sm:$0xf]
    %v2700 = vld [vmem:[#allocation10 + $0x198] sm:$0xff]
    %v2701 = vld [vmem:[#allocation10 + $0x1a0] sm:$0xf]
    %v2702 = vld [vmem:[#allocation10 + $0x1a4] sm:$0xff]
    %v2703 = vld [vmem:[#allocation10 + $0x1ac] sm:$0xf]
    %v2704 = vld [vmem:[#allocation10 + $0x1b0] sm:$0xff]
    %v2705 = vld [vmem:[#allocation10 + $0x1b8] sm:$0xf]
    %v2706 = vld [vmem:[#allocation10 + $0x1bc] sm:$0xff]
    %v2707 = vld [vmem:[#allocation10 + $0x1c4] sm:$0xf]
    %v2708 = vld [vmem:[#allocation10 + $0x1c8] sm:$0xff]
    %v2709 = vld [vmem:[#allocation10 + $0x1d0] sm:$0xf]
    %v2710 = vld [vmem:[#allocation10 + $0x1d4] sm:$0xff]
    %v2711 = vld [vmem:[#allocation10 + $0x1dc] sm:$0xf]
    %v2712 = vld [vmem:[#allocation10 + $0x1e0] sm:$0xff]
    %v2713 = vld [vmem:[#allocation10 + $0x1e8] sm:$0xf]
    %v2714 = vld [vmem:[#allocation10 + $0x1ec] sm:$0xff]
    %v2715 = vld [vmem:[#allocation10 + $0x1f4] sm:$0xf]
    %v2716 = vld [vmem:[#allocation10 + $0x1f8] sm:$0xff]
    %v2717 = vld [vmem:[#allocation10 + $0x200] sm:$0xf]
    %v2718 = vld [vmem:[#allocation10 + $0x204] sm:$0xff]
    %v2719 = vld [vmem:[#allocation10 + $0x20c] sm:$0xf]
    %v2720 = vld [vmem:[#allocation10 + $0x210] sm:$0xff]
    %v2721 = vld [vmem:[#allocation10 + $0x218] sm:$0xf]
    %v2722 = vld [vmem:[#allocation10 + $0x21c] sm:$0xff]
    %v2723 = vld [vmem:[#allocation10 + $0x224] sm:$0xf]
    %v2724 = vld [vmem:[#allocation10 + $0x228] sm:$0xff]
    %v2725 = vld [vmem:[#allocation10 + $0x230] sm:$0xf]
    %v2726 = vld [vmem:[#allocation10 + $0x234] sm:$0xff]
    %v2727 = vld [vmem:[#allocation10 + $0x23c] sm:$0xf]
    %v2728 = vld [vmem:[#allocation10 + $0x240] sm:$0xff]
    %v2729 = vld [vmem:[#allocation10 + $0x248] sm:$0xf]
    %v2730 = vld [vmem:[#allocation10 + $0x24c] sm:$0xff]
    %v2731 = vld [vmem:[#allocation10 + $0x254] sm:$0xf]
    %v2732 = vld [vmem:[#allocation10 + $0x258] sm:$0xff]
    %v2733 = vld [vmem:[#allocation10 + $0x260] sm:$0xf]
    %v2734 = vld [vmem:[#allocation10 + $0x264] sm:$0xff]
    %v2735 = vld [vmem:[#allocation10 + $0x26c] sm:$0xf]
    %v2736 = vld [vmem:[#allocation10 + $0x270] sm:$0xff]
    %v2737 = vld [vmem:[#allocation10 + $0x278] sm:$0xf]
    %v2738 = vld [vmem:[#allocation10 + $0x27c] sm:$0xff]
    %v2739 = vld [vmem:[#allocation10 + $0x284] sm:$0xf]
    %v2740 = vld [vmem:[#allocation10 + $0x288] sm:$0xff]
    %v2741 = vld [vmem:[#allocation10 + $0x290] sm:$0xf]
    %v2742 = vld [vmem:[#allocation10 + $0x294] sm:$0xff]
    %v2743 = vld [vmem:[#allocation10 + $0x29c] sm:$0xf]
    %v2744 = vld [vmem:[#allocation11] sm:$0xff]
    %v2745 = vld [vmem:[#allocation11 + $0x8] sm:$0xf]
    %v2746 = vld [vmem:[#allocation11 + $0xc] sm:$0xff]
    %v2747 = vld [vmem:[#allocation11 + $0x14] sm:$0xf]
    %v2748 = vld [vmem:[#allocation11 + $0x18] sm:$0xff]
    %v2749 = vld [vmem:[#allocation11 + $0x20] sm:$0xf]
    %v2750 = vld [vmem:[#allocation11 + $0x24] sm:$0xff]
    %v2751 = vld [vmem:[#allocation11 + $0x2c] sm:$0xf]
    %v2752 = vld [vmem:[#allocation11 + $0x30] sm:$0xff]
    %v2753 = vld [vmem:[#allocation11 + $0x38] sm:$0xf]
    %v2754 = vld [vmem:[#allocation11 + $0x3c] sm:$0xff]
    %v2755 = vld [vmem:[#allocation11 + $0x44] sm:$0xf]
    %v2756 = vld [vmem:[#allocation11 + $0x48] sm:$0xff]
    %v2757 = vld [vmem:[#allocation11 + $0x50] sm:$0xf]
    %v2758 = vld [vmem:[#allocation11 + $0x54] sm:$0xff]
    %v2759 = vld [vmem:[#allocation11 + $0x5c] sm:$0xf]
    %v2760 = vld [vmem:[#allocation11 + $0x60] sm:$0xff]
    %v2761 = vld [vmem:[#allocation11 + $0x68] sm:$0xf]
    %v2762 = vld [vmem:[#allocation11 + $0x6c] sm:$0xff]
    %v2763 = vld [vmem:[#allocation11 + $0x74] sm:$0xf]
    %v2764 = vld [vmem:[#allocation11 + $0x78] sm:$0xff]
    %v2765 = vld [vmem:[#allocation11 + $0x80] sm:$0xf]
    %v2766 = vld [vmem:[#allocation11 + $0x84] sm:$0xff]
    %v2767 = vld [vmem:[#allocation11 + $0x8c] sm:$0xf]
    %v2768 = vld [vmem:[#allocation11 + $0x90] sm:$0xff]
    %v2769 = vld [vmem:[#allocation11 + $0x98] sm:$0xf]
    %v2770 = vld [vmem:[#allocation11 + $0x9c] sm:$0xff]
    %v2771 = vld [vmem:[#allocation11 + $0xa4] sm:$0xf]
    %v2772 = vld [vmem:[#allocation11 + $0xa8] sm:$0xff]
    %v2773 = vld [vmem:[#allocation11 + $0xb0] sm:$0xf]
    %v2774 = vld [vmem:[#allocation11 + $0xb4] sm:$0xff]
    %v2775 = vld [vmem:[#allocation11 + $0xbc] sm:$0xf]
    %v2776 = vld [vmem:[#allocation11 + $0xc0] sm:$0xff]
    %v2777 = vld [vmem:[#allocation11 + $0xc8] sm:$0xf]
    %v2778 = vld [vmem:[#allocation11 + $0xcc] sm:$0xff]
    %v2779 = vld [vmem:[#allocation11 + $0xd4] sm:$0xf]
    %v2780 = vld [vmem:[#allocation11 + $0xd8] sm:$0xff]
    %v2781 = vld [vmem:[#allocation11 + $0xe0] sm:$0xf]
    %v2782 = vld [vmem:[#allocation11 + $0xe4] sm:$0xff]
    %v2783 = vld [vmem:[#allocation11 + $0xec] sm:$0xf]
    %v2784 = vld [vmem:[#allocation11 + $0xf0] sm:$0xff]
    %v2785 = vld [vmem:[#allocation11 + $0xf8] sm:$0xf]
    %v2786 = vld [vmem:[#allocation11 + $0xfc] sm:$0xff]
    %v2787 = vld [vmem:[#allocation11 + $0x104] sm:$0xf]
    %v2788 = vld [vmem:[#allocation11 + $0x108] sm:$0xff]
    %v2789 = vld [vmem:[#allocation11 + $0x110] sm:$0xf]
    %v2790 = vld [vmem:[#allocation11 + $0x114] sm:$0xff]
    %v2791 = vld [vmem:[#allocation11 + $0x11c] sm:$0xf]
    %v2792 = vld [vmem:[#allocation11 + $0x120] sm:$0xff]
    %v2793 = vld [vmem:[#allocation11 + $0x128] sm:$0xf]
    %v2794 = vld [vmem:[#allocation11 + $0x12c] sm:$0xff]
    %v2795 = vld [vmem:[#allocation11 + $0x134] sm:$0xf]
    %v2796 = vld [vmem:[#allocation11 + $0x138] sm:$0xff]
    %v2797 = vld [vmem:[#allocation11 + $0x140] sm:$0xf]
    %v2798 = vld [vmem:[#allocation11 + $0x144] sm:$0xff]
    %v2799 = vld [vmem:[#allocation11 + $0x14c] sm:$0xf]
    %v2800 = vld [vmem:[#allocation11 + $0x150] sm:$0xff]
    %v2801 = vld [vmem:[#allocation11 + $0x158] sm:$0xf]
    %v2802 = vld [vmem:[#allocation11 + $0x15c] sm:$0xff]
    %v2803 = vld [vmem:[#allocation11 + $0x164] sm:$0xf]
    %v2804 = vld [vmem:[#allocation11 + $0x168] sm:$0xff]
    %v2805 = vld [vmem:[#allocation11 + $0x170] sm:$0xf]
    %v2806 = vld [vmem:[#allocation11 + $0x174] sm:$0xff]
    %v2807 = vld [vmem:[#allocation11 + $0x17c] sm:$0xf]
    %v2808 = vld [vmem:[#allocation11 + $0x180] sm:$0xff]
    %v2809 = vld [vmem:[#allocation11 + $0x188] sm:$0xf]
    %v2810 = vld [vmem:[#allocation11 + $0x18c] sm:$0xff]
    %v2811 = vld [vmem:[#allocation11 + $0x194] sm:$0xf]
    %v2812 = vld [vmem:[#allocation11 + $0x198] sm:$0xff]
    %v2813 = vld [vmem:[#allocation11 + $0x1a0] sm:$0xf]
    %v2814 = vld [vmem:[#allocation11 + $0x1a4] sm:$0xff]
    %v2815 = vld [vmem:[#allocation11 + $0x1ac] sm:$0xf]
    %v2816 = vld [vmem:[#allocation11 + $0x1b0] sm:$0xff]
    %v2817 = vld [vmem:[#allocation11 + $0x1b8] sm:$0xf]
    %v2818 = vld [vmem:[#allocation11 + $0x1bc] sm:$0xff]
    %v2819 = vld [vmem:[#allocation11 + $0x1c4] sm:$0xf]
    %v2820 = vld [vmem:[#allocation11 + $0x1c8] sm:$0xff]
    %v2821 = vld [vmem:[#allocation11 + $0x1d0] sm:$0xf]
    %v2822 = vld [vmem:[#allocation11 + $0x1d4] sm:$0xff]
    %v2823 = vld [vmem:[#allocation11 + $0x1dc] sm:$0xf]
    %v2824 = vld [vmem:[#allocation11 + $0x1e0] sm:$0xff]
    %v2825 = vld [vmem:[#allocation11 + $0x1e8] sm:$0xf]
    %v2826 = vld [vmem:[#allocation11 + $0x1ec] sm:$0xff]
    %v2827 = vld [vmem:[#allocation11 + $0x1f4] sm:$0xf]
    %v2828 = vld [vmem:[#allocation11 + $0x1f8] sm:$0xff]
    %v2829 = vld [vmem:[#allocation11 + $0x200] sm:$0xf]
    %v2830 = vld [vmem:[#allocation11 + $0x204] sm:$0xff]
    %v2831 = vld [vmem:[#allocation11 + $0x20c] sm:$0xf]
    %v2832 = vld [vmem:[#allocation11 + $0x210] sm:$0xff]
    %v2833 = vld [vmem:[#allocation11 + $0x218] sm:$0xf]
    %v2834 = vld [vmem:[#allocation11 + $0x21c] sm:$0xff]
    %v2835 = vld [vmem:[#allocation11 + $0x224] sm:$0xf]
    %v2836 = vld [vmem:[#allocation11 + $0x228] sm:$0xff]
    %v2837 = vld [vmem:[#allocation11 + $0x230] sm:$0xf]
    %v2838 = vld [vmem:[#allocation11 + $0x234] sm:$0xff]
    %v2839 = vld [vmem:[#allocation11 + $0x23c] sm:$0xf]
    %v2840 = vld [vmem:[#allocation11 + $0x240] sm:$0xff]
    %v2841 = vld [vmem:[#allocation11 + $0x248] sm:$0xf]
    %v2842 = vld [vmem:[#allocation11 + $0x24c] sm:$0xff]
    %v2843 = vld [vmem:[#allocation11 + $0x254] sm:$0xf]
    %v2844 = vld [vmem:[#allocation11 + $0x258] sm:$0xff]
    %v2845 = vld [vmem:[#allocation11 + $0x260] sm:$0xf]
    %v2846 = vld [vmem:[#allocation11 + $0x264] sm:$0xff]
    %v2847 = vld [vmem:[#allocation11 + $0x26c] sm:$0xf]
    %v2848 = vld [vmem:[#allocation11 + $0x270] sm:$0xff]
    %v2849 = vld [vmem:[#allocation11 + $0x278] sm:$0xf]
    %v2850 = vld [vmem:[#allocation11 + $0x27c] sm:$0xff]
    %v2851 = vld [vmem:[#allocation11 + $0x284] sm:$0xf]
    %v2852 = vld [vmem:[#allocation11 + $0x288] sm:$0xff]
    %v2853 = vld [vmem:[#allocation11 + $0x290] sm:$0xf]
    %v2854 = vld [vmem:[#allocation11 + $0x294] sm:$0xff]
    %v2855 = vld [vmem:[#allocation11 + $0x29c] sm:$0xf]
    %s2856 = scalar_lea.vmem [#allocation10], 672
    %v2857 = vld [vmem:[%s2856] sm:$0xff]
    %v2858 = vld [vmem:[%s2856 + $0x8] sm:$0xf]
    %v2859 = vld [vmem:[%s2856 + $0xc] sm:$0xff]
    %v2860 = vld [vmem:[%s2856 + $0x14] sm:$0xf]
    %v2861 = vld [vmem:[%s2856 + $0x18] sm:$0xff]
    %v2862 = vld [vmem:[%s2856 + $0x20] sm:$0xf]
    %v2863 = vld [vmem:[%s2856 + $0x24] sm:$0xff]
    %v2864 = vld [vmem:[%s2856 + $0x2c] sm:$0xf]
    %v2865 = vld [vmem:[%s2856 + $0x30] sm:$0xff]
    %v2866 = vld [vmem:[%s2856 + $0x38] sm:$0xf]
    %v2867 = vld [vmem:[%s2856 + $0x3c] sm:$0xff]
    %v2868 = vld [vmem:[%s2856 + $0x44] sm:$0xf]
    %v2869 = vld [vmem:[%s2856 + $0x48] sm:$0xff]
    %v2870 = vld [vmem:[%s2856 + $0x50] sm:$0xf]
    %v2871 = vld [vmem:[%s2856 + $0x54] sm:$0xff]
    %v2872 = vld [vmem:[%s2856 + $0x5c] sm:$0xf]
    %v2873 = vld [vmem:[%s2856 + $0x60] sm:$0xff]
    %v2874 = vld [vmem:[%s2856 + $0x68] sm:$0xf]
    %v2875 = vld [vmem:[%s2856 + $0x6c] sm:$0xff]
    %v2876 = vld [vmem:[%s2856 + $0x74] sm:$0xf]
    %v2877 = vld [vmem:[%s2856 + $0x78] sm:$0xff]
    %v2878 = vld [vmem:[%s2856 + $0x80] sm:$0xf]
    %v2879 = vld [vmem:[%s2856 + $0x84] sm:$0xff]
    %v2880 = vld [vmem:[%s2856 + $0x8c] sm:$0xf]
    %v2881 = vld [vmem:[%s2856 + $0x90] sm:$0xff]
    %v2882 = vld [vmem:[%s2856 + $0x98] sm:$0xf]
    %v2883 = vld [vmem:[%s2856 + $0x9c] sm:$0xff]
    %v2884 = vld [vmem:[%s2856 + $0xa4] sm:$0xf]
    %v2885 = vld [vmem:[%s2856 + $0xa8] sm:$0xff]
    %v2886 = vld [vmem:[%s2856 + $0xb0] sm:$0xf]
    %v2887 = vld [vmem:[%s2856 + $0xb4] sm:$0xff]
    %v2888 = vld [vmem:[%s2856 + $0xbc] sm:$0xf]
    %v2889 = vld [vmem:[%s2856 + $0xc0] sm:$0xff]
    %v2890 = vld [vmem:[%s2856 + $0xc8] sm:$0xf]
    %v2891 = vld [vmem:[%s2856 + $0xcc] sm:$0xff]
    %v2892 = vld [vmem:[%s2856 + $0xd4] sm:$0xf]
    %v2893 = vld [vmem:[%s2856 + $0xd8] sm:$0xff]
    %v2894 = vld [vmem:[%s2856 + $0xe0] sm:$0xf]
    %v2895 = vld [vmem:[%s2856 + $0xe4] sm:$0xff]
    %v2896 = vld [vmem:[%s2856 + $0xec] sm:$0xf]
    %v2897 = vld [vmem:[%s2856 + $0xf0] sm:$0xff]
    %v2898 = vld [vmem:[%s2856 + $0xf8] sm:$0xf]
    %v2899 = vld [vmem:[%s2856 + $0xfc] sm:$0xff]
    %v2900 = vld [vmem:[%s2856 + $0x104] sm:$0xf]
    %v2901 = vld [vmem:[%s2856 + $0x108] sm:$0xff]
    %v2902 = vld [vmem:[%s2856 + $0x110] sm:$0xf]
    %v2903 = vld [vmem:[%s2856 + $0x114] sm:$0xff]
    %v2904 = vld [vmem:[%s2856 + $0x11c] sm:$0xf]
    %v2905 = vld [vmem:[%s2856 + $0x120] sm:$0xff]
    %v2906 = vld [vmem:[%s2856 + $0x128] sm:$0xf]
    %v2907 = vld [vmem:[%s2856 + $0x12c] sm:$0xff]
    %v2908 = vld [vmem:[%s2856 + $0x134] sm:$0xf]
    %v2909 = vld [vmem:[%s2856 + $0x138] sm:$0xff]
    %v2910 = vld [vmem:[%s2856 + $0x140] sm:$0xf]
    %v2911 = vld [vmem:[%s2856 + $0x144] sm:$0xff]
    %v2912 = vld [vmem:[%s2856 + $0x14c] sm:$0xf]
    %v2913 = vld [vmem:[%s2856 + $0x150] sm:$0xff]
    %v2914 = vld [vmem:[%s2856 + $0x158] sm:$0xf]
    %v2915 = vld [vmem:[%s2856 + $0x15c] sm:$0xff]
    %v2916 = vld [vmem:[%s2856 + $0x164] sm:$0xf]
    %v2917 = vld [vmem:[%s2856 + $0x168] sm:$0xff]
    %v2918 = vld [vmem:[%s2856 + $0x170] sm:$0xf]
    %v2919 = vld [vmem:[%s2856 + $0x174] sm:$0xff]
    %v2920 = vld [vmem:[%s2856 + $0x17c] sm:$0xf]
    %v2921 = vld [vmem:[%s2856 + $0x180] sm:$0xff]
    %v2922 = vld [vmem:[%s2856 + $0x188] sm:$0xf]
    %v2923 = vld [vmem:[%s2856 + $0x18c] sm:$0xff]
    %v2924 = vld [vmem:[%s2856 + $0x194] sm:$0xf]
    %v2925 = vld [vmem:[%s2856 + $0x198] sm:$0xff]
    %v2926 = vld [vmem:[%s2856 + $0x1a0] sm:$0xf]
    %v2927 = vld [vmem:[%s2856 + $0x1a4] sm:$0xff]
    %v2928 = vld [vmem:[%s2856 + $0x1ac] sm:$0xf]
    %v2929 = vld [vmem:[%s2856 + $0x1b0] sm:$0xff]
    %v2930 = vld [vmem:[%s2856 + $0x1b8] sm:$0xf]
    %v2931 = vld [vmem:[%s2856 + $0x1bc] sm:$0xff]
    %v2932 = vld [vmem:[%s2856 + $0x1c4] sm:$0xf]
    %v2933 = vld [vmem:[%s2856 + $0x1c8] sm:$0xff]
    %v2934 = vld [vmem:[%s2856 + $0x1d0] sm:$0xf]
    %v2935 = vld [vmem:[%s2856 + $0x1d4] sm:$0xff]
    %v2936 = vld [vmem:[%s2856 + $0x1dc] sm:$0xf]
    %v2937 = vld [vmem:[%s2856 + $0x1e0] sm:$0xff]
    %v2938 = vld [vmem:[%s2856 + $0x1e8] sm:$0xf]
    %v2939 = vld [vmem:[%s2856 + $0x1ec] sm:$0xff]
    %v2940 = vld [vmem:[%s2856 + $0x1f4] sm:$0xf]
    %v2941 = vld [vmem:[%s2856 + $0x1f8] sm:$0xff]
    %v2942 = vld [vmem:[%s2856 + $0x200] sm:$0xf]
    %v2943 = vld [vmem:[%s2856 + $0x204] sm:$0xff]
    %v2944 = vld [vmem:[%s2856 + $0x20c] sm:$0xf]
    %v2945 = vld [vmem:[%s2856 + $0x210] sm:$0xff]
    %v2946 = vld [vmem:[%s2856 + $0x218] sm:$0xf]
    %v2947 = vld [vmem:[%s2856 + $0x21c] sm:$0xff]
    %v2948 = vld [vmem:[%s2856 + $0x224] sm:$0xf]
    %v2949 = vld [vmem:[%s2856 + $0x228] sm:$0xff]
    %v2950 = vld [vmem:[%s2856 + $0x230] sm:$0xf]
    %v2951 = vld [vmem:[%s2856 + $0x234] sm:$0xff]
    %v2952 = vld [vmem:[%s2856 + $0x23c] sm:$0xf]
    %v2953 = vld [vmem:[%s2856 + $0x240] sm:$0xff]
    %v2954 = vld [vmem:[%s2856 + $0x248] sm:$0xf]
    %v2955 = vld [vmem:[%s2856 + $0x24c] sm:$0xff]
    %v2956 = vld [vmem:[%s2856 + $0x254] sm:$0xf]
    %v2957 = vld [vmem:[%s2856 + $0x258] sm:$0xff]
    %v2958 = vld [vmem:[%s2856 + $0x260] sm:$0xf]
    %v2959 = vld [vmem:[%s2856 + $0x264] sm:$0xff]
    %v2960 = vld [vmem:[%s2856 + $0x26c] sm:$0xf]
    %v2961 = vld [vmem:[%s2856 + $0x270] sm:$0xff]
    %v2962 = vld [vmem:[%s2856 + $0x278] sm:$0xf]
    %v2963 = vld [vmem:[%s2856 + $0x27c] sm:$0xff]
    %v2964 = vld [vmem:[%s2856 + $0x284] sm:$0xf]
    %v2965 = vld [vmem:[%s2856 + $0x288] sm:$0xff]
    %v2966 = vld [vmem:[%s2856 + $0x290] sm:$0xf]
    %v2967 = vld [vmem:[%s2856 + $0x294] sm:$0xff]
    %v2968 = vld [vmem:[%s2856 + $0x29c] sm:$0xf]
    %v3065 = vunpack.c.l.b16 %v2524
    %v3066 = vunpack.c.l.b16 %v2525
    %v3067 = vunpack.c.l.b16 %v2526
    %v3068 = vunpack.c.l.b16 %v2527
    %v3069 = vunpack.c.l.b16 %v2528
    %v3070 = vunpack.c.l.b16 %v2529
    %v3071 = vunpack.c.l.b16 %v2530
    %v3072 = vunpack.c.l.b16 %v2531
    %v3073 = vunpack.c.l.b16 %v2532
    %v3074 = vunpack.c.l.b16 %v2533
    %v3075 = vunpack.c.l.b16 %v2534
    %v3076 = vunpack.c.l.b16 %v2535
    %v3077 = vunpack.c.l.b16 %v2536
    %v3078 = vunpack.c.l.b16 %v2537
    %v3079 = vunpack.c.l.b16 %v2538
    %v3080 = vunpack.c.l.b16 %v2539
    %v3081 = vunpack.c.l.b16 %v2540
    %v3082 = vunpack.c.l.b16 %v2541
    %v3083 = vunpack.c.l.b16 %v2542
    %v3084 = vunpack.c.l.b16 %v2543
    %v3085 = vunpack.c.l.b16 %v2544
    %v3086 = vunpack.c.l.b16 %v2545
    %v3087 = vunpack.c.l.b16 %v2546
    %v3088 = vunpack.c.l.b16 %v2547
    %v3089 = vunpack.c.l.b16 %v2548
    %v3090 = vunpack.c.l.b16 %v2549
    %v3091 = vunpack.c.l.b16 %v2550
    %v3092 = vunpack.c.l.b16 %v2551
    %v3093 = vunpack.c.l.b16 %v2552
    %v3094 = vunpack.c.l.b16 %v2553
    %v3095 = vunpack.c.l.b16 %v2554
    %v3096 = vunpack.c.l.b16 %v2555
    %v3097 = vunpack.c.l.b16 %v2556
    %v3098 = vunpack.c.l.b16 %v2557
    %v3099 = vunpack.c.l.b16 %v2558
    %v3100 = vunpack.c.l.b16 %v2559
    %v3101 = vunpack.c.l.b16 %v2560
    %v3102 = vunpack.c.l.b16 %v2561
    %v3103 = vunpack.c.l.b16 %v2562
    %v3104 = vunpack.c.l.b16 %v2563
    %v3105 = vunpack.c.l.b16 %v2564
    %v3106 = vunpack.c.l.b16 %v2565
    %v3107 = vunpack.c.l.b16 %v2566
    %v3108 = vunpack.c.l.b16 %v2567
    %v3109 = vunpack.c.l.b16 %v2568
    %v3110 = vunpack.c.l.b16 %v2569
    %v3111 = vunpack.c.l.b16 %v2570
    %v3112 = vunpack.c.l.b16 %v2571
    %v3113 = vunpack.c.l.b16 %v2580
    %v3114 = vunpack.c.l.b16 %v2581
    %v3115 = vunpack.c.l.b16 %v2582
    %v3116 = vunpack.c.l.b16 %v2583
    %v3117 = vunpack.c.l.b16 %v2584
    %v3118 = vunpack.c.l.b16 %v2585
    %v3119 = vunpack.c.l.b16 %v2586
    %v3120 = vunpack.c.l.b16 %v2587
    %v3121 = vunpack.c.l.b16 %v2588
    %v3122 = vunpack.c.l.b16 %v2589
    %v3123 = vunpack.c.l.b16 %v2590
    %v3124 = vunpack.c.l.b16 %v2591
    %v3125 = vunpack.c.l.b16 %v2592
    %v3126 = vunpack.c.l.b16 %v2593
    %v3127 = vunpack.c.l.b16 %v2594
    %v3128 = vunpack.c.l.b16 %v2595
    %v3129 = vunpack.c.l.b16 %v2596
    %v3130 = vunpack.c.l.b16 %v2597
    %v3131 = vunpack.c.l.b16 %v2598
    %v3132 = vunpack.c.l.b16 %v2599
    %v3133 = vunpack.c.l.b16 %v2600
    %v3134 = vunpack.c.l.b16 %v2601
    %v3135 = vunpack.c.l.b16 %v2602
    %v3136 = vunpack.c.l.b16 %v2603
    %v3137 = vunpack.c.l.b16 %v2604
    %v3138 = vunpack.c.l.b16 %v2605
    %v3139 = vunpack.c.l.b16 %v2606
    %v3140 = vunpack.c.l.b16 %v2607
    %v3141 = vunpack.c.l.b16 %v2608
    %v3142 = vunpack.c.l.b16 %v2609
    %v3143 = vunpack.c.l.b16 %v2610
    %v3144 = vunpack.c.l.b16 %v2611
    %v3145 = vunpack.c.l.b16 %v2612
    %v3146 = vunpack.c.l.b16 %v2613
    %v3147 = vunpack.c.l.b16 %v2614
    %v3148 = vunpack.c.l.b16 %v2615
    %v3149 = vunpack.c.l.b16 %v2616
    %v3150 = vunpack.c.l.b16 %v2617
    %v3151 = vunpack.c.l.b16 %v2618
    %v3152 = vunpack.c.l.b16 %v2619
    %v3153 = vunpack.c.l.b16 %v2620
    %v3154 = vunpack.c.l.b16 %v2621
    %v3155 = vunpack.c.l.b16 %v2622
    %v3156 = vunpack.c.l.b16 %v2623
    %v3157 = vunpack.c.l.b16 %v2624
    %v3158 = vunpack.c.l.b16 %v2625
    %v3159 = vunpack.c.l.b16 %v2626
    %v3160 = vunpack.c.l.b16 %v2627
    %vm3161 = vcmask 1041409
    %v3162 = vsel %vm3161, %v3069, %v3065
    %vm3163 = vcmask 1042434
    %v3164 = vsel %vm3163, %v3073, %v3162
    %vm3165 = vcmask 1043459
    %v3166 = vsel %vm3165, %v3077, %v3164
    %vm3167 = vcmask 1044484
    %v3168 = vsel %vm3167, %v3081, %v3166
    %vm3169 = vcmask 1045509
    %v3170 = vsel %vm3169, %v3085, %v3168
    %vm3171 = vcmask 1046534
    %v3172 = vsel %vm3171, %v3089, %v3170
    %vm3173 = vcmask 1047559
    %v3174 = vsel %vm3173, %v3093, %v3172
    %v3175 = vsel %vm3161, %v3070, %v3066
    %v3176 = vsel %vm3163, %v3074, %v3175
    %v3177 = vsel %vm3165, %v3078, %v3176
    %v3178 = vsel %vm3167, %v3082, %v3177
    %v3179 = vsel %vm3169, %v3086, %v3178
    %v3180 = vsel %vm3171, %v3090, %v3179
    %v3181 = vsel %vm3173, %v3094, %v3180
    %v3182 = vsel %vm3161, %v3071, %v3067
    %v3183 = vsel %vm3163, %v3075, %v3182
    %v3184 = vsel %vm3165, %v3079, %v3183
    %v3185 = vsel %vm3167, %v3083, %v3184
    %v3186 = vsel %vm3169, %v3087, %v3185
    %v3187 = vsel %vm3171, %v3091, %v3186
    %v3188 = vsel %vm3173, %v3095, %v3187
    %v3189 = vsel %vm3161, %v3072, %v3068
    %v3190 = vsel %vm3163, %v3076, %v3189
    %v3191 = vsel %vm3165, %v3080, %v3190
    %v3192 = vsel %vm3167, %v3084, %v3191
    %v3193 = vsel %vm3169, %v3088, %v3192
    %v3194 = vsel %vm3171, %v3092, %v3193
    %v3195 = vsel %vm3173, %v3096, %v3194
    %v3196 = vsel %vm3161, %v3101, %v3097
    %v3197 = vsel %vm3163, %v3105, %v3196
    %v3198 = vsel %vm3165, %v3109, %v3197
    %v3199 = vsel %vm3167, %v3113, %v3198
    %v3200 = vsel %vm3169, %v3117, %v3199
    %v3201 = vsel %vm3171, %v3121, %v3200
    %v3202 = vsel %vm3173, %v3125, %v3201
    %v3203 = vsel %vm3161, %v3102, %v3098
    %v3204 = vsel %vm3163, %v3106, %v3203
    %v3205 = vsel %vm3165, %v3110, %v3204
    %v3206 = vsel %vm3167, %v3114, %v3205
    %v3207 = vsel %vm3169, %v3118, %v3206
    %v3208 = vsel %vm3171, %v3122, %v3207
    %v3209 = vsel %vm3173, %v3126, %v3208
    %v3210 = vsel %vm3161, %v3103, %v3099
    %v3211 = vsel %vm3163, %v3107, %v3210
    %v3212 = vsel %vm3165, %v3111, %v3211
    %v3213 = vsel %vm3167, %v3115, %v3212
    %v3214 = vsel %vm3169, %v3119, %v3213
    %v3215 = vsel %vm3171, %v3123, %v3214
    %v3216 = vsel %vm3173, %v3127, %v3215
    %v3217 = vsel %vm3161, %v3104, %v3100
    %v3218 = vsel %vm3163, %v3108, %v3217
    %v3219 = vsel %vm3165, %v3112, %v3218
    %v3220 = vsel %vm3167, %v3116, %v3219
    %v3221 = vsel %vm3169, %v3120, %v3220
    %v3222 = vsel %vm3171, %v3124, %v3221
    %v3223 = vsel %vm3173, %v3128, %v3222
    %v3224 = vsel %vm3161, %v3133, %v3129
    %v3225 = vsel %vm3163, %v3137, %v3224
    %v3226 = vsel %vm3165, %v3141, %v3225
    %v3227 = vsel %vm3167, %v3145, %v3226
    %v3228 = vsel %vm3169, %v3149, %v3227
    %v3229 = vsel %vm3171, %v3153, %v3228
    %v3230 = vsel %vm3173, %v3157, %v3229
    %v3231 = vsel %vm3161, %v3134, %v3130
    %v3232 = vsel %vm3163, %v3138, %v3231
    %v3233 = vsel %vm3165, %v3142, %v3232
    %v3234 = vsel %vm3167, %v3146, %v3233
    %v3235 = vsel %vm3169, %v3150, %v3234
    %v3236 = vsel %vm3171, %v3154, %v3235
    %v3237 = vsel %vm3173, %v3158, %v3236
    %v3238 = vsel %vm3161, %v3135, %v3131
    %v3239 = vsel %vm3163, %v3139, %v3238
    %v3240 = vsel %vm3165, %v3143, %v3239
    %v3241 = vsel %vm3167, %v3147, %v3240
    %v3242 = vsel %vm3169, %v3151, %v3241
    %v3243 = vsel %vm3171, %v3155, %v3242
    %v3244 = vsel %vm3173, %v3159, %v3243
    %v3245 = vsel %vm3161, %v3136, %v3132
    %v3246 = vsel %vm3163, %v3140, %v3245
    %v3247 = vsel %vm3165, %v3144, %v3246
    %v3248 = vsel %vm3167, %v3148, %v3247
    %v3249 = vsel %vm3169, %v3152, %v3248
    %v3250 = vsel %vm3171, %v3156, %v3249
    %v3251 = vsel %vm3173, %v3160, %v3250
    %v3252 = vpack.c.b16 %v3202, %v3174
    %v3253 = vpack.c.b16 %v3209, %v3181
    %v3254 = vpack.c.b16 %v3216, %v3188
    %v3255 = vpack.c.b16 %v3223, %v3195
    %v3256 = vpack.c.b16 %v3230, %v3230
    %v3257 = vpack.c.b16 %v3237, %v3237
    %v3258 = vpack.c.b16 %v3244, %v3244
    %v3259 = vpack.c.b16 %v3251, %v3251
    %v3378 = vunpack.c.l.b16 %v2857
    %v3379 = vunpack.c.h.b16 %v2857
    %v3380 = vunpack.c.l.b16 %v2858
    %v3381 = vunpack.c.l.b16 %v2859
    %v3382 = vunpack.c.h.b16 %v2859
    %v3383 = vunpack.c.l.b16 %v2860
    %v3384 = vunpack.c.l.b16 %v2861
    %v3385 = vunpack.c.h.b16 %v2861
    %v3386 = vunpack.c.l.b16 %v2862
    %v3387 = vunpack.c.l.b16 %v2863
    %v3388 = vunpack.c.h.b16 %v2863
    %v3389 = vunpack.c.l.b16 %v2864
    %v3390 = vunpack.c.l.b16 %v2865
    %v3391 = vunpack.c.h.b16 %v2865
    %v3392 = vunpack.c.l.b16 %v2866
    %v3393 = vunpack.c.l.b16 %v2867
    %v3394 = vunpack.c.h.b16 %v2867
    %v3395 = vunpack.c.l.b16 %v2868
    %v3396 = vunpack.c.l.b16 %v2869
    %v3397 = vunpack.c.h.b16 %v2869
    %v3398 = vunpack.c.l.b16 %v2870
    %v3399 = vunpack.c.l.b16 %v2871
    %v3400 = vunpack.c.h.b16 %v2871
    %v3401 = vunpack.c.l.b16 %v2872
    %v3402 = vunpack.c.l.b16 %v2873
    %v3403 = vunpack.c.h.b16 %v2873
    %v3404 = vunpack.c.l.b16 %v2874
    %v3405 = vunpack.c.l.b16 %v2875
    %v3406 = vunpack.c.h.b16 %v2875
    %v3407 = vunpack.c.l.b16 %v2876
    %v3408 = vunpack.c.l.b16 %v2877
    %v3409 = vunpack.c.h.b16 %v2877
    %v3410 = vunpack.c.l.b16 %v2878
    %v3411 = vunpack.c.l.b16 %v2879
    %v3412 = vunpack.c.h.b16 %v2879
    %v3413 = vunpack.c.l.b16 %v2880
    %v3414 = vunpack.c.l.b16 %v2881
    %v3415 = vunpack.c.h.b16 %v2881
    %v3416 = vunpack.c.l.b16 %v2882
    %v3417 = vunpack.c.l.b16 %v2883
    %v3418 = vunpack.c.h.b16 %v2883
    %v3419 = vunpack.c.l.b16 %v2884
    %v3420 = vunpack.c.l.b16 %v2885
    %v3421 = vunpack.c.h.b16 %v2885
    %v3422 = vunpack.c.l.b16 %v2886
    %v3423 = vunpack.c.l.b16 %v2887
    %v3424 = vunpack.c.h.b16 %v2887
    %v3425 = vunpack.c.l.b16 %v2888
    %v3426 = vunpack.c.l.b16 %v2889
    %v3427 = vunpack.c.h.b16 %v2889
    %v3428 = vunpack.c.l.b16 %v2890
    %v3429 = vunpack.c.l.b16 %v2891
    %v3430 = vunpack.c.h.b16 %v2891
    %v3431 = vunpack.c.l.b16 %v2892
    %v3432 = vunpack.c.l.b16 %v2893
    %v3433 = vunpack.c.h.b16 %v2893
    %v3434 = vunpack.c.l.b16 %v2894
    %v3435 = vunpack.c.l.b16 %v2895
    %v3436 = vunpack.c.h.b16 %v2895
    %v3437 = vunpack.c.l.b16 %v2896
    %v3438 = vunpack.c.l.b16 %v2897
    %v3439 = vunpack.c.h.b16 %v2897
    %v3440 = vunpack.c.l.b16 %v2898
    %v3441 = vunpack.c.l.b16 %v2899
    %v3442 = vunpack.c.h.b16 %v2899
    %v3443 = vunpack.c.l.b16 %v2900
    %v3444 = vunpack.c.l.b16 %v2901
    %v3445 = vunpack.c.h.b16 %v2901
    %v3446 = vunpack.c.l.b16 %v2902
    %v3447 = vunpack.c.l.b16 %v2903
    %v3448 = vunpack.c.h.b16 %v2903
    %v3449 = vunpack.c.l.b16 %v2904
    %v3450 = vunpack.c.l.b16 %v2905
    %v3451 = vunpack.c.h.b16 %v2905
    %v3452 = vunpack.c.l.b16 %v2906
    %v3453 = vunpack.c.l.b16 %v2907
    %v3454 = vunpack.c.h.b16 %v2907
    %v3455 = vunpack.c.l.b16 %v2908
    %v3456 = vunpack.c.l.b16 %v2909
    %v3457 = vunpack.c.h.b16 %v2909
    %v3458 = vunpack.c.l.b16 %v2910
    %v3459 = vunpack.c.l.b16 %v2911
    %v3460 = vunpack.c.h.b16 %v2911
    %v3461 = vunpack.c.l.b16 %v2912
    %v3462 = vunpack.c.l.b16 %v2913
    %v3463 = vunpack.c.h.b16 %v2913
    %v3464 = vunpack.c.l.b16 %v2914
    %v3465 = vunpack.c.l.b16 %v2915
    %v3466 = vunpack.c.h.b16 %v2915
    %v3467 = vunpack.c.l.b16 %v2916
    %v3468 = vunpack.c.l.b16 %v2917
    %v3469 = vunpack.c.h.b16 %v2917
    %v3470 = vunpack.c.l.b16 %v2918
    %v3471 = vunpack.c.l.b16 %v2919
    %v3472 = vunpack.c.h.b16 %v2919
    %v3473 = vunpack.c.l.b16 %v2920
    %v3474 = vunpack.c.l.b16 %v2921
    %v3475 = vunpack.c.h.b16 %v2921
    %v3476 = vunpack.c.l.b16 %v2922
    %v3477 = vunpack.c.l.b16 %v2923
    %v3478 = vunpack.c.h.b16 %v2923
    %v3479 = vunpack.c.l.b16 %v2924
    %v3480 = vunpack.c.l.b16 %v2925
    %v3481 = vunpack.c.h.b16 %v2925
    %v3482 = vunpack.c.l.b16 %v2926
    %v3483 = vunpack.c.l.b16 %v2927
    %v3484 = vunpack.c.h.b16 %v2927
    %v3485 = vunpack.c.l.b16 %v2928
    %v3486 = vunpack.c.l.b16 %v2929
    %v3487 = vunpack.c.h.b16 %v2929
    %v3488 = vunpack.c.l.b16 %v2930
    %v3489 = vunpack.c.l.b16 %v2931
    %v3490 = vunpack.c.h.b16 %v2931
    %v3491 = vunpack.c.l.b16 %v2932
    %v3492 = vunpack.c.l.b16 %v2933
    %v3493 = vunpack.c.h.b16 %v2933
    %v3494 = vunpack.c.l.b16 %v2934
    %v3495 = vunpack.c.l.b16 %v2935
    %v3496 = vunpack.c.h.b16 %v2935
    %v3497 = vunpack.c.l.b16 %v2936
    %v3498 = vunpack.c.l.b16 %v2937
    %v3499 = vunpack.c.h.b16 %v2937
    %v3500 = vunpack.c.l.b16 %v2938
    %v3501 = vunpack.c.l.b16 %v2939
    %v3502 = vunpack.c.h.b16 %v2939
    %v3503 = vunpack.c.l.b16 %v2940
    %v3504 = vunpack.c.l.b16 %v2941
    %v3505 = vunpack.c.h.b16 %v2941
    %v3506 = vunpack.c.l.b16 %v2942
    %v3507 = vunpack.c.l.b16 %v2943
    %v3508 = vunpack.c.h.b16 %v2943
    %v3509 = vunpack.c.l.b16 %v2944
    %v3510 = vunpack.c.l.b16 %v2945
    %v3511 = vunpack.c.h.b16 %v2945
    %v3512 = vunpack.c.l.b16 %v2946
    %v3513 = vunpack.c.l.b16 %v2947
    %v3514 = vunpack.c.h.b16 %v2947
    %v3515 = vunpack.c.l.b16 %v2948
    %v3516 = vunpack.c.l.b16 %v2949
    %v3517 = vunpack.c.h.b16 %v2949
    %v3518 = vunpack.c.l.b16 %v2950
    %v3519 = vunpack.c.l.b16 %v2951
    %v3520 = vunpack.c.h.b16 %v2951
    %v3521 = vunpack.c.l.b16 %v2952
    %v3522 = vunpack.c.l.b16 %v2953
    %v3523 = vunpack.c.h.b16 %v2953
    %v3524 = vunpack.c.l.b16 %v2954
    %v3525 = vunpack.c.l.b16 %v2955
    %v3526 = vunpack.c.h.b16 %v2955
    %v3527 = vunpack.c.l.b16 %v2956
    %v3528 = vunpack.c.l.b16 %v2957
    %v3529 = vunpack.c.h.b16 %v2957
    %v3530 = vunpack.c.l.b16 %v2958
    %v3531 = vunpack.c.l.b16 %v2959
    %v3532 = vunpack.c.h.b16 %v2959
    %v3533 = vunpack.c.l.b16 %v2960
    %v3534 = vunpack.c.l.b16 %v2961
    %v3535 = vunpack.c.h.b16 %v2961
    %v3536 = vunpack.c.l.b16 %v2962
    %v3537 = vunpack.c.l.b16 %v2963
    %v3538 = vunpack.c.h.b16 %v2963
    %v3539 = vunpack.c.l.b16 %v2964
    %v3540 = vunpack.c.l.b16 %v2965
    %v3541 = vunpack.c.h.b16 %v2965
    %v3542 = vunpack.c.l.b16 %v2966
    %v3543 = vunpack.c.l.b16 %v2967
    %v3544 = vunpack.c.h.b16 %v2967
    %v3545 = vunpack.c.l.b16 %v2968
    %v3546 = vpack.c.b16 %v3381, %v3378
    %v3547 = vpack.c.b16 %v3382, %v3379
    %v3548 = vpack.c.b16 %v3383, %v3380
    %v3549 = vpack.c.b16 %v3387, %v3384
    %v3550 = vpack.c.b16 %v3388, %v3385
    %v3551 = vpack.c.b16 %v3389, %v3386
    %v3552 = vpack.c.b16 %v3393, %v3390
    %v3553 = vpack.c.b16 %v3394, %v3391
    %v3554 = vpack.c.b16 %v3395, %v3392
    %v3555 = vpack.c.b16 %v3399, %v3396
    %v3556 = vpack.c.b16 %v3400, %v3397
    %v3557 = vpack.c.b16 %v3401, %v3398
    %v3558 = vpack.c.b16 %v3405, %v3402
    %v3559 = vpack.c.b16 %v3406, %v3403
    %v3560 = vpack.c.b16 %v3407, %v3404
    %v3561 = vpack.c.b16 %v3411, %v3408
    %v3562 = vpack.c.b16 %v3412, %v3409
    %v3563 = vpack.c.b16 %v3413, %v3410
    %v3564 = vpack.c.b16 %v3417, %v3414
    %v3565 = vpack.c.b16 %v3418, %v3415
    %v3566 = vpack.c.b16 %v3419, %v3416
    %v3567 = vpack.c.b16 %v3423, %v3420
    %v3568 = vpack.c.b16 %v3424, %v3421
    %v3569 = vpack.c.b16 %v3425, %v3422
    %v3570 = vpack.c.b16 %v3429, %v3426
    %v3571 = vpack.c.b16 %v3430, %v3427
    %v3572 = vpack.c.b16 %v3431, %v3428
    %v3573 = vpack.c.b16 %v3435, %v3432
    %v3574 = vpack.c.b16 %v3436, %v3433
    %v3575 = vpack.c.b16 %v3437, %v3434
    %v3576 = vpack.c.b16 %v3441, %v3438
    %v3577 = vpack.c.b16 %v3442, %v3439
    %v3578 = vpack.c.b16 %v3443, %v3440
    %v3579 = vpack.c.b16 %v3447, %v3444
    %v3580 = vpack.c.b16 %v3448, %v3445
    %v3581 = vpack.c.b16 %v3449, %v3446
    %v3582 = vpack.c.b16 %v3453, %v3450
    %v3583 = vpack.c.b16 %v3454, %v3451
    %v3584 = vpack.c.b16 %v3455, %v3452
    %v3585 = vpack.c.b16 %v3459, %v3456
    %v3586 = vpack.c.b16 %v3460, %v3457
    %v3587 = vpack.c.b16 %v3461, %v3458
    %v3588 = vpack.c.b16 %v3465, %v3462
    %v3589 = vpack.c.b16 %v3466, %v3463
    %v3590 = vpack.c.b16 %v3467, %v3464
    %v3591 = vpack.c.b16 %v3471, %v3468
    %v3592 = vpack.c.b16 %v3472, %v3469
    %v3593 = vpack.c.b16 %v3473, %v3470
    %v3594 = vpack.c.b16 %v3477, %v3474
    %v3595 = vpack.c.b16 %v3478, %v3475
    %v3596 = vpack.c.b16 %v3479, %v3476
    %v3597 = vpack.c.b16 %v3483, %v3480
    %v3598 = vpack.c.b16 %v3484, %v3481
    %v3599 = vpack.c.b16 %v3485, %v3482
    %v3600 = vpack.c.b16 %v3489, %v3486
    %v3601 = vpack.c.b16 %v3490, %v3487
    %v3602 = vpack.c.b16 %v3491, %v3488
    %v3603 = vpack.c.b16 %v3495, %v3492
    %v3604 = vpack.c.b16 %v3496, %v3493
    %v3605 = vpack.c.b16 %v3497, %v3494
    %v3606 = vpack.c.b16 %v3501, %v3498
    %v3607 = vpack.c.b16 %v3502, %v3499
    %v3608 = vpack.c.b16 %v3503, %v3500
    %v3609 = vpack.c.b16 %v3507, %v3504
    %v3610 = vpack.c.b16 %v3508, %v3505
    %v3611 = vpack.c.b16 %v3509, %v3506
    %v3612 = vpack.c.b16 %v3513, %v3510
    %v3613 = vpack.c.b16 %v3514, %v3511
    %v3614 = vpack.c.b16 %v3515, %v3512
    %v3615 = vpack.c.b16 %v3519, %v3516
    %v3616 = vpack.c.b16 %v3520, %v3517
    %v3617 = vpack.c.b16 %v3521, %v3518
    %v3618 = vpack.c.b16 %v3525, %v3522
    %v3619 = vpack.c.b16 %v3526, %v3523
    %v3620 = vpack.c.b16 %v3527, %v3524
    %v3621 = vpack.c.b16 %v3531, %v3528
    %v3622 = vpack.c.b16 %v3532, %v3529
    %v3623 = vpack.c.b16 %v3533, %v3530
    %v3624 = vpack.c.b16 %v3537, %v3534
    %v3625 = vpack.c.b16 %v3538, %v3535
    %v3626 = vpack.c.b16 %v3539, %v3536
    %v3627 = vpack.c.b16 %v3543, %v3540
    %v3628 = vpack.c.b16 %v3544, %v3541
    %v3629 = vpack.c.b16 %v3545, %v3542
    %vm3714 = vcmask 523264
    %v3716 = vsel %vm3714, %v3255, 0
    %v3719 = vsel %vm3714, %v3259, 0
    %3721 = vmatprep.subr.bf16.mxu0 %v3547
    %3722 = vmatpush1.bf16.msra.mxu0 %v3546
    %3723 = vmatprep.subr.bf16.mxu0 %v3550
    %3724 = vmatpush1.bf16.msra.mxu0 %v3549
    %3725 = vmatprep.subr.bf16.mxu0 %v3553
    %3726 = vmatpush1.bf16.msra.mxu0 %v3552
    %3727 = vmatprep.subr.bf16.mxu0 %v3556
    %3728 = vmatpush1.bf16.msra.mxu0 %v3555
    %3729 = vmatprep.subr.bf16.mxu0 %v3559
    %3730 = vmatpush1.bf16.msra.mxu0 %v3558
    %3731 = vmatprep.subr.bf16.mxu0 %v3562
    %3732 = vmatpush1.bf16.msra.mxu0 %v3561
    %3733 = vmatprep.subr.bf16.mxu0 %v3565
    %3734 = vmatpush1.bf16.msra.mxu0 %v3564
    %3735 = vmatprep.subr.bf16.mxu0 %v3568
    %3736 = vmatpush1.bf16.msra.mxu0 %v3567
    %3737 = vmatprep.subr.bf16.mxu0 %v3571
    %3738 = vmatpush1.bf16.msra.mxu0 %v3570
    %3739 = vmatprep.subr.bf16.mxu0 %v3574
    %3740 = vmatpush1.bf16.msra.mxu0 %v3573
    %3741 = vmatprep.subr.bf16.mxu0 %v3577
    %3742 = vmatpush1.bf16.msra.mxu0 %v3576
    %3743 = vmatprep.subr.bf16.mxu0 %v3580
    %3744 = vmatpush1.bf16.msra.mxu0 %v3579
    %3745 = vmatprep.subr.bf16.mxu0 %v3583
    %3746 = vmatpush1.bf16.msra.mxu0 %v3582
    %3747 = vmatprep.subr.bf16.mxu0 %v3586
    %3748 = vmatpush1.bf16.msra.mxu0 %v3585
    %3749 = vmatprep.subr.bf16.mxu0 %v3589
    %3750 = vmatpush1.bf16.msra.mxu0 %v3588
    %3751 = vmatprep.subr.bf16.mxu0 %v3592
    %3752 = vmatpush1.bf16.msra.mxu0 %v3591
    %3753 = vmatprep.mubr.bf16.mxu0 %v3253
    %3754 = vmatmul.mubr.bf16.gmra.mrb[0].mxu0 %v3252
    %v3755 = vpop.f32.mrb[0].mxu0
    %v3756 = vadd.f32 0.0, %v3755
    %v3757 = vpop.f32.mrb[0].mxu0
    %v3758 = vadd.f32 0.0, %v3757
    %v3759 = vpop.f32.mrb[0].mxu0
    %v3760 = vadd.f32 0.0, %v3759
    %v3761 = vpop.f32.mrb[0].mxu0
    %v3762 = vadd.f32 0.0, %v3761
    %3763 = vmatprep.mubr.bf16.mxu0 %v3257
    %3764 = vmatmul.mubr.bf16.gmra.mrb[0].mxu0 %v3256
    %v3765 = vpop.f32.mrb[0].mxu0
    %v3766 = vadd.f32 0.0, %v3765
    %v3767 = vpop.f32.mrb[0].mxu0
    %v3768 = vadd.f32 0.0, %v3767
    %v3769 = vpop.f32.mrb[0].mxu0
    %v3770 = vpop.f32.mrb[0].mxu0
    %3771 = vdwg.mxu0
    %3772 = vmatprep.subr.bf16.mxu0 %v3595
    %3773 = vmatpush1.bf16.msra.mxu0 %v3594
    %3774 = vmatprep.subr.bf16.mxu0 %v3598
    %3775 = vmatpush1.bf16.msra.mxu0 %v3597
    %3776 = vmatprep.subr.bf16.mxu0 %v3601
    %3777 = vmatpush1.bf16.msra.mxu0 %v3600
    %3778 = vmatprep.subr.bf16.mxu0 %v3604
    %3779 = vmatpush1.bf16.msra.mxu0 %v3603
    %3780 = vmatprep.subr.bf16.mxu0 %v3607
    %3781 = vmatpush1.bf16.msra.mxu0 %v3606
    %3782 = vmatprep.subr.bf16.mxu0 %v3610
    %3783 = vmatpush1.bf16.msra.mxu0 %v3609
    %3784 = vmatprep.subr.bf16.mxu0 %v3613
    %3785 = vmatpush1.bf16.msra.mxu0 %v3612
    %3786 = vmatprep.subr.bf16.mxu0 %v3616
    %3787 = vmatpush1.bf16.msra.mxu0 %v3615
    %3788 = vmatprep.subr.bf16.mxu0 %v3619
    %3789 = vmatpush1.bf16.msra.mxu0 %v3618
    %3790 = vmatprep.subr.bf16.mxu0 %v3622
    %3791 = vmatpush1.bf16.msra.mxu0 %v3621
    %3792 = vmatprep.subr.bf16.mxu0 %v3625
    %3793 = vmatpush1.bf16.msra.mxu0 %v3624
    %3794 = vmatprep.subr.bf16.mxu0 %v3628
    %3795 = vmatpush1.bf16.msra.mxu0 %v3627
    %3796 = vmatprep.subr.bf16.mxu0 0
    %3797 = vmatpush1.bf16.msra.mxu0 0
    %3798 = vmatprep.subr.bf16.mxu0 0
    %3799 = vmatpush1.bf16.msra.mxu0 0
    %3800 = vmatprep.subr.bf16.mxu0 0
    %3801 = vmatpush1.bf16.msra.mxu0 0
    %3802 = vmatprep.subr.bf16.mxu0 0
    %3803 = vmatpush1.bf16.msra.mxu0 0
    %3804 = vmatprep.mubr.bf16.mxu0 %v3716
    %3805 = vmatmul.mubr.bf16.gmra.mrb[0].mxu0 %v3254
    %v3806 = vpop.f32.mrb[0].mxu0
    %v3807 = vadd.f32 %v3756, %v3806
    %v3808 = vpop.f32.mrb[0].mxu0
    %v3809 = vadd.f32 %v3758, %v3808
    %v3810 = vpop.f32.mrb[0].mxu0
    %v3811 = vadd.f32 %v3760, %v3810
    %v3812 = vpop.f32.mrb[0].mxu0
    %v3813 = vadd.f32 %v3762, %v3812
    %3814 = vmatprep.mubr.bf16.mxu0 %v3719
    %3815 = vmatmul.mubr.bf16.gmra.mrb[0].mxu0 %v3258
    %v3816 = vpop.f32.mrb[0].mxu0
    %v3817 = vadd.f32 %v3766, %v3816
    %v3818 = vpop.f32.mrb[0].mxu0
    %v3819 = vadd.f32 %v3768, %v3818
    %v3820 = vpop.f32.mrb[0].mxu0
    %v3821 = vpop.f32.mrb[0].mxu0
    %3822 = vdwg.mxu0
    %3823 = vmatprep.subr.bf16.mxu0 0
    %3824 = vmatpush1.bf16.msra.mxu0 %v3548
    %3825 = vmatprep.subr.bf16.mxu0 0
    %3826 = vmatpush1.bf16.msra.mxu0 %v3551
    %3827 = vmatprep.subr.bf16.mxu0 0
    %3828 = vmatpush1.bf16.msra.mxu0 %v3554
    %3829 = vmatprep.subr.bf16.mxu0 0
    %3830 = vmatpush1.bf16.msra.mxu0 %v3557
    %3831 = vmatprep.subr.bf16.mxu0 0
    %3832 = vmatpush1.bf16.msra.mxu0 %v3560
    %3833 = vmatprep.subr.bf16.mxu0 0
    %3834 = vmatpush1.bf16.msra.mxu0 %v3563
    %3835 = vmatprep.subr.bf16.mxu0 0
    %3836 = vmatpush1.bf16.msra.mxu0 %v3566
    %3837 = vmatprep.subr.bf16.mxu0 0
    %3838 = vmatpush1.bf16.msra.mxu0 %v3569
    %3839 = vmatprep.subr.bf16.mxu0 0
    %3840 = vmatpush1.bf16.msra.mxu0 %v3572
    %3841 = vmatprep.subr.bf16.mxu0 0
    %3842 = vmatpush1.bf16.msra.mxu0 %v3575
    %3843 = vmatprep.subr.bf16.mxu0 0
    %3844 = vmatpush1.bf16.msra.mxu0 %v3578
    %3845 = vmatprep.subr.bf16.mxu0 0
    %3846 = vmatpush1.bf16.msra.mxu0 %v3581
    %3847 = vmatprep.subr.bf16.mxu0 0
    %3848 = vmatpush1.bf16.msra.mxu0 %v3584
    %3849 = vmatprep.subr.bf16.mxu0 0
    %3850 = vmatpush1.bf16.msra.mxu0 %v3587
    %3851 = vmatprep.subr.bf16.mxu0 0
    %3852 = vmatpush1.bf16.msra.mxu0 %v3590
    %3853 = vmatprep.subr.bf16.mxu0 0
    %3854 = vmatpush1.bf16.msra.mxu0 %v3593
    %3855 = vmatprep.mubr.bf16.mxu0 %v3253
    %3856 = vmatmul.mubr.bf16.gmra.mrb[0].mxu0 %v3252
    %v3857 = vpop.f32.mrb[0].mxu0
    %v3858 = vadd.f32 0.0, %v3857
    %v3859 = vpop.f32.mrb[0].mxu0
    %v3860 = vpop.f32.mrb[0].mxu0
    %v3861 = vadd.f32 0.0, %v3860
    %v3862 = vpop.f32.mrb[0].mxu0
    %3863 = vmatprep.mubr.bf16.mxu0 %v3257
    %3864 = vmatmul.mubr.bf16.gmra.mrb[0].mxu0 %v3256
    %v3865 = vpop.f32.mrb[0].mxu0
    %v3866 = vadd.f32 0.0, %v3865
    %v3867 = vpop.f32.mrb[0].mxu0
    %v3868 = vpop.f32.mrb[0].mxu0
    %v3869 = vpop.f32.mrb[0].mxu0
    %3870 = vdwg.mxu0
    %3871 = vmatprep.subr.bf16.mxu0 0
    %3872 = vmatpush1.bf16.msra.mxu0 %v3596
    %3873 = vmatprep.subr.bf16.mxu0 0
    %3874 = vmatpush1.bf16.msra.mxu0 %v3599
    %3875 = vmatprep.subr.bf16.mxu0 0
    %3876 = vmatpush1.bf16.msra.mxu0 %v3602
    %3877 = vmatprep.subr.bf16.mxu0 0
    %3878 = vmatpush1.bf16.msra.mxu0 %v3605
    %3879 = vmatprep.subr.bf16.mxu0 0
    %3880 = vmatpush1.bf16.msra.mxu0 %v3608
    %3881 = vmatprep.subr.bf16.mxu0 0
    %3882 = vmatpush1.bf16.msra.mxu0 %v3611
    %3883 = vmatprep.subr.bf16.mxu0 0
    %3884 = vmatpush1.bf16.msra.mxu0 %v3614
    %3885 = vmatprep.subr.bf16.mxu0 0
    %3886 = vmatpush1.bf16.msra.mxu0 %v3617
    %3887 = vmatprep.subr.bf16.mxu0 0
    %3888 = vmatpush1.bf16.msra.mxu0 %v3620
    %3889 = vmatprep.subr.bf16.mxu0 0
    %3890 = vmatpush1.bf16.msra.mxu0 %v3623
    %3891 = vmatprep.subr.bf16.mxu0 0
    %3892 = vmatpush1.bf16.msra.mxu0 %v3626
    %3893 = vmatprep.subr.bf16.mxu0 0
    %3894 = vmatpush1.bf16.msra.mxu0 %v3629
    %3895 = vmatprep.subr.bf16.mxu0 0
    %3896 = vmatpush1.bf16.msra.mxu0 0
    %3897 = vmatprep.subr.bf16.mxu0 0
    %3898 = vmatpush1.bf16.msra.mxu0 0
    %3899 = vmatprep.subr.bf16.mxu0 0
    %3900 = vmatpush1.bf16.msra.mxu0 0
    %3901 = vmatprep.subr.bf16.mxu0 0
    %3902 = vmatpush1.bf16.msra.mxu0 0
    %3903 = vmatprep.mubr.bf16.mxu0 %v3716
    %3904 = vmatmul.mubr.bf16.gmra.mrb[0].mxu0 %v3254
    %v3905 = vpop.f32.mrb[0].mxu0
    %v3906 = vadd.f32 %v3858, %v3905
    %v3907 = vpop.f32.mrb[0].mxu0
    %v3908 = vpop.f32.mrb[0].mxu0
    %v3909 = vadd.f32 %v3861, %v3908
    %v3910 = vpop.f32.mrb[0].mxu0
    %3911 = vmatprep.mubr.bf16.mxu0 %v3719
    %3912 = vmatmul.mubr.bf16.gmra.mrb[0].mxu0 %v3258
    %v3913 = vpop.f32.mrb[0].mxu0
    %v3914 = vadd.f32 %v3866, %v3913
    %v3915 = vpop.f32.mrb[0].mxu0
    %v3916 = vpop.f32.mrb[0].mxu0
    %v3917 = vpop.f32.mrb[0].mxu0
    %3918 = vdwg.mxu0
    %v3927 = vunpack.c.l.b16 %v2520
    %v3928 = vunpack.c.l.b16 %v2521
    %v3929 = vunpack.c.l.b16 %v2522
    %v3930 = vunpack.c.l.b16 %v2523
    %v3931 = vunpack.c.l.b16 %v2576
    %v3932 = vunpack.c.l.b16 %v2577
    %v3933 = vunpack.c.l.b16 %v2578
    %v3934 = vunpack.c.l.b16 %v2579
    %v3935 = vsel %vm3161, %v3065, %v3927
    %v3936 = vsel %vm3163, %v3069, %v3935
    %v3937 = vsel %vm3165, %v3073, %v3936
    %v3938 = vsel %vm3167, %v3077, %v3937
    %v3939 = vsel %vm3169, %v3081, %v3938
    %v3940 = vsel %vm3171, %v3085, %v3939
    %v3941 = vsel %vm3173, %v3089, %v3940
    %v3942 = vsel %vm3161, %v3066, %v3928
    %v3943 = vsel %vm3163, %v3070, %v3942
    %v3944 = vsel %vm3165, %v3074, %v3943
    %v3945 = vsel %vm3167, %v3078, %v3944
    %v3946 = vsel %vm3169, %v3082, %v3945
    %v3947 = vsel %vm3171, %v3086, %v3946
    %v3948 = vsel %vm3173, %v3090, %v3947
    %v3949 = vsel %vm3161, %v3067, %v3929
    %v3950 = vsel %vm3163, %v3071, %v3949
    %v3951 = vsel %vm3165, %v3075, %v3950
    %v3952 = vsel %vm3167, %v3079, %v3951
    %v3953 = vsel %vm3169, %v3083, %v3952
    %v3954 = vsel %vm3171, %v3087, %v3953
    %v3955 = vsel %vm3173, %v3091, %v3954
    %v3956 = vsel %vm3161, %v3068, %v3930
    %v3957 = vsel %vm3163, %v3072, %v3956
    %v3958 = vsel %vm3165, %v3076, %v3957
    %v3959 = vsel %vm3167, %v3080, %v3958
    %v3960 = vsel %vm3169, %v3084, %v3959
    %v3961 = vsel %vm3171, %v3088, %v3960
    %v3962 = vsel %vm3173, %v3092, %v3961
    %v3963 = vsel %vm3161, %v3097, %v3093
    %v3964 = vsel %vm3163, %v3101, %v3963
    %v3965 = vsel %vm3165, %v3105, %v3964
    %v3966 = vsel %vm3167, %v3931, %v3965
    %v3967 = vsel %vm3169, %v3113, %v3966
    %v3968 = vsel %vm3171, %v3117, %v3967
    %v3969 = vsel %vm3173, %v3121, %v3968
    %v3970 = vsel %vm3161, %v3098, %v3094
    %v3971 = vsel %vm3163, %v3102, %v3970
    %v3972 = vsel %vm3165, %v3106, %v3971
    %v3973 = vsel %vm3167, %v3932, %v3972
    %v3974 = vsel %vm3169, %v3114, %v3973
    %v3975 = vsel %vm3171, %v3118, %v3974
    %v3976 = vsel %vm3173, %v3122, %v3975
    %v3977 = vsel %vm3161, %v3099, %v3095
    %v3978 = vsel %vm3163, %v3103, %v3977
    %v3979 = vsel %vm3165, %v3107, %v3978
    %v3980 = vsel %vm3167, %v3933, %v3979
    %v3981 = vsel %vm3169, %v3115, %v3980
    %v3982 = vsel %vm3171, %v3119, %v3981
    %v3983 = vsel %vm3173, %v3123, %v3982
    %v3984 = vsel %vm3161, %v3100, %v3096
    %v3985 = vsel %vm3163, %v3104, %v3984
    %v3986 = vsel %vm3165, %v3108, %v3985
    %v3987 = vsel %vm3167, %v3934, %v3986
    %v3988 = vsel %vm3169, %v3116, %v3987
    %v3989 = vsel %vm3171, %v3120, %v3988
    %v3990 = vsel %vm3173, %v3124, %v3989
    %v3991 = vsel %vm3161, %v3129, %v3125
    %v3992 = vsel %vm3163, %v3133, %v3991
    %v3993 = vsel %vm3165, %v3137, %v3992
    %v3994 = vsel %vm3167, %v3141, %v3993
    %v3995 = vsel %vm3169, %v3145, %v3994
    %v3996 = vsel %vm3171, %v3149, %v3995
    %v3997 = vsel %vm3173, %v3153, %v3996
    %v3998 = vsel %vm3161, %v3130, %v3126
    %v3999 = vsel %vm3163, %v3134, %v3998
    %v4000 = vsel %vm3165, %v3138, %v3999
    %v4001 = vsel %vm3167, %v3142, %v4000
    %v4002 = vsel %vm3169, %v3146, %v4001
    %v4003 = vsel %vm3171, %v3150, %v4002
    %v4004 = vsel %vm3173, %v3154, %v4003
    %v4005 = vsel %vm3161, %v3131, %v3127
    %v4006 = vsel %vm3163, %v3135, %v4005
    %v4007 = vsel %vm3165, %v3139, %v4006
    %v4008 = vsel %vm3167, %v3143, %v4007
    %v4009 = vsel %vm3169, %v3147, %v4008
    %v4010 = vsel %vm3171, %v3151, %v4009
    %v4011 = vsel %vm3173, %v3155, %v4010
    %v4012 = vsel %vm3161, %v3132, %v3128
    %v4013 = vsel %vm3163, %v3136, %v4012
    %v4014 = vsel %vm3165, %v3140, %v4013
    %v4015 = vsel %vm3167, %v3144, %v4014
    %v4016 = vsel %vm3169, %v3148, %v4015
    %v4017 = vsel %vm3171, %v3152, %v4016
    %v4018 = vsel %vm3173, %v3156, %v4017
    %v4019 = vpack.c.b16 %v3969, %v3941
    %v4020 = vpack.c.b16 %v3976, %v3948
    %v4021 = vpack.c.b16 %v3983, %v3955
    %v4022 = vpack.c.b16 %v3990, %v3962
    %v4023 = vpack.c.b16 %v3997, %v3997
    %v4024 = vpack.c.b16 %v4004, %v4004
    %v4025 = vpack.c.b16 %v4011, %v4011
    %v4026 = vpack.c.b16 %v4018, %v4018
    %v4145 = vunpack.c.l.b16 %v2632
    %v4146 = vunpack.c.h.b16 %v2632
    %v4147 = vunpack.c.l.b16 %v2633
    %v4148 = vunpack.c.l.b16 %v2634
    %v4149 = vunpack.c.h.b16 %v2634
    %v4150 = vunpack.c.l.b16 %v2635
    %v4151 = vunpack.c.l.b16 %v2636
    %v4152 = vunpack.c.h.b16 %v2636
    %v4153 = vunpack.c.l.b16 %v2637
    %v4154 = vunpack.c.l.b16 %v2638
    %v4155 = vunpack.c.h.b16 %v2638
    %v4156 = vunpack.c.l.b16 %v2639
    %v4157 = vunpack.c.l.b16 %v2640
    %v4158 = vunpack.c.h.b16 %v2640
    %v4159 = vunpack.c.l.b16 %v2641
    %v4160 = vunpack.c.l.b16 %v2642
    %v4161 = vunpack.c.h.b16 %v2642
    %v4162 = vunpack.c.l.b16 %v2643
    %v4163 = vunpack.c.l.b16 %v2644
    %v4164 = vunpack.c.h.b16 %v2644
    %v4165 = vunpack.c.l.b16 %v2645
    %v4166 = vunpack.c.l.b16 %v2646
    %v4167 = vunpack.c.h.b16 %v2646
    %v4168 = vunpack.c.l.b16 %v2647
    %v4169 = vunpack.c.l.b16 %v2648
    %v4170 = vunpack.c.h.b16 %v2648
    %v4171 = vunpack.c.l.b16 %v2649
    %v4172 = vunpack.c.l.b16 %v2650
    %v4173 = vunpack.c.h.b16 %v2650
    %v4174 = vunpack.c.l.b16 %v2651
    %v4175 = vunpack.c.l.b16 %v2652
    %v4176 = vunpack.c.h.b16 %v2652
    %v4177 = vunpack.c.l.b16 %v2653
    %v4178 = vunpack.c.l.b16 %v2654
    %v4179 = vunpack.c.h.b16 %v2654
    %v4180 = vunpack.c.l.b16 %v2655
    %v4181 = vunpack.c.l.b16 %v2656
    %v4182 = vunpack.c.h.b16 %v2656
    %v4183 = vunpack.c.l.b16 %v2657
    %v4184 = vunpack.c.l.b16 %v2658
    %v4185 = vunpack.c.h.b16 %v2658
    %v4186 = vunpack.c.l.b16 %v2659
    %v4187 = vunpack.c.l.b16 %v2660
    %v4188 = vunpack.c.h.b16 %v2660
    %v4189 = vunpack.c.l.b16 %v2661
    %v4190 = vunpack.c.l.b16 %v2662
    %v4191 = vunpack.c.h.b16 %v2662
    %v4192 = vunpack.c.l.b16 %v2663
    %v4193 = vunpack.c.l.b16 %v2664
    %v4194 = vunpack.c.h.b16 %v2664
    %v4195 = vunpack.c.l.b16 %v2665
    %v4196 = vunpack.c.l.b16 %v2666
    %v4197 = vunpack.c.h.b16 %v2666
    %v4198 = vunpack.c.l.b16 %v2667
    %v4199 = vunpack.c.l.b16 %v2668
    %v4200 = vunpack.c.h.b16 %v2668
    %v4201 = vunpack.c.l.b16 %v2669
    %v4202 = vunpack.c.l.b16 %v2670
    %v4203 = vunpack.c.h.b16 %v2670
    %v4204 = vunpack.c.l.b16 %v2671
    %v4205 = vunpack.c.l.b16 %v2672
    %v4206 = vunpack.c.h.b16 %v2672
    %v4207 = vunpack.c.l.b16 %v2673
    %v4208 = vunpack.c.l.b16 %v2674
    %v4209 = vunpack.c.h.b16 %v2674
    %v4210 = vunpack.c.l.b16 %v2675
    %v4211 = vunpack.c.l.b16 %v2676
    %v4212 = vunpack.c.h.b16 %v2676
    %v4213 = vunpack.c.l.b16 %v2677
    %v4214 = vunpack.c.l.b16 %v2678
    %v4215 = vunpack.c.h.b16 %v2678
    %v4216 = vunpack.c.l.b16 %v2679
    %v4217 = vunpack.c.l.b16 %v2680
    %v4218 = vunpack.c.h.b16 %v2680
    %v4219 = vunpack.c.l.b16 %v2681
    %v4220 = vunpack.c.l.b16 %v2682
    %v4221 = vunpack.c.h.b16 %v2682
    %v4222 = vunpack.c.l.b16 %v2683
    %v4223 = vunpack.c.l.b16 %v2684
    %v4224 = vunpack.c.h.b16 %v2684
    %v4225 = vunpack.c.l.b16 %v2685
    %v4226 = vunpack.c.l.b16 %v2686
    %v4227 = vunpack.c.h.b16 %v2686
    %v4228 = vunpack.c.l.b16 %v2687
    %v4229 = vunpack.c.l.b16 %v2688
    %v4230 = vunpack.c.h.b16 %v2688
    %v4231 = vunpack.c.l.b16 %v2689
    %v4232 = vunpack.c.l.b16 %v2690
    %v4233 = vunpack.c.h.b16 %v2690
    %v4234 = vunpack.c.l.b16 %v2691
    %v4235 = vunpack.c.l.b16 %v2692
    %v4236 = vunpack.c.h.b16 %v2692
    %v4237 = vunpack.c.l.b16 %v2693
    %v4238 = vunpack.c.l.b16 %v2694
    %v4239 = vunpack.c.h.b16 %v2694
    %v4240 = vunpack.c.l.b16 %v2695
    %v4241 = vunpack.c.l.b16 %v2696
    %v4242 = vunpack.c.h.b16 %v2696
    %v4243 = vunpack.c.l.b16 %v2697
    %v4244 = vunpack.c.l.b16 %v2698
    %v4245 = vunpack.c.h.b16 %v2698
    %v4246 = vunpack.c.l.b16 %v2699
    %v4247 = vunpack.c.l.b16 %v2700
    %v4248 = vunpack.c.h.b16 %v2700
    %v4249 = vunpack.c.l.b16 %v2701
    %v4250 = vunpack.c.l.b16 %v2702
    %v4251 = vunpack.c.h.b16 %v2702
    %v4252 = vunpack.c.l.b16 %v2703
    %v4253 = vunpack.c.l.b16 %v2704
    %v4254 = vunpack.c.h.b16 %v2704
    %v4255 = vunpack.c.l.b16 %v2705
    %v4256 = vunpack.c.l.b16 %v2706
    %v4257 = vunpack.c.h.b16 %v2706
    %v4258 = vunpack.c.l.b16 %v2707
    %v4259 = vunpack.c.l.b16 %v2708
    %v4260 = vunpack.c.h.b16 %v2708
    %v4261 = vunpack.c.l.b16 %v2709
    %v4262 = vunpack.c.l.b16 %v2710
    %v4263 = vunpack.c.h.b16 %v2710
    %v4264 = vunpack.c.l.b16 %v2711
    %v4265 = vunpack.c.l.b16 %v2712
    %v4266 = vunpack.c.h.b16 %v2712
    %v4267 = vunpack.c.l.b16 %v2713
    %v4268 = vunpack.c.l.b16 %v2714
    %v4269 = vunpack.c.h.b16 %v2714
    %v4270 = vunpack.c.l.b16 %v2715
    %v4271 = vunpack.c.l.b16 %v2716
    %v4272 = vunpack.c.h.b16 %v2716
    %v4273 = vunpack.c.l.b16 %v2717
    %v4274 = vunpack.c.l.b16 %v2718
    %v4275 = vunpack.c.h.b16 %v2718
    %v4276 = vunpack.c.l.b16 %v2719
    %v4277 = vunpack.c.l.b16 %v2720
    %v4278 = vunpack.c.h.b16 %v2720
    %v4279 = vunpack.c.l.b16 %v2721
    %v4280 = vunpack.c.l.b16 %v2722
    %v4281 = vunpack.c.h.b16 %v2722
    %v4282 = vunpack.c.l.b16 %v2723
    %v4283 = vunpack.c.l.b16 %v2724
    %v4284 = vunpack.c.h.b16 %v2724
    %v4285 = vunpack.c.l.b16 %v2725
    %v4286 = vunpack.c.l.b16 %v2726
    %v4287 = vunpack.c.h.b16 %v2726
    %v4288 = vunpack.c.l.b16 %v2727
    %v4289 = vunpack.c.l.b16 %v2728
    %v4290 = vunpack.c.h.b16 %v2728
    %v4291 = vunpack.c.l.b16 %v2729
    %v4292 = vunpack.c.l.b16 %v2730
    %v4293 = vunpack.c.h.b16 %v2730
    %v4294 = vunpack.c.l.b16 %v2731
    %v4295 = vunpack.c.l.b16 %v2732
    %v4296 = vunpack.c.h.b16 %v2732
    %v4297 = vunpack.c.l.b16 %v2733
    %v4298 = vunpack.c.l.b16 %v2734
    %v4299 = vunpack.c.h.b16 %v2734
    %v4300 = vunpack.c.l.b16 %v2735
    %v4301 = vunpack.c.l.b16 %v2736
    %v4302 = vunpack.c.h.b16 %v2736
    %v4303 = vunpack.c.l.b16 %v2737
    %v4304 = vunpack.c.l.b16 %v2738
    %v4305 = vunpack.c.h.b16 %v2738
    %v4306 = vunpack.c.l.b16 %v2739
    %v4307 = vunpack.c.l.b16 %v2740
    %v4308 = vunpack.c.h.b16 %v2740
    %v4309 = vunpack.c.l.b16 %v2741
    %v4310 = vunpack.c.l.b16 %v2742
    %v4311 = vunpack.c.h.b16 %v2742
    %v4312 = vunpack.c.l.b16 %v2743
    %v4313 = vpack.c.b16 %v4148, %v4145
    %v4314 = vpack.c.b16 %v4149, %v4146
    %v4315 = vpack.c.b16 %v4150, %v4147
    %v4316 = vpack.c.b16 %v4154, %v4151
    %v4317 = vpack.c.b16 %v4155, %v4152
    %v4318 = vpack.c.b16 %v4156, %v4153
    %v4319 = vpack.c.b16 %v4160, %v4157
    %v4320 = vpack.c.b16 %v4161, %v4158
    %v4321 = vpack.c.b16 %v4162, %v4159
    %v4322 = vpack.c.b16 %v4166, %v4163
    %v4323 = vpack.c.b16 %v4167, %v4164
    %v4324 = vpack.c.b16 %v4168, %v4165
    %v4325 = vpack.c.b16 %v4172, %v4169
    %v4326 = vpack.c.b16 %v4173, %v4170
    %v4327 = vpack.c.b16 %v4174, %v4171
    %v4328 = vpack.c.b16 %v4178, %v4175
    %v4329 = vpack.c.b16 %v4179, %v4176
    %v4330 = vpack.c.b16 %v4180, %v4177
    %v4331 = vpack.c.b16 %v4184, %v4181
    %v4332 = vpack.c.b16 %v4185, %v4182
    %v4333 = vpack.c.b16 %v4186, %v4183
    %v4334 = vpack.c.b16 %v4190, %v4187
    %v4335 = vpack.c.b16 %v4191, %v4188
    %v4336 = vpack.c.b16 %v4192, %v4189
    %v4337 = vpack.c.b16 %v4196, %v4193
    %v4338 = vpack.c.b16 %v4197, %v4194
    %v4339 = vpack.c.b16 %v4198, %v4195
    %v4340 = vpack.c.b16 %v4202, %v4199
    %v4341 = vpack.c.b16 %v4203, %v4200
    %v4342 = vpack.c.b16 %v4204, %v4201
    %v4343 = vpack.c.b16 %v4208, %v4205
    %v4344 = vpack.c.b16 %v4209, %v4206
    %v4345 = vpack.c.b16 %v4210, %v4207
    %v4346 = vpack.c.b16 %v4214, %v4211
    %v4347 = vpack.c.b16 %v4215, %v4212
    %v4348 = vpack.c.b16 %v4216, %v4213
    %v4349 = vpack.c.b16 %v4220, %v4217
    %v4350 = vpack.c.b16 %v4221, %v4218
    %v4351 = vpack.c.b16 %v4222, %v4219
    %v4352 = vpack.c.b16 %v4226, %v4223
    %v4353 = vpack.c.b16 %v4227, %v4224
    %v4354 = vpack.c.b16 %v4228, %v4225
    %v4355 = vpack.c.b16 %v4232, %v4229
    %v4356 = vpack.c.b16 %v4233, %v4230
    %v4357 = vpack.c.b16 %v4234, %v4231
    %v4358 = vpack.c.b16 %v4238, %v4235
    %v4359 = vpack.c.b16 %v4239, %v4236
    %v4360 = vpack.c.b16 %v4240, %v4237
    %v4361 = vpack.c.b16 %v4244, %v4241
    %v4362 = vpack.c.b16 %v4245, %v4242
    %v4363 = vpack.c.b16 %v4246, %v4243
    %v4364 = vpack.c.b16 %v4250, %v4247
    %v4365 = vpack.c.b16 %v4251, %v4248
    %v4366 = vpack.c.b16 %v4252, %v4249
    %v4367 = vpack.c.b16 %v4256, %v4253
    %v4368 = vpack.c.b16 %v4257, %v4254
    %v4369 = vpack.c.b16 %v4258, %v4255
    %v4370 = vpack.c.b16 %v4262, %v4259
    %v4371 = vpack.c.b16 %v4263, %v4260
    %v4372 = vpack.c.b16 %v4264, %v4261
    %v4373 = vpack.c.b16 %v4268, %v4265
    %v4374 = vpack.c.b16 %v4269, %v4266
    %v4375 = vpack.c.b16 %v4270, %v4267
    %v4376 = vpack.c.b16 %v4274, %v4271
    %v4377 = vpack.c.b16 %v4275, %v4272
    %v4378 = vpack.c.b16 %v4276, %v4273
    %v4379 = vpack.c.b16 %v4280, %v4277
    %v4380 = vpack.c.b16 %v4281, %v4278
    %v4381 = vpack.c.b16 %v4282, %v4279
    %v4382 = vpack.c.b16 %v4286, %v4283
    %v4383 = vpack.c.b16 %v4287, %v4284
    %v4384 = vpack.c.b16 %v4288, %v4285
    %v4385 = vpack.c.b16 %v4292, %v4289
    %v4386 = vpack.c.b16 %v4293, %v4290
    %v4387 = vpack.c.b16 %v4294, %v4291
    %v4388 = vpack.c.b16 %v4298, %v4295
    %v4389 = vpack.c.b16 %v4299, %v4296
    %v4390 = vpack.c.b16 %v4300, %v4297
    %v4391 = vpack.c.b16 %v4304, %v4301
    %v4392 = vpack.c.b16 %v4305, %v4302
    %v4393 = vpack.c.b16 %v4306, %v4303
    %v4394 = vpack.c.b16 %v4310, %v4307
    %v4395 = vpack.c.b16 %v4311, %v4308
    %v4396 = vpack.c.b16 %v4312, %v4309
    %v4482 = vsel %vm3714, %v4022, 0
    %v4485 = vsel %vm3714, %v4026, 0
    %4487 = vmatprep.subr.bf16.mxu0 %v4314
    %4488 = vmatpush1.bf16.msra.mxu0 %v4313
    %4489 = vmatprep.subr.bf16.mxu0 %v4317
    %4490 = vmatpush1.bf16.msra.mxu0 %v4316
    %4491 = vmatprep.subr.bf16.mxu0 %v4320
    %4492 = vmatpush1.bf16.msra.mxu0 %v4319
    %4493 = vmatprep.subr.bf16.mxu0 %v4323
    %4494 = vmatpush1.bf16.msra.mxu0 %v4322
    %4495 = vmatprep.subr.bf16.mxu0 %v4326
    %4496 = vmatpush1.bf16.msra.mxu0 %v4325
    %4497 = vmatprep.subr.bf16.mxu0 %v4329
    %4498 = vmatpush1.bf16.msra.mxu0 %v4328
    %4499 = vmatprep.subr.bf16.mxu0 %v4332
    %4500 = vmatpush1.bf16.msra.mxu0 %v4331
    %4501 = vmatprep.subr.bf16.mxu0 %v4335
    %4502 = vmatpush1.bf16.msra.mxu0 %v4334
    %4503 = vmatprep.subr.bf16.mxu0 %v4338
    %4504 = vmatpush1.bf16.msra.mxu0 %v4337
    %4505 = vmatprep.subr.bf16.mxu0 %v4341
    %4506 = vmatpush1.bf16.msra.mxu0 %v4340
    %4507 = vmatprep.subr.bf16.mxu0 %v4344
    %4508 = vmatpush1.bf16.msra.mxu0 %v4343
    %4509 = vmatprep.subr.bf16.mxu0 %v4347
    %4510 = vmatpush1.bf16.msra.mxu0 %v4346
    %4511 = vmatprep.subr.bf16.mxu0 %v4350
    %4512 = vmatpush1.bf16.msra.mxu0 %v4349
    %4513 = vmatprep.subr.bf16.mxu0 %v4353
    %4514 = vmatpush1.bf16.msra.mxu0 %v4352
    %4515 = vmatprep.subr.bf16.mxu0 %v4356
    %4516 = vmatpush1.bf16.msra.mxu0 %v4355
    %4517 = vmatprep.subr.bf16.mxu0 %v4359
    %4518 = vmatpush1.bf16.msra.mxu0 %v4358
    %4519 = vmatprep.mubr.bf16.mxu0 %v4020
    %4520 = vmatmul.mubr.bf16.gmra.mrb[0].mxu0 %v4019
    %v4521 = vpop.f32.mrb[0].mxu0
    %v4522 = vadd.f32 %v3807, %v4521
    %v4523 = vpop.f32.mrb[0].mxu0
    %v4524 = vadd.f32 %v3809, %v4523
    %v4525 = vpop.f32.mrb[0].mxu0
    %v4526 = vadd.f32 %v3811, %v4525
    %v4527 = vpop.f32.mrb[0].mxu0
    %v4528 = vadd.f32 %v3813, %v4527
    %4529 = vmatprep.mubr.bf16.mxu0 %v4024
    %4530 = vmatmul.mubr.bf16.gmra.mrb[0].mxu0 %v4023
    %v4531 = vpop.f32.mrb[0].mxu0
    %v4532 = vadd.f32 %v3817, %v4531
    %v4533 = vpop.f32.mrb[0].mxu0
    %v4534 = vadd.f32 %v3819, %v4533
    %v4535 = vpop.f32.mrb[0].mxu0
    %v4536 = vpop.f32.mrb[0].mxu0
    %4537 = vdwg.mxu0
    %4538 = vmatprep.subr.bf16.mxu0 %v4362
    %4539 = vmatpush1.bf16.msra.mxu0 %v4361
    %4540 = vmatprep.subr.bf16.mxu0 %v4365
    %4541 = vmatpush1.bf16.msra.mxu0 %v4364
    %4542 = vmatprep.subr.bf16.mxu0 %v4368
    %4543 = vmatpush1.bf16.msra.mxu0 %v4367
    %4544 = vmatprep.subr.bf16.mxu0 %v4371
    %4545 = vmatpush1.bf16.msra.mxu0 %v4370
    %4546 = vmatprep.subr.bf16.mxu0 %v4374
    %4547 = vmatpush1.bf16.msra.mxu0 %v4373
    %4548 = vmatprep.subr.bf16.mxu0 %v4377
    %4549 = vmatpush1.bf16.msra.mxu0 %v4376
    %4550 = vmatprep.subr.bf16.mxu0 %v4380
    %4551 = vmatpush1.bf16.msra.mxu0 %v4379
    %4552 = vmatprep.subr.bf16.mxu0 %v4383
    %4553 = vmatpush1.bf16.msra.mxu0 %v4382
    %4554 = vmatprep.subr.bf16.mxu0 %v4386
    %4555 = vmatpush1.bf16.msra.mxu0 %v4385
    %4556 = vmatprep.subr.bf16.mxu0 %v4389
    %4557 = vmatpush1.bf16.msra.mxu0 %v4388
    %4558 = vmatprep.subr.bf16.mxu0 %v4392
    %4559 = vmatpush1.bf16.msra.mxu0 %v4391
    %4560 = vmatprep.subr.bf16.mxu0 %v4395
    %4561 = vmatpush1.bf16.msra.mxu0 %v4394
    %4562 = vmatprep.subr.bf16.mxu0 0
    %4563 = vmatpush1.bf16.msra.mxu0 0
    %4564 = vmatprep.subr.bf16.mxu0 0
    %4565 = vmatpush1.bf16.msra.mxu0 0
    %4566 = vmatprep.subr.bf16.mxu0 0
    %4567 = vmatpush1.bf16.msra.mxu0 0
    %4568 = vmatprep.subr.bf16.mxu0 0
    %4569 = vmatpush1.bf16.msra.mxu0 0
    %4570 = vmatprep.mubr.bf16.mxu0 %v4482
    %4571 = vmatmul.mubr.bf16.gmra.mrb[0].mxu0 %v4021
    %v4572 = vpop.f32.mrb[0].mxu0
    %v4573 = vadd.f32 %v4522, %v4572
    %v4574 = vpop.f32.mrb[0].mxu0
    %v4575 = vadd.f32 %v4524, %v4574
    %v4576 = vpop.f32.mrb[0].mxu0
    %v4577 = vadd.f32 %v4526, %v4576
    %v4578 = vpop.f32.mrb[0].mxu0
    %v4579 = vadd.f32 %v4528, %v4578
    %4580 = vmatprep.mubr.bf16.mxu0 %v4485
    %4581 = vmatmul.mubr.bf16.gmra.mrb[0].mxu0 %v4025
    %v4582 = vpop.f32.mrb[0].mxu0
    %v4583 = vadd.f32 %v4532, %v4582
    %v4584 = vpop.f32.mrb[0].mxu0
    %v4585 = vadd.f32 %v4534, %v4584
    %v4586 = vpop.f32.mrb[0].mxu0
    %v4587 = vpop.f32.mrb[0].mxu0
    %4588 = vdwg.mxu0
    %4589 = vmatprep.subr.bf16.mxu0 0
    %4590 = vmatpush1.bf16.msra.mxu0 %v4315
    %4591 = vmatprep.subr.bf16.mxu0 0
    %4592 = vmatpush1.bf16.msra.mxu0 %v4318
    %4593 = vmatprep.subr.bf16.mxu0 0
    %4594 = vmatpush1.bf16.msra.mxu0 %v4321
    %4595 = vmatprep.subr.bf16.mxu0 0
    %4596 = vmatpush1.bf16.msra.mxu0 %v4324
    %4597 = vmatprep.subr.bf16.mxu0 0
    %4598 = vmatpush1.bf16.msra.mxu0 %v4327
    %4599 = vmatprep.subr.bf16.mxu0 0
    %4600 = vmatpush1.bf16.msra.mxu0 %v4330
    %4601 = vmatprep.subr.bf16.mxu0 0
    %4602 = vmatpush1.bf16.msra.mxu0 %v4333
    %4603 = vmatprep.subr.bf16.mxu0 0
    %4604 = vmatpush1.bf16.msra.mxu0 %v4336
    %4605 = vmatprep.subr.bf16.mxu0 0
    %4606 = vmatpush1.bf16.msra.mxu0 %v4339
    %4607 = vmatprep.subr.bf16.mxu0 0
    %4608 = vmatpush1.bf16.msra.mxu0 %v4342
    %4609 = vmatprep.subr.bf16.mxu0 0
    %4610 = vmatpush1.bf16.msra.mxu0 %v4345
    %4611 = vmatprep.subr.bf16.mxu0 0
    %4612 = vmatpush1.bf16.msra.mxu0 %v4348
    %4613 = vmatprep.subr.bf16.mxu0 0
    %4614 = vmatpush1.bf16.msra.mxu0 %v4351
    %4615 = vmatprep.subr.bf16.mxu0 0
    %4616 = vmatpush1.bf16.msra.mxu0 %v4354
    %4617 = vmatprep.subr.bf16.mxu0 0
    %4618 = vmatpush1.bf16.msra.mxu0 %v4357
    %4619 = vmatprep.subr.bf16.mxu0 0
    %4620 = vmatpush1.bf16.msra.mxu0 %v4360
    %4621 = vmatprep.mubr.bf16.mxu0 %v4020
    %4622 = vmatmul.mubr.bf16.gmra.mrb[0].mxu0 %v4019
    %v4623 = vpop.f32.mrb[0].mxu0
    %v4624 = vadd.f32 %v3906, %v4623
    %v4625 = vpop.f32.mrb[0].mxu0
    %v4626 = vpop.f32.mrb[0].mxu0
    %v4627 = vadd.f32 %v3909, %v4626
    %v4628 = vpop.f32.mrb[0].mxu0
    %4629 = vmatprep.mubr.bf16.mxu0 %v4024
    %4630 = vmatmul.mubr.bf16.gmra.mrb[0].mxu0 %v4023
    %v4631 = vpop.f32.mrb[0].mxu0
    %v4632 = vadd.f32 %v3914, %v4631
    %v4633 = vpop.f32.mrb[0].mxu0
    %v4634 = vpop.f32.mrb[0].mxu0
    %v4635 = vpop.f32.mrb[0].mxu0
    %4636 = vdwg.mxu0
    %4637 = vmatprep.subr.bf16.mxu0 0
    %4638 = vmatpush1.bf16.msra.mxu0 %v4363
    %4639 = vmatprep.subr.bf16.mxu0 0
    %4640 = vmatpush1.bf16.msra.mxu0 %v4366
    %4641 = vmatprep.subr.bf16.mxu0 0
    %4642 = vmatpush1.bf16.msra.mxu0 %v4369
    %4643 = vmatprep.subr.bf16.mxu0 0
    %4644 = vmatpush1.bf16.msra.mxu0 %v4372
    %4645 = vmatprep.subr.bf16.mxu0 0
    %4646 = vmatpush1.bf16.msra.mxu0 %v4375
    %4647 = vmatprep.subr.bf16.mxu0 0
    %4648 = vmatpush1.bf16.msra.mxu0 %v4378
    %4649 = vmatprep.subr.bf16.mxu0 0
    %4650 = vmatpush1.bf16.msra.mxu0 %v4381
    %4651 = vmatprep.subr.bf16.mxu0 0
    %4652 = vmatpush1.bf16.msra.mxu0 %v4384
    %4653 = vmatprep.subr.bf16.mxu0 0
    %4654 = vmatpush1.bf16.msra.mxu0 %v4387
    %4655 = vmatprep.subr.bf16.mxu0 0
    %4656 = vmatpush1.bf16.msra.mxu0 %v4390
    %4657 = vmatprep.subr.bf16.mxu0 0
    %4658 = vmatpush1.bf16.msra.mxu0 %v4393
    %4659 = vmatprep.subr.bf16.mxu0 0
    %4660 = vmatpush1.bf16.msra.mxu0 %v4396
    %4661 = vmatprep.subr.bf16.mxu0 0
    %4662 = vmatpush1.bf16.msra.mxu0 0
    %4663 = vmatprep.subr.bf16.mxu0 0
    %4664 = vmatpush1.bf16.msra.mxu0 0
    %4665 = vmatprep.subr.bf16.mxu0 0
    %4666 = vmatpush1.bf16.msra.mxu0 0
    %4667 = vmatprep.subr.bf16.mxu0 0
    %4668 = vmatpush1.bf16.msra.mxu0 0
    %4669 = vmatprep.mubr.bf16.mxu0 %v4482
    %4670 = vmatmul.mubr.bf16.gmra.mrb[0].mxu0 %v4021
    %v4671 = vpop.f32.mrb[0].mxu0
    %v4672 = vadd.f32 %v4624, %v4671
    %v4673 = vpop.f32.mrb[0].mxu0
    %v4674 = vpop.f32.mrb[0].mxu0
    %v4675 = vadd.f32 %v4627, %v4674
    %v4676 = vpop.f32.mrb[0].mxu0
    %4677 = vmatprep.mubr.bf16.mxu0 %v4485
    %4678 = vmatmul.mubr.bf16.gmra.mrb[0].mxu0 %v4025
    %v4679 = vpop.f32.mrb[0].mxu0
    %v4680 = vadd.f32 %v4632, %v4679
    %v4681 = vpop.f32.mrb[0].mxu0
    %v4682 = vpop.f32.mrb[0].mxu0
    %v4683 = vpop.f32.mrb[0].mxu0
    %4684 = vdwg.mxu0
    %s4685 = scalar_lea.vmem [#allocation11], 672
    %v4686 = vld [vmem:[%s4685] sm:$0xff]
    %v4687 = vld [vmem:[%s4685 + $0x8] sm:$0xf]
    %v4688 = vld [vmem:[%s4685 + $0xc] sm:$0xff]
    %v4689 = vld [vmem:[%s4685 + $0x14] sm:$0xf]
    %v4690 = vld [vmem:[%s4685 + $0x18] sm:$0xff]
    %v4691 = vld [vmem:[%s4685 + $0x20] sm:$0xf]
    %v4692 = vld [vmem:[%s4685 + $0x24] sm:$0xff]
    %v4693 = vld [vmem:[%s4685 + $0x2c] sm:$0xf]
    %v4694 = vld [vmem:[%s4685 + $0x30] sm:$0xff]
    %v4695 = vld [vmem:[%s4685 + $0x38] sm:$0xf]
    %v4696 = vld [vmem:[%s4685 + $0x3c] sm:$0xff]
    %v4697 = vld [vmem:[%s4685 + $0x44] sm:$0xf]
    %v4698 = vld [vmem:[%s4685 + $0x48] sm:$0xff]
    %v4699 = vld [vmem:[%s4685 + $0x50] sm:$0xf]
    %v4700 = vld [vmem:[%s4685 + $0x54] sm:$0xff]
    %v4701 = vld [vmem:[%s4685 + $0x5c] sm:$0xf]
    %v4702 = vld [vmem:[%s4685 + $0x60] sm:$0xff]
    %v4703 = vld [vmem:[%s4685 + $0x68] sm:$0xf]
    %v4704 = vld [vmem:[%s4685 + $0x6c] sm:$0xff]
    %v4705 = vld [vmem:[%s4685 + $0x74] sm:$0xf]
    %v4706 = vld [vmem:[%s4685 + $0x78] sm:$0xff]
    %v4707 = vld [vmem:[%s4685 + $0x80] sm:$0xf]
    %v4708 = vld [vmem:[%s4685 + $0x84] sm:$0xff]
    %v4709 = vld [vmem:[%s4685 + $0x8c] sm:$0xf]
    %v4710 = vld [vmem:[%s4685 + $0x90] sm:$0xff]
    %v4711 = vld [vmem:[%s4685 + $0x98] sm:$0xf]
    %v4712 = vld [vmem:[%s4685 + $0x9c] sm:$0xff]
    %v4713 = vld [vmem:[%s4685 + $0xa4] sm:$0xf]
    %v4714 = vld [vmem:[%s4685 + $0xa8] sm:$0xff]
    %v4715 = vld [vmem:[%s4685 + $0xb0] sm:$0xf]
    %v4716 = vld [vmem:[%s4685 + $0xb4] sm:$0xff]
    %v4717 = vld [vmem:[%s4685 + $0xbc] sm:$0xf]
    %v4718 = vld [vmem:[%s4685 + $0xc0] sm:$0xff]
    %v4719 = vld [vmem:[%s4685 + $0xc8] sm:$0xf]
    %v4720 = vld [vmem:[%s4685 + $0xcc] sm:$0xff]
    %v4721 = vld [vmem:[%s4685 + $0xd4] sm:$0xf]
    %v4722 = vld [vmem:[%s4685 + $0xd8] sm:$0xff]
    %v4723 = vld [vmem:[%s4685 + $0xe0] sm:$0xf]
    %v4724 = vld [vmem:[%s4685 + $0xe4] sm:$0xff]
    %v4725 = vld [vmem:[%s4685 + $0xec] sm:$0xf]
    %v4726 = vld [vmem:[%s4685 + $0xf0] sm:$0xff]
    %v4727 = vld [vmem:[%s4685 + $0xf8] sm:$0xf]
    %v4728 = vld [vmem:[%s4685 + $0xfc] sm:$0xff]
    %v4729 = vld [vmem:[%s4685 + $0x104] sm:$0xf]
    %v4730 = vld [vmem:[%s4685 + $0x108] sm:$0xff]
    %v4731 = vld [vmem:[%s4685 + $0x110] sm:$0xf]
    %v4732 = vld [vmem:[%s4685 + $0x114] sm:$0xff]
    %v4733 = vld [vmem:[%s4685 + $0x11c] sm:$0xf]
    %v4734 = vld [vmem:[%s4685 + $0x120] sm:$0xff]
    %v4735 = vld [vmem:[%s4685 + $0x128] sm:$0xf]
    %v4736 = vld [vmem:[%s4685 + $0x12c] sm:$0xff]
    %v4737 = vld [vmem:[%s4685 + $0x134] sm:$0xf]
    %v4738 = vld [vmem:[%s4685 + $0x138] sm:$0xff]
    %v4739 = vld [vmem:[%s4685 + $0x140] sm:$0xf]
    %v4740 = vld [vmem:[%s4685 + $0x144] sm:$0xff]
    %v4741 = vld [vmem:[%s4685 + $0x14c] sm:$0xf]
    %v4742 = vld [vmem:[%s4685 + $0x150] sm:$0xff]
    %v4743 = vld [vmem:[%s4685 + $0x158] sm:$0xf]
    %v4744 = vld [vmem:[%s4685 + $0x15c] sm:$0xff]
    %v4745 = vld [vmem:[%s4685 + $0x164] sm:$0xf]
    %v4746 = vld [vmem:[%s4685 + $0x168] sm:$0xff]
    %v4747 = vld [vmem:[%s4685 + $0x170] sm:$0xf]
    %v4748 = vld [vmem:[%s4685 + $0x174] sm:$0xff]
    %v4749 = vld [vmem:[%s4685 + $0x17c] sm:$0xf]
    %v4750 = vld [vmem:[%s4685 + $0x180] sm:$0xff]
    %v4751 = vld [vmem:[%s4685 + $0x188] sm:$0xf]
    %v4752 = vld [vmem:[%s4685 + $0x18c] sm:$0xff]
    %v4753 = vld [vmem:[%s4685 + $0x194] sm:$0xf]
    %v4754 = vld [vmem:[%s4685 + $0x198] sm:$0xff]
    %v4755 = vld [vmem:[%s4685 + $0x1a0] sm:$0xf]
    %v4756 = vld [vmem:[%s4685 + $0x1a4] sm:$0xff]
    %v4757 = vld [vmem:[%s4685 + $0x1ac] sm:$0xf]
    %v4758 = vld [vmem:[%s4685 + $0x1b0] sm:$0xff]
    %v4759 = vld [vmem:[%s4685 + $0x1b8] sm:$0xf]
    %v4760 = vld [vmem:[%s4685 + $0x1bc] sm:$0xff]
    %v4761 = vld [vmem:[%s4685 + $0x1c4] sm:$0xf]
    %v4762 = vld [vmem:[%s4685 + $0x1c8] sm:$0xff]
    %v4763 = vld [vmem:[%s4685 + $0x1d0] sm:$0xf]
    %v4764 = vld [vmem:[%s4685 + $0x1d4] sm:$0xff]
    %v4765 = vld [vmem:[%s4685 + $0x1dc] sm:$0xf]
    %v4766 = vld [vmem:[%s4685 + $0x1e0] sm:$0xff]
    %v4767 = vld [vmem:[%s4685 + $0x1e8] sm:$0xf]
    %v4768 = vld [vmem:[%s4685 + $0x1ec] sm:$0xff]
    %v4769 = vld [vmem:[%s4685 + $0x1f4] sm:$0xf]
    %v4770 = vld [vmem:[%s4685 + $0x1f8] sm:$0xff]
    %v4771 = vld [vmem:[%s4685 + $0x200] sm:$0xf]
    %v4772 = vld [vmem:[%s4685 + $0x204] sm:$0xff]
    %v4773 = vld [vmem:[%s4685 + $0x20c] sm:$0xf]
    %v4774 = vld [vmem:[%s4685 + $0x210] sm:$0xff]
    %v4775 = vld [vmem:[%s4685 + $0x218] sm:$0xf]
    %v4776 = vld [vmem:[%s4685 + $0x21c] sm:$0xff]
    %v4777 = vld [vmem:[%s4685 + $0x224] sm:$0xf]
    %v4778 = vld [vmem:[%s4685 + $0x228] sm:$0xff]
    %v4779 = vld [vmem:[%s4685 + $0x230] sm:$0xf]
    %v4780 = vld [vmem:[%s4685 + $0x234] sm:$0xff]
    %v4781 = vld [vmem:[%s4685 + $0x23c] sm:$0xf]
    %v4782 = vld [vmem:[%s4685 + $0x240] sm:$0xff]
    %v4783 = vld [vmem:[%s4685 + $0x248] sm:$0xf]
    %v4784 = vld [vmem:[%s4685 + $0x24c] sm:$0xff]
    %v4785 = vld [vmem:[%s4685 + $0x254] sm:$0xf]
    %v4786 = vld [vmem:[%s4685 + $0x258] sm:$0xff]
    %v4787 = vld [vmem:[%s4685 + $0x260] sm:$0xf]
    %v4788 = vld [vmem:[%s4685 + $0x264] sm:$0xff]
    %v4789 = vld [vmem:[%s4685 + $0x26c] sm:$0xf]
    %v4790 = vld [vmem:[%s4685 + $0x270] sm:$0xff]
    %v4791 = vld [vmem:[%s4685 + $0x278] sm:$0xf]
    %v4792 = vld [vmem:[%s4685 + $0x27c] sm:$0xff]
    %v4793 = vld [vmem:[%s4685 + $0x284] sm:$0xf]
    %v4794 = vld [vmem:[%s4685 + $0x288] sm:$0xff]
    %v4795 = vld [vmem:[%s4685 + $0x290] sm:$0xf]
    %v4796 = vld [vmem:[%s4685 + $0x294] sm:$0xff]
    %v4797 = vld [vmem:[%s4685 + $0x29c] sm:$0xf]
    %v4910 = vunpack.c.l.b16 %v4686
    %v4911 = vunpack.c.h.b16 %v4686
    %v4912 = vunpack.c.l.b16 %v4687
    %v4913 = vunpack.c.l.b16 %v4688
    %v4914 = vunpack.c.h.b16 %v4688
    %v4915 = vunpack.c.l.b16 %v4689
    %v4916 = vunpack.c.l.b16 %v4690
    %v4917 = vunpack.c.h.b16 %v4690
    %v4918 = vunpack.c.l.b16 %v4691
    %v4919 = vunpack.c.l.b16 %v4692
    %v4920 = vunpack.c.h.b16 %v4692
    %v4921 = vunpack.c.l.b16 %v4693
    %v4922 = vunpack.c.l.b16 %v4694
    %v4923 = vunpack.c.h.b16 %v4694
    %v4924 = vunpack.c.l.b16 %v4695
    %v4925 = vunpack.c.l.b16 %v4696
    %v4926 = vunpack.c.h.b16 %v4696
    %v4927 = vunpack.c.l.b16 %v4697
    %v4928 = vunpack.c.l.b16 %v4698
    %v4929 = vunpack.c.h.b16 %v4698
    %v4930 = vunpack.c.l.b16 %v4699
    %v4931 = vunpack.c.l.b16 %v4700
    %v4932 = vunpack.c.h.b16 %v4700
    %v4933 = vunpack.c.l.b16 %v4701
    %v4934 = vunpack.c.l.b16 %v4702
    %v4935 = vunpack.c.h.b16 %v4702
    %v4936 = vunpack.c.l.b16 %v4703
    %v4937 = vunpack.c.l.b16 %v4704
    %v4938 = vunpack.c.h.b16 %v4704
    %v4939 = vunpack.c.l.b16 %v4705
    %v4940 = vunpack.c.l.b16 %v4706
    %v4941 = vunpack.c.h.b16 %v4706
    %v4942 = vunpack.c.l.b16 %v4707
    %v4943 = vunpack.c.l.b16 %v4708
    %v4944 = vunpack.c.h.b16 %v4708
    %v4945 = vunpack.c.l.b16 %v4709
    %v4946 = vunpack.c.l.b16 %v4710
    %v4947 = vunpack.c.h.b16 %v4710
    %v4948 = vunpack.c.l.b16 %v4711
    %v4949 = vunpack.c.l.b16 %v4712
    %v4950 = vunpack.c.h.b16 %v4712
    %v4951 = vunpack.c.l.b16 %v4713
    %v4952 = vunpack.c.l.b16 %v4714
    %v4953 = vunpack.c.h.b16 %v4714
    %v4954 = vunpack.c.l.b16 %v4715
    %v4955 = vunpack.c.l.b16 %v4716
    %v4956 = vunpack.c.h.b16 %v4716
    %v4957 = vunpack.c.l.b16 %v4717
    %v4958 = vunpack.c.l.b16 %v4718
    %v4959 = vunpack.c.h.b16 %v4718
    %v4960 = vunpack.c.l.b16 %v4719
    %v4961 = vunpack.c.l.b16 %v4720
    %v4962 = vunpack.c.h.b16 %v4720
    %v4963 = vunpack.c.l.b16 %v4721
    %v4964 = vunpack.c.l.b16 %v4722
    %v4965 = vunpack.c.h.b16 %v4722
    %v4966 = vunpack.c.l.b16 %v4723
    %v4967 = vunpack.c.l.b16 %v4724
    %v4968 = vunpack.c.h.b16 %v4724
    %v4969 = vunpack.c.l.b16 %v4725
    %v4970 = vunpack.c.l.b16 %v4726
    %v4971 = vunpack.c.h.b16 %v4726
    %v4972 = vunpack.c.l.b16 %v4727
    %v4973 = vunpack.c.l.b16 %v4728
    %v4974 = vunpack.c.h.b16 %v4728
    %v4975 = vunpack.c.l.b16 %v4729
    %v4976 = vunpack.c.l.b16 %v4730
    %v4977 = vunpack.c.h.b16 %v4730
    %v4978 = vunpack.c.l.b16 %v4731
    %v4979 = vunpack.c.l.b16 %v4732
    %v4980 = vunpack.c.h.b16 %v4732
    %v4981 = vunpack.c.l.b16 %v4733
    %v4982 = vunpack.c.l.b16 %v4734
    %v4983 = vunpack.c.h.b16 %v4734
    %v4984 = vunpack.c.l.b16 %v4735
    %v4985 = vunpack.c.l.b16 %v4736
    %v4986 = vunpack.c.h.b16 %v4736
    %v4987 = vunpack.c.l.b16 %v4737
    %v4988 = vunpack.c.l.b16 %v4738
    %v4989 = vunpack.c.h.b16 %v4738
    %v4990 = vunpack.c.l.b16 %v4739
    %v4991 = vunpack.c.l.b16 %v4740
    %v4992 = vunpack.c.h.b16 %v4740
    %v4993 = vunpack.c.l.b16 %v4741
    %v4994 = vunpack.c.l.b16 %v4742
    %v4995 = vunpack.c.h.b16 %v4742
    %v4996 = vunpack.c.l.b16 %v4743
    %v4997 = vunpack.c.l.b16 %v4744
    %v4998 = vunpack.c.h.b16 %v4744
    %v4999 = vunpack.c.l.b16 %v4745
    %v5000 = vunpack.c.l.b16 %v4746
    %v5001 = vunpack.c.h.b16 %v4746
    %v5002 = vunpack.c.l.b16 %v4747
    %v5003 = vunpack.c.l.b16 %v4748
    %v5004 = vunpack.c.h.b16 %v4748
    %v5005 = vunpack.c.l.b16 %v4749
    %v5006 = vunpack.c.l.b16 %v4750
    %v5007 = vunpack.c.h.b16 %v4750
    %v5008 = vunpack.c.l.b16 %v4751
    %v5009 = vunpack.c.l.b16 %v4752
    %v5010 = vunpack.c.h.b16 %v4752
    %v5011 = vunpack.c.l.b16 %v4753
    %v5012 = vunpack.c.l.b16 %v4754
    %v5013 = vunpack.c.h.b16 %v4754
    %v5014 = vunpack.c.l.b16 %v4755
    %v5015 = vunpack.c.l.b16 %v4756
    %v5016 = vunpack.c.h.b16 %v4756
    %v5017 = vunpack.c.l.b16 %v4757
    %v5018 = vunpack.c.l.b16 %v4758
    %v5019 = vunpack.c.h.b16 %v4758
    %v5020 = vunpack.c.l.b16 %v4759
    %v5021 = vunpack.c.l.b16 %v4760
    %v5022 = vunpack.c.h.b16 %v4760
    %v5023 = vunpack.c.l.b16 %v4761
    %v5024 = vunpack.c.l.b16 %v4762
    %v5025 = vunpack.c.h.b16 %v4762
    %v5026 = vunpack.c.l.b16 %v4763
    %v5027 = vunpack.c.l.b16 %v4764
    %v5028 = vunpack.c.h.b16 %v4764
    %v5029 = vunpack.c.l.b16 %v4765
    %v5030 = vunpack.c.l.b16 %v4766
    %v5031 = vunpack.c.h.b16 %v4766
    %v5032 = vunpack.c.l.b16 %v4767
    %v5033 = vunpack.c.l.b16 %v4768
    %v5034 = vunpack.c.h.b16 %v4768
    %v5035 = vunpack.c.l.b16 %v4769
    %v5036 = vunpack.c.l.b16 %v4770
    %v5037 = vunpack.c.h.b16 %v4770
    %v5038 = vunpack.c.l.b16 %v4771
    %v5039 = vunpack.c.l.b16 %v4772
    %v5040 = vunpack.c.h.b16 %v4772
    %v5041 = vunpack.c.l.b16 %v4773
    %v5042 = vunpack.c.l.b16 %v4774
    %v5043 = vunpack.c.h.b16 %v4774
    %v5044 = vunpack.c.l.b16 %v4775
    %v5045 = vunpack.c.l.b16 %v4776
    %v5046 = vunpack.c.h.b16 %v4776
    %v5047 = vunpack.c.l.b16 %v4777
    %v5048 = vunpack.c.l.b16 %v4778
    %v5049 = vunpack.c.h.b16 %v4778
    %v5050 = vunpack.c.l.b16 %v4779
    %v5051 = vunpack.c.l.b16 %v4780
    %v5052 = vunpack.c.h.b16 %v4780
    %v5053 = vunpack.c.l.b16 %v4781
    %v5054 = vunpack.c.l.b16 %v4782
    %v5055 = vunpack.c.h.b16 %v4782
    %v5056 = vunpack.c.l.b16 %v4783
    %v5057 = vunpack.c.l.b16 %v4784
    %v5058 = vunpack.c.h.b16 %v4784
    %v5059 = vunpack.c.l.b16 %v4785
    %v5060 = vunpack.c.l.b16 %v4786
    %v5061 = vunpack.c.h.b16 %v4786
    %v5062 = vunpack.c.l.b16 %v4787
    %v5063 = vunpack.c.l.b16 %v4788
    %v5064 = vunpack.c.h.b16 %v4788
    %v5065 = vunpack.c.l.b16 %v4789
    %v5066 = vunpack.c.l.b16 %v4790
    %v5067 = vunpack.c.h.b16 %v4790
    %v5068 = vunpack.c.l.b16 %v4791
    %v5069 = vunpack.c.l.b16 %v4792
    %v5070 = vunpack.c.h.b16 %v4792
    %v5071 = vunpack.c.l.b16 %v4793
    %v5072 = vunpack.c.l.b16 %v4794
    %v5073 = vunpack.c.h.b16 %v4794
    %v5074 = vunpack.c.l.b16 %v4795
    %v5075 = vunpack.c.l.b16 %v4796
    %v5076 = vunpack.c.h.b16 %v4796
    %v5077 = vunpack.c.l.b16 %v4797
    %v5078 = vpack.c.b16 %v4913, %v4910
    %v5079 = vpack.c.b16 %v4914, %v4911
    %v5080 = vpack.c.b16 %v4915, %v4912
    %v5081 = vpack.c.b16 %v4919, %v4916
    %v5082 = vpack.c.b16 %v4920, %v4917
    %v5083 = vpack.c.b16 %v4921, %v4918
    %v5084 = vpack.c.b16 %v4925, %v4922
    %v5085 = vpack.c.b16 %v4926, %v4923
    %v5086 = vpack.c.b16 %v4927, %v4924
    %v5087 = vpack.c.b16 %v4931, %v4928
    %v5088 = vpack.c.b16 %v4932, %v4929
    %v5089 = vpack.c.b16 %v4933, %v4930
    %v5090 = vpack.c.b16 %v4937, %v4934
    %v5091 = vpack.c.b16 %v4938, %v4935
    %v5092 = vpack.c.b16 %v4939, %v4936
    %v5093 = vpack.c.b16 %v4943, %v4940
    %v5094 = vpack.c.b16 %v4944, %v4941
    %v5095 = vpack.c.b16 %v4945, %v4942
    %v5096 = vpack.c.b16 %v4949, %v4946
    %v5097 = vpack.c.b16 %v4950, %v4947
    %v5098 = vpack.c.b16 %v4951, %v4948
    %v5099 = vpack.c.b16 %v4955, %v4952
    %v5100 = vpack.c.b16 %v4956, %v4953
    %v5101 = vpack.c.b16 %v4957, %v4954
    %v5102 = vpack.c.b16 %v4961, %v4958
    %v5103 = vpack.c.b16 %v4962, %v4959
    %v5104 = vpack.c.b16 %v4963, %v4960
    %v5105 = vpack.c.b16 %v4967, %v4964
    %v5106 = vpack.c.b16 %v4968, %v4965
    %v5107 = vpack.c.b16 %v4969, %v4966
    %v5108 = vpack.c.b16 %v4973, %v4970
    %v5109 = vpack.c.b16 %v4974, %v4971
    %v5110 = vpack.c.b16 %v4975, %v4972
    %v5111 = vpack.c.b16 %v4979, %v4976
    %v5112 = vpack.c.b16 %v4980, %v4977
    %v5113 = vpack.c.b16 %v4981, %v4978
    %v5114 = vpack.c.b16 %v4985, %v4982
    %v5115 = vpack.c.b16 %v4986, %v4983
    %v5116 = vpack.c.b16 %v4987, %v4984
    %v5117 = vpack.c.b16 %v4991, %v4988
    %v5118 = vpack.c.b16 %v4992, %v4989
    %v5119 = vpack.c.b16 %v4993, %v4990
    %v5120 = vpack.c.b16 %v4997, %v4994
    %v5121 = vpack.c.b16 %v4998, %v4995
    %v5122 = vpack.c.b16 %v4999, %v4996
    %v5123 = vpack.c.b16 %v5003, %v5000
    %v5124 = vpack.c.b16 %v5004, %v5001
    %v5125 = vpack.c.b16 %v5005, %v5002
    %v5126 = vpack.c.b16 %v5009, %v5006
    %v5127 = vpack.c.b16 %v5010, %v5007
    %v5128 = vpack.c.b16 %v5011, %v5008
    %v5129 = vpack.c.b16 %v5015, %v5012
    %v5130 = vpack.c.b16 %v5016, %v5013
    %v5131 = vpack.c.b16 %v5017, %v5014
    %v5132 = vpack.c.b16 %v5021, %v5018
    %v5133 = vpack.c.b16 %v5022, %v5019
    %v5134 = vpack.c.b16 %v5023, %v5020
    %v5135 = vpack.c.b16 %v5027, %v5024
    %v5136 = vpack.c.b16 %v5028, %v5025
    %v5137 = vpack.c.b16 %v5029, %v5026
    %v5138 = vpack.c.b16 %v5033, %v5030
    %v5139 = vpack.c.b16 %v5034, %v5031
    %v5140 = vpack.c.b16 %v5035, %v5032
    %v5141 = vpack.c.b16 %v5039, %v5036
    %v5142 = vpack.c.b16 %v5040, %v5037
    %v5143 = vpack.c.b16 %v5041, %v5038
    %v5144 = vpack.c.b16 %v5045, %v5042
    %v5145 = vpack.c.b16 %v5046, %v5043
    %v5146 = vpack.c.b16 %v5047, %v5044
    %v5147 = vpack.c.b16 %v5051, %v5048
    %v5148 = vpack.c.b16 %v5052, %v5049
    %v5149 = vpack.c.b16 %v5053, %v5050
    %v5150 = vpack.c.b16 %v5057, %v5054
    %v5151 = vpack.c.b16 %v5058, %v5055
    %v5152 = vpack.c.b16 %v5059, %v5056
    %v5153 = vpack.c.b16 %v5063, %v5060
    %v5154 = vpack.c.b16 %v5064, %v5061
    %v5155 = vpack.c.b16 %v5065, %v5062
    %v5156 = vpack.c.b16 %v5069, %v5066
    %v5157 = vpack.c.b16 %v5070, %v5067
    %v5158 = vpack.c.b16 %v5071, %v5068
    %v5159 = vpack.c.b16 %v5075, %v5072
    %v5160 = vpack.c.b16 %v5076, %v5073
    %v5161 = vpack.c.b16 %v5077, %v5074
    %5246 = vmatprep.subr.bf16.mxu0 %v5079
    %5247 = vmatpush1.bf16.msra.mxu0 %v5078
    %5248 = vmatprep.subr.bf16.mxu0 %v5082
    %5249 = vmatpush1.bf16.msra.mxu0 %v5081
    %5250 = vmatprep.subr.bf16.mxu0 %v5085
    %5251 = vmatpush1.bf16.msra.mxu0 %v5084
    %5252 = vmatprep.subr.bf16.mxu0 %v5088
    %5253 = vmatpush1.bf16.msra.mxu0 %v5087
    %5254 = vmatprep.subr.bf16.mxu0 %v5091
    %5255 = vmatpush1.bf16.msra.mxu0 %v5090
    %5256 = vmatprep.subr.bf16.mxu0 %v5094
    %5257 = vmatpush1.bf16.msra.mxu0 %v5093
    %5258 = vmatprep.subr.bf16.mxu0 %v5097
    %5259 = vmatpush1.bf16.msra.mxu0 %v5096
    %5260 = vmatprep.subr.bf16.mxu0 %v5100
    %5261 = vmatpush1.bf16.msra.mxu0 %v5099
    %5262 = vmatprep.subr.bf16.mxu0 %v5103
    %5263 = vmatpush1.bf16.msra.mxu0 %v5102
    %5264 = vmatprep.subr.bf16.mxu0 %v5106
    %5265 = vmatpush1.bf16.msra.mxu0 %v5105
    %5266 = vmatprep.subr.bf16.mxu0 %v5109
    %5267 = vmatpush1.bf16.msra.mxu0 %v5108
    %5268 = vmatprep.subr.bf16.mxu0 %v5112
    %5269 = vmatpush1.bf16.msra.mxu0 %v5111
    %5270 = vmatprep.subr.bf16.mxu0 %v5115
    %5271 = vmatpush1.bf16.msra.mxu0 %v5114
    %5272 = vmatprep.subr.bf16.mxu0 %v5118
    %5273 = vmatpush1.bf16.msra.mxu0 %v5117
    %5274 = vmatprep.subr.bf16.mxu0 %v5121
    %5275 = vmatpush1.bf16.msra.mxu0 %v5120
    %5276 = vmatprep.subr.bf16.mxu0 %v5124
    %5277 = vmatpush1.bf16.msra.mxu0 %v5123
    %5278 = vmatprep.mubr.bf16.mxu0 %v3253
    %5279 = vmatmul.mubr.bf16.gmra.mrb[0].mxu0 %v3252
    %v5280 = vpop.f32.mrb[0].mxu0
    %v5281 = vadd.f32 0.0, %v5280
    %v5282 = vpop.f32.mrb[0].mxu0
    %v5283 = vadd.f32 0.0, %v5282
    %v5284 = vpop.f32.mrb[0].mxu0
    %v5285 = vadd.f32 0.0, %v5284
    %v5286 = vpop.f32.mrb[0].mxu0
    %v5287 = vadd.f32 0.0, %v5286
    %5288 = vmatprep.mubr.bf16.mxu0 %v3257
    %5289 = vmatmul.mubr.bf16.gmra.mrb[0].mxu0 %v3256
    %v5290 = vpop.f32.mrb[0].mxu0
    %v5291 = vadd.f32 0.0, %v5290
    %v5292 = vpop.f32.mrb[0].mxu0
    %v5293 = vadd.f32 0.0, %v5292
    %v5294 = vpop.f32.mrb[0].mxu0
    %v5295 = vpop.f32.mrb[0].mxu0
    %5296 = vdwg.mxu0
    %5297 = vmatprep.subr.bf16.mxu0 %v5127
    %5298 = vmatpush1.bf16.msra.mxu0 %v5126
    %5299 = vmatprep.subr.bf16.mxu0 %v5130
    %5300 = vmatpush1.bf16.msra.mxu0 %v5129
    %5301 = vmatprep.subr.bf16.mxu0 %v5133
    %5302 = vmatpush1.bf16.msra.mxu0 %v5132
    %5303 = vmatprep.subr.bf16.mxu0 %v5136
    %5304 = vmatpush1.bf16.msra.mxu0 %v5135
    %5305 = vmatprep.subr.bf16.mxu0 %v5139
    %5306 = vmatpush1.bf16.msra.mxu0 %v5138
    %5307 = vmatprep.subr.bf16.mxu0 %v5142
    %5308 = vmatpush1.bf16.msra.mxu0 %v5141
    %5309 = vmatprep.subr.bf16.mxu0 %v5145
    %5310 = vmatpush1.bf16.msra.mxu0 %v5144
    %5311 = vmatprep.subr.bf16.mxu0 %v5148
    %5312 = vmatpush1.bf16.msra.mxu0 %v5147
    %5313 = vmatprep.subr.bf16.mxu0 %v5151
    %5314 = vmatpush1.bf16.msra.mxu0 %v5150
    %5315 = vmatprep.subr.bf16.mxu0 %v5154
    %5316 = vmatpush1.bf16.msra.mxu0 %v5153
    %5317 = vmatprep.subr.bf16.mxu0 %v5157
    %5318 = vmatpush1.bf16.msra.mxu0 %v5156
    %5319 = vmatprep.subr.bf16.mxu0 %v5160
    %5320 = vmatpush1.bf16.msra.mxu0 %v5159
    %5321 = vmatprep.subr.bf16.mxu0 0
    %5322 = vmatpush1.bf16.msra.mxu0 0
    %5323 = vmatprep.subr.bf16.mxu0 0
    %5324 = vmatpush1.bf16.msra.mxu0 0
    %5325 = vmatprep.subr.bf16.mxu0 0
    %5326 = vmatpush1.bf16.msra.mxu0 0
    %5327 = vmatprep.subr.bf16.mxu0 0
    %5328 = vmatpush1.bf16.msra.mxu0 0
    %5329 = vmatprep.mubr.bf16.mxu0 %v3716
    %5330 = vmatmul.mubr.bf16.gmra.mrb[0].mxu0 %v3254
    %v5331 = vpop.f32.mrb[0].mxu0
    %v5332 = vadd.f32 %v5281, %v5331
    %v5333 = vpop.f32.mrb[0].mxu0
    %v5334 = vadd.f32 %v5283, %v5333
    %v5335 = vpop.f32.mrb[0].mxu0
    %v5336 = vadd.f32 %v5285, %v5335
    %v5337 = vpop.f32.mrb[0].mxu0
    %v5338 = vadd.f32 %v5287, %v5337
    %5339 = vmatprep.mubr.bf16.mxu0 %v3719
    %5340 = vmatmul.mubr.bf16.gmra.mrb[0].mxu0 %v3258
    %v5341 = vpop.f32.mrb[0].mxu0
    %v5342 = vadd.f32 %v5291, %v5341
    %v5343 = vpop.f32.mrb[0].mxu0
    %v5344 = vadd.f32 %v5293, %v5343
    %v5345 = vpop.f32.mrb[0].mxu0
    %v5346 = vpop.f32.mrb[0].mxu0
    %5347 = vdwg.mxu0
    %5348 = vmatprep.subr.bf16.mxu0 0
    %5349 = vmatpush1.bf16.msra.mxu0 %v5080
    %5350 = vmatprep.subr.bf16.mxu0 0
    %5351 = vmatpush1.bf16.msra.mxu0 %v5083
    %5352 = vmatprep.subr.bf16.mxu0 0
    %5353 = vmatpush1.bf16.msra.mxu0 %v5086
    %5354 = vmatprep.subr.bf16.mxu0 0
    %5355 = vmatpush1.bf16.msra.mxu0 %v5089
    %5356 = vmatprep.subr.bf16.mxu0 0
    %5357 = vmatpush1.bf16.msra.mxu0 %v5092
    %5358 = vmatprep.subr.bf16.mxu0 0
    %5359 = vmatpush1.bf16.msra.mxu0 %v5095
    %5360 = vmatprep.subr.bf16.mxu0 0
    %5361 = vmatpush1.bf16.msra.mxu0 %v5098
    %5362 = vmatprep.subr.bf16.mxu0 0
    %5363 = vmatpush1.bf16.msra.mxu0 %v5101
    %5364 = vmatprep.subr.bf16.mxu0 0
    %5365 = vmatpush1.bf16.msra.mxu0 %v5104
    %5366 = vmatprep.subr.bf16.mxu0 0
    %5367 = vmatpush1.bf16.msra.mxu0 %v5107
    %5368 = vmatprep.subr.bf16.mxu0 0
    %5369 = vmatpush1.bf16.msra.mxu0 %v5110
    %5370 = vmatprep.subr.bf16.mxu0 0
    %5371 = vmatpush1.bf16.msra.mxu0 %v5113
    %5372 = vmatprep.subr.bf16.mxu0 0
    %5373 = vmatpush1.bf16.msra.mxu0 %v5116
    %5374 = vmatprep.subr.bf16.mxu0 0
    %5375 = vmatpush1.bf16.msra.mxu0 %v5119
    %5376 = vmatprep.subr.bf16.mxu0 0
    %5377 = vmatpush1.bf16.msra.mxu0 %v5122
    %5378 = vmatprep.subr.bf16.mxu0 0
    %5379 = vmatpush1.bf16.msra.mxu0 %v5125
    %5380 = vmatprep.mubr.bf16.mxu0 %v3253
    %5381 = vmatmul.mubr.bf16.gmra.mrb[0].mxu0 %v3252
    %v5382 = vpop.f32.mrb[0].mxu0
    %v5383 = vadd.f32 0.0, %v5382
    %v5384 = vpop.f32.mrb[0].mxu0
    %v5385 = vpop.f32.mrb[0].mxu0
    %v5386 = vadd.f32 0.0, %v5385
    %v5387 = vpop.f32.mrb[0].mxu0
    %5388 = vmatprep.mubr.bf16.mxu0 %v3257
    %5389 = vmatmul.mubr.bf16.gmra.mrb[0].mxu0 %v3256
    %v5390 = vpop.f32.mrb[0].mxu0
    %v5391 = vadd.f32 0.0, %v5390
    %v5392 = vpop.f32.mrb[0].mxu0
    %v5393 = vpop.f32.mrb[0].mxu0
    %v5394 = vpop.f32.mrb[0].mxu0
    %5395 = vdwg.mxu0
    %5396 = vmatprep.subr.bf16.mxu0 0
    %5397 = vmatpush1.bf16.msra.mxu0 %v5128
    %5398 = vmatprep.subr.bf16.mxu0 0
    %5399 = vmatpush1.bf16.msra.mxu0 %v5131
    %5400 = vmatprep.subr.bf16.mxu0 0
    %5401 = vmatpush1.bf16.msra.mxu0 %v5134
    %5402 = vmatprep.subr.bf16.mxu0 0
    %5403 = vmatpush1.bf16.msra.mxu0 %v5137
    %5404 = vmatprep.subr.bf16.mxu0 0
    %5405 = vmatpush1.bf16.msra.mxu0 %v5140
    %5406 = vmatprep.subr.bf16.mxu0 0
    %5407 = vmatpush1.bf16.msra.mxu0 %v5143
    %5408 = vmatprep.subr.bf16.mxu0 0
    %5409 = vmatpush1.bf16.msra.mxu0 %v5146
    %5410 = vmatprep.subr.bf16.mxu0 0
    %5411 = vmatpush1.bf16.msra.mxu0 %v5149
    %5412 = vmatprep.subr.bf16.mxu0 0
    %5413 = vmatpush1.bf16.msra.mxu0 %v5152
    %5414 = vmatprep.subr.bf16.mxu0 0
    %5415 = vmatpush1.bf16.msra.mxu0 %v5155
    %5416 = vmatprep.subr.bf16.mxu0 0
    %5417 = vmatpush1.bf16.msra.mxu0 %v5158
    %5418 = vmatprep.subr.bf16.mxu0 0
    %5419 = vmatpush1.bf16.msra.mxu0 %v5161
    %5420 = vmatprep.subr.bf16.mxu0 0
    %5421 = vmatpush1.bf16.msra.mxu0 0
    %5422 = vmatprep.subr.bf16.mxu0 0
    %5423 = vmatpush1.bf16.msra.mxu0 0
    %5424 = vmatprep.subr.bf16.mxu0 0
    %5425 = vmatpush1.bf16.msra.mxu0 0
    %5426 = vmatprep.subr.bf16.mxu0 0
    %5427 = vmatpush1.bf16.msra.mxu0 0
    %5428 = vmatprep.mubr.bf16.mxu0 %v3716
    %5429 = vmatmul.mubr.bf16.gmra.mrb[0].mxu0 %v3254
    %v5430 = vpop.f32.mrb[0].mxu0
    %v5431 = vadd.f32 %v5383, %v5430
    %v5432 = vpop.f32.mrb[0].mxu0
    %v5433 = vpop.f32.mrb[0].mxu0
    %v5434 = vadd.f32 %v5386, %v5433
    %v5435 = vpop.f32.mrb[0].mxu0
    %5436 = vmatprep.mubr.bf16.mxu0 %v3719
    %5437 = vmatmul.mubr.bf16.gmra.mrb[0].mxu0 %v3258
    %v5438 = vpop.f32.mrb[0].mxu0
    %v5439 = vadd.f32 %v5391, %v5438
    %v5440 = vpop.f32.mrb[0].mxu0
    %v5441 = vpop.f32.mrb[0].mxu0
    %v5442 = vpop.f32.mrb[0].mxu0
    %5443 = vdwg.mxu0
    %v5556 = vunpack.c.l.b16 %v2744
    %v5557 = vunpack.c.h.b16 %v2744
    %v5558 = vunpack.c.l.b16 %v2745
    %v5559 = vunpack.c.l.b16 %v2746
    %v5560 = vunpack.c.h.b16 %v2746
    %v5561 = vunpack.c.l.b16 %v2747
    %v5562 = vunpack.c.l.b16 %v2748
    %v5563 = vunpack.c.h.b16 %v2748
    %v5564 = vunpack.c.l.b16 %v2749
    %v5565 = vunpack.c.l.b16 %v2750
    %v5566 = vunpack.c.h.b16 %v2750
    %v5567 = vunpack.c.l.b16 %v2751
    %v5568 = vunpack.c.l.b16 %v2752
    %v5569 = vunpack.c.h.b16 %v2752
    %v5570 = vunpack.c.l.b16 %v2753
    %v5571 = vunpack.c.l.b16 %v2754
    %v5572 = vunpack.c.h.b16 %v2754
    %v5573 = vunpack.c.l.b16 %v2755
    %v5574 = vunpack.c.l.b16 %v2756
    %v5575 = vunpack.c.h.b16 %v2756
    %v5576 = vunpack.c.l.b16 %v2757
    %v5577 = vunpack.c.l.b16 %v2758
    %v5578 = vunpack.c.h.b16 %v2758
    %v5579 = vunpack.c.l.b16 %v2759
    %v5580 = vunpack.c.l.b16 %v2760
    %v5581 = vunpack.c.h.b16 %v2760
    %v5582 = vunpack.c.l.b16 %v2761
    %v5583 = vunpack.c.l.b16 %v2762
    %v5584 = vunpack.c.h.b16 %v2762
    %v5585 = vunpack.c.l.b16 %v2763
    %v5586 = vunpack.c.l.b16 %v2764
    %v5587 = vunpack.c.h.b16 %v2764
    %v5588 = vunpack.c.l.b16 %v2765
    %v5589 = vunpack.c.l.b16 %v2766
    %v5590 = vunpack.c.h.b16 %v2766
    %v5591 = vunpack.c.l.b16 %v2767
    %v5592 = vunpack.c.l.b16 %v2768
    %v5593 = vunpack.c.h.b16 %v2768
    %v5594 = vunpack.c.l.b16 %v2769
    %v5595 = vunpack.c.l.b16 %v2770
    %v5596 = vunpack.c.h.b16 %v2770
    %v5597 = vunpack.c.l.b16 %v2771
    %v5598 = vunpack.c.l.b16 %v2772
    %v5599 = vunpack.c.h.b16 %v2772
    %v5600 = vunpack.c.l.b16 %v2773
    %v5601 = vunpack.c.l.b16 %v2774
    %v5602 = vunpack.c.h.b16 %v2774
    %v5603 = vunpack.c.l.b16 %v2775
    %v5604 = vunpack.c.l.b16 %v2776
    %v5605 = vunpack.c.h.b16 %v2776
    %v5606 = vunpack.c.l.b16 %v2777
    %v5607 = vunpack.c.l.b16 %v2778
    %v5608 = vunpack.c.h.b16 %v2778
    %v5609 = vunpack.c.l.b16 %v2779
    %v5610 = vunpack.c.l.b16 %v2780
    %v5611 = vunpack.c.h.b16 %v2780
    %v5612 = vunpack.c.l.b16 %v2781
    %v5613 = vunpack.c.l.b16 %v2782
    %v5614 = vunpack.c.h.b16 %v2782
    %v5615 = vunpack.c.l.b16 %v2783
    %v5616 = vunpack.c.l.b16 %v2784
    %v5617 = vunpack.c.h.b16 %v2784
    %v5618 = vunpack.c.l.b16 %v2785
    %v5619 = vunpack.c.l.b16 %v2786
    %v5620 = vunpack.c.h.b16 %v2786
    %v5621 = vunpack.c.l.b16 %v2787
    %v5622 = vunpack.c.l.b16 %v2788
    %v5623 = vunpack.c.h.b16 %v2788
    %v5624 = vunpack.c.l.b16 %v2789
    %v5625 = vunpack.c.l.b16 %v2790
    %v5626 = vunpack.c.h.b16 %v2790
    %v5627 = vunpack.c.l.b16 %v2791
    %v5628 = vunpack.c.l.b16 %v2792
    %v5629 = vunpack.c.h.b16 %v2792
    %v5630 = vunpack.c.l.b16 %v2793
    %v5631 = vunpack.c.l.b16 %v2794
    %v5632 = vunpack.c.h.b16 %v2794
    %v5633 = vunpack.c.l.b16 %v2795
    %v5634 = vunpack.c.l.b16 %v2796
    %v5635 = vunpack.c.h.b16 %v2796
    %v5636 = vunpack.c.l.b16 %v2797
    %v5637 = vunpack.c.l.b16 %v2798
    %v5638 = vunpack.c.h.b16 %v2798
    %v5639 = vunpack.c.l.b16 %v2799
    %v5640 = vunpack.c.l.b16 %v2800
    %v5641 = vunpack.c.h.b16 %v2800
    %v5642 = vunpack.c.l.b16 %v2801
    %v5643 = vunpack.c.l.b16 %v2802
    %v5644 = vunpack.c.h.b16 %v2802
    %v5645 = vunpack.c.l.b16 %v2803
    %v5646 = vunpack.c.l.b16 %v2804
    %v5647 = vunpack.c.h.b16 %v2804
    %v5648 = vunpack.c.l.b16 %v2805
    %v5649 = vunpack.c.l.b16 %v2806
    %v5650 = vunpack.c.h.b16 %v2806
    %v5651 = vunpack.c.l.b16 %v2807
    %v5652 = vunpack.c.l.b16 %v2808
    %v5653 = vunpack.c.h.b16 %v2808
    %v5654 = vunpack.c.l.b16 %v2809
    %v5655 = vunpack.c.l.b16 %v2810
    %v5656 = vunpack.c.h.b16 %v2810
    %v5657 = vunpack.c.l.b16 %v2811
    %v5658 = vunpack.c.l.b16 %v2812
    %v5659 = vunpack.c.h.b16 %v2812
    %v5660 = vunpack.c.l.b16 %v2813
    %v5661 = vunpack.c.l.b16 %v2814
    %v5662 = vunpack.c.h.b16 %v2814
    %v5663 = vunpack.c.l.b16 %v2815
    %v5664 = vunpack.c.l.b16 %v2816
    %v5665 = vunpack.c.h.b16 %v2816
    %v5666 = vunpack.c.l.b16 %v2817
    %v5667 = vunpack.c.l.b16 %v2818
    %v5668 = vunpack.c.h.b16 %v2818
    %v5669 = vunpack.c.l.b16 %v2819
    %v5670 = vunpack.c.l.b16 %v2820
    %v5671 = vunpack.c.h.b16 %v2820
    %v5672 = vunpack.c.l.b16 %v2821
    %v5673 = vunpack.c.l.b16 %v2822
    %v5674 = vunpack.c.h.b16 %v2822
    %v5675 = vunpack.c.l.b16 %v2823
    %v5676 = vunpack.c.l.b16 %v2824
    %v5677 = vunpack.c.h.b16 %v2824
    %v5678 = vunpack.c.l.b16 %v2825
    %v5679 = vunpack.c.l.b16 %v2826
    %v5680 = vunpack.c.h.b16 %v2826
    %v5681 = vunpack.c.l.b16 %v2827
    %v5682 = vunpack.c.l.b16 %v2828
    %v5683 = vunpack.c.h.b16 %v2828
    %v5684 = vunpack.c.l.b16 %v2829
    %v5685 = vunpack.c.l.b16 %v2830
    %v5686 = vunpack.c.h.b16 %v2830
    %v5687 = vunpack.c.l.b16 %v2831
    %v5688 = vunpack.c.l.b16 %v2832
    %v5689 = vunpack.c.h.b16 %v2832
    %v5690 = vunpack.c.l.b16 %v2833
    %v5691 = vunpack.c.l.b16 %v2834
    %v5692 = vunpack.c.h.b16 %v2834
    %v5693 = vunpack.c.l.b16 %v2835
    %v5694 = vunpack.c.l.b16 %v2836
    %v5695 = vunpack.c.h.b16 %v2836
    %v5696 = vunpack.c.l.b16 %v2837
    %v5697 = vunpack.c.l.b16 %v2838
    %v5698 = vunpack.c.h.b16 %v2838
    %v5699 = vunpack.c.l.b16 %v2839
    %v5700 = vunpack.c.l.b16 %v2840
    %v5701 = vunpack.c.h.b16 %v2840
    %v5702 = vunpack.c.l.b16 %v2841
    %v5703 = vunpack.c.l.b16 %v2842
    %v5704 = vunpack.c.h.b16 %v2842
    %v5705 = vunpack.c.l.b16 %v2843
    %v5706 = vunpack.c.l.b16 %v2844
    %v5707 = vunpack.c.h.b16 %v2844
    %v5708 = vunpack.c.l.b16 %v2845
    %v5709 = vunpack.c.l.b16 %v2846
    %v5710 = vunpack.c.h.b16 %v2846
    %v5711 = vunpack.c.l.b16 %v2847
    %v5712 = vunpack.c.l.b16 %v2848
    %v5713 = vunpack.c.h.b16 %v2848
    %v5714 = vunpack.c.l.b16 %v2849
    %v5715 = vunpack.c.l.b16 %v2850
    %v5716 = vunpack.c.h.b16 %v2850
    %v5717 = vunpack.c.l.b16 %v2851
    %v5718 = vunpack.c.l.b16 %v2852
    %v5719 = vunpack.c.h.b16 %v2852
    %v5720 = vunpack.c.l.b16 %v2853
    %v5721 = vunpack.c.l.b16 %v2854
    %v5722 = vunpack.c.h.b16 %v2854
    %v5723 = vunpack.c.l.b16 %v2855
    %v5724 = vpack.c.b16 %v5559, %v5556
    %v5725 = vpack.c.b16 %v5560, %v5557
    %v5726 = vpack.c.b16 %v5561, %v5558
    %v5727 = vpack.c.b16 %v5565, %v5562
    %v5728 = vpack.c.b16 %v5566, %v5563
    %v5729 = vpack.c.b16 %v5567, %v5564
    %v5730 = vpack.c.b16 %v5571, %v5568
    %v5731 = vpack.c.b16 %v5572, %v5569
    %v5732 = vpack.c.b16 %v5573, %v5570
    %v5733 = vpack.c.b16 %v5577, %v5574
    %v5734 = vpack.c.b16 %v5578, %v5575
    %v5735 = vpack.c.b16 %v5579, %v5576
    %v5736 = vpack.c.b16 %v5583, %v5580
    %v5737 = vpack.c.b16 %v5584, %v5581
    %v5738 = vpack.c.b16 %v5585, %v5582
    %v5739 = vpack.c.b16 %v5589, %v5586
    %v5740 = vpack.c.b16 %v5590, %v5587
    %v5741 = vpack.c.b16 %v5591, %v5588
    %v5742 = vpack.c.b16 %v5595, %v5592
    %v5743 = vpack.c.b16 %v5596, %v5593
    %v5744 = vpack.c.b16 %v5597, %v5594
    %v5745 = vpack.c.b16 %v5601, %v5598
    %v5746 = vpack.c.b16 %v5602, %v5599
    %v5747 = vpack.c.b16 %v5603, %v5600
    %v5748 = vpack.c.b16 %v5607, %v5604
    %v5749 = vpack.c.b16 %v5608, %v5605
    %v5750 = vpack.c.b16 %v5609, %v5606
    %v5751 = vpack.c.b16 %v5613, %v5610
    %v5752 = vpack.c.b16 %v5614, %v5611
    %v5753 = vpack.c.b16 %v5615, %v5612
    %v5754 = vpack.c.b16 %v5619, %v5616
    %v5755 = vpack.c.b16 %v5620, %v5617
    %v5756 = vpack.c.b16 %v5621, %v5618
    %v5757 = vpack.c.b16 %v5625, %v5622
    %v5758 = vpack.c.b16 %v5626, %v5623
    %v5759 = vpack.c.b16 %v5627, %v5624
    %v5760 = vpack.c.b16 %v5631, %v5628
    %v5761 = vpack.c.b16 %v5632, %v5629
    %v5762 = vpack.c.b16 %v5633, %v5630
    %v5763 = vpack.c.b16 %v5637, %v5634
    %v5764 = vpack.c.b16 %v5638, %v5635
    %v5765 = vpack.c.b16 %v5639, %v5636
    %v5766 = vpack.c.b16 %v5643, %v5640
    %v5767 = vpack.c.b16 %v5644, %v5641
    %v5768 = vpack.c.b16 %v5645, %v5642
    %v5769 = vpack.c.b16 %v5649, %v5646
    %v5770 = vpack.c.b16 %v5650, %v5647
    %v5771 = vpack.c.b16 %v5651, %v5648
    %v5772 = vpack.c.b16 %v5655, %v5652
    %v5773 = vpack.c.b16 %v5656, %v5653
    %v5774 = vpack.c.b16 %v5657, %v5654
    %v5775 = vpack.c.b16 %v5661, %v5658
    %v5776 = vpack.c.b16 %v5662, %v5659
    %v5777 = vpack.c.b16 %v5663, %v5660
    %v5778 = vpack.c.b16 %v5667, %v5664
    %v5779 = vpack.c.b16 %v5668, %v5665
    %v5780 = vpack.c.b16 %v5669, %v5666
    %v5781 = vpack.c.b16 %v5673, %v5670
    %v5782 = vpack.c.b16 %v5674, %v5671
    %v5783 = vpack.c.b16 %v5675, %v5672
    %v5784 = vpack.c.b16 %v5679, %v5676
    %v5785 = vpack.c.b16 %v5680, %v5677
    %v5786 = vpack.c.b16 %v5681, %v5678
    %v5787 = vpack.c.b16 %v5685, %v5682
    %v5788 = vpack.c.b16 %v5686, %v5683
    %v5789 = vpack.c.b16 %v5687, %v5684
    %v5790 = vpack.c.b16 %v5691, %v5688
    %v5791 = vpack.c.b16 %v5692, %v5689
    %v5792 = vpack.c.b16 %v5693, %v5690
    %v5793 = vpack.c.b16 %v5697, %v5694
    %v5794 = vpack.c.b16 %v5698, %v5695
    %v5795 = vpack.c.b16 %v5699, %v5696
    %v5796 = vpack.c.b16 %v5703, %v5700
    %v5797 = vpack.c.b16 %v5704, %v5701
    %v5798 = vpack.c.b16 %v5705, %v5702
    %v5799 = vpack.c.b16 %v5709, %v5706
    %v5800 = vpack.c.b16 %v5710, %v5707
    %v5801 = vpack.c.b16 %v5711, %v5708
    %v5802 = vpack.c.b16 %v5715, %v5712
    %v5803 = vpack.c.b16 %v5716, %v5713
    %v5804 = vpack.c.b16 %v5717, %v5714
    %v5805 = vpack.c.b16 %v5721, %v5718
    %v5806 = vpack.c.b16 %v5722, %v5719
    %v5807 = vpack.c.b16 %v5723, %v5720
    %5892 = vmatprep.subr.bf16.mxu0 %v5725
    %5893 = vmatpush1.bf16.msra.mxu0 %v5724
    %5894 = vmatprep.subr.bf16.mxu0 %v5728
    %5895 = vmatpush1.bf16.msra.mxu0 %v5727
    %5896 = vmatprep.subr.bf16.mxu0 %v5731
    %5897 = vmatpush1.bf16.msra.mxu0 %v5730
    %5898 = vmatprep.subr.bf16.mxu0 %v5734
    %5899 = vmatpush1.bf16.msra.mxu0 %v5733
    %5900 = vmatprep.subr.bf16.mxu0 %v5737
    %5901 = vmatpush1.bf16.msra.mxu0 %v5736
    %5902 = vmatprep.subr.bf16.mxu0 %v5740
    %5903 = vmatpush1.bf16.msra.mxu0 %v5739
    %5904 = vmatprep.subr.bf16.mxu0 %v5743
    %5905 = vmatpush1.bf16.msra.mxu0 %v5742
    %5906 = vmatprep.subr.bf16.mxu0 %v5746
    %5907 = vmatpush1.bf16.msra.mxu0 %v5745
    %5908 = vmatprep.subr.bf16.mxu0 %v5749
    %5909 = vmatpush1.bf16.msra.mxu0 %v5748
    %5910 = vmatprep.subr.bf16.mxu0 %v5752
    %5911 = vmatpush1.bf16.msra.mxu0 %v5751
    %5912 = vmatprep.subr.bf16.mxu0 %v5755
    %5913 = vmatpush1.bf16.msra.mxu0 %v5754
    %5914 = vmatprep.subr.bf16.mxu0 %v5758
    %5915 = vmatpush1.bf16.msra.mxu0 %v5757
    %5916 = vmatprep.subr.bf16.mxu0 %v5761
    %5917 = vmatpush1.bf16.msra.mxu0 %v5760
    %5918 = vmatprep.subr.bf16.mxu0 %v5764
    %5919 = vmatpush1.bf16.msra.mxu0 %v5763
    %5920 = vmatprep.subr.bf16.mxu0 %v5767
    %5921 = vmatpush1.bf16.msra.mxu0 %v5766
    %5922 = vmatprep.subr.bf16.mxu0 %v5770
    %5923 = vmatpush1.bf16.msra.mxu0 %v5769
    %5924 = vmatprep.mubr.bf16.mxu0 %v4020
    %5925 = vmatmul.mubr.bf16.gmra.mrb[0].mxu0 %v4019
    %v5926 = vpop.f32.mrb[0].mxu0
    %v5927 = vadd.f32 %v5332, %v5926
    %v5928 = vpop.f32.mrb[0].mxu0
    %v5929 = vadd.f32 %v5334, %v5928
    %v5930 = vpop.f32.mrb[0].mxu0
    %v5931 = vadd.f32 %v5336, %v5930
    %v5932 = vpop.f32.mrb[0].mxu0
    %v5933 = vadd.f32 %v5338, %v5932
    %5934 = vmatprep.mubr.bf16.mxu0 %v4024
    %5935 = vmatmul.mubr.bf16.gmra.mrb[0].mxu0 %v4023
    %v5936 = vpop.f32.mrb[0].mxu0
    %v5937 = vadd.f32 %v5342, %v5936
    %v5938 = vpop.f32.mrb[0].mxu0
    %v5939 = vadd.f32 %v5344, %v5938
    %v5940 = vpop.f32.mrb[0].mxu0
    %v5941 = vpop.f32.mrb[0].mxu0
    %5942 = vdwg.mxu0
    %5943 = vmatprep.subr.bf16.mxu0 %v5773
    %5944 = vmatpush1.bf16.msra.mxu0 %v5772
    %5945 = vmatprep.subr.bf16.mxu0 %v5776
    %5946 = vmatpush1.bf16.msra.mxu0 %v5775
    %5947 = vmatprep.subr.bf16.mxu0 %v5779
    %5948 = vmatpush1.bf16.msra.mxu0 %v5778
    %5949 = vmatprep.subr.bf16.mxu0 %v5782
    %5950 = vmatpush1.bf16.msra.mxu0 %v5781
    %5951 = vmatprep.subr.bf16.mxu0 %v5785
    %5952 = vmatpush1.bf16.msra.mxu0 %v5784
    %5953 = vmatprep.subr.bf16.mxu0 %v5788
    %5954 = vmatpush1.bf16.msra.mxu0 %v5787
    %5955 = vmatprep.subr.bf16.mxu0 %v5791
    %5956 = vmatpush1.bf16.msra.mxu0 %v5790
    %5957 = vmatprep.subr.bf16.mxu0 %v5794
    %5958 = vmatpush1.bf16.msra.mxu0 %v5793
    %5959 = vmatprep.subr.bf16.mxu0 %v5797
    %5960 = vmatpush1.bf16.msra.mxu0 %v5796
    %5961 = vmatprep.subr.bf16.mxu0 %v5800
    %5962 = vmatpush1.bf16.msra.mxu0 %v5799
    %5963 = vmatprep.subr.bf16.mxu0 %v5803
    %5964 = vmatpush1.bf16.msra.mxu0 %v5802
    %5965 = vmatprep.subr.bf16.mxu0 %v5806
    %5966 = vmatpush1.bf16.msra.mxu0 %v5805
    %5967 = vmatprep.subr.bf16.mxu0 0
    %5968 = vmatpush1.bf16.msra.mxu0 0
    %5969 = vmatprep.subr.bf16.mxu0 0
    %5970 = vmatpush1.bf16.msra.mxu0 0
    %5971 = vmatprep.subr.bf16.mxu0 0
    %5972 = vmatpush1.bf16.msra.mxu0 0
    %5973 = vmatprep.subr.bf16.mxu0 0
    %5974 = vmatpush1.bf16.msra.mxu0 0
    %5975 = vmatprep.mubr.bf16.mxu0 %v4482
    %5976 = vmatmul.mubr.bf16.gmra.mrb[0].mxu0 %v4021
    %v5977 = vpop.f32.mrb[0].mxu0
    %v5978 = vadd.f32 %v5927, %v5977
    %v5979 = vpop.f32.mrb[0].mxu0
    %v5980 = vadd.f32 %v5929, %v5979
    %v5981 = vpop.f32.mrb[0].mxu0
    %v5982 = vadd.f32 %v5931, %v5981
    %v5983 = vpop.f32.mrb[0].mxu0
    %v5984 = vadd.f32 %v5933, %v5983
    %5985 = vmatprep.mubr.bf16.mxu0 %v4485
    %5986 = vmatmul.mubr.bf16.gmra.mrb[0].mxu0 %v4025
    %v5987 = vpop.f32.mrb[0].mxu0
    %v5988 = vadd.f32 %v5937, %v5987
    %v5989 = vpop.f32.mrb[0].mxu0
    %v5990 = vadd.f32 %v5939, %v5989
    %v5991 = vpop.f32.mrb[0].mxu0
    %v5992 = vpop.f32.mrb[0].mxu0
    %5993 = vdwg.mxu0
    %5994 = vmatprep.subr.bf16.mxu0 0
    %5995 = vmatpush1.bf16.msra.mxu0 %v5726
    %5996 = vmatprep.subr.bf16.mxu0 0
    %5997 = vmatpush1.bf16.msra.mxu0 %v5729
    %5998 = vmatprep.subr.bf16.mxu0 0
    %5999 = vmatpush1.bf16.msra.mxu0 %v5732
    %6000 = vmatprep.subr.bf16.mxu0 0
    %6001 = vmatpush1.bf16.msra.mxu0 %v5735
    %6002 = vmatprep.subr.bf16.mxu0 0
    %6003 = vmatpush1.bf16.msra.mxu0 %v5738
    %6004 = vmatprep.subr.bf16.mxu0 0
    %6005 = vmatpush1.bf16.msra.mxu0 %v5741
    %6006 = vmatprep.subr.bf16.mxu0 0
    %6007 = vmatpush1.bf16.msra.mxu0 %v5744
    %6008 = vmatprep.subr.bf16.mxu0 0
    %6009 = vmatpush1.bf16.msra.mxu0 %v5747
    %6010 = vmatprep.subr.bf16.mxu0 0
    %6011 = vmatpush1.bf16.msra.mxu0 %v5750
    %6012 = vmatprep.subr.bf16.mxu0 0
    %6013 = vmatpush1.bf16.msra.mxu0 %v5753
    %6014 = vmatprep.subr.bf16.mxu0 0
    %6015 = vmatpush1.bf16.msra.mxu0 %v5756
    %6016 = vmatprep.subr.bf16.mxu0 0
    %6017 = vmatpush1.bf16.msra.mxu0 %v5759
    %6018 = vmatprep.subr.bf16.mxu0 0
    %6019 = vmatpush1.bf16.msra.mxu0 %v5762
    %6020 = vmatprep.subr.bf16.mxu0 0
    %6021 = vmatpush1.bf16.msra.mxu0 %v5765
    %6022 = vmatprep.subr.bf16.mxu0 0
    %6023 = vmatpush1.bf16.msra.mxu0 %v5768
    %6024 = vmatprep.subr.bf16.mxu0 0
    %6025 = vmatpush1.bf16.msra.mxu0 %v5771
    %6026 = vmatprep.mubr.bf16.mxu0 %v4020
    %6027 = vmatmul.mubr.bf16.gmra.mrb[0].mxu0 %v4019
    %v6028 = vpop.f32.mrb[0].mxu0
    %v6029 = vadd.f32 %v5431, %v6028
    %v6030 = vpop.f32.mrb[0].mxu0
    %v6031 = vpop.f32.mrb[0].mxu0
    %v6032 = vadd.f32 %v5434, %v6031
    %v6033 = vpop.f32.mrb[0].mxu0
    %6034 = vmatprep.mubr.bf16.mxu0 %v4024
    %6035 = vmatmul.mubr.bf16.gmra.mrb[0].mxu0 %v4023
    %v6036 = vpop.f32.mrb[0].mxu0
    %v6037 = vadd.f32 %v5439, %v6036
    %v6038 = vpop.f32.mrb[0].mxu0
    %v6039 = vpop.f32.mrb[0].mxu0
    %v6040 = vpop.f32.mrb[0].mxu0
    %6041 = vdwg.mxu0
    %6042 = vmatprep.subr.bf16.mxu0 0
    %6043 = vmatpush1.bf16.msra.mxu0 %v5774
    %6044 = vmatprep.subr.bf16.mxu0 0
    %6045 = vmatpush1.bf16.msra.mxu0 %v5777
    %6046 = vmatprep.subr.bf16.mxu0 0
    %6047 = vmatpush1.bf16.msra.mxu0 %v5780
    %6048 = vmatprep.subr.bf16.mxu0 0
    %6049 = vmatpush1.bf16.msra.mxu0 %v5783
    %6050 = vmatprep.subr.bf16.mxu0 0
    %6051 = vmatpush1.bf16.msra.mxu0 %v5786
    %6052 = vmatprep.subr.bf16.mxu0 0
    %6053 = vmatpush1.bf16.msra.mxu0 %v5789
    %6054 = vmatprep.subr.bf16.mxu0 0
    %6055 = vmatpush1.bf16.msra.mxu0 %v5792
    %6056 = vmatprep.subr.bf16.mxu0 0
    %6057 = vmatpush1.bf16.msra.mxu0 %v5795
    %6058 = vmatprep.subr.bf16.mxu0 0
    %6059 = vmatpush1.bf16.msra.mxu0 %v5798
    %6060 = vmatprep.subr.bf16.mxu0 0
    %6061 = vmatpush1.bf16.msra.mxu0 %v5801
    %6062 = vmatprep.subr.bf16.mxu0 0
    %6063 = vmatpush1.bf16.msra.mxu0 %v5804
    %6064 = vmatprep.subr.bf16.mxu0 0
    %6065 = vmatpush1.bf16.msra.mxu0 %v5807
    %6066 = vmatprep.subr.bf16.mxu0 0
    %6067 = vmatpush1.bf16.msra.mxu0 0
    %6068 = vmatprep.subr.bf16.mxu0 0
    %6069 = vmatpush1.bf16.msra.mxu0 0
    %6070 = vmatprep.subr.bf16.mxu0 0
    %6071 = vmatpush1.bf16.msra.mxu0 0
    %6072 = vmatprep.subr.bf16.mxu0 0
    %6073 = vmatpush1.bf16.msra.mxu0 0
    %6074 = vmatprep.mubr.bf16.mxu0 %v4482
    %6075 = vmatmul.mubr.bf16.gmra.mrb[0].mxu0 %v4021
    %v6076 = vpop.f32.mrb[0].mxu0
    %v6077 = vadd.f32 %v6029, %v6076
    %v6078 = vpop.f32.mrb[0].mxu0
    %v6079 = vpop.f32.mrb[0].mxu0
    %v6080 = vadd.f32 %v6032, %v6079
    %v6081 = vpop.f32.mrb[0].mxu0
    %6082 = vmatprep.mubr.bf16.mxu0 %v4485
    %6083 = vmatmul.mubr.bf16.gmra.mrb[0].mxu0 %v4025
    %v6084 = vpop.f32.mrb[0].mxu0
    %v6085 = vadd.f32 %v6037, %v6084
    %v6086 = vpop.f32.mrb[0].mxu0
    %v6087 = vpop.f32.mrb[0].mxu0
    %v6088 = vpop.f32.mrb[0].mxu0
    %6089 = vdwg.mxu0
    %s6090 = scalar_lea.vmem [#allocation10], 1344
    %v6091 = vld [vmem:[%s6090] sm:$0xff]
    %v6092 = vld [vmem:[%s6090 + $0x8] sm:$0xf]
    %v6093 = vld [vmem:[%s6090 + $0xc] sm:$0xff]
    %v6094 = vld [vmem:[%s6090 + $0x14] sm:$0xf]
    %v6095 = vld [vmem:[%s6090 + $0x18] sm:$0xff]
    %v6096 = vld [vmem:[%s6090 + $0x20] sm:$0xf]
    %v6097 = vld [vmem:[%s6090 + $0x24] sm:$0xff]
    %v6098 = vld [vmem:[%s6090 + $0x2c] sm:$0xf]
    %v6099 = vld [vmem:[%s6090 + $0x30] sm:$0xff]
    %v6100 = vld [vmem:[%s6090 + $0x38] sm:$0xf]
    %v6101 = vld [vmem:[%s6090 + $0x3c] sm:$0xff]
    %v6102 = vld [vmem:[%s6090 + $0x44] sm:$0xf]
    %v6103 = vld [vmem:[%s6090 + $0x48] sm:$0xff]
    %v6104 = vld [vmem:[%s6090 + $0x50] sm:$0xf]
    %v6105 = vld [vmem:[%s6090 + $0x54] sm:$0xff]
    %v6106 = vld [vmem:[%s6090 + $0x5c] sm:$0xf]
    %v6107 = vld [vmem:[%s6090 + $0x60] sm:$0xff]
    %v6108 = vld [vmem:[%s6090 + $0x68] sm:$0xf]
    %v6109 = vld [vmem:[%s6090 + $0x6c] sm:$0xff]
    %v6110 = vld [vmem:[%s6090 + $0x74] sm:$0xf]
    %v6111 = vld [vmem:[%s6090 + $0x78] sm:$0xff]
    %v6112 = vld [vmem:[%s6090 + $0x80] sm:$0xf]
    %v6113 = vld [vmem:[%s6090 + $0x84] sm:$0xff]
    %v6114 = vld [vmem:[%s6090 + $0x8c] sm:$0xf]
    %v6115 = vld [vmem:[%s6090 + $0x90] sm:$0xff]
    %v6116 = vld [vmem:[%s6090 + $0x98] sm:$0xf]
    %v6117 = vld [vmem:[%s6090 + $0x9c] sm:$0xff]
    %v6118 = vld [vmem:[%s6090 + $0xa4] sm:$0xf]
    %v6119 = vld [vmem:[%s6090 + $0xa8] sm:$0xff]
    %v6120 = vld [vmem:[%s6090 + $0xb0] sm:$0xf]
    %v6121 = vld [vmem:[%s6090 + $0xb4] sm:$0xff]
    %v6122 = vld [vmem:[%s6090 + $0xbc] sm:$0xf]
    %v6123 = vld [vmem:[%s6090 + $0xc0] sm:$0xff]
    %v6124 = vld [vmem:[%s6090 + $0xc8] sm:$0xf]
    %v6125 = vld [vmem:[%s6090 + $0xcc] sm:$0xff]
    %v6126 = vld [vmem:[%s6090 + $0xd4] sm:$0xf]
    %v6127 = vld [vmem:[%s6090 + $0xd8] sm:$0xff]
    %v6128 = vld [vmem:[%s6090 + $0xe0] sm:$0xf]
    %v6129 = vld [vmem:[%s6090 + $0xe4] sm:$0xff]
    %v6130 = vld [vmem:[%s6090 + $0xec] sm:$0xf]
    %v6131 = vld [vmem:[%s6090 + $0xf0] sm:$0xff]
    %v6132 = vld [vmem:[%s6090 + $0xf8] sm:$0xf]
    %v6133 = vld [vmem:[%s6090 + $0xfc] sm:$0xff]
    %v6134 = vld [vmem:[%s6090 + $0x104] sm:$0xf]
    %v6135 = vld [vmem:[%s6090 + $0x108] sm:$0xff]
    %v6136 = vld [vmem:[%s6090 + $0x110] sm:$0xf]
    %v6137 = vld [vmem:[%s6090 + $0x114] sm:$0xff]
    %v6138 = vld [vmem:[%s6090 + $0x11c] sm:$0xf]
    %v6139 = vld [vmem:[%s6090 + $0x120] sm:$0xff]
    %v6140 = vld [vmem:[%s6090 + $0x128] sm:$0xf]
    %v6141 = vld [vmem:[%s6090 + $0x12c] sm:$0xff]
    %v6142 = vld [vmem:[%s6090 + $0x134] sm:$0xf]
    %v6143 = vld [vmem:[%s6090 + $0x138] sm:$0xff]
    %v6144 = vld [vmem:[%s6090 + $0x140] sm:$0xf]
    %v6145 = vld [vmem:[%s6090 + $0x144] sm:$0xff]
    %v6146 = vld [vmem:[%s6090 + $0x14c] sm:$0xf]
    %v6147 = vld [vmem:[%s6090 + $0x150] sm:$0xff]
    %v6148 = vld [vmem:[%s6090 + $0x158] sm:$0xf]
    %v6149 = vld [vmem:[%s6090 + $0x15c] sm:$0xff]
    %v6150 = vld [vmem:[%s6090 + $0x164] sm:$0xf]
    %v6151 = vld [vmem:[%s6090 + $0x168] sm:$0xff]
    %v6152 = vld [vmem:[%s6090 + $0x170] sm:$0xf]
    %v6153 = vld [vmem:[%s6090 + $0x174] sm:$0xff]
    %v6154 = vld [vmem:[%s6090 + $0x17c] sm:$0xf]
    %v6155 = vld [vmem:[%s6090 + $0x180] sm:$0xff]
    %v6156 = vld [vmem:[%s6090 + $0x188] sm:$0xf]
    %v6157 = vld [vmem:[%s6090 + $0x18c] sm:$0xff]
    %v6158 = vld [vmem:[%s6090 + $0x194] sm:$0xf]
    %v6159 = vld [vmem:[%s6090 + $0x198] sm:$0xff]
    %v6160 = vld [vmem:[%s6090 + $0x1a0] sm:$0xf]
    %v6161 = vld [vmem:[%s6090 + $0x1a4] sm:$0xff]
    %v6162 = vld [vmem:[%s6090 + $0x1ac] sm:$0xf]
    %v6163 = vld [vmem:[%s6090 + $0x1b0] sm:$0xff]
    %v6164 = vld [vmem:[%s6090 + $0x1b8] sm:$0xf]
    %v6165 = vld [vmem:[%s6090 + $0x1bc] sm:$0xff]
    %v6166 = vld [vmem:[%s6090 + $0x1c4] sm:$0xf]
    %v6167 = vld [vmem:[%s6090 + $0x1c8] sm:$0xff]
    %v6168 = vld [vmem:[%s6090 + $0x1d0] sm:$0xf]
    %v6169 = vld [vmem:[%s6090 + $0x1d4] sm:$0xff]
    %v6170 = vld [vmem:[%s6090 + $0x1dc] sm:$0xf]
    %v6171 = vld [vmem:[%s6090 + $0x1e0] sm:$0xff]
    %v6172 = vld [vmem:[%s6090 + $0x1e8] sm:$0xf]
    %v6173 = vld [vmem:[%s6090 + $0x1ec] sm:$0xff]
    %v6174 = vld [vmem:[%s6090 + $0x1f4] sm:$0xf]
    %v6175 = vld [vmem:[%s6090 + $0x1f8] sm:$0xff]
    %v6176 = vld [vmem:[%s6090 + $0x200] sm:$0xf]
    %v6177 = vld [vmem:[%s6090 + $0x204] sm:$0xff]
    %v6178 = vld [vmem:[%s6090 + $0x20c] sm:$0xf]
    %v6179 = vld [vmem:[%s6090 + $0x210] sm:$0xff]
    %v6180 = vld [vmem:[%s6090 + $0x218] sm:$0xf]
    %v6181 = vld [vmem:[%s6090 + $0x21c] sm:$0xff]
    %v6182 = vld [vmem:[%s6090 + $0x224] sm:$0xf]
    %v6183 = vld [vmem:[%s6090 + $0x228] sm:$0xff]
    %v6184 = vld [vmem:[%s6090 + $0x230] sm:$0xf]
    %v6185 = vld [vmem:[%s6090 + $0x234] sm:$0xff]
    %v6186 = vld [vmem:[%s6090 + $0x23c] sm:$0xf]
    %v6187 = vld [vmem:[%s6090 + $0x240] sm:$0xff]
    %v6188 = vld [vmem:[%s6090 + $0x248] sm:$0xf]
    %v6189 = vld [vmem:[%s6090 + $0x24c] sm:$0xff]
    %v6190 = vld [vmem:[%s6090 + $0x254] sm:$0xf]
    %v6191 = vld [vmem:[%s6090 + $0x258] sm:$0xff]
    %v6192 = vld [vmem:[%s6090 + $0x260] sm:$0xf]
    %v6193 = vld [vmem:[%s6090 + $0x264] sm:$0xff]
    %v6194 = vld [vmem:[%s6090 + $0x26c] sm:$0xf]
    %v6195 = vld [vmem:[%s6090 + $0x270] sm:$0xff]
    %v6196 = vld [vmem:[%s6090 + $0x278] sm:$0xf]
    %v6197 = vld [vmem:[%s6090 + $0x27c] sm:$0xff]
    %v6198 = vld [vmem:[%s6090 + $0x284] sm:$0xf]
    %v6199 = vld [vmem:[%s6090 + $0x288] sm:$0xff]
    %v6200 = vld [vmem:[%s6090 + $0x290] sm:$0xf]
    %v6201 = vld [vmem:[%s6090 + $0x294] sm:$0xff]
    %v6202 = vld [vmem:[%s6090 + $0x29c] sm:$0xf]
    %v6211 = vunpack.c.l.b16 %v2572
    %v6212 = vunpack.c.l.b16 %v2573
    %v6213 = vunpack.c.l.b16 %v2574
    %v6214 = vunpack.c.l.b16 %v2575
    %v6215 = vunpack.c.l.b16 %v2628
    %v6216 = vunpack.c.l.b16 %v2629
    %v6217 = vunpack.c.l.b16 %v2630
    %v6218 = vunpack.c.l.b16 %v2631
    %v6219 = vsel %vm3161, %v3073, %v3069
    %v6220 = vsel %vm3163, %v3077, %v6219
    %v6221 = vsel %vm3165, %v3081, %v6220
    %v6222 = vsel %vm3167, %v3085, %v6221
    %v6223 = vsel %vm3169, %v3089, %v6222
    %v6224 = vsel %vm3171, %v3093, %v6223
    %v6225 = vsel %vm3173, %v3097, %v6224
    %v6226 = vsel %vm3161, %v3074, %v3070
    %v6227 = vsel %vm3163, %v3078, %v6226
    %v6228 = vsel %vm3165, %v3082, %v6227
    %v6229 = vsel %vm3167, %v3086, %v6228
    %v6230 = vsel %vm3169, %v3090, %v6229
    %v6231 = vsel %vm3171, %v3094, %v6230
    %v6232 = vsel %vm3173, %v3098, %v6231
    %v6233 = vsel %vm3161, %v3075, %v3071
    %v6234 = vsel %vm3163, %v3079, %v6233
    %v6235 = vsel %vm3165, %v3083, %v6234
    %v6236 = vsel %vm3167, %v3087, %v6235
    %v6237 = vsel %vm3169, %v3091, %v6236
    %v6238 = vsel %vm3171, %v3095, %v6237
    %v6239 = vsel %vm3173, %v3099, %v6238
    %v6240 = vsel %vm3161, %v3076, %v3072
    %v6241 = vsel %vm3163, %v3080, %v6240
    %v6242 = vsel %vm3165, %v3084, %v6241
    %v6243 = vsel %vm3167, %v3088, %v6242
    %v6244 = vsel %vm3169, %v3092, %v6243
    %v6245 = vsel %vm3171, %v3096, %v6244
    %v6246 = vsel %vm3173, %v3100, %v6245
    %v6247 = vsel %vm3161, %v3105, %v3101
    %v6248 = vsel %vm3163, %v3109, %v6247
    %v6249 = vsel %vm3165, %v6211, %v6248
    %v6250 = vsel %vm3167, %v3117, %v6249
    %v6251 = vsel %vm3169, %v3121, %v6250
    %v6252 = vsel %vm3171, %v3125, %v6251
    %v6253 = vsel %vm3173, %v3129, %v6252
    %v6254 = vsel %vm3161, %v3106, %v3102
    %v6255 = vsel %vm3163, %v3110, %v6254
    %v6256 = vsel %vm3165, %v6212, %v6255
    %v6257 = vsel %vm3167, %v3118, %v6256
    %v6258 = vsel %vm3169, %v3122, %v6257
    %v6259 = vsel %vm3171, %v3126, %v6258
    %v6260 = vsel %vm3173, %v3130, %v6259
    %v6261 = vsel %vm3161, %v3107, %v3103
    %v6262 = vsel %vm3163, %v3111, %v6261
    %v6263 = vsel %vm3165, %v6213, %v6262
    %v6264 = vsel %vm3167, %v3119, %v6263
    %v6265 = vsel %vm3169, %v3123, %v6264
    %v6266 = vsel %vm3171, %v3127, %v6265
    %v6267 = vsel %vm3173, %v3131, %v6266
    %v6268 = vsel %vm3161, %v3108, %v3104
    %v6269 = vsel %vm3163, %v3112, %v6268
    %v6270 = vsel %vm3165, %v6214, %v6269
    %v6271 = vsel %vm3167, %v3120, %v6270
    %v6272 = vsel %vm3169, %v3124, %v6271
    %v6273 = vsel %vm3171, %v3128, %v6272
    %v6274 = vsel %vm3173, %v3132, %v6273
    %v6275 = vsel %vm3161, %v3137, %v3133
    %v6276 = vsel %vm3163, %v3141, %v6275
    %v6277 = vsel %vm3165, %v3145, %v6276
    %v6278 = vsel %vm3167, %v3149, %v6277
    %v6279 = vsel %vm3169, %v3153, %v6278
    %v6280 = vsel %vm3171, %v3157, %v6279
    %v6281 = vsel %vm3173, %v6215, %v6280
    %v6282 = vsel %vm3161, %v3138, %v3134
    %v6283 = vsel %vm3163, %v3142, %v6282
    %v6284 = vsel %vm3165, %v3146, %v6283
    %v6285 = vsel %vm3167, %v3150, %v6284
    %v6286 = vsel %vm3169, %v3154, %v6285
    %v6287 = vsel %vm3171, %v3158, %v6286
    %v6288 = vsel %vm3173, %v6216, %v6287
    %v6289 = vsel %vm3161, %v3139, %v3135
    %v6290 = vsel %vm3163, %v3143, %v6289
    %v6291 = vsel %vm3165, %v3147, %v6290
    %v6292 = vsel %vm3167, %v3151, %v6291
    %v6293 = vsel %vm3169, %v3155, %v6292
    %v6294 = vsel %vm3171, %v3159, %v6293
    %v6295 = vsel %vm3173, %v6217, %v6294
    %v6296 = vsel %vm3161, %v3140, %v3136
    %v6297 = vsel %vm3163, %v3144, %v6296
    %v6298 = vsel %vm3165, %v3148, %v6297
    %v6299 = vsel %vm3167, %v3152, %v6298
    %v6300 = vsel %vm3169, %v3156, %v6299
    %v6301 = vsel %vm3171, %v3160, %v6300
    %v6302 = vsel %vm3173, %v6218, %v6301
    %v6303 = vpack.c.b16 %v6253, %v6225
    %v6304 = vpack.c.b16 %v6260, %v6232
    %v6305 = vpack.c.b16 %v6267, %v6239
    %v6306 = vpack.c.b16 %v6274, %v6246
    %v6307 = vpack.c.b16 %v6281, %v6281
    %v6308 = vpack.c.b16 %v6288, %v6288
    %v6309 = vpack.c.b16 %v6295, %v6295
    %v6310 = vpack.c.b16 %v6302, %v6302
    %v6429 = vunpack.c.l.b16 %v6091
    %v6430 = vunpack.c.h.b16 %v6091
    %v6431 = vunpack.c.l.b16 %v6092
    %v6432 = vunpack.c.l.b16 %v6093
    %v6433 = vunpack.c.h.b16 %v6093
    %v6434 = vunpack.c.l.b16 %v6094
    %v6435 = vunpack.c.l.b16 %v6095
    %v6436 = vunpack.c.h.b16 %v6095
    %v6437 = vunpack.c.l.b16 %v6096
    %v6438 = vunpack.c.l.b16 %v6097
    %v6439 = vunpack.c.h.b16 %v6097
    %v6440 = vunpack.c.l.b16 %v6098
    %v6441 = vunpack.c.l.b16 %v6099
    %v6442 = vunpack.c.h.b16 %v6099
    %v6443 = vunpack.c.l.b16 %v6100
    %v6444 = vunpack.c.l.b16 %v6101
    %v6445 = vunpack.c.h.b16 %v6101
    %v6446 = vunpack.c.l.b16 %v6102
    %v6447 = vunpack.c.l.b16 %v6103
    %v6448 = vunpack.c.h.b16 %v6103
    %v6449 = vunpack.c.l.b16 %v6104
    %v6450 = vunpack.c.l.b16 %v6105
    %v6451 = vunpack.c.h.b16 %v6105
    %v6452 = vunpack.c.l.b16 %v6106
    %v6453 = vunpack.c.l.b16 %v6107
    %v6454 = vunpack.c.h.b16 %v6107
    %v6455 = vunpack.c.l.b16 %v6108
    %v6456 = vunpack.c.l.b16 %v6109
    %v6457 = vunpack.c.h.b16 %v6109
    %v6458 = vunpack.c.l.b16 %v6110
    %v6459 = vunpack.c.l.b16 %v6111
    %v6460 = vunpack.c.h.b16 %v6111
    %v6461 = vunpack.c.l.b16 %v6112
    %v6462 = vunpack.c.l.b16 %v6113
    %v6463 = vunpack.c.h.b16 %v6113
    %v6464 = vunpack.c.l.b16 %v6114
    %v6465 = vunpack.c.l.b16 %v6115
    %v6466 = vunpack.c.h.b16 %v6115
    %v6467 = vunpack.c.l.b16 %v6116
    %v6468 = vunpack.c.l.b16 %v6117
    %v6469 = vunpack.c.h.b16 %v6117
    %v6470 = vunpack.c.l.b16 %v6118
    %v6471 = vunpack.c.l.b16 %v6119
    %v6472 = vunpack.c.h.b16 %v6119
    %v6473 = vunpack.c.l.b16 %v6120
    %v6474 = vunpack.c.l.b16 %v6121
    %v6475 = vunpack.c.h.b16 %v6121
    %v6476 = vunpack.c.l.b16 %v6122
    %v6477 = vunpack.c.l.b16 %v6123
    %v6478 = vunpack.c.h.b16 %v6123
    %v6479 = vunpack.c.l.b16 %v6124
    %v6480 = vunpack.c.l.b16 %v6125
    %v6481 = vunpack.c.h.b16 %v6125
    %v6482 = vunpack.c.l.b16 %v6126
    %v6483 = vunpack.c.l.b16 %v6127
    %v6484 = vunpack.c.h.b16 %v6127
    %v6485 = vunpack.c.l.b16 %v6128
    %v6486 = vunpack.c.l.b16 %v6129
    %v6487 = vunpack.c.h.b16 %v6129
    %v6488 = vunpack.c.l.b16 %v6130
    %v6489 = vunpack.c.l.b16 %v6131
    %v6490 = vunpack.c.h.b16 %v6131
    %v6491 = vunpack.c.l.b16 %v6132
    %v6492 = vunpack.c.l.b16 %v6133
    %v6493 = vunpack.c.h.b16 %v6133
    %v6494 = vunpack.c.l.b16 %v6134
    %v6495 = vunpack.c.l.b16 %v6135
    %v6496 = vunpack.c.h.b16 %v6135
    %v6497 = vunpack.c.l.b16 %v6136
    %v6498 = vunpack.c.l.b16 %v6137
    %v6499 = vunpack.c.h.b16 %v6137
    %v6500 = vunpack.c.l.b16 %v6138
    %v6501 = vunpack.c.l.b16 %v6139
    %v6502 = vunpack.c.h.b16 %v6139
    %v6503 = vunpack.c.l.b16 %v6140
    %v6504 = vunpack.c.l.b16 %v6141
    %v6505 = vunpack.c.h.b16 %v6141
    %v6506 = vunpack.c.l.b16 %v6142
    %v6507 = vunpack.c.l.b16 %v6143
    %v6508 = vunpack.c.h.b16 %v6143
    %v6509 = vunpack.c.l.b16 %v6144
    %v6510 = vunpack.c.l.b16 %v6145
    %v6511 = vunpack.c.h.b16 %v6145
    %v6512 = vunpack.c.l.b16 %v6146
    %v6513 = vunpack.c.l.b16 %v6147
    %v6514 = vunpack.c.h.b16 %v6147
    %v6515 = vunpack.c.l.b16 %v6148
    %v6516 = vunpack.c.l.b16 %v6149
    %v6517 = vunpack.c.h.b16 %v6149
    %v6518 = vunpack.c.l.b16 %v6150
    %v6519 = vunpack.c.l.b16 %v6151
    %v6520 = vunpack.c.h.b16 %v6151
    %v6521 = vunpack.c.l.b16 %v6152
    %v6522 = vunpack.c.l.b16 %v6153
    %v6523 = vunpack.c.h.b16 %v6153
    %v6524 = vunpack.c.l.b16 %v6154
    %v6525 = vunpack.c.l.b16 %v6155
    %v6526 = vunpack.c.h.b16 %v6155
    %v6527 = vunpack.c.l.b16 %v6156
    %v6528 = vunpack.c.l.b16 %v6157
    %v6529 = vunpack.c.h.b16 %v6157
    %v6530 = vunpack.c.l.b16 %v6158
    %v6531 = vunpack.c.l.b16 %v6159
    %v6532 = vunpack.c.h.b16 %v6159
    %v6533 = vunpack.c.l.b16 %v6160
    %v6534 = vunpack.c.l.b16 %v6161
    %v6535 = vunpack.c.h.b16 %v6161
    %v6536 = vunpack.c.l.b16 %v6162
    %v6537 = vunpack.c.l.b16 %v6163
    %v6538 = vunpack.c.h.b16 %v6163
    %v6539 = vunpack.c.l.b16 %v6164
    %v6540 = vunpack.c.l.b16 %v6165
    %v6541 = vunpack.c.h.b16 %v6165
    %v6542 = vunpack.c.l.b16 %v6166
    %v6543 = vunpack.c.l.b16 %v6167
    %v6544 = vunpack.c.h.b16 %v6167
    %v6545 = vunpack.c.l.b16 %v6168
    %v6546 = vunpack.c.l.b16 %v6169
    %v6547 = vunpack.c.h.b16 %v6169
    %v6548 = vunpack.c.l.b16 %v6170
    %v6549 = vunpack.c.l.b16 %v6171
    %v6550 = vunpack.c.h.b16 %v6171
    %v6551 = vunpack.c.l.b16 %v6172
    %v6552 = vunpack.c.l.b16 %v6173
    %v6553 = vunpack.c.h.b16 %v6173
    %v6554 = vunpack.c.l.b16 %v6174
    %v6555 = vunpack.c.l.b16 %v6175
    %v6556 = vunpack.c.h.b16 %v6175
    %v6557 = vunpack.c.l.b16 %v6176
    %v6558 = vunpack.c.l.b16 %v6177
    %v6559 = vunpack.c.h.b16 %v6177
    %v6560 = vunpack.c.l.b16 %v6178
    %v6561 = vunpack.c.l.b16 %v6179
    %v6562 = vunpack.c.h.b16 %v6179
    %v6563 = vunpack.c.l.b16 %v6180
    %v6564 = vunpack.c.l.b16 %v6181
    %v6565 = vunpack.c.h.b16 %v6181
    %v6566 = vunpack.c.l.b16 %v6182
    %v6567 = vunpack.c.l.b16 %v6183
    %v6568 = vunpack.c.h.b16 %v6183
    %v6569 = vunpack.c.l.b16 %v6184
    %v6570 = vunpack.c.l.b16 %v6185
    %v6571 = vunpack.c.h.b16 %v6185
    %v6572 = vunpack.c.l.b16 %v6186
    %v6573 = vunpack.c.l.b16 %v6187
    %v6574 = vunpack.c.h.b16 %v6187
    %v6575 = vunpack.c.l.b16 %v6188
    %v6576 = vunpack.c.l.b16 %v6189
    %v6577 = vunpack.c.h.b16 %v6189
    %v6578 = vunpack.c.l.b16 %v6190
    %v6579 = vunpack.c.l.b16 %v6191
    %v6580 = vunpack.c.h.b16 %v6191
    %v6581 = vunpack.c.l.b16 %v6192
    %v6582 = vunpack.c.l.b16 %v6193
    %v6583 = vunpack.c.h.b16 %v6193
    %v6584 = vunpack.c.l.b16 %v6194
    %v6585 = vunpack.c.l.b16 %v6195
    %v6586 = vunpack.c.h.b16 %v6195
    %v6587 = vunpack.c.l.b16 %v6196
    %v6588 = vunpack.c.l.b16 %v6197
    %v6589 = vunpack.c.h.b16 %v6197
    %v6590 = vunpack.c.l.b16 %v6198
    %v6591 = vunpack.c.l.b16 %v6199
    %v6592 = vunpack.c.h.b16 %v6199
    %v6593 = vunpack.c.l.b16 %v6200
    %v6594 = vunpack.c.l.b16 %v6201
    %v6595 = vunpack.c.h.b16 %v6201
    %v6596 = vunpack.c.l.b16 %v6202
    %v6597 = vpack.c.b16 %v6432, %v6429
    %v6598 = vpack.c.b16 %v6433, %v6430
    %v6599 = vpack.c.b16 %v6434, %v6431
    %v6600 = vpack.c.b16 %v6438, %v6435
    %v6601 = vpack.c.b16 %v6439, %v6436
    %v6602 = vpack.c.b16 %v6440, %v6437
    %v6603 = vpack.c.b16 %v6444, %v6441
    %v6604 = vpack.c.b16 %v6445, %v6442
    %v6605 = vpack.c.b16 %v6446, %v6443
    %v6606 = vpack.c.b16 %v6450, %v6447
    %v6607 = vpack.c.b16 %v6451, %v6448
    %v6608 = vpack.c.b16 %v6452, %v6449
    %v6609 = vpack.c.b16 %v6456, %v6453
    %v6610 = vpack.c.b16 %v6457, %v6454
    %v6611 = vpack.c.b16 %v6458, %v6455
    %v6612 = vpack.c.b16 %v6462, %v6459
    %v6613 = vpack.c.b16 %v6463, %v6460
    %v6614 = vpack.c.b16 %v6464, %v6461
    %v6615 = vpack.c.b16 %v6468, %v6465
    %v6616 = vpack.c.b16 %v6469, %v6466
    %v6617 = vpack.c.b16 %v6470, %v6467
    %v6618 = vpack.c.b16 %v6474, %v6471
    %v6619 = vpack.c.b16 %v6475, %v6472
    %v6620 = vpack.c.b16 %v6476, %v6473
    %v6621 = vpack.c.b16 %v6480, %v6477
    %v6622 = vpack.c.b16 %v6481, %v6478
    %v6623 = vpack.c.b16 %v6482, %v6479
    %v6624 = vpack.c.b16 %v6486, %v6483
    %v6625 = vpack.c.b16 %v6487, %v6484
    %v6626 = vpack.c.b16 %v6488, %v6485
    %v6627 = vpack.c.b16 %v6492, %v6489
    %v6628 = vpack.c.b16 %v6493, %v6490
    %v6629 = vpack.c.b16 %v6494, %v6491
    %v6630 = vpack.c.b16 %v6498, %v6495
    %v6631 = vpack.c.b16 %v6499, %v6496
    %v6632 = vpack.c.b16 %v6500, %v6497
    %v6633 = vpack.c.b16 %v6504, %v6501
    %v6634 = vpack.c.b16 %v6505, %v6502
    %v6635 = vpack.c.b16 %v6506, %v6503
    %v6636 = vpack.c.b16 %v6510, %v6507
    %v6637 = vpack.c.b16 %v6511, %v6508
    %v6638 = vpack.c.b16 %v6512, %v6509
    %v6639 = vpack.c.b16 %v6516, %v6513
    %v6640 = vpack.c.b16 %v6517, %v6514
    %v6641 = vpack.c.b16 %v6518, %v6515
    %v6642 = vpack.c.b16 %v6522, %v6519
    %v6643 = vpack.c.b16 %v6523, %v6520
    %v6644 = vpack.c.b16 %v6524, %v6521
    %v6645 = vpack.c.b16 %v6528, %v6525
    %v6646 = vpack.c.b16 %v6529, %v6526
    %v6647 = vpack.c.b16 %v6530, %v6527
    %v6648 = vpack.c.b16 %v6534, %v6531
    %v6649 = vpack.c.b16 %v6535, %v6532
    %v6650 = vpack.c.b16 %v6536, %v6533
    %v6651 = vpack.c.b16 %v6540, %v6537
    %v6652 = vpack.c.b16 %v6541, %v6538
    %v6653 = vpack.c.b16 %v6542, %v6539
    %v6654 = vpack.c.b16 %v6546, %v6543
    %v6655 = vpack.c.b16 %v6547, %v6544
    %v6656 = vpack.c.b16 %v6548, %v6545
    %v6657 = vpack.c.b16 %v6552, %v6549
    %v6658 = vpack.c.b16 %v6553, %v6550
    %v6659 = vpack.c.b16 %v6554, %v6551
    %v6660 = vpack.c.b16 %v6558, %v6555
    %v6661 = vpack.c.b16 %v6559, %v6556
    %v6662 = vpack.c.b16 %v6560, %v6557
    %v6663 = vpack.c.b16 %v6564, %v6561
    %v6664 = vpack.c.b16 %v6565, %v6562
    %v6665 = vpack.c.b16 %v6566, %v6563
    %v6666 = vpack.c.b16 %v6570, %v6567
    %v6667 = vpack.c.b16 %v6571, %v6568
    %v6668 = vpack.c.b16 %v6572, %v6569
    %v6669 = vpack.c.b16 %v6576, %v6573
    %v6670 = vpack.c.b16 %v6577, %v6574
    %v6671 = vpack.c.b16 %v6578, %v6575
    %v6672 = vpack.c.b16 %v6582, %v6579
    %v6673 = vpack.c.b16 %v6583, %v6580
    %v6674 = vpack.c.b16 %v6584, %v6581
    %v6675 = vpack.c.b16 %v6588, %v6585
    %v6676 = vpack.c.b16 %v6589, %v6586
    %v6677 = vpack.c.b16 %v6590, %v6587
    %v6678 = vpack.c.b16 %v6594, %v6591
    %v6679 = vpack.c.b16 %v6595, %v6592
    %v6680 = vpack.c.b16 %v6596, %v6593
    %v6766 = vsel %vm3714, %v6306, 0
    %v6769 = vsel %vm3714, %v6310, 0
    %6771 = vmatprep.subr.bf16.mxu0 %v6598
    %6772 = vmatpush1.bf16.msra.mxu0 %v6597
    %6773 = vmatprep.subr.bf16.mxu0 %v6601
    %6774 = vmatpush1.bf16.msra.mxu0 %v6600
    %6775 = vmatprep.subr.bf16.mxu0 %v6604
    %6776 = vmatpush1.bf16.msra.mxu0 %v6603
    %6777 = vmatprep.subr.bf16.mxu0 %v6607
    %6778 = vmatpush1.bf16.msra.mxu0 %v6606
    %6779 = vmatprep.subr.bf16.mxu0 %v6610
    %6780 = vmatpush1.bf16.msra.mxu0 %v6609
    %6781 = vmatprep.subr.bf16.mxu0 %v6613
    %6782 = vmatpush1.bf16.msra.mxu0 %v6612
    %6783 = vmatprep.subr.bf16.mxu0 %v6616
    %6784 = vmatpush1.bf16.msra.mxu0 %v6615
    %6785 = vmatprep.subr.bf16.mxu0 %v6619
    %6786 = vmatpush1.bf16.msra.mxu0 %v6618
    %6787 = vmatprep.subr.bf16.mxu0 %v6622
    %6788 = vmatpush1.bf16.msra.mxu0 %v6621
    %6789 = vmatprep.subr.bf16.mxu0 %v6625
    %6790 = vmatpush1.bf16.msra.mxu0 %v6624
    %6791 = vmatprep.subr.bf16.mxu0 %v6628
    %6792 = vmatpush1.bf16.msra.mxu0 %v6627
    %6793 = vmatprep.subr.bf16.mxu0 %v6631
    %6794 = vmatpush1.bf16.msra.mxu0 %v6630
    %6795 = vmatprep.subr.bf16.mxu0 %v6634
    %6796 = vmatpush1.bf16.msra.mxu0 %v6633
    %6797 = vmatprep.subr.bf16.mxu0 %v6637
    %6798 = vmatpush1.bf16.msra.mxu0 %v6636
    %6799 = vmatprep.subr.bf16.mxu0 %v6640
    %6800 = vmatpush1.bf16.msra.mxu0 %v6639
    %6801 = vmatprep.subr.bf16.mxu0 %v6643
    %6802 = vmatpush1.bf16.msra.mxu0 %v6642
    %6803 = vmatprep.mubr.bf16.mxu0 %v6304
    %6804 = vmatmul.mubr.bf16.gmra.mrb[0].mxu0 %v6303
    %v6805 = vpop.f32.mrb[0].mxu0
    %v6806 = vadd.f32 0.0, %v6805
    %v6807 = vpop.f32.mrb[0].mxu0
    %v6808 = vadd.f32 0.0, %v6807
    %v6809 = vpop.f32.mrb[0].mxu0
    %v6810 = vadd.f32 0.0, %v6809
    %v6811 = vpop.f32.mrb[0].mxu0
    %v6812 = vadd.f32 0.0, %v6811
    %6813 = vmatprep.mubr.bf16.mxu0 %v6308
    %6814 = vmatmul.mubr.bf16.gmra.mrb[0].mxu0 %v6307
    %v6815 = vpop.f32.mrb[0].mxu0
    %v6816 = vadd.f32 0.0, %v6815
    %v6817 = vpop.f32.mrb[0].mxu0
    %v6818 = vadd.f32 0.0, %v6817
    %v6819 = vpop.f32.mrb[0].mxu0
    %v6820 = vpop.f32.mrb[0].mxu0
    %6821 = vdwg.mxu0
    %6822 = vmatprep.subr.bf16.mxu0 %v6646
    %6823 = vmatpush1.bf16.msra.mxu0 %v6645
    %6824 = vmatprep.subr.bf16.mxu0 %v6649
    %6825 = vmatpush1.bf16.msra.mxu0 %v6648
    %6826 = vmatprep.subr.bf16.mxu0 %v6652
    %6827 = vmatpush1.bf16.msra.mxu0 %v6651
    %6828 = vmatprep.subr.bf16.mxu0 %v6655
    %6829 = vmatpush1.bf16.msra.mxu0 %v6654
    %6830 = vmatprep.subr.bf16.mxu0 %v6658
    %6831 = vmatpush1.bf16.msra.mxu0 %v6657
    %6832 = vmatprep.subr.bf16.mxu0 %v6661
    %6833 = vmatpush1.bf16.msra.mxu0 %v6660
    %6834 = vmatprep.subr.bf16.mxu0 %v6664
    %6835 = vmatpush1.bf16.msra.mxu0 %v6663
    %6836 = vmatprep.subr.bf16.mxu0 %v6667
    %6837 = vmatpush1.bf16.msra.mxu0 %v6666
    %6838 = vmatprep.subr.bf16.mxu0 %v6670
    %6839 = vmatpush1.bf16.msra.mxu0 %v6669
    %6840 = vmatprep.subr.bf16.mxu0 %v6673
    %6841 = vmatpush1.bf16.msra.mxu0 %v6672
    %6842 = vmatprep.subr.bf16.mxu0 %v6676
    %6843 = vmatpush1.bf16.msra.mxu0 %v6675
    %6844 = vmatprep.subr.bf16.mxu0 %v6679
    %6845 = vmatpush1.bf16.msra.mxu0 %v6678
    %6846 = vmatprep.subr.bf16.mxu0 0
    %6847 = vmatpush1.bf16.msra.mxu0 0
    %6848 = vmatprep.subr.bf16.mxu0 0
    %6849 = vmatpush1.bf16.msra.mxu0 0
    %6850 = vmatprep.subr.bf16.mxu0 0
    %6851 = vmatpush1.bf16.msra.mxu0 0
    %6852 = vmatprep.subr.bf16.mxu0 0
    %6853 = vmatpush1.bf16.msra.mxu0 0
    %6854 = vmatprep.mubr.bf16.mxu0 %v6766
    %6855 = vmatmul.mubr.bf16.gmra.mrb[0].mxu0 %v6305
    %v6856 = vpop.f32.mrb[0].mxu0
    %v6857 = vadd.f32 %v6806, %v6856
    %v6858 = vpop.f32.mrb[0].mxu0
    %v6859 = vadd.f32 %v6808, %v6858
    %v6860 = vpop.f32.mrb[0].mxu0
    %v6861 = vadd.f32 %v6810, %v6860
    %v6862 = vpop.f32.mrb[0].mxu0
    %v6863 = vadd.f32 %v6812, %v6862
    %6864 = vmatprep.mubr.bf16.mxu0 %v6769
    %6865 = vmatmul.mubr.bf16.gmra.mrb[0].mxu0 %v6309
    %v6866 = vpop.f32.mrb[0].mxu0
    %v6867 = vadd.f32 %v6816, %v6866
    %v6868 = vpop.f32.mrb[0].mxu0
    %v6869 = vadd.f32 %v6818, %v6868
    %v6870 = vpop.f32.mrb[0].mxu0
    %v6871 = vpop.f32.mrb[0].mxu0
    %6872 = vdwg.mxu0
    %6873 = vmatprep.subr.bf16.mxu0 0
    %6874 = vmatpush1.bf16.msra.mxu0 %v6599
    %6875 = vmatprep.subr.bf16.mxu0 0
    %6876 = vmatpush1.bf16.msra.mxu0 %v6602
    %6877 = vmatprep.subr.bf16.mxu0 0
    %6878 = vmatpush1.bf16.msra.mxu0 %v6605
    %6879 = vmatprep.subr.bf16.mxu0 0
    %6880 = vmatpush1.bf16.msra.mxu0 %v6608
    %6881 = vmatprep.subr.bf16.mxu0 0
    %6882 = vmatpush1.bf16.msra.mxu0 %v6611
    %6883 = vmatprep.subr.bf16.mxu0 0
    %6884 = vmatpush1.bf16.msra.mxu0 %v6614
    %6885 = vmatprep.subr.bf16.mxu0 0
    %6886 = vmatpush1.bf16.msra.mxu0 %v6617
    %6887 = vmatprep.subr.bf16.mxu0 0
    %6888 = vmatpush1.bf16.msra.mxu0 %v6620
    %6889 = vmatprep.subr.bf16.mxu0 0
    %6890 = vmatpush1.bf16.msra.mxu0 %v6623
    %6891 = vmatprep.subr.bf16.mxu0 0
    %6892 = vmatpush1.bf16.msra.mxu0 %v6626
    %6893 = vmatprep.subr.bf16.mxu0 0
    %6894 = vmatpush1.bf16.msra.mxu0 %v6629
    %6895 = vmatprep.subr.bf16.mxu0 0
    %6896 = vmatpush1.bf16.msra.mxu0 %v6632
    %6897 = vmatprep.subr.bf16.mxu0 0
    %6898 = vmatpush1.bf16.msra.mxu0 %v6635
    %6899 = vmatprep.subr.bf16.mxu0 0
    %6900 = vmatpush1.bf16.msra.mxu0 %v6638
    %6901 = vmatprep.subr.bf16.mxu0 0
    %6902 = vmatpush1.bf16.msra.mxu0 %v6641
    %6903 = vmatprep.subr.bf16.mxu0 0
    %6904 = vmatpush1.bf16.msra.mxu0 %v6644
    %6905 = vmatprep.mubr.bf16.mxu0 %v6304
    %6906 = vmatmul.mubr.bf16.gmra.mrb[0].mxu0 %v6303
    %v6907 = vpop.f32.mrb[0].mxu0
    %v6908 = vadd.f32 0.0, %v6907
    %v6909 = vpop.f32.mrb[0].mxu0
    %v6910 = vpop.f32.mrb[0].mxu0
    %v6911 = vadd.f32 0.0, %v6910
    %v6912 = vpop.f32.mrb[0].mxu0
    %6913 = vmatprep.mubr.bf16.mxu0 %v6308
    %6914 = vmatmul.mubr.bf16.gmra.mrb[0].mxu0 %v6307
    %v6915 = vpop.f32.mrb[0].mxu0
    %v6916 = vadd.f32 0.0, %v6915
    %v6917 = vpop.f32.mrb[0].mxu0
    %v6918 = vpop.f32.mrb[0].mxu0
    %v6919 = vpop.f32.mrb[0].mxu0
    %6920 = vdwg.mxu0
    %6921 = vmatprep.subr.bf16.mxu0 0
    %6922 = vmatpush1.bf16.msra.mxu0 %v6647
    %6923 = vmatprep.subr.bf16.mxu0 0
    %6924 = vmatpush1.bf16.msra.mxu0 %v6650
    %6925 = vmatprep.subr.bf16.mxu0 0
    %6926 = vmatpush1.bf16.msra.mxu0 %v6653
    %6927 = vmatprep.subr.bf16.mxu0 0
    %6928 = vmatpush1.bf16.msra.mxu0 %v6656
    %6929 = vmatprep.subr.bf16.mxu0 0
    %6930 = vmatpush1.bf16.msra.mxu0 %v6659
    %6931 = vmatprep.subr.bf16.mxu0 0
    %6932 = vmatpush1.bf16.msra.mxu0 %v6662
    %6933 = vmatprep.subr.bf16.mxu0 0
    %6934 = vmatpush1.bf16.msra.mxu0 %v6665
    %6935 = vmatprep.subr.bf16.mxu0 0
    %6936 = vmatpush1.bf16.msra.mxu0 %v6668
    %6937 = vmatprep.subr.bf16.mxu0 0
    %6938 = vmatpush1.bf16.msra.mxu0 %v6671
    %6939 = vmatprep.subr.bf16.mxu0 0
    %6940 = vmatpush1.bf16.msra.mxu0 %v6674
    %6941 = vmatprep.subr.bf16.mxu0 0
    %6942 = vmatpush1.bf16.msra.mxu0 %v6677
    %6943 = vmatprep.subr.bf16.mxu0 0
    %6944 = vmatpush1.bf16.msra.mxu0 %v6680
    %6945 = vmatprep.subr.bf16.mxu0 0
    %6946 = vmatpush1.bf16.msra.mxu0 0
    %6947 = vmatprep.subr.bf16.mxu0 0
    %6948 = vmatpush1.bf16.msra.mxu0 0
    %6949 = vmatprep.subr.bf16.mxu0 0
    %6950 = vmatpush1.bf16.msra.mxu0 0
    %6951 = vmatprep.subr.bf16.mxu0 0
    %6952 = vmatpush1.bf16.msra.mxu0 0
    %6953 = vmatprep.mubr.bf16.mxu0 %v6766
    %6954 = vmatmul.mubr.bf16.gmra.mrb[0].mxu0 %v6305
    %v6955 = vpop.f32.mrb[0].mxu0
    %v6956 = vadd.f32 %v6908, %v6955
    %v6957 = vpop.f32.mrb[0].mxu0
    %v6958 = vpop.f32.mrb[0].mxu0
    %v6959 = vadd.f32 %v6911, %v6958
    %v6960 = vpop.f32.mrb[0].mxu0
    %6961 = vmatprep.mubr.bf16.mxu0 %v6769
    %6962 = vmatmul.mubr.bf16.gmra.mrb[0].mxu0 %v6309
    %v6963 = vpop.f32.mrb[0].mxu0
    %v6964 = vadd.f32 %v6916, %v6963
    %v6965 = vpop.f32.mrb[0].mxu0
    %v6966 = vpop.f32.mrb[0].mxu0
    %v6967 = vpop.f32.mrb[0].mxu0
    %6968 = vdwg.mxu0
    %v6969 = vadd.f32 %v4573, %v6857
    %v6970 = vadd.f32 %v4575, %v6859
    %v6971 = vadd.f32 %v4672, %v6956
    %v6972 = vadd.f32 %v4577, %v6861
    %v6973 = vadd.f32 %v4579, %v6863
    %v6974 = vadd.f32 %v4675, %v6959
    %v6975 = vadd.f32 %v4583, %v6867
    %v6976 = vadd.f32 %v4585, %v6869
    %v6977 = vadd.f32 %v4680, %v6964
    %s6978 = scalar_lea.vmem [#allocation11], 1344
    %v6979 = vld [vmem:[%s6978] sm:$0xff]
    %v6980 = vld [vmem:[%s6978 + $0x8] sm:$0xf]
    %v6981 = vld [vmem:[%s6978 + $0xc] sm:$0xff]
    %v6982 = vld [vmem:[%s6978 + $0x14] sm:$0xf]
    %v6983 = vld [vmem:[%s6978 + $0x18] sm:$0xff]
    %v6984 = vld [vmem:[%s6978 + $0x20] sm:$0xf]
    %v6985 = vld [vmem:[%s6978 + $0x24] sm:$0xff]
    %v6986 = vld [vmem:[%s6978 + $0x2c] sm:$0xf]
    %v6987 = vld [vmem:[%s6978 + $0x30] sm:$0xff]
    %v6988 = vld [vmem:[%s6978 + $0x38] sm:$0xf]
    %v6989 = vld [vmem:[%s6978 + $0x3c] sm:$0xff]
    %v6990 = vld [vmem:[%s6978 + $0x44] sm:$0xf]
    %v6991 = vld [vmem:[%s6978 + $0x48] sm:$0xff]
    %v6992 = vld [vmem:[%s6978 + $0x50] sm:$0xf]
    %v6993 = vld [vmem:[%s6978 + $0x54] sm:$0xff]
    %v6994 = vld [vmem:[%s6978 + $0x5c] sm:$0xf]
    %v6995 = vld [vmem:[%s6978 + $0x60] sm:$0xff]
    %v6996 = vld [vmem:[%s6978 + $0x68] sm:$0xf]
    %v6997 = vld [vmem:[%s6978 + $0x6c] sm:$0xff]
    %v6998 = vld [vmem:[%s6978 + $0x74] sm:$0xf]
    %v6999 = vld [vmem:[%s6978 + $0x78] sm:$0xff]
    %v7000 = vld [vmem:[%s6978 + $0x80] sm:$0xf]
    %v7001 = vld [vmem:[%s6978 + $0x84] sm:$0xff]
    %v7002 = vld [vmem:[%s6978 + $0x8c] sm:$0xf]
    %v7003 = vld [vmem:[%s6978 + $0x90] sm:$0xff]
    %v7004 = vld [vmem:[%s6978 + $0x98] sm:$0xf]
    %v7005 = vld [vmem:[%s6978 + $0x9c] sm:$0xff]
    %v7006 = vld [vmem:[%s6978 + $0xa4] sm:$0xf]
    %v7007 = vld [vmem:[%s6978 + $0xa8] sm:$0xff]
    %v7008 = vld [vmem:[%s6978 + $0xb0] sm:$0xf]
    %v7009 = vld [vmem:[%s6978 + $0xb4] sm:$0xff]
    %v7010 = vld [vmem:[%s6978 + $0xbc] sm:$0xf]
    %v7011 = vld [vmem:[%s6978 + $0xc0] sm:$0xff]
    %v7012 = vld [vmem:[%s6978 + $0xc8] sm:$0xf]
    %v7013 = vld [vmem:[%s6978 + $0xcc] sm:$0xff]
    %v7014 = vld [vmem:[%s6978 + $0xd4] sm:$0xf]
    %v7015 = vld [vmem:[%s6978 + $0xd8] sm:$0xff]
    %v7016 = vld [vmem:[%s6978 + $0xe0] sm:$0xf]
    %v7017 = vld [vmem:[%s6978 + $0xe4] sm:$0xff]
    %v7018 = vld [vmem:[%s6978 + $0xec] sm:$0xf]
    %v7019 = vld [vmem:[%s6978 + $0xf0] sm:$0xff]
    %v7020 = vld [vmem:[%s6978 + $0xf8] sm:$0xf]
    %v7021 = vld [vmem:[%s6978 + $0xfc] sm:$0xff]
    %v7022 = vld [vmem:[%s6978 + $0x104] sm:$0xf]
    %v7023 = vld [vmem:[%s6978 + $0x108] sm:$0xff]
    %v7024 = vld [vmem:[%s6978 + $0x110] sm:$0xf]
    %v7025 = vld [vmem:[%s6978 + $0x114] sm:$0xff]
    %v7026 = vld [vmem:[%s6978 + $0x11c] sm:$0xf]
    %v7027 = vld [vmem:[%s6978 + $0x120] sm:$0xff]
    %v7028 = vld [vmem:[%s6978 + $0x128] sm:$0xf]
    %v7029 = vld [vmem:[%s6978 + $0x12c] sm:$0xff]
    %v7030 = vld [vmem:[%s6978 + $0x134] sm:$0xf]
    %v7031 = vld [vmem:[%s6978 + $0x138] sm:$0xff]
    %v7032 = vld [vmem:[%s6978 + $0x140] sm:$0xf]
    %v7033 = vld [vmem:[%s6978 + $0x144] sm:$0xff]
    %v7034 = vld [vmem:[%s6978 + $0x14c] sm:$0xf]
    %v7035 = vld [vmem:[%s6978 + $0x150] sm:$0xff]
    %v7036 = vld [vmem:[%s6978 + $0x158] sm:$0xf]
    %v7037 = vld [vmem:[%s6978 + $0x15c] sm:$0xff]
    %v7038 = vld [vmem:[%s6978 + $0x164] sm:$0xf]
    %v7039 = vld [vmem:[%s6978 + $0x168] sm:$0xff]
    %v7040 = vld [vmem:[%s6978 + $0x170] sm:$0xf]
    %v7041 = vld [vmem:[%s6978 + $0x174] sm:$0xff]
    %v7042 = vld [vmem:[%s6978 + $0x17c] sm:$0xf]
    %v7043 = vld [vmem:[%s6978 + $0x180] sm:$0xff]
    %v7044 = vld [vmem:[%s6978 + $0x188] sm:$0xf]
    %v7045 = vld [vmem:[%s6978 + $0x18c] sm:$0xff]
    %v7046 = vld [vmem:[%s6978 + $0x194] sm:$0xf]
    %v7047 = vld [vmem:[%s6978 + $0x198] sm:$0xff]
    %v7048 = vld [vmem:[%s6978 + $0x1a0] sm:$0xf]
    %v7049 = vld [vmem:[%s6978 + $0x1a4] sm:$0xff]
    %v7050 = vld [vmem:[%s6978 + $0x1ac] sm:$0xf]
    %v7051 = vld [vmem:[%s6978 + $0x1b0] sm:$0xff]
    %v7052 = vld [vmem:[%s6978 + $0x1b8] sm:$0xf]
    %v7053 = vld [vmem:[%s6978 + $0x1bc] sm:$0xff]
    %v7054 = vld [vmem:[%s6978 + $0x1c4] sm:$0xf]
    %v7055 = vld [vmem:[%s6978 + $0x1c8] sm:$0xff]
    %v7056 = vld [vmem:[%s6978 + $0x1d0] sm:$0xf]
    %v7057 = vld [vmem:[%s6978 + $0x1d4] sm:$0xff]
    %v7058 = vld [vmem:[%s6978 + $0x1dc] sm:$0xf]
    %v7059 = vld [vmem:[%s6978 + $0x1e0] sm:$0xff]
    %v7060 = vld [vmem:[%s6978 + $0x1e8] sm:$0xf]
    %v7061 = vld [vmem:[%s6978 + $0x1ec] sm:$0xff]
    %v7062 = vld [vmem:[%s6978 + $0x1f4] sm:$0xf]
    %v7063 = vld [vmem:[%s6978 + $0x1f8] sm:$0xff]
    %v7064 = vld [vmem:[%s6978 + $0x200] sm:$0xf]
    %v7065 = vld [vmem:[%s6978 + $0x204] sm:$0xff]
    %v7066 = vld [vmem:[%s6978 + $0x20c] sm:$0xf]
    %v7067 = vld [vmem:[%s6978 + $0x210] sm:$0xff]
    %v7068 = vld [vmem:[%s6978 + $0x218] sm:$0xf]
    %v7069 = vld [vmem:[%s6978 + $0x21c] sm:$0xff]
    %v7070 = vld [vmem:[%s6978 + $0x224] sm:$0xf]
    %v7071 = vld [vmem:[%s6978 + $0x228] sm:$0xff]
    %v7072 = vld [vmem:[%s6978 + $0x230] sm:$0xf]
    %v7073 = vld [vmem:[%s6978 + $0x234] sm:$0xff]
    %v7074 = vld [vmem:[%s6978 + $0x23c] sm:$0xf]
    %v7075 = vld [vmem:[%s6978 + $0x240] sm:$0xff]
    %v7076 = vld [vmem:[%s6978 + $0x248] sm:$0xf]
    %v7077 = vld [vmem:[%s6978 + $0x24c] sm:$0xff]
    %v7078 = vld [vmem:[%s6978 + $0x254] sm:$0xf]
    %v7079 = vld [vmem:[%s6978 + $0x258] sm:$0xff]
    %v7080 = vld [vmem:[%s6978 + $0x260] sm:$0xf]
    %v7081 = vld [vmem:[%s6978 + $0x264] sm:$0xff]
    %v7082 = vld [vmem:[%s6978 + $0x26c] sm:$0xf]
    %v7083 = vld [vmem:[%s6978 + $0x270] sm:$0xff]
    %v7084 = vld [vmem:[%s6978 + $0x278] sm:$0xf]
    %v7085 = vld [vmem:[%s6978 + $0x27c] sm:$0xff]
    %v7086 = vld [vmem:[%s6978 + $0x284] sm:$0xf]
    %v7087 = vld [vmem:[%s6978 + $0x288] sm:$0xff]
    %v7088 = vld [vmem:[%s6978 + $0x290] sm:$0xf]
    %v7089 = vld [vmem:[%s6978 + $0x294] sm:$0xff]
    %v7090 = vld [vmem:[%s6978 + $0x29c] sm:$0xf]
    %v7203 = vunpack.c.l.b16 %v6979
    %v7204 = vunpack.c.h.b16 %v6979
    %v7205 = vunpack.c.l.b16 %v6980
    %v7206 = vunpack.c.l.b16 %v6981
    %v7207 = vunpack.c.h.b16 %v6981
    %v7208 = vunpack.c.l.b16 %v6982
    %v7209 = vunpack.c.l.b16 %v6983
    %v7210 = vunpack.c.h.b16 %v6983
    %v7211 = vunpack.c.l.b16 %v6984
    %v7212 = vunpack.c.l.b16 %v6985
    %v7213 = vunpack.c.h.b16 %v6985
    %v7214 = vunpack.c.l.b16 %v6986
    %v7215 = vunpack.c.l.b16 %v6987
    %v7216 = vunpack.c.h.b16 %v6987
    %v7217 = vunpack.c.l.b16 %v6988
    %v7218 = vunpack.c.l.b16 %v6989
    %v7219 = vunpack.c.h.b16 %v6989
    %v7220 = vunpack.c.l.b16 %v6990
    %v7221 = vunpack.c.l.b16 %v6991
    %v7222 = vunpack.c.h.b16 %v6991
    %v7223 = vunpack.c.l.b16 %v6992
    %v7224 = vunpack.c.l.b16 %v6993
    %v7225 = vunpack.c.h.b16 %v6993
    %v7226 = vunpack.c.l.b16 %v6994
    %v7227 = vunpack.c.l.b16 %v6995
    %v7228 = vunpack.c.h.b16 %v6995
    %v7229 = vunpack.c.l.b16 %v6996
    %v7230 = vunpack.c.l.b16 %v6997
    %v7231 = vunpack.c.h.b16 %v6997
    %v7232 = vunpack.c.l.b16 %v6998
    %v7233 = vunpack.c.l.b16 %v6999
    %v7234 = vunpack.c.h.b16 %v6999
    %v7235 = vunpack.c.l.b16 %v7000
    %v7236 = vunpack.c.l.b16 %v7001
    %v7237 = vunpack.c.h.b16 %v7001
    %v7238 = vunpack.c.l.b16 %v7002
    %v7239 = vunpack.c.l.b16 %v7003
    %v7240 = vunpack.c.h.b16 %v7003
    %v7241 = vunpack.c.l.b16 %v7004
    %v7242 = vunpack.c.l.b16 %v7005
    %v7243 = vunpack.c.h.b16 %v7005
    %v7244 = vunpack.c.l.b16 %v7006
    %v7245 = vunpack.c.l.b16 %v7007
    %v7246 = vunpack.c.h.b16 %v7007
    %v7247 = vunpack.c.l.b16 %v7008
    %v7248 = vunpack.c.l.b16 %v7009
    %v7249 = vunpack.c.h.b16 %v7009
    %v7250 = vunpack.c.l.b16 %v7010
    %v7251 = vunpack.c.l.b16 %v7011
    %v7252 = vunpack.c.h.b16 %v7011
    %v7253 = vunpack.c.l.b16 %v7012
    %v7254 = vunpack.c.l.b16 %v7013
    %v7255 = vunpack.c.h.b16 %v7013
    %v7256 = vunpack.c.l.b16 %v7014
    %v7257 = vunpack.c.l.b16 %v7015
    %v7258 = vunpack.c.h.b16 %v7015
    %v7259 = vunpack.c.l.b16 %v7016
    %v7260 = vunpack.c.l.b16 %v7017
    %v7261 = vunpack.c.h.b16 %v7017
    %v7262 = vunpack.c.l.b16 %v7018
    %v7263 = vunpack.c.l.b16 %v7019
    %v7264 = vunpack.c.h.b16 %v7019
    %v7265 = vunpack.c.l.b16 %v7020
    %v7266 = vunpack.c.l.b16 %v7021
    %v7267 = vunpack.c.h.b16 %v7021
    %v7268 = vunpack.c.l.b16 %v7022
    %v7269 = vunpack.c.l.b16 %v7023
    %v7270 = vunpack.c.h.b16 %v7023
    %v7271 = vunpack.c.l.b16 %v7024
    %v7272 = vunpack.c.l.b16 %v7025
    %v7273 = vunpack.c.h.b16 %v7025
    %v7274 = vunpack.c.l.b16 %v7026
    %v7275 = vunpack.c.l.b16 %v7027
    %v7276 = vunpack.c.h.b16 %v7027
    %v7277 = vunpack.c.l.b16 %v7028
    %v7278 = vunpack.c.l.b16 %v7029
    %v7279 = vunpack.c.h.b16 %v7029
    %v7280 = vunpack.c.l.b16 %v7030
    %v7281 = vunpack.c.l.b16 %v7031
    %v7282 = vunpack.c.h.b16 %v7031
    %v7283 = vunpack.c.l.b16 %v7032
    %v7284 = vunpack.c.l.b16 %v7033
    %v7285 = vunpack.c.h.b16 %v7033
    %v7286 = vunpack.c.l.b16 %v7034
    %v7287 = vunpack.c.l.b16 %v7035
    %v7288 = vunpack.c.h.b16 %v7035
    %v7289 = vunpack.c.l.b16 %v7036
    %v7290 = vunpack.c.l.b16 %v7037
    %v7291 = vunpack.c.h.b16 %v7037
    %v7292 = vunpack.c.l.b16 %v7038
    %v7293 = vunpack.c.l.b16 %v7039
    %v7294 = vunpack.c.h.b16 %v7039
    %v7295 = vunpack.c.l.b16 %v7040
    %v7296 = vunpack.c.l.b16 %v7041
    %v7297 = vunpack.c.h.b16 %v7041
    %v7298 = vunpack.c.l.b16 %v7042
    %v7299 = vunpack.c.l.b16 %v7043
    %v7300 = vunpack.c.h.b16 %v7043
    %v7301 = vunpack.c.l.b16 %v7044
    %v7302 = vunpack.c.l.b16 %v7045
    %v7303 = vunpack.c.h.b16 %v7045
    %v7304 = vunpack.c.l.b16 %v7046
    %v7305 = vunpack.c.l.b16 %v7047
    %v7306 = vunpack.c.h.b16 %v7047
    %v7307 = vunpack.c.l.b16 %v7048
    %v7308 = vunpack.c.l.b16 %v7049
    %v7309 = vunpack.c.h.b16 %v7049
    %v7310 = vunpack.c.l.b16 %v7050
    %v7311 = vunpack.c.l.b16 %v7051
    %v7312 = vunpack.c.h.b16 %v7051
    %v7313 = vunpack.c.l.b16 %v7052
    %v7314 = vunpack.c.l.b16 %v7053
    %v7315 = vunpack.c.h.b16 %v7053
    %v7316 = vunpack.c.l.b16 %v7054
    %v7317 = vunpack.c.l.b16 %v7055
    %v7318 = vunpack.c.h.b16 %v7055
    %v7319 = vunpack.c.l.b16 %v7056
    %v7320 = vunpack.c.l.b16 %v7057
    %v7321 = vunpack.c.h.b16 %v7057
    %v7322 = vunpack.c.l.b16 %v7058
    %v7323 = vunpack.c.l.b16 %v7059
    %v7324 = vunpack.c.h.b16 %v7059
    %v7325 = vunpack.c.l.b16 %v7060
    %v7326 = vunpack.c.l.b16 %v7061
    %v7327 = vunpack.c.h.b16 %v7061
    %v7328 = vunpack.c.l.b16 %v7062
    %v7329 = vunpack.c.l.b16 %v7063
    %v7330 = vunpack.c.h.b16 %v7063
    %v7331 = vunpack.c.l.b16 %v7064
    %v7332 = vunpack.c.l.b16 %v7065
    %v7333 = vunpack.c.h.b16 %v7065
    %v7334 = vunpack.c.l.b16 %v7066
    %v7335 = vunpack.c.l.b16 %v7067
    %v7336 = vunpack.c.h.b16 %v7067
    %v7337 = vunpack.c.l.b16 %v7068
    %v7338 = vunpack.c.l.b16 %v7069
    %v7339 = vunpack.c.h.b16 %v7069
    %v7340 = vunpack.c.l.b16 %v7070
    %v7341 = vunpack.c.l.b16 %v7071
    %v7342 = vunpack.c.h.b16 %v7071
    %v7343 = vunpack.c.l.b16 %v7072
    %v7344 = vunpack.c.l.b16 %v7073
    %v7345 = vunpack.c.h.b16 %v7073
    %v7346 = vunpack.c.l.b16 %v7074
    %v7347 = vunpack.c.l.b16 %v7075
    %v7348 = vunpack.c.h.b16 %v7075
    %v7349 = vunpack.c.l.b16 %v7076
    %v7350 = vunpack.c.l.b16 %v7077
    %v7351 = vunpack.c.h.b16 %v7077
    %v7352 = vunpack.c.l.b16 %v7078
    %v7353 = vunpack.c.l.b16 %v7079
    %v7354 = vunpack.c.h.b16 %v7079
    %v7355 = vunpack.c.l.b16 %v7080
    %v7356 = vunpack.c.l.b16 %v7081
    %v7357 = vunpack.c.h.b16 %v7081
    %v7358 = vunpack.c.l.b16 %v7082
    %v7359 = vunpack.c.l.b16 %v7083
    %v7360 = vunpack.c.h.b16 %v7083
    %v7361 = vunpack.c.l.b16 %v7084
    %v7362 = vunpack.c.l.b16 %v7085
    %v7363 = vunpack.c.h.b16 %v7085
    %v7364 = vunpack.c.l.b16 %v7086
    %v7365 = vunpack.c.l.b16 %v7087
    %v7366 = vunpack.c.h.b16 %v7087
    %v7367 = vunpack.c.l.b16 %v7088
    %v7368 = vunpack.c.l.b16 %v7089
    %v7369 = vunpack.c.h.b16 %v7089
    %v7370 = vunpack.c.l.b16 %v7090
    %v7371 = vpack.c.b16 %v7206, %v7203
    %v7372 = vpack.c.b16 %v7207, %v7204
    %v7373 = vpack.c.b16 %v7208, %v7205
    %v7374 = vpack.c.b16 %v7212, %v7209
    %v7375 = vpack.c.b16 %v7213, %v7210
    %v7376 = vpack.c.b16 %v7214, %v7211
    %v7377 = vpack.c.b16 %v7218, %v7215
    %v7378 = vpack.c.b16 %v7219, %v7216
    %v7379 = vpack.c.b16 %v7220, %v7217
    %v7380 = vpack.c.b16 %v7224, %v7221
    %v7381 = vpack.c.b16 %v7225, %v7222
    %v7382 = vpack.c.b16 %v7226, %v7223
    %v7383 = vpack.c.b16 %v7230, %v7227
    %v7384 = vpack.c.b16 %v7231, %v7228
    %v7385 = vpack.c.b16 %v7232, %v7229
    %v7386 = vpack.c.b16 %v7236, %v7233
    %v7387 = vpack.c.b16 %v7237, %v7234
    %v7388 = vpack.c.b16 %v7238, %v7235
    %v7389 = vpack.c.b16 %v7242, %v7239
    %v7390 = vpack.c.b16 %v7243, %v7240
    %v7391 = vpack.c.b16 %v7244, %v7241
    %v7392 = vpack.c.b16 %v7248, %v7245
    %v7393 = vpack.c.b16 %v7249, %v7246
    %v7394 = vpack.c.b16 %v7250, %v7247
    %v7395 = vpack.c.b16 %v7254, %v7251
    %v7396 = vpack.c.b16 %v7255, %v7252
    %v7397 = vpack.c.b16 %v7256, %v7253
    %v7398 = vpack.c.b16 %v7260, %v7257
    %v7399 = vpack.c.b16 %v7261, %v7258
    %v7400 = vpack.c.b16 %v7262, %v7259
    %v7401 = vpack.c.b16 %v7266, %v7263
    %v7402 = vpack.c.b16 %v7267, %v7264
    %v7403 = vpack.c.b16 %v7268, %v7265
    %v7404 = vpack.c.b16 %v7272, %v7269
    %v7405 = vpack.c.b16 %v7273, %v7270
    %v7406 = vpack.c.b16 %v7274, %v7271
    %v7407 = vpack.c.b16 %v7278, %v7275
    %v7408 = vpack.c.b16 %v7279, %v7276
    %v7409 = vpack.c.b16 %v7280, %v7277
    %v7410 = vpack.c.b16 %v7284, %v7281
    %v7411 = vpack.c.b16 %v7285, %v7282
    %v7412 = vpack.c.b16 %v7286, %v7283
    %v7413 = vpack.c.b16 %v7290, %v7287
    %v7414 = vpack.c.b16 %v7291, %v7288
    %v7415 = vpack.c.b16 %v7292, %v7289
    %v7416 = vpack.c.b16 %v7296, %v7293
    %v7417 = vpack.c.b16 %v7297, %v7294
    %v7418 = vpack.c.b16 %v7298, %v7295
    %v7419 = vpack.c.b16 %v7302, %v7299
    %v7420 = vpack.c.b16 %v7303, %v7300
    %v7421 = vpack.c.b16 %v7304, %v7301
    %v7422 = vpack.c.b16 %v7308, %v7305
    %v7423 = vpack.c.b16 %v7309, %v7306
    %v7424 = vpack.c.b16 %v7310, %v7307
    %v7425 = vpack.c.b16 %v7314, %v7311
    %v7426 = vpack.c.b16 %v7315, %v7312
    %v7427 = vpack.c.b16 %v7316, %v7313
    %v7428 = vpack.c.b16 %v7320, %v7317
    %v7429 = vpack.c.b16 %v7321, %v7318
    %v7430 = vpack.c.b16 %v7322, %v7319
    %v7431 = vpack.c.b16 %v7326, %v7323
    %v7432 = vpack.c.b16 %v7327, %v7324
    %v7433 = vpack.c.b16 %v7328, %v7325
    %v7434 = vpack.c.b16 %v7332, %v7329
    %v7435 = vpack.c.b16 %v7333, %v7330
    %v7436 = vpack.c.b16 %v7334, %v7331
    %v7437 = vpack.c.b16 %v7338, %v7335
    %v7438 = vpack.c.b16 %v7339, %v7336
    %v7439 = vpack.c.b16 %v7340, %v7337
    %v7440 = vpack.c.b16 %v7344, %v7341
    %v7441 = vpack.c.b16 %v7345, %v7342
    %v7442 = vpack.c.b16 %v7346, %v7343
    %v7443 = vpack.c.b16 %v7350, %v7347
    %v7444 = vpack.c.b16 %v7351, %v7348
    %v7445 = vpack.c.b16 %v7352, %v7349
    %v7446 = vpack.c.b16 %v7356, %v7353
    %v7447 = vpack.c.b16 %v7357, %v7354
    %v7448 = vpack.c.b16 %v7358, %v7355
    %v7449 = vpack.c.b16 %v7362, %v7359
    %v7450 = vpack.c.b16 %v7363, %v7360
    %v7451 = vpack.c.b16 %v7364, %v7361
    %v7452 = vpack.c.b16 %v7368, %v7365
    %v7453 = vpack.c.b16 %v7369, %v7366
    %v7454 = vpack.c.b16 %v7370, %v7367
    %7539 = vmatprep.subr.bf16.mxu0 %v7372
    %7540 = vmatpush1.bf16.msra.mxu0 %v7371
    %7541 = vmatprep.subr.bf16.mxu0 %v7375
    %7542 = vmatpush1.bf16.msra.mxu0 %v7374
    %7543 = vmatprep.subr.bf16.mxu0 %v7378
    %7544 = vmatpush1.bf16.msra.mxu0 %v7377
    %7545 = vmatprep.subr.bf16.mxu0 %v7381
    %7546 = vmatpush1.bf16.msra.mxu0 %v7380
    %7547 = vmatprep.subr.bf16.mxu0 %v7384
    %7548 = vmatpush1.bf16.msra.mxu0 %v7383
    %7549 = vmatprep.subr.bf16.mxu0 %v7387
    %7550 = vmatpush1.bf16.msra.mxu0 %v7386
    %7551 = vmatprep.subr.bf16.mxu0 %v7390
    %7552 = vmatpush1.bf16.msra.mxu0 %v7389
    %7553 = vmatprep.subr.bf16.mxu0 %v7393
    %7554 = vmatpush1.bf16.msra.mxu0 %v7392
    %7555 = vmatprep.subr.bf16.mxu0 %v7396
    %7556 = vmatpush1.bf16.msra.mxu0 %v7395
    %7557 = vmatprep.subr.bf16.mxu0 %v7399
    %7558 = vmatpush1.bf16.msra.mxu0 %v7398
    %7559 = vmatprep.subr.bf16.mxu0 %v7402
    %7560 = vmatpush1.bf16.msra.mxu0 %v7401
    %7561 = vmatprep.subr.bf16.mxu0 %v7405
    %7562 = vmatpush1.bf16.msra.mxu0 %v7404
    %7563 = vmatprep.subr.bf16.mxu0 %v7408
    %7564 = vmatpush1.bf16.msra.mxu0 %v7407
    %7565 = vmatprep.subr.bf16.mxu0 %v7411
    %7566 = vmatpush1.bf16.msra.mxu0 %v7410
    %7567 = vmatprep.subr.bf16.mxu0 %v7414
    %7568 = vmatpush1.bf16.msra.mxu0 %v7413
    %7569 = vmatprep.subr.bf16.mxu0 %v7417
    %7570 = vmatpush1.bf16.msra.mxu0 %v7416
    %7571 = vmatprep.mubr.bf16.mxu0 %v6304
    %7572 = vmatmul.mubr.bf16.gmra.mrb[0].mxu0 %v6303
    %v7573 = vpop.f32.mrb[0].mxu0
    %v7574 = vadd.f32 0.0, %v7573
    %v7575 = vpop.f32.mrb[0].mxu0
    %v7576 = vadd.f32 0.0, %v7575
    %v7577 = vpop.f32.mrb[0].mxu0
    %v7578 = vadd.f32 0.0, %v7577
    %v7579 = vpop.f32.mrb[0].mxu0
    %v7580 = vadd.f32 0.0, %v7579
    %7581 = vmatprep.mubr.bf16.mxu0 %v6308
    %7582 = vmatmul.mubr.bf16.gmra.mrb[0].mxu0 %v6307
    %v7583 = vpop.f32.mrb[0].mxu0
    %v7584 = vadd.f32 0.0, %v7583
    %v7585 = vpop.f32.mrb[0].mxu0
    %v7586 = vadd.f32 0.0, %v7585
    %v7587 = vpop.f32.mrb[0].mxu0
    %v7588 = vpop.f32.mrb[0].mxu0
    %7589 = vdwg.mxu0
    %7590 = vmatprep.subr.bf16.mxu0 %v7420
    %7591 = vmatpush1.bf16.msra.mxu0 %v7419
    %7592 = vmatprep.subr.bf16.mxu0 %v7423
    %7593 = vmatpush1.bf16.msra.mxu0 %v7422
    %7594 = vmatprep.subr.bf16.mxu0 %v7426
    %7595 = vmatpush1.bf16.msra.mxu0 %v7425
    %7596 = vmatprep.subr.bf16.mxu0 %v7429
    %7597 = vmatpush1.bf16.msra.mxu0 %v7428
    %7598 = vmatprep.subr.bf16.mxu0 %v7432
    %7599 = vmatpush1.bf16.msra.mxu0 %v7431
    %7600 = vmatprep.subr.bf16.mxu0 %v7435
    %7601 = vmatpush1.bf16.msra.mxu0 %v7434
    %7602 = vmatprep.subr.bf16.mxu0 %v7438
    %7603 = vmatpush1.bf16.msra.mxu0 %v7437
    %7604 = vmatprep.subr.bf16.mxu0 %v7441
    %7605 = vmatpush1.bf16.msra.mxu0 %v7440
    %7606 = vmatprep.subr.bf16.mxu0 %v7444
    %7607 = vmatpush1.bf16.msra.mxu0 %v7443
    %7608 = vmatprep.subr.bf16.mxu0 %v7447
    %7609 = vmatpush1.bf16.msra.mxu0 %v7446
    %7610 = vmatprep.subr.bf16.mxu0 %v7450
    %7611 = vmatpush1.bf16.msra.mxu0 %v7449
    %7612 = vmatprep.subr.bf16.mxu0 %v7453
    %7613 = vmatpush1.bf16.msra.mxu0 %v7452
    %7614 = vmatprep.subr.bf16.mxu0 0
    %7615 = vmatpush1.bf16.msra.mxu0 0
    %7616 = vmatprep.subr.bf16.mxu0 0
    %7617 = vmatpush1.bf16.msra.mxu0 0
    %7618 = vmatprep.subr.bf16.mxu0 0
    %7619 = vmatpush1.bf16.msra.mxu0 0
    %7620 = vmatprep.subr.bf16.mxu0 0
    %7621 = vmatpush1.bf16.msra.mxu0 0
    %7622 = vmatprep.mubr.bf16.mxu0 %v6766
    %7623 = vmatmul.mubr.bf16.gmra.mrb[0].mxu0 %v6305
    %v7624 = vpop.f32.mrb[0].mxu0
    %v7625 = vadd.f32 %v7574, %v7624
    %v7626 = vpop.f32.mrb[0].mxu0
    %v7627 = vadd.f32 %v7576, %v7626
    %v7628 = vpop.f32.mrb[0].mxu0
    %v7629 = vadd.f32 %v7578, %v7628
    %v7630 = vpop.f32.mrb[0].mxu0
    %v7631 = vadd.f32 %v7580, %v7630
    %7632 = vmatprep.mubr.bf16.mxu0 %v6769
    %7633 = vmatmul.mubr.bf16.gmra.mrb[0].mxu0 %v6309
    %v7634 = vpop.f32.mrb[0].mxu0
    %v7635 = vadd.f32 %v7584, %v7634
    %v7636 = vpop.f32.mrb[0].mxu0
    %v7637 = vadd.f32 %v7586, %v7636
    %v7638 = vpop.f32.mrb[0].mxu0
    %v7639 = vpop.f32.mrb[0].mxu0
    %7640 = vdwg.mxu0
    %7641 = vmatprep.subr.bf16.mxu0 0
    %7642 = vmatpush1.bf16.msra.mxu0 %v7373
    %7643 = vmatprep.subr.bf16.mxu0 0
    %7644 = vmatpush1.bf16.msra.mxu0 %v7376
    %7645 = vmatprep.subr.bf16.mxu0 0
    %7646 = vmatpush1.bf16.msra.mxu0 %v7379
    %7647 = vmatprep.subr.bf16.mxu0 0
    %7648 = vmatpush1.bf16.msra.mxu0 %v7382
    %7649 = vmatprep.subr.bf16.mxu0 0
    %7650 = vmatpush1.bf16.msra.mxu0 %v7385
    %7651 = vmatprep.subr.bf16.mxu0 0
    %7652 = vmatpush1.bf16.msra.mxu0 %v7388
    %7653 = vmatprep.subr.bf16.mxu0 0
    %7654 = vmatpush1.bf16.msra.mxu0 %v7391
    %7655 = vmatprep.subr.bf16.mxu0 0
    %7656 = vmatpush1.bf16.msra.mxu0 %v7394
    %7657 = vmatprep.subr.bf16.mxu0 0
    %7658 = vmatpush1.bf16.msra.mxu0 %v7397
    %7659 = vmatprep.subr.bf16.mxu0 0
    %7660 = vmatpush1.bf16.msra.mxu0 %v7400
    %7661 = vmatprep.subr.bf16.mxu0 0
    %7662 = vmatpush1.bf16.msra.mxu0 %v7403
    %7663 = vmatprep.subr.bf16.mxu0 0
    %7664 = vmatpush1.bf16.msra.mxu0 %v7406
    %7665 = vmatprep.subr.bf16.mxu0 0
    %7666 = vmatpush1.bf16.msra.mxu0 %v7409
    %7667 = vmatprep.subr.bf16.mxu0 0
    %7668 = vmatpush1.bf16.msra.mxu0 %v7412
    %7669 = vmatprep.subr.bf16.mxu0 0
    %7670 = vmatpush1.bf16.msra.mxu0 %v7415
    %7671 = vmatprep.subr.bf16.mxu0 0
    %7672 = vmatpush1.bf16.msra.mxu0 %v7418
    %7673 = vmatprep.mubr.bf16.mxu0 %v6304
    %7674 = vmatmul.mubr.bf16.gmra.mrb[0].mxu0 %v6303
    %v7675 = vpop.f32.mrb[0].mxu0
    %v7676 = vadd.f32 0.0, %v7675
    %v7677 = vpop.f32.mrb[0].mxu0
    %v7678 = vpop.f32.mrb[0].mxu0
    %v7679 = vadd.f32 0.0, %v7678
    %v7680 = vpop.f32.mrb[0].mxu0
    %7681 = vmatprep.mubr.bf16.mxu0 %v6308
    %7682 = vmatmul.mubr.bf16.gmra.mrb[0].mxu0 %v6307
    %v7683 = vpop.f32.mrb[0].mxu0
    %v7684 = vadd.f32 0.0, %v7683
    %v7685 = vpop.f32.mrb[0].mxu0
    %v7686 = vpop.f32.mrb[0].mxu0
    %v7687 = vpop.f32.mrb[0].mxu0
    %7688 = vdwg.mxu0
    %7689 = vmatprep.subr.bf16.mxu0 0
    %7690 = vmatpush1.bf16.msra.mxu0 %v7421
    %7691 = vmatprep.subr.bf16.mxu0 0
    %7692 = vmatpush1.bf16.msra.mxu0 %v7424
    %7693 = vmatprep.subr.bf16.mxu0 0
    %7694 = vmatpush1.bf16.msra.mxu0 %v7427
    %7695 = vmatprep.subr.bf16.mxu0 0
    %7696 = vmatpush1.bf16.msra.mxu0 %v7430
    %7697 = vmatprep.subr.bf16.mxu0 0
    %7698 = vmatpush1.bf16.msra.mxu0 %v7433
    %7699 = vmatprep.subr.bf16.mxu0 0
    %7700 = vmatpush1.bf16.msra.mxu0 %v7436
    %7701 = vmatprep.subr.bf16.mxu0 0
    %7702 = vmatpush1.bf16.msra.mxu0 %v7439
    %7703 = vmatprep.subr.bf16.mxu0 0
    %7704 = vmatpush1.bf16.msra.mxu0 %v7442
    %7705 = vmatprep.subr.bf16.mxu0 0
    %7706 = vmatpush1.bf16.msra.mxu0 %v7445
    %7707 = vmatprep.subr.bf16.mxu0 0
    %7708 = vmatpush1.bf16.msra.mxu0 %v7448
    %7709 = vmatprep.subr.bf16.mxu0 0
    %7710 = vmatpush1.bf16.msra.mxu0 %v7451
    %7711 = vmatprep.subr.bf16.mxu0 0
    %7712 = vmatpush1.bf16.msra.mxu0 %v7454
    %7713 = vmatprep.subr.bf16.mxu0 0
    %7714 = vmatpush1.bf16.msra.mxu0 0
    %7715 = vmatprep.subr.bf16.mxu0 0
    %7716 = vmatpush1.bf16.msra.mxu0 0
    %7717 = vmatprep.subr.bf16.mxu0 0
    %7718 = vmatpush1.bf16.msra.mxu0 0
    %7719 = vmatprep.subr.bf16.mxu0 0
    %7720 = vmatpush1.bf16.msra.mxu0 0
    %7721 = vmatprep.mubr.bf16.mxu0 %v6766
    %7722 = vmatmul.mubr.bf16.gmra.mrb[0].mxu0 %v6305
    %v7723 = vpop.f32.mrb[0].mxu0
    %v7724 = vadd.f32 %v7676, %v7723
    %v7725 = vpop.f32.mrb[0].mxu0
    %v7726 = vpop.f32.mrb[0].mxu0
    %v7727 = vadd.f32 %v7679, %v7726
    %v7728 = vpop.f32.mrb[0].mxu0
    %7729 = vmatprep.mubr.bf16.mxu0 %v6769
    %7730 = vmatmul.mubr.bf16.gmra.mrb[0].mxu0 %v6309
    %v7731 = vpop.f32.mrb[0].mxu0
    %v7732 = vadd.f32 %v7684, %v7731
    %v7733 = vpop.f32.mrb[0].mxu0
    %v7734 = vpop.f32.mrb[0].mxu0
    %v7735 = vpop.f32.mrb[0].mxu0
    %7736 = vdwg.mxu0
    %v7737 = vadd.f32 %v5978, %v7625
    %v7738 = vadd.f32 %v5980, %v7627
    %v7739 = vadd.f32 %v6077, %v7724
    %v7740 = vadd.f32 %v5982, %v7629
    %v7741 = vadd.f32 %v5984, %v7631
    %v7742 = vadd.f32 %v6080, %v7727
    %v7743 = vadd.f32 %v5988, %v7635
    %v7744 = vadd.f32 %v5990, %v7637
    %v7745 = vadd.f32 %v6085, %v7732
    %v7746 = vmax.f32 %v6969, %v7737
    %v7747 = vmax.f32 %v6970, %v7738
    %v7748 = vmax.f32 %v6971, %v7739
    %v7749 = vmax.f32 %v6972, %v7740
    %v7750 = vmax.f32 %v6973, %v7741
    %v7751 = vmax.f32 %v6974, %v7742
    %v7752 = vmax.f32 %v6975, %v7743
    %v7753 = vmax.f32 %v6976, %v7744
    %v7754 = vmax.f32 %v6977, %v7745
    %v7755 = vld [vmem:[#allocation13] sm:$0x7]
    %v7757 = vlaneseq
    %v7758 = vshrl.u32 %v7757, 7
    %v7759 = vsub.s32 0, %v7758
    %v7760 = vrot.slane %v7755, %v7759
    %v7761 = vlaneseq
    %v7762 = vshrl.u32 %v7761, 7
    %v7763 = vsub.s32 1, %v7762
    %v7764 = vrot.slane %v7755, %v7763
    %v7765 = vlaneseq
    %v7766 = vshrl.u32 %v7765, 7
    %v7767 = vsub.s32 2, %v7766
    %v7768 = vrot.slane %v7755, %v7767
    %v7772 = vadd.f32 %v7746, %v7760
    %v7773 = vadd.f32 %v7747, %v7764
    %v7774 = vadd.f32 %v7748, %v7768
    %v7775 = vadd.f32 %v7749, %v7760
    %v7776 = vadd.f32 %v7750, %v7764
    %v7777 = vadd.f32 %v7751, %v7768
    %v7778 = vadd.f32 %v7752, %v7760
    %v7779 = vadd.f32 %v7753, %v7764
    %v7780 = vadd.f32 %v7754, %v7768
    %v7781 = vmax.f32 %v7772, 0.0
    %v7782 = vmax.f32 %v7773, 0.0
    %v7783 = vmax.f32 %v7774, 0.0
    %v7784 = vmax.f32 %v7775, 0.0
    %v7785 = vmax.f32 %v7776, 0.0
    %v7786 = vmax.f32 %v7777, 0.0
    %v7787 = vmax.f32 %v7778, 0.0
    %v7788 = vmax.f32 %v7779, 0.0
    %v7789 = vmax.f32 %v7780, 0.0
    %v7799 = vcombine.low %v7781, %v7782
    %v7800 = vcombine.high %v7781, %v7782
    %v7801 = vcombine.high %v7783, %v7783
    %v7803 = vunpack.c.l.s4 1983009808
    %v7804 = vunpack.c.0.s8 %v7803
    %v7805 = vlaneseq
    %v7806 = vshrl.u32 %v7805, 7
    %v7807 = vsub.s32 %v7804, %v7806
    %v7808 = vrot.slane %v7799, %v7807
    %v7810 = vunpack.c.l.s4 1983009808
    %v7811 = vunpack.c.0.s8 %v7810
    %v7812 = vlaneseq
    %v7813 = vshrl.u32 %v7812, 7
    %v7814 = vsub.s32 %v7811, %v7813
    %v7815 = vrot.slane %v7800, %v7814
    %v7817 = vunpack.c.l.s4 1983009808
    %v7818 = vunpack.c.0.s8 %v7817
    %v7819 = vlaneseq
    %v7820 = vshrl.u32 %v7819, 7
    %v7821 = vsub.s32 %v7818, %v7820
    %v7822 = vrot.slane %v7783, %v7821
    %v7824 = vunpack.c.l.s4 1983009808
    %v7825 = vunpack.c.0.s8 %v7824
    %v7826 = vlaneseq
    %v7827 = vshrl.u32 %v7826, 7
    %v7828 = vsub.s32 %v7825, %v7827
    %v7829 = vrot.slane %v7801, %v7828
    %v7830 = vcombine.low %v7808, %v7822
    %v7831 = vcombine.high %v7808, %v7822
    %v7832 = vcombine.low %v7815, %v7829
    %v7833 = vcombine.high %v7815, %v7829
    %v7834 = vcombine.low %v7784, %v7785
    %v7835 = vcombine.high %v7784, %v7785
    %v7836 = vcombine.high %v7786, %v7786
    %v7838 = vunpack.c.l.s4 1983009808
    %v7839 = vunpack.c.0.s8 %v7838
    %v7840 = vlaneseq
    %v7841 = vshrl.u32 %v7840, 7
    %v7842 = vsub.s32 %v7839, %v7841
    %v7843 = vrot.slane %v7834, %v7842
    %v7845 = vunpack.c.l.s4 1983009808
    %v7846 = vunpack.c.0.s8 %v7845
    %v7847 = vlaneseq
    %v7848 = vshrl.u32 %v7847, 7
    %v7849 = vsub.s32 %v7846, %v7848
    %v7850 = vrot.slane %v7835, %v7849
    %v7852 = vunpack.c.l.s4 1983009808
    %v7853 = vunpack.c.0.s8 %v7852
    %v7854 = vlaneseq
    %v7855 = vshrl.u32 %v7854, 7
    %v7856 = vsub.s32 %v7853, %v7855
    %v7857 = vrot.slane %v7786, %v7856
    %v7859 = vunpack.c.l.s4 1983009808
    %v7860 = vunpack.c.0.s8 %v7859
    %v7861 = vlaneseq
    %v7862 = vshrl.u32 %v7861, 7
    %v7863 = vsub.s32 %v7860, %v7862
    %v7864 = vrot.slane %v7836, %v7863
    %v7865 = vcombine.low %v7843, %v7857
    %v7866 = vcombine.high %v7843, %v7857
    %v7867 = vcombine.low %v7850, %v7864
    %v7868 = vcombine.high %v7850, %v7864
    %v7869 = vcombine.low %v7787, %v7788
    %v7870 = vcombine.high %v7787, %v7788
    %v7871 = vcombine.high %v7789, %v7789
    %v7873 = vunpack.c.l.s4 1983009808
    %v7874 = vunpack.c.0.s8 %v7873
    %v7875 = vlaneseq
    %v7876 = vshrl.u32 %v7875, 7
    %v7877 = vsub.s32 %v7874, %v7876
    %v7878 = vrot.slane %v7869, %v7877
    %v7880 = vunpack.c.l.s4 1983009808
    %v7881 = vunpack.c.0.s8 %v7880
    %v7882 = vlaneseq
    %v7883 = vshrl.u32 %v7882, 7
    %v7884 = vsub.s32 %v7881, %v7883
    %v7885 = vrot.slane %v7870, %v7884
    %v7887 = vunpack.c.l.s4 1983009808
    %v7888 = vunpack.c.0.s8 %v7887
    %v7889 = vlaneseq
    %v7890 = vshrl.u32 %v7889, 7
    %v7891 = vsub.s32 %v7888, %v7890
    %v7892 = vrot.slane %v7789, %v7891
    %v7894 = vunpack.c.l.s4 1983009808
    %v7895 = vunpack.c.0.s8 %v7894
    %v7896 = vlaneseq
    %v7897 = vshrl.u32 %v7896, 7
    %v7898 = vsub.s32 %v7895, %v7897
    %v7899 = vrot.slane %v7871, %v7898
    %v7900 = vcombine.low %v7878, %v7892
    %v7901 = vcombine.high %v7878, %v7892
    %v7902 = vcombine.low %v7885, %v7899
    %v7903 = vcombine.high %v7885, %v7899
    %v7904 = vcombine.high %v7830, %v7830
    %v7906 = vunpack.c.l.s4 1983009808
    %v7907 = vunpack.c.0.s8 %v7906
    %v7908 = vlaneseq
    %v7909 = vshrl.u32 %v7908, 7
    %v7910 = vsub.s32 %v7907, %v7909
    %v7911 = vrot.slane %v7830, %v7910
    %v7913 = vunpack.c.l.s4 1983009808
    %v7914 = vunpack.c.0.s8 %v7913
    %v7915 = vlaneseq
    %v7916 = vshrl.u32 %v7915, 7
    %v7917 = vsub.s32 %v7914, %v7916
    %v7918 = vrot.slane %v7904, %v7917
    %v7919 = vcombine.high %v7911, %v7911
    %v7920 = vcombine.high %v7831, %v7831
    %v7922 = vunpack.c.l.s4 1983009808
    %v7923 = vunpack.c.0.s8 %v7922
    %v7924 = vlaneseq
    %v7925 = vshrl.u32 %v7924, 7
    %v7926 = vsub.s32 %v7923, %v7925
    %v7927 = vrot.slane %v7831, %v7926
    %v7929 = vunpack.c.l.s4 1983009808
    %v7930 = vunpack.c.0.s8 %v7929
    %v7931 = vlaneseq
    %v7932 = vshrl.u32 %v7931, 7
    %v7933 = vsub.s32 %v7930, %v7932
    %v7934 = vrot.slane %v7920, %v7933
    %v7935 = vcombine.high %v7927, %v7927
    %v7936 = vcombine.high %v7832, %v7832
    %v7938 = vunpack.c.l.s4 1983009808
    %v7939 = vunpack.c.0.s8 %v7938
    %v7940 = vlaneseq
    %v7941 = vshrl.u32 %v7940, 7
    %v7942 = vsub.s32 %v7939, %v7941
    %v7943 = vrot.slane %v7832, %v7942
    %v7945 = vunpack.c.l.s4 1983009808
    %v7946 = vunpack.c.0.s8 %v7945
    %v7947 = vlaneseq
    %v7948 = vshrl.u32 %v7947, 7
    %v7949 = vsub.s32 %v7946, %v7948
    %v7950 = vrot.slane %v7936, %v7949
    %v7951 = vcombine.high %v7943, %v7943
    %v7952 = vcombine.high %v7833, %v7833
    %v7954 = vunpack.c.l.s4 1983009808
    %v7955 = vunpack.c.0.s8 %v7954
    %v7956 = vlaneseq
    %v7957 = vshrl.u32 %v7956, 7
    %v7958 = vsub.s32 %v7955, %v7957
    %v7959 = vrot.slane %v7833, %v7958
    %v7961 = vunpack.c.l.s4 1983009808
    %v7962 = vunpack.c.0.s8 %v7961
    %v7963 = vlaneseq
    %v7964 = vshrl.u32 %v7963, 7
    %v7965 = vsub.s32 %v7962, %v7964
    %v7966 = vrot.slane %v7952, %v7965
    %v7967 = vcombine.high %v7959, %v7959
    %v7968 = vcombine.high %v7865, %v7865
    %v7970 = vunpack.c.l.s4 1983009808
    %v7971 = vunpack.c.0.s8 %v7970
    %v7972 = vlaneseq
    %v7973 = vshrl.u32 %v7972, 7
    %v7974 = vsub.s32 %v7971, %v7973
    %v7975 = vrot.slane %v7865, %v7974
    %v7977 = vunpack.c.l.s4 1983009808
    %v7978 = vunpack.c.0.s8 %v7977
    %v7979 = vlaneseq
    %v7980 = vshrl.u32 %v7979, 7
    %v7981 = vsub.s32 %v7978, %v7980
    %v7982 = vrot.slane %v7968, %v7981
    %v7983 = vcombine.high %v7975, %v7975
    %v7984 = vcombine.high %v7866, %v7866
    %v7986 = vunpack.c.l.s4 1983009808
    %v7987 = vunpack.c.0.s8 %v7986
    %v7988 = vlaneseq
    %v7989 = vshrl.u32 %v7988, 7
    %v7990 = vsub.s32 %v7987, %v7989
    %v7991 = vrot.slane %v7866, %v7990
    %v7993 = vunpack.c.l.s4 1983009808
    %v7994 = vunpack.c.0.s8 %v7993
    %v7995 = vlaneseq
    %v7996 = vshrl.u32 %v7995, 7
    %v7997 = vsub.s32 %v7994, %v7996
    %v7998 = vrot.slane %v7984, %v7997
    %v7999 = vcombine.high %v7991, %v7991
    %v8000 = vcombine.high %v7867, %v7867
    %v8002 = vunpack.c.l.s4 1983009808
    %v8003 = vunpack.c.0.s8 %v8002
    %v8004 = vlaneseq
    %v8005 = vshrl.u32 %v8004, 7
    %v8006 = vsub.s32 %v8003, %v8005
    %v8007 = vrot.slane %v7867, %v8006
    %v8009 = vunpack.c.l.s4 1983009808
    %v8010 = vunpack.c.0.s8 %v8009
    %v8011 = vlaneseq
    %v8012 = vshrl.u32 %v8011, 7
    %v8013 = vsub.s32 %v8010, %v8012
    %v8014 = vrot.slane %v8000, %v8013
    %v8015 = vcombine.high %v8007, %v8007
    %v8016 = vcombine.high %v7868, %v7868
    %v8018 = vunpack.c.l.s4 1983009808
    %v8019 = vunpack.c.0.s8 %v8018
    %v8020 = vlaneseq
    %v8021 = vshrl.u32 %v8020, 7
    %v8022 = vsub.s32 %v8019, %v8021
    %v8023 = vrot.slane %v7868, %v8022
    %v8025 = vunpack.c.l.s4 1983009808
    %v8026 = vunpack.c.0.s8 %v8025
    %v8027 = vlaneseq
    %v8028 = vshrl.u32 %v8027, 7
    %v8029 = vsub.s32 %v8026, %v8028
    %v8030 = vrot.slane %v8016, %v8029
    %v8031 = vcombine.high %v8023, %v8023
    %v8032 = vcombine.high %v7900, %v7900
    %v8034 = vunpack.c.l.s4 1983009808
    %v8035 = vunpack.c.0.s8 %v8034
    %v8036 = vlaneseq
    %v8037 = vshrl.u32 %v8036, 7
    %v8038 = vsub.s32 %v8035, %v8037
    %v8039 = vrot.slane %v7900, %v8038
    %v8041 = vunpack.c.l.s4 1983009808
    %v8042 = vunpack.c.0.s8 %v8041
    %v8043 = vlaneseq
    %v8044 = vshrl.u32 %v8043, 7
    %v8045 = vsub.s32 %v8042, %v8044
    %v8046 = vrot.slane %v8032, %v8045
    %v8047 = vcombine.high %v8039, %v8039
    %v8048 = vcombine.high %v7901, %v7901
    %v8050 = vunpack.c.l.s4 1983009808
    %v8051 = vunpack.c.0.s8 %v8050
    %v8052 = vlaneseq
    %v8053 = vshrl.u32 %v8052, 7
    %v8054 = vsub.s32 %v8051, %v8053
    %v8055 = vrot.slane %v7901, %v8054
    %v8057 = vunpack.c.l.s4 1983009808
    %v8058 = vunpack.c.0.s8 %v8057
    %v8059 = vlaneseq
    %v8060 = vshrl.u32 %v8059, 7
    %v8061 = vsub.s32 %v8058, %v8060
    %v8062 = vrot.slane %v8048, %v8061
    %v8063 = vcombine.high %v8055, %v8055
    %v8064 = vcombine.high %v7902, %v7902
    %v8066 = vunpack.c.l.s4 1983009808
    %v8067 = vunpack.c.0.s8 %v8066
    %v8068 = vlaneseq
    %v8069 = vshrl.u32 %v8068, 7
    %v8070 = vsub.s32 %v8067, %v8069
    %v8071 = vrot.slane %v7902, %v8070
    %v8073 = vunpack.c.l.s4 1983009808
    %v8074 = vunpack.c.0.s8 %v8073
    %v8075 = vlaneseq
    %v8076 = vshrl.u32 %v8075, 7
    %v8077 = vsub.s32 %v8074, %v8076
    %v8078 = vrot.slane %v8064, %v8077
    %v8079 = vcombine.high %v8071, %v8071
    %v8080 = vcombine.high %v7903, %v7903
    %v8082 = vunpack.c.l.s4 1983009808
    %v8083 = vunpack.c.0.s8 %v8082
    %v8084 = vlaneseq
    %v8085 = vshrl.u32 %v8084, 7
    %v8086 = vsub.s32 %v8083, %v8085
    %v8087 = vrot.slane %v7903, %v8086
    %v8089 = vunpack.c.l.s4 1983009808
    %v8090 = vunpack.c.0.s8 %v8089
    %v8091 = vlaneseq
    %v8092 = vshrl.u32 %v8091, 7
    %v8093 = vsub.s32 %v8090, %v8092
    %v8094 = vrot.slane %v8080, %v8093
    %v8095 = vcombine.high %v8087, %v8087
    %v8132 = vsel %vm320, %v7911, -inf
    %v8133 = vrot.slane %v8132, 4
    %v8134 = vmax.f32 %v8132, %v8133
    %v8135 = vrot.slane %v8134, 2
    %v8136 = vmax.f32 %v8134, %v8135
    %v8137 = vrot.slane %v8136, 1
    %v8138 = vmax.f32 %v8136, %v8137
    %v8139 = vsel %vm320, %v7919, -inf
    %v8140 = vrot.slane %v8139, 4
    %v8141 = vmax.f32 %v8139, %v8140
    %v8142 = vrot.slane %v8141, 2
    %v8143 = vmax.f32 %v8141, %v8142
    %v8144 = vrot.slane %v8143, 1
    %v8145 = vmax.f32 %v8143, %v8144
    %v8146 = vsel %vm320, %v7918, -inf
    %v8147 = vrot.slane %v8146, 4
    %v8148 = vmax.f32 %v8146, %v8147
    %v8149 = vrot.slane %v8148, 2
    %v8150 = vmax.f32 %v8148, %v8149
    %v8151 = vrot.slane %v8150, 1
    %v8152 = vmax.f32 %v8150, %v8151
    %v8153 = vsel %vm320, %v7927, -inf
    %v8154 = vrot.slane %v8153, 4
    %v8155 = vmax.f32 %v8153, %v8154
    %v8156 = vrot.slane %v8155, 2
    %v8157 = vmax.f32 %v8155, %v8156
    %v8158 = vrot.slane %v8157, 1
    %v8159 = vmax.f32 %v8157, %v8158
    %v8160 = vsel %vm320, %v7935, -inf
    %v8161 = vrot.slane %v8160, 4
    %v8162 = vmax.f32 %v8160, %v8161
    %v8163 = vrot.slane %v8162, 2
    %v8164 = vmax.f32 %v8162, %v8163
    %v8165 = vrot.slane %v8164, 1
    %v8166 = vmax.f32 %v8164, %v8165
    %v8167 = vsel %vm320, %v7934, -inf
    %v8168 = vrot.slane %v8167, 4
    %v8169 = vmax.f32 %v8167, %v8168
    %v8170 = vrot.slane %v8169, 2
    %v8171 = vmax.f32 %v8169, %v8170
    %v8172 = vrot.slane %v8171, 1
    %v8173 = vmax.f32 %v8171, %v8172
    %v8174 = vsel %vm320, %v7943, -inf
    %v8175 = vrot.slane %v8174, 4
    %v8176 = vmax.f32 %v8174, %v8175
    %v8177 = vrot.slane %v8176, 2
    %v8178 = vmax.f32 %v8176, %v8177
    %v8179 = vrot.slane %v8178, 1
    %v8180 = vmax.f32 %v8178, %v8179
    %v8181 = vsel %vm320, %v7951, -inf
    %v8182 = vrot.slane %v8181, 4
    %v8183 = vmax.f32 %v8181, %v8182
    %v8184 = vrot.slane %v8183, 2
    %v8185 = vmax.f32 %v8183, %v8184
    %v8186 = vrot.slane %v8185, 1
    %v8187 = vmax.f32 %v8185, %v8186
    %v8188 = vsel %vm320, %v7950, -inf
    %v8189 = vrot.slane %v8188, 4
    %v8190 = vmax.f32 %v8188, %v8189
    %v8191 = vrot.slane %v8190, 2
    %v8192 = vmax.f32 %v8190, %v8191
    %v8193 = vrot.slane %v8192, 1
    %v8194 = vmax.f32 %v8192, %v8193
    %v8195 = vsel %vm320, %v7959, -inf
    %v8196 = vrot.slane %v8195, 4
    %v8197 = vmax.f32 %v8195, %v8196
    %v8198 = vrot.slane %v8197, 2
    %v8199 = vmax.f32 %v8197, %v8198
    %v8200 = vrot.slane %v8199, 1
    %v8201 = vmax.f32 %v8199, %v8200
    %v8202 = vsel %vm320, %v7967, -inf
    %v8203 = vrot.slane %v8202, 4
    %v8204 = vmax.f32 %v8202, %v8203
    %v8205 = vrot.slane %v8204, 2
    %v8206 = vmax.f32 %v8204, %v8205
    %v8207 = vrot.slane %v8206, 1
    %v8208 = vmax.f32 %v8206, %v8207
    %v8209 = vsel %vm320, %v7966, -inf
    %v8210 = vrot.slane %v8209, 4
    %v8211 = vmax.f32 %v8209, %v8210
    %v8212 = vrot.slane %v8211, 2
    %v8213 = vmax.f32 %v8211, %v8212
    %v8214 = vrot.slane %v8213, 1
    %v8215 = vmax.f32 %v8213, %v8214
    %v8216 = vsel %vm320, %v7975, -inf
    %v8217 = vrot.slane %v8216, 4
    %v8218 = vmax.f32 %v8216, %v8217
    %v8219 = vrot.slane %v8218, 2
    %v8220 = vmax.f32 %v8218, %v8219
    %v8221 = vrot.slane %v8220, 1
    %v8222 = vmax.f32 %v8220, %v8221
    %v8223 = vsel %vm320, %v7983, -inf
    %v8224 = vrot.slane %v8223, 4
    %v8225 = vmax.f32 %v8223, %v8224
    %v8226 = vrot.slane %v8225, 2
    %v8227 = vmax.f32 %v8225, %v8226
    %v8228 = vrot.slane %v8227, 1
    %v8229 = vmax.f32 %v8227, %v8228
    %v8230 = vsel %vm320, %v7982, -inf
    %v8231 = vrot.slane %v8230, 4
    %v8232 = vmax.f32 %v8230, %v8231
    %v8233 = vrot.slane %v8232, 2
    %v8234 = vmax.f32 %v8232, %v8233
    %v8235 = vrot.slane %v8234, 1
    %v8236 = vmax.f32 %v8234, %v8235
    %v8237 = vsel %vm320, %v7991, -inf
    %v8238 = vrot.slane %v8237, 4
    %v8239 = vmax.f32 %v8237, %v8238
    %v8240 = vrot.slane %v8239, 2
    %v8241 = vmax.f32 %v8239, %v8240
    %v8242 = vrot.slane %v8241, 1
    %v8243 = vmax.f32 %v8241, %v8242
    %v8244 = vsel %vm320, %v7999, -inf
    %v8245 = vrot.slane %v8244, 4
    %v8246 = vmax.f32 %v8244, %v8245
    %v8247 = vrot.slane %v8246, 2
    %v8248 = vmax.f32 %v8246, %v8247
    %v8249 = vrot.slane %v8248, 1
    %v8250 = vmax.f32 %v8248, %v8249
    %v8251 = vsel %vm320, %v7998, -inf
    %v8252 = vrot.slane %v8251, 4
    %v8253 = vmax.f32 %v8251, %v8252
    %v8254 = vrot.slane %v8253, 2
    %v8255 = vmax.f32 %v8253, %v8254
    %v8256 = vrot.slane %v8255, 1
    %v8257 = vmax.f32 %v8255, %v8256
    %v8258 = vsel %vm320, %v8007, -inf
    %v8259 = vrot.slane %v8258, 4
    %v8260 = vmax.f32 %v8258, %v8259
    %v8261 = vrot.slane %v8260, 2
    %v8262 = vmax.f32 %v8260, %v8261
    %v8263 = vrot.slane %v8262, 1
    %v8264 = vmax.f32 %v8262, %v8263
    %v8265 = vsel %vm320, %v8015, -inf
    %v8266 = vrot.slane %v8265, 4
    %v8267 = vmax.f32 %v8265, %v8266
    %v8268 = vrot.slane %v8267, 2
    %v8269 = vmax.f32 %v8267, %v8268
    %v8270 = vrot.slane %v8269, 1
    %v8271 = vmax.f32 %v8269, %v8270
    %v8272 = vsel %vm320, %v8014, -inf
    %v8273 = vrot.slane %v8272, 4
    %v8274 = vmax.f32 %v8272, %v8273
    %v8275 = vrot.slane %v8274, 2
    %v8276 = vmax.f32 %v8274, %v8275
    %v8277 = vrot.slane %v8276, 1
    %v8278 = vmax.f32 %v8276, %v8277
    %v8279 = vsel %vm320, %v8023, -inf
    %v8280 = vrot.slane %v8279, 4
    %v8281 = vmax.f32 %v8279, %v8280
    %v8282 = vrot.slane %v8281, 2
    %v8283 = vmax.f32 %v8281, %v8282
    %v8284 = vrot.slane %v8283, 1
    %v8285 = vmax.f32 %v8283, %v8284
    %v8286 = vsel %vm320, %v8031, -inf
    %v8287 = vrot.slane %v8286, 4
    %v8288 = vmax.f32 %v8286, %v8287
    %v8289 = vrot.slane %v8288, 2
    %v8290 = vmax.f32 %v8288, %v8289
    %v8291 = vrot.slane %v8290, 1
    %v8292 = vmax.f32 %v8290, %v8291
    %v8293 = vsel %vm320, %v8030, -inf
    %v8294 = vrot.slane %v8293, 4
    %v8295 = vmax.f32 %v8293, %v8294
    %v8296 = vrot.slane %v8295, 2
    %v8297 = vmax.f32 %v8295, %v8296
    %v8298 = vrot.slane %v8297, 1
    %v8299 = vmax.f32 %v8297, %v8298
    %v8300 = vsel %vm320, %v8039, -inf
    %v8301 = vrot.slane %v8300, 4
    %v8302 = vmax.f32 %v8300, %v8301
    %v8303 = vrot.slane %v8302, 2
    %v8304 = vmax.f32 %v8302, %v8303
    %v8305 = vrot.slane %v8304, 1
    %v8306 = vmax.f32 %v8304, %v8305
    %v8307 = vsel %vm320, %v8047, -inf
    %v8308 = vrot.slane %v8307, 4
    %v8309 = vmax.f32 %v8307, %v8308
    %v8310 = vrot.slane %v8309, 2
    %v8311 = vmax.f32 %v8309, %v8310
    %v8312 = vrot.slane %v8311, 1
    %v8313 = vmax.f32 %v8311, %v8312
    %v8314 = vsel %vm320, %v8046, -inf
    %v8315 = vrot.slane %v8314, 4
    %v8316 = vmax.f32 %v8314, %v8315
    %v8317 = vrot.slane %v8316, 2
    %v8318 = vmax.f32 %v8316, %v8317
    %v8319 = vrot.slane %v8318, 1
    %v8320 = vmax.f32 %v8318, %v8319
    %v8321 = vsel %vm320, %v8055, -inf
    %v8322 = vrot.slane %v8321, 4
    %v8323 = vmax.f32 %v8321, %v8322
    %v8324 = vrot.slane %v8323, 2
    %v8325 = vmax.f32 %v8323, %v8324
    %v8326 = vrot.slane %v8325, 1
    %v8327 = vmax.f32 %v8325, %v8326
    %v8328 = vsel %vm320, %v8063, -inf
    %v8329 = vrot.slane %v8328, 4
    %v8330 = vmax.f32 %v8328, %v8329
    %v8331 = vrot.slane %v8330, 2
    %v8332 = vmax.f32 %v8330, %v8331
    %v8333 = vrot.slane %v8332, 1
    %v8334 = vmax.f32 %v8332, %v8333
    %v8335 = vsel %vm320, %v8062, -inf
    %v8336 = vrot.slane %v8335, 4
    %v8337 = vmax.f32 %v8335, %v8336
    %v8338 = vrot.slane %v8337, 2
    %v8339 = vmax.f32 %v8337, %v8338
    %v8340 = vrot.slane %v8339, 1
    %v8341 = vmax.f32 %v8339, %v8340
    %v8342 = vsel %vm320, %v8071, -inf
    %v8343 = vrot.slane %v8342, 4
    %v8344 = vmax.f32 %v8342, %v8343
    %v8345 = vrot.slane %v8344, 2
    %v8346 = vmax.f32 %v8344, %v8345
    %v8347 = vrot.slane %v8346, 1
    %v8348 = vmax.f32 %v8346, %v8347
    %v8349 = vsel %vm320, %v8079, -inf
    %v8350 = vrot.slane %v8349, 4
    %v8351 = vmax.f32 %v8349, %v8350
    %v8352 = vrot.slane %v8351, 2
    %v8353 = vmax.f32 %v8351, %v8352
    %v8354 = vrot.slane %v8353, 1
    %v8355 = vmax.f32 %v8353, %v8354
    %v8356 = vsel %vm320, %v8078, -inf
    %v8357 = vrot.slane %v8356, 4
    %v8358 = vmax.f32 %v8356, %v8357
    %v8359 = vrot.slane %v8358, 2
    %v8360 = vmax.f32 %v8358, %v8359
    %v8361 = vrot.slane %v8360, 1
    %v8362 = vmax.f32 %v8360, %v8361
    %v8363 = vsel %vm320, %v8087, -inf
    %v8364 = vrot.slane %v8363, 4
    %v8365 = vmax.f32 %v8363, %v8364
    %v8366 = vrot.slane %v8365, 2
    %v8367 = vmax.f32 %v8365, %v8366
    %v8368 = vrot.slane %v8367, 1
    %v8369 = vmax.f32 %v8367, %v8368
    %v8370 = vsel %vm320, %v8095, -inf
    %v8371 = vrot.slane %v8370, 4
    %v8372 = vmax.f32 %v8370, %v8371
    %v8373 = vrot.slane %v8372, 2
    %v8374 = vmax.f32 %v8372, %v8373
    %v8375 = vrot.slane %v8374, 1
    %v8376 = vmax.f32 %v8374, %v8375
    %v8377 = vsel %vm320, %v8094, -inf
    %v8378 = vrot.slane %v8377, 4
    %v8379 = vmax.f32 %v8377, %v8378
    %v8380 = vrot.slane %v8379, 2
    %v8381 = vmax.f32 %v8379, %v8380
    %v8382 = vrot.slane %v8381, 1
    %v8383 = vmax.f32 %v8381, %v8382
    %v8384 = vld [vmem:[#allocation14] sm:$0xff]
    %v8385 = vld [vmem:[#allocation14 + $0x8] sm:$0xff]
    %v8386 = vld [vmem:[#allocation14 + $0x10] sm:$0xff]
    %v8387 = vld [vmem:[#allocation14 + $0x18] sm:$0xff]
    %v8388 = vld [vmem:[#allocation14 + $0x20] sm:$0xff]
    %v8389 = vld [vmem:[#allocation14 + $0x28] sm:$0xff]
    %v8390 = vld [vmem:[#allocation14 + $0x30] sm:$0xff]
    %v8391 = vld [vmem:[#allocation14 + $0x38] sm:$0xff]
    %v8392 = vld [vmem:[#allocation14 + $0x40] sm:$0xff]
    %v8393 = vld [vmem:[#allocation14 + $0x48] sm:$0xff]
    %v8394 = vld [vmem:[#allocation14 + $0x50] sm:$0xff]
    %v8395 = vld [vmem:[#allocation14 + $0x58] sm:$0xff]
    %v8396 = vld [vmem:[#allocation14 + $0x60] sm:$0xff]
    %v8397 = vld [vmem:[#allocation14 + $0x68] sm:$0xff]
    %v8398 = vld [vmem:[#allocation14 + $0x70] sm:$0xff]
    %v8399 = vld [vmem:[#allocation14 + $0x78] sm:$0xff]
    %v8400 = vld [vmem:[#allocation14 + $0x80] sm:$0xff]
    %v8401 = vld [vmem:[#allocation14 + $0x88] sm:$0xff]
    %v8402 = vld [vmem:[#allocation14 + $0x90] sm:$0xff]
    %v8403 = vld [vmem:[#allocation14 + $0x98] sm:$0xff]
    %v8404 = vld [vmem:[#allocation14 + $0xa0] sm:$0xff]
    %v8405 = vld [vmem:[#allocation14 + $0xa8] sm:$0xff]
    %v8406 = vld [vmem:[#allocation14 + $0xb0] sm:$0xff]
    %v8407 = vld [vmem:[#allocation14 + $0xb8] sm:$0xff]
    %v8408 = vld [vmem:[#allocation14 + $0xc0] sm:$0xff]
    %v8409 = vld [vmem:[#allocation14 + $0xc8] sm:$0xff]
    %v8410 = vld [vmem:[#allocation14 + $0xd0] sm:$0xff]
    %v8411 = vld [vmem:[#allocation14 + $0xd8] sm:$0xff]
    %v8412 = vld [vmem:[#allocation14 + $0xe0] sm:$0xff]
    %v8413 = vld [vmem:[#allocation14 + $0xe8] sm:$0xff]
    %v8414 = vld [vmem:[#allocation14 + $0xf0] sm:$0xff]
    %v8415 = vld [vmem:[#allocation14 + $0xf8] sm:$0xff]
    %v8416 = vld [vmem:[#allocation14 + $0x100] sm:$0xff]
    %v8417 = vld [vmem:[#allocation14 + $0x108] sm:$0xff]
    %v8418 = vld [vmem:[#allocation14 + $0x110] sm:$0xff]
    %v8419 = vld [vmem:[#allocation14 + $0x118] sm:$0xff]
    %v8420 = vld [vmem:[#allocation14 + $0x120] sm:$0xff]
    %v8421 = vld [vmem:[#allocation14 + $0x128] sm:$0xff]
    %v8422 = vld [vmem:[#allocation14 + $0x130] sm:$0xff]
    %v8423 = vld [vmem:[#allocation14 + $0x138] sm:$0xff]
    %v8424 = vld [vmem:[#allocation14 + $0x140] sm:$0xff]
    %v8425 = vld [vmem:[#allocation14 + $0x148] sm:$0xff]
    %v8426 = vld [vmem:[#allocation14 + $0x150] sm:$0xff]
    %v8427 = vld [vmem:[#allocation14 + $0x158] sm:$0xff]
    %v8428 = vld [vmem:[#allocation14 + $0x160] sm:$0xff]
    %v8429 = vld [vmem:[#allocation14 + $0x168] sm:$0xff]
    %v8430 = vld [vmem:[#allocation14 + $0x170] sm:$0xff]
    %v8431 = vld [vmem:[#allocation14 + $0x178] sm:$0xff]
    %s8432 = scalar_lea.vmem [#allocation14], 384
    %v8433 = vld [vmem:[%s8432] sm:$0xff]
    %v8434 = vld [vmem:[%s8432 + $0x8] sm:$0xff]
    %v8435 = vld [vmem:[%s8432 + $0x10] sm:$0xff]
    %v8436 = vld [vmem:[%s8432 + $0x18] sm:$0xff]
    %v8437 = vld [vmem:[%s8432 + $0x20] sm:$0xff]
    %v8438 = vld [vmem:[%s8432 + $0x28] sm:$0xff]
    %v8439 = vld [vmem:[%s8432 + $0x30] sm:$0xff]
    %v8440 = vld [vmem:[%s8432 + $0x38] sm:$0xff]
    %v8441 = vld [vmem:[%s8432 + $0x40] sm:$0xff]
    %v8442 = vld [vmem:[%s8432 + $0x48] sm:$0xff]
    %v8443 = vld [vmem:[%s8432 + $0x50] sm:$0xff]
    %v8444 = vld [vmem:[%s8432 + $0x58] sm:$0xff]
    %v8445 = vld [vmem:[%s8432 + $0x60] sm:$0xff]
    %v8446 = vld [vmem:[%s8432 + $0x68] sm:$0xff]
    %v8447 = vld [vmem:[%s8432 + $0x70] sm:$0xff]
    %v8448 = vld [vmem:[%s8432 + $0x78] sm:$0xff]
    %v8449 = vld [vmem:[%s8432 + $0x80] sm:$0xff]
    %v8450 = vld [vmem:[%s8432 + $0x88] sm:$0xff]
    %v8451 = vld [vmem:[%s8432 + $0x90] sm:$0xff]
    %v8452 = vld [vmem:[%s8432 + $0x98] sm:$0xff]
    %v8453 = vld [vmem:[%s8432 + $0xa0] sm:$0xff]
    %v8454 = vld [vmem:[%s8432 + $0xa8] sm:$0xff]
    %v8455 = vld [vmem:[%s8432 + $0xb0] sm:$0xff]
    %v8456 = vld [vmem:[%s8432 + $0xb8] sm:$0xff]
    %v8457 = vld [vmem:[%s8432 + $0xc0] sm:$0xff]
    %v8458 = vld [vmem:[%s8432 + $0xc8] sm:$0xff]
    %v8459 = vld [vmem:[%s8432 + $0xd0] sm:$0xff]
    %v8460 = vld [vmem:[%s8432 + $0xd8] sm:$0xff]
    %v8461 = vld [vmem:[%s8432 + $0xe0] sm:$0xff]
    %v8462 = vld [vmem:[%s8432 + $0xe8] sm:$0xff]
    %v8463 = vld [vmem:[%s8432 + $0xf0] sm:$0xff]
    %v8464 = vld [vmem:[%s8432 + $0xf8] sm:$0xff]
    %v8465 = vld [vmem:[%s8432 + $0x100] sm:$0xff]
    %v8466 = vld [vmem:[%s8432 + $0x108] sm:$0xff]
    %v8467 = vld [vmem:[%s8432 + $0x110] sm:$0xff]
    %v8468 = vld [vmem:[%s8432 + $0x118] sm:$0xff]
    %v8469 = vld [vmem:[%s8432 + $0x120] sm:$0xff]
    %v8470 = vld [vmem:[%s8432 + $0x128] sm:$0xff]
    %v8471 = vld [vmem:[%s8432 + $0x130] sm:$0xff]
    %v8472 = vld [vmem:[%s8432 + $0x138] sm:$0xff]
    %v8473 = vld [vmem:[%s8432 + $0x140] sm:$0xff]
    %v8474 = vld [vmem:[%s8432 + $0x148] sm:$0xff]
    %v8475 = vld [vmem:[%s8432 + $0x150] sm:$0xff]
    %v8476 = vld [vmem:[%s8432 + $0x158] sm:$0xff]
    %v8477 = vld [vmem:[%s8432 + $0x160] sm:$0xff]
    %v8478 = vld [vmem:[%s8432 + $0x168] sm:$0xff]
    %v8479 = vld [vmem:[%s8432 + $0x170] sm:$0xff]
    %v8480 = vld [vmem:[%s8432 + $0x178] sm:$0xff]
    %v8487 = vsel %vm3161, %v8285, %v8159
    %v8488 = vsel %vm3161, %v8292, %v8166
    %v8489 = vsel %vm3161, %v8299, %v8173
    %8493 = vmatprep.subr.mxu0 0.0
    %8494 = vmatpush1.msra.mxu0 %v8433
    %8495 = vmatprep.subr.mxu0 0.0
    %8496 = vmatpush1.msra.mxu0 %v8434
    %8497 = vmatprep.subr.mxu0 0.0
    %8498 = vmatpush1.msra.mxu0 %v8435
    %8499 = vmatprep.subr.mxu0 0.0
    %8500 = vmatpush1.msra.mxu0 %v8436
    %8501 = vmatprep.subr.mxu0 0.0
    %8502 = vmatpush1.msra.mxu0 %v8437
    %8503 = vmatprep.subr.mxu0 0.0
    %8504 = vmatpush1.msra.mxu0 %v8438
    %8505 = vmatprep.subr.mxu0 0.0
    %8506 = vmatpush1.msra.mxu0 %v8439
    %8507 = vmatprep.subr.mxu0 0.0
    %8508 = vmatpush1.msra.mxu0 %v8440
    %8509 = vmatprep.subr.mxu0 0.0
    %8510 = vmatpush1.msra.mxu0 %v8441
    %8511 = vmatprep.subr.mxu0 0.0
    %8512 = vmatpush1.msra.mxu0 %v8442
    %8513 = vmatprep.subr.mxu0 0.0
    %8514 = vmatpush1.msra.mxu0 %v8443
    %8515 = vmatprep.subr.mxu0 0.0
    %8516 = vmatpush1.msra.mxu0 %v8444
    %8517 = vmatprep.subr.mxu0 0.0
    %8518 = vmatpush1.msra.mxu0 %v8445
    %8519 = vmatprep.subr.mxu0 0.0
    %8520 = vmatpush1.msra.mxu0 %v8446
    %8521 = vmatprep.subr.mxu0 0.0
    %8522 = vmatpush1.msra.mxu0 %v8447
    %8523 = vmatprep.subr.mxu0 0.0
    %8524 = vmatpush1.msra.mxu0 %v8448
    %8525 = vmatprep.subr.mxu0 0.0
    %8526 = vmatpush1.msra.mxu0 %v8449
    %8527 = vmatprep.subr.mxu0 0.0
    %8528 = vmatpush1.msra.mxu0 %v8450
    %8529 = vmatprep.subr.mxu0 0.0
    %8530 = vmatpush1.msra.mxu0 %v8451
    %8531 = vmatprep.subr.mxu0 0.0
    %8532 = vmatpush1.msra.mxu0 %v8452
    %8533 = vmatprep.subr.mxu0 0.0
    %8534 = vmatpush1.msra.mxu0 %v8453
    %8535 = vmatprep.subr.mxu0 0.0
    %8536 = vmatpush1.msra.mxu0 %v8454
    %8537 = vmatprep.subr.mxu0 0.0
    %8538 = vmatpush1.msra.mxu0 %v8455
    %8539 = vmatprep.subr.mxu0 0.0
    %8540 = vmatpush1.msra.mxu0 %v8456
    %8541 = vmatprep.subr.mxu0 0.0
    %8542 = vmatpush1.msra.mxu0 %v8457
    %8543 = vmatprep.subr.mxu0 0.0
    %8544 = vmatpush1.msra.mxu0 %v8458
    %8545 = vmatprep.subr.mxu0 0.0
    %8546 = vmatpush1.msra.mxu0 %v8459
    %8547 = vmatprep.subr.mxu0 0.0
    %8548 = vmatpush1.msra.mxu0 %v8460
    %8549 = vmatprep.subr.mxu0 0.0
    %8550 = vmatpush1.msra.mxu0 %v8461
    %8551 = vmatprep.subr.mxu0 0.0
    %8552 = vmatpush1.msra.mxu0 %v8462
    %8553 = vmatprep.subr.mxu0 0.0
    %8554 = vmatpush1.msra.mxu0 %v8463
    %8555 = vmatprep.subr.mxu0 0.0
    %8556 = vmatpush1.msra.mxu0 %v8464
    %8557 = vmatprep.mubr.f32.mxu0 %v8488
    %8558 = vmatmul.mubr.f32.gmra.mrb[0].mxu0 %v8487
    %v8559 = vpop.f32.mrb[0].mxu0
    %v8560 = vadd.f32 0.0, %v8559
    %v8561 = vpop.f32.mrb[0].mxu0
    %8562 = vdwg.mxu0
    %8563 = vmatprep.subr.mxu0 0.0
    %8564 = vmatpush1.msra.mxu0 %v8465
    %8565 = vmatprep.subr.mxu0 0.0
    %8566 = vmatpush1.msra.mxu0 %v8466
    %8567 = vmatprep.subr.mxu0 0.0
    %8568 = vmatpush1.msra.mxu0 %v8467
    %8569 = vmatprep.subr.mxu0 0.0
    %8570 = vmatpush1.msra.mxu0 %v8468
    %8571 = vmatprep.subr.mxu0 0.0
    %8572 = vmatpush1.msra.mxu0 %v8469
    %8573 = vmatprep.subr.mxu0 0.0
    %8574 = vmatpush1.msra.mxu0 %v8470
    %8575 = vmatprep.subr.mxu0 0.0
    %8576 = vmatpush1.msra.mxu0 %v8471
    %8577 = vmatprep.subr.mxu0 0.0
    %8578 = vmatpush1.msra.mxu0 %v8472
    %8579 = vmatprep.subr.mxu0 0.0
    %8580 = vmatpush1.msra.mxu0 %v8473
    %8581 = vmatprep.subr.mxu0 0.0
    %8582 = vmatpush1.msra.mxu0 %v8474
    %8583 = vmatprep.subr.mxu0 0.0
    %8584 = vmatpush1.msra.mxu0 %v8475
    %8585 = vmatprep.subr.mxu0 0.0
    %8586 = vmatpush1.msra.mxu0 %v8476
    %8587 = vmatprep.subr.mxu0 0.0
    %8588 = vmatpush1.msra.mxu0 %v8477
    %8589 = vmatprep.subr.mxu0 0.0
    %8590 = vmatpush1.msra.mxu0 %v8478
    %8591 = vmatprep.subr.mxu0 0.0
    %8592 = vmatpush1.msra.mxu0 %v8479
    %8593 = vmatprep.subr.mxu0 0.0
    %8594 = vmatpush1.msra.mxu0 %v8480
    %8595 = vmatprep.subr.mxu0 0.0
    %8596 = vmatpush1.msra.mxu0 0.0
    %8597 = vmatprep.subr.mxu0 0.0
    %8598 = vmatpush1.msra.mxu0 0.0
    %8599 = vmatprep.subr.mxu0 0.0
    %8600 = vmatpush1.msra.mxu0 0.0
    %8601 = vmatprep.subr.mxu0 0.0
    %8602 = vmatpush1.msra.mxu0 0.0
    %8603 = vmatprep.subr.mxu0 0.0
    %8604 = vmatpush1.msra.mxu0 0.0
    %8605 = vmatprep.subr.mxu0 0.0
    %8606 = vmatpush1.msra.mxu0 0.0
    %8607 = vmatprep.subr.mxu0 0.0
    %8608 = vmatpush1.msra.mxu0 0.0
    %8609 = vmatprep.subr.mxu0 0.0
    %8610 = vmatpush1.msra.mxu0 0.0
    %8611 = vmatprep.subr.mxu0 0.0
    %8612 = vmatpush1.msra.mxu0 0.0
    %8613 = vmatprep.subr.mxu0 0.0
    %8614 = vmatpush1.msra.mxu0 0.0
    %8615 = vmatprep.subr.mxu0 0.0
    %8616 = vmatpush1.msra.mxu0 0.0
    %8617 = vmatprep.subr.mxu0 0.0
    %8618 = vmatpush1.msra.mxu0 0.0
    %8619 = vmatprep.subr.mxu0 0.0
    %8620 = vmatpush1.msra.mxu0 0.0
    %8621 = vmatprep.subr.mxu0 0.0
    %8622 = vmatpush1.msra.mxu0 0.0
    %8623 = vmatprep.subr.mxu0 0.0
    %8624 = vmatpush1.msra.mxu0 0.0
    %8625 = vmatprep.subr.mxu0 0.0
    %8626 = vmatpush1.msra.mxu0 0.0
    %8627 = vmatprep.mubr.f32.mxu0 0.0
    %8628 = vmatmul.mubr.f32.gmra.mrb[0].mxu0 %v8489
    %v8629 = vpop.f32.mrb[0].mxu0
    %v8630 = vadd.f32 %v8560, %v8629
    %v8631 = vpop.f32.mrb[0].mxu0
    %8632 = vdwg.mxu0
    %v8639 = vsel %vm3161, %v8264, %v8138
    %v8640 = vsel %vm3161, %v8271, %v8145
    %v8641 = vsel %vm3161, %v8278, %v8152
    %8645 = vmatprep.subr.mxu0 0.0
    %8646 = vmatpush1.msra.mxu0 %v8384
    %8647 = vmatprep.subr.mxu0 0.0
    %8648 = vmatpush1.msra.mxu0 %v8385
    %8649 = vmatprep.subr.mxu0 0.0
    %8650 = vmatpush1.msra.mxu0 %v8386
    %8651 = vmatprep.subr.mxu0 0.0
    %8652 = vmatpush1.msra.mxu0 %v8387
    %8653 = vmatprep.subr.mxu0 0.0
    %8654 = vmatpush1.msra.mxu0 %v8388
    %8655 = vmatprep.subr.mxu0 0.0
    %8656 = vmatpush1.msra.mxu0 %v8389
    %8657 = vmatprep.subr.mxu0 0.0
    %8658 = vmatpush1.msra.mxu0 %v8390
    %8659 = vmatprep.subr.mxu0 0.0
    %8660 = vmatpush1.msra.mxu0 %v8391
    %8661 = vmatprep.subr.mxu0 0.0
    %8662 = vmatpush1.msra.mxu0 %v8392
    %8663 = vmatprep.subr.mxu0 0.0
    %8664 = vmatpush1.msra.mxu0 %v8393
    %8665 = vmatprep.subr.mxu0 0.0
    %8666 = vmatpush1.msra.mxu0 %v8394
    %8667 = vmatprep.subr.mxu0 0.0
    %8668 = vmatpush1.msra.mxu0 %v8395
    %8669 = vmatprep.subr.mxu0 0.0
    %8670 = vmatpush1.msra.mxu0 %v8396
    %8671 = vmatprep.subr.mxu0 0.0
    %8672 = vmatpush1.msra.mxu0 %v8397
    %8673 = vmatprep.subr.mxu0 0.0
    %8674 = vmatpush1.msra.mxu0 %v8398
    %8675 = vmatprep.subr.mxu0 0.0
    %8676 = vmatpush1.msra.mxu0 %v8399
    %8677 = vmatprep.subr.mxu0 0.0
    %8678 = vmatpush1.msra.mxu0 %v8400
    %8679 = vmatprep.subr.mxu0 0.0
    %8680 = vmatpush1.msra.mxu0 %v8401
    %8681 = vmatprep.subr.mxu0 0.0
    %8682 = vmatpush1.msra.mxu0 %v8402
    %8683 = vmatprep.subr.mxu0 0.0
    %8684 = vmatpush1.msra.mxu0 %v8403
    %8685 = vmatprep.subr.mxu0 0.0
    %8686 = vmatpush1.msra.mxu0 %v8404
    %8687 = vmatprep.subr.mxu0 0.0
    %8688 = vmatpush1.msra.mxu0 %v8405
    %8689 = vmatprep.subr.mxu0 0.0
    %8690 = vmatpush1.msra.mxu0 %v8406
    %8691 = vmatprep.subr.mxu0 0.0
    %8692 = vmatpush1.msra.mxu0 %v8407
    %8693 = vmatprep.subr.mxu0 0.0
    %8694 = vmatpush1.msra.mxu0 %v8408
    %8695 = vmatprep.subr.mxu0 0.0
    %8696 = vmatpush1.msra.mxu0 %v8409
    %8697 = vmatprep.subr.mxu0 0.0
    %8698 = vmatpush1.msra.mxu0 %v8410
    %8699 = vmatprep.subr.mxu0 0.0
    %8700 = vmatpush1.msra.mxu0 %v8411
    %8701 = vmatprep.subr.mxu0 0.0
    %8702 = vmatpush1.msra.mxu0 %v8412
    %8703 = vmatprep.subr.mxu0 0.0
    %8704 = vmatpush1.msra.mxu0 %v8413
    %8705 = vmatprep.subr.mxu0 0.0
    %8706 = vmatpush1.msra.mxu0 %v8414
    %8707 = vmatprep.subr.mxu0 0.0
    %8708 = vmatpush1.msra.mxu0 %v8415
    %8709 = vmatprep.mubr.f32.mxu0 %v8640
    %8710 = vmatmul.mubr.f32.gmra.mrb[0].mxu0 %v8639
    %v8711 = vpop.f32.mrb[0].mxu0
    %v8712 = vadd.f32 %v8630, %v8711
    %v8713 = vpop.f32.mrb[0].mxu0
    %8714 = vdwg.mxu0
    %8715 = vmatprep.subr.mxu0 0.0
    %8716 = vmatpush1.msra.mxu0 %v8416
    %8717 = vmatprep.subr.mxu0 0.0
    %8718 = vmatpush1.msra.mxu0 %v8417
    %8719 = vmatprep.subr.mxu0 0.0
    %8720 = vmatpush1.msra.mxu0 %v8418
    %8721 = vmatprep.subr.mxu0 0.0
    %8722 = vmatpush1.msra.mxu0 %v8419
    %8723 = vmatprep.subr.mxu0 0.0
    %8724 = vmatpush1.msra.mxu0 %v8420
    %8725 = vmatprep.subr.mxu0 0.0
    %8726 = vmatpush1.msra.mxu0 %v8421
    %8727 = vmatprep.subr.mxu0 0.0
    %8728 = vmatpush1.msra.mxu0 %v8422
    %8729 = vmatprep.subr.mxu0 0.0
    %8730 = vmatpush1.msra.mxu0 %v8423
    %8731 = vmatprep.subr.mxu0 0.0
    %8732 = vmatpush1.msra.mxu0 %v8424
    %8733 = vmatprep.subr.mxu0 0.0
    %8734 = vmatpush1.msra.mxu0 %v8425
    %8735 = vmatprep.subr.mxu0 0.0
    %8736 = vmatpush1.msra.mxu0 %v8426
    %8737 = vmatprep.subr.mxu0 0.0
    %8738 = vmatpush1.msra.mxu0 %v8427
    %8739 = vmatprep.subr.mxu0 0.0
    %8740 = vmatpush1.msra.mxu0 %v8428
    %8741 = vmatprep.subr.mxu0 0.0
    %8742 = vmatpush1.msra.mxu0 %v8429
    %8743 = vmatprep.subr.mxu0 0.0
    %8744 = vmatpush1.msra.mxu0 %v8430
    %8745 = vmatprep.subr.mxu0 0.0
    %8746 = vmatpush1.msra.mxu0 %v8431
    %8747 = vmatprep.subr.mxu0 0.0
    %8748 = vmatpush1.msra.mxu0 0.0
    %8749 = vmatprep.subr.mxu0 0.0
    %8750 = vmatpush1.msra.mxu0 0.0
    %8751 = vmatprep.subr.mxu0 0.0
    %8752 = vmatpush1.msra.mxu0 0.0
    %8753 = vmatprep.subr.mxu0 0.0
    %8754 = vmatpush1.msra.mxu0 0.0
    %8755 = vmatprep.subr.mxu0 0.0
    %8756 = vmatpush1.msra.mxu0 0.0
    %8757 = vmatprep.subr.mxu0 0.0
    %8758 = vmatpush1.msra.mxu0 0.0
    %8759 = vmatprep.subr.mxu0 0.0
    %8760 = vmatpush1.msra.mxu0 0.0
    %8761 = vmatprep.subr.mxu0 0.0
    %8762 = vmatpush1.msra.mxu0 0.0
    %8763 = vmatprep.subr.mxu0 0.0
    %8764 = vmatpush1.msra.mxu0 0.0
    %8765 = vmatprep.subr.mxu0 0.0
    %8766 = vmatpush1.msra.mxu0 0.0
    %8767 = vmatprep.subr.mxu0 0.0
    %8768 = vmatpush1.msra.mxu0 0.0
    %8769 = vmatprep.subr.mxu0 0.0
    %8770 = vmatpush1.msra.mxu0 0.0
    %8771 = vmatprep.subr.mxu0 0.0
    %8772 = vmatpush1.msra.mxu0 0.0
    %8773 = vmatprep.subr.mxu0 0.0
    %8774 = vmatpush1.msra.mxu0 0.0
    %8775 = vmatprep.subr.mxu0 0.0
    %8776 = vmatpush1.msra.mxu0 0.0
    %8777 = vmatprep.subr.mxu0 0.0
    %8778 = vmatpush1.msra.mxu0 0.0
    %8779 = vmatprep.mubr.f32.mxu0 0.0
    %8780 = vmatmul.mubr.f32.gmra.mrb[0].mxu0 %v8641
    %v8781 = vpop.f32.mrb[0].mxu0
    %v8782 = vadd.f32 %v8712, %v8781
    %v8783 = vpop.f32.mrb[0].mxu0
    %8784 = vdwg.mxu0
    %s8785 = scalar_lea.vmem [#allocation14], 768
    %v8786 = vld [vmem:[%s8785] sm:$0xff]
    %v8787 = vld [vmem:[%s8785 + $0x8] sm:$0xff]
    %v8788 = vld [vmem:[%s8785 + $0x10] sm:$0xff]
    %v8789 = vld [vmem:[%s8785 + $0x18] sm:$0xff]
    %v8790 = vld [vmem:[%s8785 + $0x20] sm:$0xff]
    %v8791 = vld [vmem:[%s8785 + $0x28] sm:$0xff]
    %v8792 = vld [vmem:[%s8785 + $0x30] sm:$0xff]
    %v8793 = vld [vmem:[%s8785 + $0x38] sm:$0xff]
    %v8794 = vld [vmem:[%s8785 + $0x40] sm:$0xff]
    %v8795 = vld [vmem:[%s8785 + $0x48] sm:$0xff]
    %v8796 = vld [vmem:[%s8785 + $0x50] sm:$0xff]
    %v8797 = vld [vmem:[%s8785 + $0x58] sm:$0xff]
    %v8798 = vld [vmem:[%s8785 + $0x60] sm:$0xff]
    %v8799 = vld [vmem:[%s8785 + $0x68] sm:$0xff]
    %v8800 = vld [vmem:[%s8785 + $0x70] sm:$0xff]
    %v8801 = vld [vmem:[%s8785 + $0x78] sm:$0xff]
    %v8802 = vld [vmem:[%s8785 + $0x80] sm:$0xff]
    %v8803 = vld [vmem:[%s8785 + $0x88] sm:$0xff]
    %v8804 = vld [vmem:[%s8785 + $0x90] sm:$0xff]
    %v8805 = vld [vmem:[%s8785 + $0x98] sm:$0xff]
    %v8806 = vld [vmem:[%s8785 + $0xa0] sm:$0xff]
    %v8807 = vld [vmem:[%s8785 + $0xa8] sm:$0xff]
    %v8808 = vld [vmem:[%s8785 + $0xb0] sm:$0xff]
    %v8809 = vld [vmem:[%s8785 + $0xb8] sm:$0xff]
    %v8810 = vld [vmem:[%s8785 + $0xc0] sm:$0xff]
    %v8811 = vld [vmem:[%s8785 + $0xc8] sm:$0xff]
    %v8812 = vld [vmem:[%s8785 + $0xd0] sm:$0xff]
    %v8813 = vld [vmem:[%s8785 + $0xd8] sm:$0xff]
    %v8814 = vld [vmem:[%s8785 + $0xe0] sm:$0xff]
    %v8815 = vld [vmem:[%s8785 + $0xe8] sm:$0xff]
    %v8816 = vld [vmem:[%s8785 + $0xf0] sm:$0xff]
    %v8817 = vld [vmem:[%s8785 + $0xf8] sm:$0xff]
    %v8818 = vld [vmem:[%s8785 + $0x100] sm:$0xff]
    %v8819 = vld [vmem:[%s8785 + $0x108] sm:$0xff]
    %v8820 = vld [vmem:[%s8785 + $0x110] sm:$0xff]
    %v8821 = vld [vmem:[%s8785 + $0x118] sm:$0xff]
    %v8822 = vld [vmem:[%s8785 + $0x120] sm:$0xff]
    %v8823 = vld [vmem:[%s8785 + $0x128] sm:$0xff]
    %v8824 = vld [vmem:[%s8785 + $0x130] sm:$0xff]
    %v8825 = vld [vmem:[%s8785 + $0x138] sm:$0xff]
    %v8826 = vld [vmem:[%s8785 + $0x140] sm:$0xff]
    %v8827 = vld [vmem:[%s8785 + $0x148] sm:$0xff]
    %v8828 = vld [vmem:[%s8785 + $0x150] sm:$0xff]
    %v8829 = vld [vmem:[%s8785 + $0x158] sm:$0xff]
    %v8830 = vld [vmem:[%s8785 + $0x160] sm:$0xff]
    %v8831 = vld [vmem:[%s8785 + $0x168] sm:$0xff]
    %v8832 = vld [vmem:[%s8785 + $0x170] sm:$0xff]
    %v8833 = vld [vmem:[%s8785 + $0x178] sm:$0xff]
    %v8840 = vsel %vm3161, %v8306, %v8180
    %v8841 = vsel %vm3161, %v8313, %v8187
    %v8842 = vsel %vm3161, %v8320, %v8194
    %8846 = vmatprep.subr.mxu0 0.0
    %8847 = vmatpush1.msra.mxu0 %v8786
    %8848 = vmatprep.subr.mxu0 0.0
    %8849 = vmatpush1.msra.mxu0 %v8787
    %8850 = vmatprep.subr.mxu0 0.0
    %8851 = vmatpush1.msra.mxu0 %v8788
    %8852 = vmatprep.subr.mxu0 0.0
    %8853 = vmatpush1.msra.mxu0 %v8789
    %8854 = vmatprep.subr.mxu0 0.0
    %8855 = vmatpush1.msra.mxu0 %v8790
    %8856 = vmatprep.subr.mxu0 0.0
    %8857 = vmatpush1.msra.mxu0 %v8791
    %8858 = vmatprep.subr.mxu0 0.0
    %8859 = vmatpush1.msra.mxu0 %v8792
    %8860 = vmatprep.subr.mxu0 0.0
    %8861 = vmatpush1.msra.mxu0 %v8793
    %8862 = vmatprep.subr.mxu0 0.0
    %8863 = vmatpush1.msra.mxu0 %v8794
    %8864 = vmatprep.subr.mxu0 0.0
    %8865 = vmatpush1.msra.mxu0 %v8795
    %8866 = vmatprep.subr.mxu0 0.0
    %8867 = vmatpush1.msra.mxu0 %v8796
    %8868 = vmatprep.subr.mxu0 0.0
    %8869 = vmatpush1.msra.mxu0 %v8797
    %8870 = vmatprep.subr.mxu0 0.0
    %8871 = vmatpush1.msra.mxu0 %v8798
    %8872 = vmatprep.subr.mxu0 0.0
    %8873 = vmatpush1.msra.mxu0 %v8799
    %8874 = vmatprep.subr.mxu0 0.0
    %8875 = vmatpush1.msra.mxu0 %v8800
    %8876 = vmatprep.subr.mxu0 0.0
    %8877 = vmatpush1.msra.mxu0 %v8801
    %8878 = vmatprep.subr.mxu0 0.0
    %8879 = vmatpush1.msra.mxu0 %v8802
    %8880 = vmatprep.subr.mxu0 0.0
    %8881 = vmatpush1.msra.mxu0 %v8803
    %8882 = vmatprep.subr.mxu0 0.0
    %8883 = vmatpush1.msra.mxu0 %v8804
    %8884 = vmatprep.subr.mxu0 0.0
    %8885 = vmatpush1.msra.mxu0 %v8805
    %8886 = vmatprep.subr.mxu0 0.0
    %8887 = vmatpush1.msra.mxu0 %v8806
    %8888 = vmatprep.subr.mxu0 0.0
    %8889 = vmatpush1.msra.mxu0 %v8807
    %8890 = vmatprep.subr.mxu0 0.0
    %8891 = vmatpush1.msra.mxu0 %v8808
    %8892 = vmatprep.subr.mxu0 0.0
    %8893 = vmatpush1.msra.mxu0 %v8809
    %8894 = vmatprep.subr.mxu0 0.0
    %8895 = vmatpush1.msra.mxu0 %v8810
    %8896 = vmatprep.subr.mxu0 0.0
    %8897 = vmatpush1.msra.mxu0 %v8811
    %8898 = vmatprep.subr.mxu0 0.0
    %8899 = vmatpush1.msra.mxu0 %v8812
    %8900 = vmatprep.subr.mxu0 0.0
    %8901 = vmatpush1.msra.mxu0 %v8813
    %8902 = vmatprep.subr.mxu0 0.0
    %8903 = vmatpush1.msra.mxu0 %v8814
    %8904 = vmatprep.subr.mxu0 0.0
    %8905 = vmatpush1.msra.mxu0 %v8815
    %8906 = vmatprep.subr.mxu0 0.0
    %8907 = vmatpush1.msra.mxu0 %v8816
    %8908 = vmatprep.subr.mxu0 0.0
    %8909 = vmatpush1.msra.mxu0 %v8817
    %8910 = vmatprep.mubr.f32.mxu0 %v8841
    %8911 = vmatmul.mubr.f32.gmra.mrb[0].mxu0 %v8840
    %v8912 = vpop.f32.mrb[0].mxu0
    %v8913 = vadd.f32 0.0, %v8912
    %v8914 = vpop.f32.mrb[0].mxu0
    %8915 = vdwg.mxu0
    %8916 = vmatprep.subr.mxu0 0.0
    %8917 = vmatpush1.msra.mxu0 %v8818
    %8918 = vmatprep.subr.mxu0 0.0
    %8919 = vmatpush1.msra.mxu0 %v8819
    %8920 = vmatprep.subr.mxu0 0.0
    %8921 = vmatpush1.msra.mxu0 %v8820
    %8922 = vmatprep.subr.mxu0 0.0
    %8923 = vmatpush1.msra.mxu0 %v8821
    %8924 = vmatprep.subr.mxu0 0.0
    %8925 = vmatpush1.msra.mxu0 %v8822
    %8926 = vmatprep.subr.mxu0 0.0
    %8927 = vmatpush1.msra.mxu0 %v8823
    %8928 = vmatprep.subr.mxu0 0.0
    %8929 = vmatpush1.msra.mxu0 %v8824
    %8930 = vmatprep.subr.mxu0 0.0
    %8931 = vmatpush1.msra.mxu0 %v8825
    %8932 = vmatprep.subr.mxu0 0.0
    %8933 = vmatpush1.msra.mxu0 %v8826
    %8934 = vmatprep.subr.mxu0 0.0
    %8935 = vmatpush1.msra.mxu0 %v8827
    %8936 = vmatprep.subr.mxu0 0.0
    %8937 = vmatpush1.msra.mxu0 %v8828
    %8938 = vmatprep.subr.mxu0 0.0
    %8939 = vmatpush1.msra.mxu0 %v8829
    %8940 = vmatprep.subr.mxu0 0.0
    %8941 = vmatpush1.msra.mxu0 %v8830
    %8942 = vmatprep.subr.mxu0 0.0
    %8943 = vmatpush1.msra.mxu0 %v8831
    %8944 = vmatprep.subr.mxu0 0.0
    %8945 = vmatpush1.msra.mxu0 %v8832
    %8946 = vmatprep.subr.mxu0 0.0
    %8947 = vmatpush1.msra.mxu0 %v8833
    %8948 = vmatprep.subr.mxu0 0.0
    %8949 = vmatpush1.msra.mxu0 0.0
    %8950 = vmatprep.subr.mxu0 0.0
    %8951 = vmatpush1.msra.mxu0 0.0
    %8952 = vmatprep.subr.mxu0 0.0
    %8953 = vmatpush1.msra.mxu0 0.0
    %8954 = vmatprep.subr.mxu0 0.0
    %8955 = vmatpush1.msra.mxu0 0.0
    %8956 = vmatprep.subr.mxu0 0.0
    %8957 = vmatpush1.msra.mxu0 0.0
    %8958 = vmatprep.subr.mxu0 0.0
    %8959 = vmatpush1.msra.mxu0 0.0
    %8960 = vmatprep.subr.mxu0 0.0
    %8961 = vmatpush1.msra.mxu0 0.0
    %8962 = vmatprep.subr.mxu0 0.0
    %8963 = vmatpush1.msra.mxu0 0.0
    %8964 = vmatprep.subr.mxu0 0.0
    %8965 = vmatpush1.msra.mxu0 0.0
    %8966 = vmatprep.subr.mxu0 0.0
    %8967 = vmatpush1.msra.mxu0 0.0
    %8968 = vmatprep.subr.mxu0 0.0
    %8969 = vmatpush1.msra.mxu0 0.0
    %8970 = vmatprep.subr.mxu0 0.0
    %8971 = vmatpush1.msra.mxu0 0.0
    %8972 = vmatprep.subr.mxu0 0.0
    %8973 = vmatpush1.msra.mxu0 0.0
    %8974 = vmatprep.subr.mxu0 0.0
    %8975 = vmatpush1.msra.mxu0 0.0
    %8976 = vmatprep.subr.mxu0 0.0
    %8977 = vmatpush1.msra.mxu0 0.0
    %8978 = vmatprep.subr.mxu0 0.0
    %8979 = vmatpush1.msra.mxu0 0.0
    %8980 = vmatprep.mubr.f32.mxu0 0.0
    %8981 = vmatmul.mubr.f32.gmra.mrb[0].mxu0 %v8842
    %v8982 = vpop.f32.mrb[0].mxu0
    %v8983 = vadd.f32 %v8913, %v8982
    %v8984 = vpop.f32.mrb[0].mxu0
    %8985 = vdwg.mxu0
    %v8986 = vadd.f32 %v8782, %v8983
    %s8987 = scalar_lea.vmem [#allocation14], 1152
    %v8988 = vld [vmem:[%s8987] sm:$0xff]
    %v8989 = vld [vmem:[%s8987 + $0x8] sm:$0xff]
    %v8990 = vld [vmem:[%s8987 + $0x10] sm:$0xff]
    %v8991 = vld [vmem:[%s8987 + $0x18] sm:$0xff]
    %v8992 = vld [vmem:[%s8987 + $0x20] sm:$0xff]
    %v8993 = vld [vmem:[%s8987 + $0x28] sm:$0xff]
    %v8994 = vld [vmem:[%s8987 + $0x30] sm:$0xff]
    %v8995 = vld [vmem:[%s8987 + $0x38] sm:$0xff]
    %v8996 = vld [vmem:[%s8987 + $0x40] sm:$0xff]
    %v8997 = vld [vmem:[%s8987 + $0x48] sm:$0xff]
    %v8998 = vld [vmem:[%s8987 + $0x50] sm:$0xff]
    %v8999 = vld [vmem:[%s8987 + $0x58] sm:$0xff]
    %v9000 = vld [vmem:[%s8987 + $0x60] sm:$0xff]
    %v9001 = vld [vmem:[%s8987 + $0x68] sm:$0xff]
    %v9002 = vld [vmem:[%s8987 + $0x70] sm:$0xff]
    %v9003 = vld [vmem:[%s8987 + $0x78] sm:$0xff]
    %v9004 = vld [vmem:[%s8987 + $0x80] sm:$0xff]
    %v9005 = vld [vmem:[%s8987 + $0x88] sm:$0xff]
    %v9006 = vld [vmem:[%s8987 + $0x90] sm:$0xff]
    %v9007 = vld [vmem:[%s8987 + $0x98] sm:$0xff]
    %v9008 = vld [vmem:[%s8987 + $0xa0] sm:$0xff]
    %v9009 = vld [vmem:[%s8987 + $0xa8] sm:$0xff]
    %v9010 = vld [vmem:[%s8987 + $0xb0] sm:$0xff]
    %v9011 = vld [vmem:[%s8987 + $0xb8] sm:$0xff]
    %v9012 = vld [vmem:[%s8987 + $0xc0] sm:$0xff]
    %v9013 = vld [vmem:[%s8987 + $0xc8] sm:$0xff]
    %v9014 = vld [vmem:[%s8987 + $0xd0] sm:$0xff]
    %v9015 = vld [vmem:[%s8987 + $0xd8] sm:$0xff]
    %v9016 = vld [vmem:[%s8987 + $0xe0] sm:$0xff]
    %v9017 = vld [vmem:[%s8987 + $0xe8] sm:$0xff]
    %v9018 = vld [vmem:[%s8987 + $0xf0] sm:$0xff]
    %v9019 = vld [vmem:[%s8987 + $0xf8] sm:$0xff]
    %v9020 = vld [vmem:[%s8987 + $0x100] sm:$0xff]
    %v9021 = vld [vmem:[%s8987 + $0x108] sm:$0xff]
    %v9022 = vld [vmem:[%s8987 + $0x110] sm:$0xff]
    %v9023 = vld [vmem:[%s8987 + $0x118] sm:$0xff]
    %v9024 = vld [vmem:[%s8987 + $0x120] sm:$0xff]
    %v9025 = vld [vmem:[%s8987 + $0x128] sm:$0xff]
    %v9026 = vld [vmem:[%s8987 + $0x130] sm:$0xff]
    %v9027 = vld [vmem:[%s8987 + $0x138] sm:$0xff]
    %v9028 = vld [vmem:[%s8987 + $0x140] sm:$0xff]
    %v9029 = vld [vmem:[%s8987 + $0x148] sm:$0xff]
    %v9030 = vld [vmem:[%s8987 + $0x150] sm:$0xff]
    %v9031 = vld [vmem:[%s8987 + $0x158] sm:$0xff]
    %v9032 = vld [vmem:[%s8987 + $0x160] sm:$0xff]
    %v9033 = vld [vmem:[%s8987 + $0x168] sm:$0xff]
    %v9034 = vld [vmem:[%s8987 + $0x170] sm:$0xff]
    %v9035 = vld [vmem:[%s8987 + $0x178] sm:$0xff]
    %v9042 = vsel %vm3161, %v8327, %v8201
    %v9043 = vsel %vm3161, %v8334, %v8208
    %v9044 = vsel %vm3161, %v8341, %v8215
    %9048 = vmatprep.subr.mxu0 0.0
    %9049 = vmatpush1.msra.mxu0 %v8988
    %9050 = vmatprep.subr.mxu0 0.0
    %9051 = vmatpush1.msra.mxu0 %v8989
    %9052 = vmatprep.subr.mxu0 0.0
    %9053 = vmatpush1.msra.mxu0 %v8990
    %9054 = vmatprep.subr.mxu0 0.0
    %9055 = vmatpush1.msra.mxu0 %v8991
    %9056 = vmatprep.subr.mxu0 0.0
    %9057 = vmatpush1.msra.mxu0 %v8992
    %9058 = vmatprep.subr.mxu0 0.0
    %9059 = vmatpush1.msra.mxu0 %v8993
    %9060 = vmatprep.subr.mxu0 0.0
    %9061 = vmatpush1.msra.mxu0 %v8994
    %9062 = vmatprep.subr.mxu0 0.0
    %9063 = vmatpush1.msra.mxu0 %v8995
    %9064 = vmatprep.subr.mxu0 0.0
    %9065 = vmatpush1.msra.mxu0 %v8996
    %9066 = vmatprep.subr.mxu0 0.0
    %9067 = vmatpush1.msra.mxu0 %v8997
    %9068 = vmatprep.subr.mxu0 0.0
    %9069 = vmatpush1.msra.mxu0 %v8998
    %9070 = vmatprep.subr.mxu0 0.0
    %9071 = vmatpush1.msra.mxu0 %v8999
    %9072 = vmatprep.subr.mxu0 0.0
    %9073 = vmatpush1.msra.mxu0 %v9000
    %9074 = vmatprep.subr.mxu0 0.0
    %9075 = vmatpush1.msra.mxu0 %v9001
    %9076 = vmatprep.subr.mxu0 0.0
    %9077 = vmatpush1.msra.mxu0 %v9002
    %9078 = vmatprep.subr.mxu0 0.0
    %9079 = vmatpush1.msra.mxu0 %v9003
    %9080 = vmatprep.subr.mxu0 0.0
    %9081 = vmatpush1.msra.mxu0 %v9004
    %9082 = vmatprep.subr.mxu0 0.0
    %9083 = vmatpush1.msra.mxu0 %v9005
    %9084 = vmatprep.subr.mxu0 0.0
    %9085 = vmatpush1.msra.mxu0 %v9006
    %9086 = vmatprep.subr.mxu0 0.0
    %9087 = vmatpush1.msra.mxu0 %v9007
    %9088 = vmatprep.subr.mxu0 0.0
    %9089 = vmatpush1.msra.mxu0 %v9008
    %9090 = vmatprep.subr.mxu0 0.0
    %9091 = vmatpush1.msra.mxu0 %v9009
    %9092 = vmatprep.subr.mxu0 0.0
    %9093 = vmatpush1.msra.mxu0 %v9010
    %9094 = vmatprep.subr.mxu0 0.0
    %9095 = vmatpush1.msra.mxu0 %v9011
    %9096 = vmatprep.subr.mxu0 0.0
    %9097 = vmatpush1.msra.mxu0 %v9012
    %9098 = vmatprep.subr.mxu0 0.0
    %9099 = vmatpush1.msra.mxu0 %v9013
    %9100 = vmatprep.subr.mxu0 0.0
    %9101 = vmatpush1.msra.mxu0 %v9014
    %9102 = vmatprep.subr.mxu0 0.0
    %9103 = vmatpush1.msra.mxu0 %v9015
    %9104 = vmatprep.subr.mxu0 0.0
    %9105 = vmatpush1.msra.mxu0 %v9016
    %9106 = vmatprep.subr.mxu0 0.0
    %9107 = vmatpush1.msra.mxu0 %v9017
    %9108 = vmatprep.subr.mxu0 0.0
    %9109 = vmatpush1.msra.mxu0 %v9018
    %9110 = vmatprep.subr.mxu0 0.0
    %9111 = vmatpush1.msra.mxu0 %v9019
    %9112 = vmatprep.mubr.f32.mxu0 %v9043
    %9113 = vmatmul.mubr.f32.gmra.mrb[0].mxu0 %v9042
    %v9114 = vpop.f32.mrb[0].mxu0
    %v9115 = vadd.f32 0.0, %v9114
    %v9116 = vpop.f32.mrb[0].mxu0
    %9117 = vdwg.mxu0
    %9118 = vmatprep.subr.mxu0 0.0
    %9119 = vmatpush1.msra.mxu0 %v9020
    %9120 = vmatprep.subr.mxu0 0.0
    %9121 = vmatpush1.msra.mxu0 %v9021
    %9122 = vmatprep.subr.mxu0 0.0
    %9123 = vmatpush1.msra.mxu0 %v9022
    %9124 = vmatprep.subr.mxu0 0.0
    %9125 = vmatpush1.msra.mxu0 %v9023
    %9126 = vmatprep.subr.mxu0 0.0
    %9127 = vmatpush1.msra.mxu0 %v9024
    %9128 = vmatprep.subr.mxu0 0.0
    %9129 = vmatpush1.msra.mxu0 %v9025
    %9130 = vmatprep.subr.mxu0 0.0
    %9131 = vmatpush1.msra.mxu0 %v9026
    %9132 = vmatprep.subr.mxu0 0.0
    %9133 = vmatpush1.msra.mxu0 %v9027
    %9134 = vmatprep.subr.mxu0 0.0
    %9135 = vmatpush1.msra.mxu0 %v9028
    %9136 = vmatprep.subr.mxu0 0.0
    %9137 = vmatpush1.msra.mxu0 %v9029
    %9138 = vmatprep.subr.mxu0 0.0
    %9139 = vmatpush1.msra.mxu0 %v9030
    %9140 = vmatprep.subr.mxu0 0.0
    %9141 = vmatpush1.msra.mxu0 %v9031
    %9142 = vmatprep.subr.mxu0 0.0
    %9143 = vmatpush1.msra.mxu0 %v9032
    %9144 = vmatprep.subr.mxu0 0.0
    %9145 = vmatpush1.msra.mxu0 %v9033
    %9146 = vmatprep.subr.mxu0 0.0
    %9147 = vmatpush1.msra.mxu0 %v9034
    %9148 = vmatprep.subr.mxu0 0.0
    %9149 = vmatpush1.msra.mxu0 %v9035
    %9150 = vmatprep.subr.mxu0 0.0
    %9151 = vmatpush1.msra.mxu0 0.0
    %9152 = vmatprep.subr.mxu0 0.0
    %9153 = vmatpush1.msra.mxu0 0.0
    %9154 = vmatprep.subr.mxu0 0.0
    %9155 = vmatpush1.msra.mxu0 0.0
    %9156 = vmatprep.subr.mxu0 0.0
    %9157 = vmatpush1.msra.mxu0 0.0
    %9158 = vmatprep.subr.mxu0 0.0
    %9159 = vmatpush1.msra.mxu0 0.0
    %9160 = vmatprep.subr.mxu0 0.0
    %9161 = vmatpush1.msra.mxu0 0.0
    %9162 = vmatprep.subr.mxu0 0.0
    %9163 = vmatpush1.msra.mxu0 0.0
    %9164 = vmatprep.subr.mxu0 0.0
    %9165 = vmatpush1.msra.mxu0 0.0
    %9166 = vmatprep.subr.mxu0 0.0
    %9167 = vmatpush1.msra.mxu0 0.0
    %9168 = vmatprep.subr.mxu0 0.0
    %9169 = vmatpush1.msra.mxu0 0.0
    %9170 = vmatprep.subr.mxu0 0.0
    %9171 = vmatpush1.msra.mxu0 0.0
    %9172 = vmatprep.subr.mxu0 0.0
    %9173 = vmatpush1.msra.mxu0 0.0
    %9174 = vmatprep.subr.mxu0 0.0
    %9175 = vmatpush1.msra.mxu0 0.0
    %9176 = vmatprep.subr.mxu0 0.0
    %9177 = vmatpush1.msra.mxu0 0.0
    %9178 = vmatprep.subr.mxu0 0.0
    %9179 = vmatpush1.msra.mxu0 0.0
    %9180 = vmatprep.subr.mxu0 0.0
    %9181 = vmatpush1.msra.mxu0 0.0
    %9182 = vmatprep.mubr.f32.mxu0 0.0
    %9183 = vmatmul.mubr.f32.gmra.mrb[0].mxu0 %v9044
    %v9184 = vpop.f32.mrb[0].mxu0
    %v9185 = vadd.f32 %v9115, %v9184
    %v9186 = vpop.f32.mrb[0].mxu0
    %9187 = vdwg.mxu0
    %v9188 = vadd.f32 %v8986, %v9185
    %s9189 = scalar_lea.vmem [#allocation14], 1536
    %v9190 = vld [vmem:[%s9189] sm:$0xff]
    %v9191 = vld [vmem:[%s9189 + $0x8] sm:$0xff]
    %v9192 = vld [vmem:[%s9189 + $0x10] sm:$0xff]
    %v9193 = vld [vmem:[%s9189 + $0x18] sm:$0xff]
    %v9194 = vld [vmem:[%s9189 + $0x20] sm:$0xff]
    %v9195 = vld [vmem:[%s9189 + $0x28] sm:$0xff]
    %v9196 = vld [vmem:[%s9189 + $0x30] sm:$0xff]
    %v9197 = vld [vmem:[%s9189 + $0x38] sm:$0xff]
    %v9198 = vld [vmem:[%s9189 + $0x40] sm:$0xff]
    %v9199 = vld [vmem:[%s9189 + $0x48] sm:$0xff]
    %v9200 = vld [vmem:[%s9189 + $0x50] sm:$0xff]
    %v9201 = vld [vmem:[%s9189 + $0x58] sm:$0xff]
    %v9202 = vld [vmem:[%s9189 + $0x60] sm:$0xff]
    %v9203 = vld [vmem:[%s9189 + $0x68] sm:$0xff]
    %v9204 = vld [vmem:[%s9189 + $0x70] sm:$0xff]
    %v9205 = vld [vmem:[%s9189 + $0x78] sm:$0xff]
    %v9206 = vld [vmem:[%s9189 + $0x80] sm:$0xff]
    %v9207 = vld [vmem:[%s9189 + $0x88] sm:$0xff]
    %v9208 = vld [vmem:[%s9189 + $0x90] sm:$0xff]
    %v9209 = vld [vmem:[%s9189 + $0x98] sm:$0xff]
    %v9210 = vld [vmem:[%s9189 + $0xa0] sm:$0xff]
    %v9211 = vld [vmem:[%s9189 + $0xa8] sm:$0xff]
    %v9212 = vld [vmem:[%s9189 + $0xb0] sm:$0xff]
    %v9213 = vld [vmem:[%s9189 + $0xb8] sm:$0xff]
    %v9214 = vld [vmem:[%s9189 + $0xc0] sm:$0xff]
    %v9215 = vld [vmem:[%s9189 + $0xc8] sm:$0xff]
    %v9216 = vld [vmem:[%s9189 + $0xd0] sm:$0xff]
    %v9217 = vld [vmem:[%s9189 + $0xd8] sm:$0xff]
    %v9218 = vld [vmem:[%s9189 + $0xe0] sm:$0xff]
    %v9219 = vld [vmem:[%s9189 + $0xe8] sm:$0xff]
    %v9220 = vld [vmem:[%s9189 + $0xf0] sm:$0xff]
    %v9221 = vld [vmem:[%s9189 + $0xf8] sm:$0xff]
    %v9222 = vld [vmem:[%s9189 + $0x100] sm:$0xff]
    %v9223 = vld [vmem:[%s9189 + $0x108] sm:$0xff]
    %v9224 = vld [vmem:[%s9189 + $0x110] sm:$0xff]
    %v9225 = vld [vmem:[%s9189 + $0x118] sm:$0xff]
    %v9226 = vld [vmem:[%s9189 + $0x120] sm:$0xff]
    %v9227 = vld [vmem:[%s9189 + $0x128] sm:$0xff]
    %v9228 = vld [vmem:[%s9189 + $0x130] sm:$0xff]
    %v9229 = vld [vmem:[%s9189 + $0x138] sm:$0xff]
    %v9230 = vld [vmem:[%s9189 + $0x140] sm:$0xff]
    %v9231 = vld [vmem:[%s9189 + $0x148] sm:$0xff]
    %v9232 = vld [vmem:[%s9189 + $0x150] sm:$0xff]
    %v9233 = vld [vmem:[%s9189 + $0x158] sm:$0xff]
    %v9234 = vld [vmem:[%s9189 + $0x160] sm:$0xff]
    %v9235 = vld [vmem:[%s9189 + $0x168] sm:$0xff]
    %v9236 = vld [vmem:[%s9189 + $0x170] sm:$0xff]
    %v9237 = vld [vmem:[%s9189 + $0x178] sm:$0xff]
    %v9244 = vsel %vm3161, %v8348, %v8222
    %v9245 = vsel %vm3161, %v8355, %v8229
    %v9246 = vsel %vm3161, %v8362, %v8236
    %9250 = vmatprep.subr.mxu0 0.0
    %9251 = vmatpush1.msra.mxu0 %v9190
    %9252 = vmatprep.subr.mxu0 0.0
    %9253 = vmatpush1.msra.mxu0 %v9191
    %9254 = vmatprep.subr.mxu0 0.0
    %9255 = vmatpush1.msra.mxu0 %v9192
    %9256 = vmatprep.subr.mxu0 0.0
    %9257 = vmatpush1.msra.mxu0 %v9193
    %9258 = vmatprep.subr.mxu0 0.0
    %9259 = vmatpush1.msra.mxu0 %v9194
    %9260 = vmatprep.subr.mxu0 0.0
    %9261 = vmatpush1.msra.mxu0 %v9195
    %9262 = vmatprep.subr.mxu0 0.0
    %9263 = vmatpush1.msra.mxu0 %v9196
    %9264 = vmatprep.subr.mxu0 0.0
    %9265 = vmatpush1.msra.mxu0 %v9197
    %9266 = vmatprep.subr.mxu0 0.0
    %9267 = vmatpush1.msra.mxu0 %v9198
    %9268 = vmatprep.subr.mxu0 0.0
    %9269 = vmatpush1.msra.mxu0 %v9199
    %9270 = vmatprep.subr.mxu0 0.0
    %9271 = vmatpush1.msra.mxu0 %v9200
    %9272 = vmatprep.subr.mxu0 0.0
    %9273 = vmatpush1.msra.mxu0 %v9201
    %9274 = vmatprep.subr.mxu0 0.0
    %9275 = vmatpush1.msra.mxu0 %v9202
    %9276 = vmatprep.subr.mxu0 0.0
    %9277 = vmatpush1.msra.mxu0 %v9203
    %9278 = vmatprep.subr.mxu0 0.0
    %9279 = vmatpush1.msra.mxu0 %v9204
    %9280 = vmatprep.subr.mxu0 0.0
    %9281 = vmatpush1.msra.mxu0 %v9205
    %9282 = vmatprep.subr.mxu0 0.0
    %9283 = vmatpush1.msra.mxu0 %v9206
    %9284 = vmatprep.subr.mxu0 0.0
    %9285 = vmatpush1.msra.mxu0 %v9207
    %9286 = vmatprep.subr.mxu0 0.0
    %9287 = vmatpush1.msra.mxu0 %v9208
    %9288 = vmatprep.subr.mxu0 0.0
    %9289 = vmatpush1.msra.mxu0 %v9209
    %9290 = vmatprep.subr.mxu0 0.0
    %9291 = vmatpush1.msra.mxu0 %v9210
    %9292 = vmatprep.subr.mxu0 0.0
    %9293 = vmatpush1.msra.mxu0 %v9211
    %9294 = vmatprep.subr.mxu0 0.0
    %9295 = vmatpush1.msra.mxu0 %v9212
    %9296 = vmatprep.subr.mxu0 0.0
    %9297 = vmatpush1.msra.mxu0 %v9213
    %9298 = vmatprep.subr.mxu0 0.0
    %9299 = vmatpush1.msra.mxu0 %v9214
    %9300 = vmatprep.subr.mxu0 0.0
    %9301 = vmatpush1.msra.mxu0 %v9215
    %9302 = vmatprep.subr.mxu0 0.0
    %9303 = vmatpush1.msra.mxu0 %v9216
    %9304 = vmatprep.subr.mxu0 0.0
    %9305 = vmatpush1.msra.mxu0 %v9217
    %9306 = vmatprep.subr.mxu0 0.0
    %9307 = vmatpush1.msra.mxu0 %v9218
    %9308 = vmatprep.subr.mxu0 0.0
    %9309 = vmatpush1.msra.mxu0 %v9219
    %9310 = vmatprep.subr.mxu0 0.0
    %9311 = vmatpush1.msra.mxu0 %v9220
    %9312 = vmatprep.subr.mxu0 0.0
    %9313 = vmatpush1.msra.mxu0 %v9221
    %9314 = vmatprep.mubr.f32.mxu0 %v9245
    %9315 = vmatmul.mubr.f32.gmra.mrb[0].mxu0 %v9244
    %v9316 = vpop.f32.mrb[0].mxu0
    %v9317 = vadd.f32 0.0, %v9316
    %v9318 = vpop.f32.mrb[0].mxu0
    %9319 = vdwg.mxu0
    %9320 = vmatprep.subr.mxu0 0.0
    %9321 = vmatpush1.msra.mxu0 %v9222
    %9322 = vmatprep.subr.mxu0 0.0
    %9323 = vmatpush1.msra.mxu0 %v9223
    %9324 = vmatprep.subr.mxu0 0.0
    %9325 = vmatpush1.msra.mxu0 %v9224
    %9326 = vmatprep.subr.mxu0 0.0
    %9327 = vmatpush1.msra.mxu0 %v9225
    %9328 = vmatprep.subr.mxu0 0.0
    %9329 = vmatpush1.msra.mxu0 %v9226
    %9330 = vmatprep.subr.mxu0 0.0
    %9331 = vmatpush1.msra.mxu0 %v9227
    %9332 = vmatprep.subr.mxu0 0.0
    %9333 = vmatpush1.msra.mxu0 %v9228
    %9334 = vmatprep.subr.mxu0 0.0
    %9335 = vmatpush1.msra.mxu0 %v9229
    %9336 = vmatprep.subr.mxu0 0.0
    %9337 = vmatpush1.msra.mxu0 %v9230
    %9338 = vmatprep.subr.mxu0 0.0
    %9339 = vmatpush1.msra.mxu0 %v9231
    %9340 = vmatprep.subr.mxu0 0.0
    %9341 = vmatpush1.msra.mxu0 %v9232
    %9342 = vmatprep.subr.mxu0 0.0
    %9343 = vmatpush1.msra.mxu0 %v9233
    %9344 = vmatprep.subr.mxu0 0.0
    %9345 = vmatpush1.msra.mxu0 %v9234
    %9346 = vmatprep.subr.mxu0 0.0
    %9347 = vmatpush1.msra.mxu0 %v9235
    %9348 = vmatprep.subr.mxu0 0.0
    %9349 = vmatpush1.msra.mxu0 %v9236
    %9350 = vmatprep.subr.mxu0 0.0
    %9351 = vmatpush1.msra.mxu0 %v9237
    %9352 = vmatprep.subr.mxu0 0.0
    %9353 = vmatpush1.msra.mxu0 0.0
    %9354 = vmatprep.subr.mxu0 0.0
    %9355 = vmatpush1.msra.mxu0 0.0
    %9356 = vmatprep.subr.mxu0 0.0
    %9357 = vmatpush1.msra.mxu0 0.0
    %9358 = vmatprep.subr.mxu0 0.0
    %9359 = vmatpush1.msra.mxu0 0.0
    %9360 = vmatprep.subr.mxu0 0.0
    %9361 = vmatpush1.msra.mxu0 0.0
    %9362 = vmatprep.subr.mxu0 0.0
    %9363 = vmatpush1.msra.mxu0 0.0
    %9364 = vmatprep.subr.mxu0 0.0
    %9365 = vmatpush1.msra.mxu0 0.0
    %9366 = vmatprep.subr.mxu0 0.0
    %9367 = vmatpush1.msra.mxu0 0.0
    %9368 = vmatprep.subr.mxu0 0.0
    %9369 = vmatpush1.msra.mxu0 0.0
    %9370 = vmatprep.subr.mxu0 0.0
    %9371 = vmatpush1.msra.mxu0 0.0
    %9372 = vmatprep.subr.mxu0 0.0
    %9373 = vmatpush1.msra.mxu0 0.0
    %9374 = vmatprep.subr.mxu0 0.0
    %9375 = vmatpush1.msra.mxu0 0.0
    %9376 = vmatprep.subr.mxu0 0.0
    %9377 = vmatpush1.msra.mxu0 0.0
    %9378 = vmatprep.subr.mxu0 0.0
    %9379 = vmatpush1.msra.mxu0 0.0
    %9380 = vmatprep.subr.mxu0 0.0
    %9381 = vmatpush1.msra.mxu0 0.0
    %9382 = vmatprep.subr.mxu0 0.0
    %9383 = vmatpush1.msra.mxu0 0.0
    %9384 = vmatprep.mubr.f32.mxu0 0.0
    %9385 = vmatmul.mubr.f32.gmra.mrb[0].mxu0 %v9246
    %v9386 = vpop.f32.mrb[0].mxu0
    %v9387 = vadd.f32 %v9317, %v9386
    %v9388 = vpop.f32.mrb[0].mxu0
    %9389 = vdwg.mxu0
    %v9390 = vadd.f32 %v9188, %v9387
    %s9391 = scalar_lea.vmem [#allocation14], 1920
    %v9392 = vld [vmem:[%s9391] sm:$0xff]
    %v9393 = vld [vmem:[%s9391 + $0x8] sm:$0xff]
    %v9394 = vld [vmem:[%s9391 + $0x10] sm:$0xff]
    %v9395 = vld [vmem:[%s9391 + $0x18] sm:$0xff]
    %v9396 = vld [vmem:[%s9391 + $0x20] sm:$0xff]
    %v9397 = vld [vmem:[%s9391 + $0x28] sm:$0xff]
    %v9398 = vld [vmem:[%s9391 + $0x30] sm:$0xff]
    %v9399 = vld [vmem:[%s9391 + $0x38] sm:$0xff]
    %v9400 = vld [vmem:[%s9391 + $0x40] sm:$0xff]
    %v9401 = vld [vmem:[%s9391 + $0x48] sm:$0xff]
    %v9402 = vld [vmem:[%s9391 + $0x50] sm:$0xff]
    %v9403 = vld [vmem:[%s9391 + $0x58] sm:$0xff]
    %v9404 = vld [vmem:[%s9391 + $0x60] sm:$0xff]
    %v9405 = vld [vmem:[%s9391 + $0x68] sm:$0xff]
    %v9406 = vld [vmem:[%s9391 + $0x70] sm:$0xff]
    %v9407 = vld [vmem:[%s9391 + $0x78] sm:$0xff]
    %v9408 = vld [vmem:[%s9391 + $0x80] sm:$0xff]
    %v9409 = vld [vmem:[%s9391 + $0x88] sm:$0xff]
    %v9410 = vld [vmem:[%s9391 + $0x90] sm:$0xff]
    %v9411 = vld [vmem:[%s9391 + $0x98] sm:$0xff]
    %v9412 = vld [vmem:[%s9391 + $0xa0] sm:$0xff]
    %v9413 = vld [vmem:[%s9391 + $0xa8] sm:$0xff]
    %v9414 = vld [vmem:[%s9391 + $0xb0] sm:$0xff]
    %v9415 = vld [vmem:[%s9391 + $0xb8] sm:$0xff]
    %v9416 = vld [vmem:[%s9391 + $0xc0] sm:$0xff]
    %v9417 = vld [vmem:[%s9391 + $0xc8] sm:$0xff]
    %v9418 = vld [vmem:[%s9391 + $0xd0] sm:$0xff]
    %v9419 = vld [vmem:[%s9391 + $0xd8] sm:$0xff]
    %v9420 = vld [vmem:[%s9391 + $0xe0] sm:$0xff]
    %v9421 = vld [vmem:[%s9391 + $0xe8] sm:$0xff]
    %v9422 = vld [vmem:[%s9391 + $0xf0] sm:$0xff]
    %v9423 = vld [vmem:[%s9391 + $0xf8] sm:$0xff]
    %v9424 = vld [vmem:[%s9391 + $0x100] sm:$0xff]
    %v9425 = vld [vmem:[%s9391 + $0x108] sm:$0xff]
    %v9426 = vld [vmem:[%s9391 + $0x110] sm:$0xff]
    %v9427 = vld [vmem:[%s9391 + $0x118] sm:$0xff]
    %v9428 = vld [vmem:[%s9391 + $0x120] sm:$0xff]
    %v9429 = vld [vmem:[%s9391 + $0x128] sm:$0xff]
    %v9430 = vld [vmem:[%s9391 + $0x130] sm:$0xff]
    %v9431 = vld [vmem:[%s9391 + $0x138] sm:$0xff]
    %v9432 = vld [vmem:[%s9391 + $0x140] sm:$0xff]
    %v9433 = vld [vmem:[%s9391 + $0x148] sm:$0xff]
    %v9434 = vld [vmem:[%s9391 + $0x150] sm:$0xff]
    %v9435 = vld [vmem:[%s9391 + $0x158] sm:$0xff]
    %v9436 = vld [vmem:[%s9391 + $0x160] sm:$0xff]
    %v9437 = vld [vmem:[%s9391 + $0x168] sm:$0xff]
    %v9438 = vld [vmem:[%s9391 + $0x170] sm:$0xff]
    %v9439 = vld [vmem:[%s9391 + $0x178] sm:$0xff]
    %v9446 = vsel %vm3161, %v8369, %v8243
    %v9447 = vsel %vm3161, %v8376, %v8250
    %v9448 = vsel %vm3161, %v8383, %v8257
    %9452 = vmatprep.subr.mxu0 0.0
    %9453 = vmatpush1.msra.mxu0 %v9392
    %9454 = vmatprep.subr.mxu0 0.0
    %9455 = vmatpush1.msra.mxu0 %v9393
    %9456 = vmatprep.subr.mxu0 0.0
    %9457 = vmatpush1.msra.mxu0 %v9394
    %9458 = vmatprep.subr.mxu0 0.0
    %9459 = vmatpush1.msra.mxu0 %v9395
    %9460 = vmatprep.subr.mxu0 0.0
    %9461 = vmatpush1.msra.mxu0 %v9396
    %9462 = vmatprep.subr.mxu0 0.0
    %9463 = vmatpush1.msra.mxu0 %v9397
    %9464 = vmatprep.subr.mxu0 0.0
    %9465 = vmatpush1.msra.mxu0 %v9398
    %9466 = vmatprep.subr.mxu0 0.0
    %9467 = vmatpush1.msra.mxu0 %v9399
    %9468 = vmatprep.subr.mxu0 0.0
    %9469 = vmatpush1.msra.mxu0 %v9400
    %9470 = vmatprep.subr.mxu0 0.0
    %9471 = vmatpush1.msra.mxu0 %v9401
    %9472 = vmatprep.subr.mxu0 0.0
    %9473 = vmatpush1.msra.mxu0 %v9402
    %9474 = vmatprep.subr.mxu0 0.0
    %9475 = vmatpush1.msra.mxu0 %v9403
    %9476 = vmatprep.subr.mxu0 0.0
    %9477 = vmatpush1.msra.mxu0 %v9404
    %9478 = vmatprep.subr.mxu0 0.0
    %9479 = vmatpush1.msra.mxu0 %v9405
    %9480 = vmatprep.subr.mxu0 0.0
    %9481 = vmatpush1.msra.mxu0 %v9406
    %9482 = vmatprep.subr.mxu0 0.0
    %9483 = vmatpush1.msra.mxu0 %v9407
    %9484 = vmatprep.subr.mxu0 0.0
    %9485 = vmatpush1.msra.mxu0 %v9408
    %9486 = vmatprep.subr.mxu0 0.0
    %9487 = vmatpush1.msra.mxu0 %v9409
    %9488 = vmatprep.subr.mxu0 0.0
    %9489 = vmatpush1.msra.mxu0 %v9410
    %9490 = vmatprep.subr.mxu0 0.0
    %9491 = vmatpush1.msra.mxu0 %v9411
    %9492 = vmatprep.subr.mxu0 0.0
    %9493 = vmatpush1.msra.mxu0 %v9412
    %9494 = vmatprep.subr.mxu0 0.0
    %9495 = vmatpush1.msra.mxu0 %v9413
    %9496 = vmatprep.subr.mxu0 0.0
    %9497 = vmatpush1.msra.mxu0 %v9414
    %9498 = vmatprep.subr.mxu0 0.0
    %9499 = vmatpush1.msra.mxu0 %v9415
    %9500 = vmatprep.subr.mxu0 0.0
    %9501 = vmatpush1.msra.mxu0 %v9416
    %9502 = vmatprep.subr.mxu0 0.0
    %9503 = vmatpush1.msra.mxu0 %v9417
    %9504 = vmatprep.subr.mxu0 0.0
    %9505 = vmatpush1.msra.mxu0 %v9418
    %9506 = vmatprep.subr.mxu0 0.0
    %9507 = vmatpush1.msra.mxu0 %v9419
    %9508 = vmatprep.subr.mxu0 0.0
    %9509 = vmatpush1.msra.mxu0 %v9420
    %9510 = vmatprep.subr.mxu0 0.0
    %9511 = vmatpush1.msra.mxu0 %v9421
    %9512 = vmatprep.subr.mxu0 0.0
    %9513 = vmatpush1.msra.mxu0 %v9422
    %9514 = vmatprep.subr.mxu0 0.0
    %9515 = vmatpush1.msra.mxu0 %v9423
    %9516 = vmatprep.mubr.f32.mxu0 %v9447
    %9517 = vmatmul.mubr.f32.gmra.mrb[0].mxu0 %v9446
    %v9518 = vpop.f32.mrb[0].mxu0
    %v9519 = vadd.f32 0.0, %v9518
    %v9520 = vpop.f32.mrb[0].mxu0
    %9521 = vdwg.mxu0
    %9522 = vmatprep.subr.mxu0 0.0
    %9523 = vmatpush1.msra.mxu0 %v9424
    %9524 = vmatprep.subr.mxu0 0.0
    %9525 = vmatpush1.msra.mxu0 %v9425
    %9526 = vmatprep.subr.mxu0 0.0
    %9527 = vmatpush1.msra.mxu0 %v9426
    %9528 = vmatprep.subr.mxu0 0.0
    %9529 = vmatpush1.msra.mxu0 %v9427
    %9530 = vmatprep.subr.mxu0 0.0
    %9531 = vmatpush1.msra.mxu0 %v9428
    %9532 = vmatprep.subr.mxu0 0.0
    %9533 = vmatpush1.msra.mxu0 %v9429
    %9534 = vmatprep.subr.mxu0 0.0
    %9535 = vmatpush1.msra.mxu0 %v9430
    %9536 = vmatprep.subr.mxu0 0.0
    %9537 = vmatpush1.msra.mxu0 %v9431
    %9538 = vmatprep.subr.mxu0 0.0
    %9539 = vmatpush1.msra.mxu0 %v9432
    %9540 = vmatprep.subr.mxu0 0.0
    %9541 = vmatpush1.msra.mxu0 %v9433
    %9542 = vmatprep.subr.mxu0 0.0
    %9543 = vmatpush1.msra.mxu0 %v9434
    %9544 = vmatprep.subr.mxu0 0.0
    %9545 = vmatpush1.msra.mxu0 %v9435
    %9546 = vmatprep.subr.mxu0 0.0
    %9547 = vmatpush1.msra.mxu0 %v9436
    %9548 = vmatprep.subr.mxu0 0.0
    %9549 = vmatpush1.msra.mxu0 %v9437
    %9550 = vmatprep.subr.mxu0 0.0
    %9551 = vmatpush1.msra.mxu0 %v9438
    %9552 = vmatprep.subr.mxu0 0.0
    %9553 = vmatpush1.msra.mxu0 %v9439
    %9554 = vmatprep.subr.mxu0 0.0
    %9555 = vmatpush1.msra.mxu0 0.0
    %9556 = vmatprep.subr.mxu0 0.0
    %9557 = vmatpush1.msra.mxu0 0.0
    %9558 = vmatprep.subr.mxu0 0.0
    %9559 = vmatpush1.msra.mxu0 0.0
    %9560 = vmatprep.subr.mxu0 0.0
    %9561 = vmatpush1.msra.mxu0 0.0
    %9562 = vmatprep.subr.mxu0 0.0
    %9563 = vmatpush1.msra.mxu0 0.0
    %9564 = vmatprep.subr.mxu0 0.0
    %9565 = vmatpush1.msra.mxu0 0.0
    %9566 = vmatprep.subr.mxu0 0.0
    %9567 = vmatpush1.msra.mxu0 0.0
    %9568 = vmatprep.subr.mxu0 0.0
    %9569 = vmatpush1.msra.mxu0 0.0
    %9570 = vmatprep.subr.mxu0 0.0
    %9571 = vmatpush1.msra.mxu0 0.0
    %9572 = vmatprep.subr.mxu0 0.0
    %9573 = vmatpush1.msra.mxu0 0.0
    %9574 = vmatprep.subr.mxu0 0.0
    %9575 = vmatpush1.msra.mxu0 0.0
    %9576 = vmatprep.subr.mxu0 0.0
    %9577 = vmatpush1.msra.mxu0 0.0
    %9578 = vmatprep.subr.mxu0 0.0
    %9579 = vmatpush1.msra.mxu0 0.0
    %9580 = vmatprep.subr.mxu0 0.0
    %9581 = vmatpush1.msra.mxu0 0.0
    %9582 = vmatprep.subr.mxu0 0.0
    %9583 = vmatpush1.msra.mxu0 0.0
    %9584 = vmatprep.subr.mxu0 0.0
    %9585 = vmatpush1.msra.mxu0 0.0
    %9586 = vmatprep.mubr.f32.mxu0 0.0
    %9587 = vmatmul.mubr.f32.gmra.mrb[0].mxu0 %v9448
    %v9588 = vpop.f32.mrb[0].mxu0
    %v9589 = vadd.f32 %v9519, %v9588
    %v9590 = vpop.f32.mrb[0].mxu0
    %9591 = vdwg.mxu0
    %v9592 = vadd.f32 %v9390, %v9589
    %v9593 = vld [vmem:[#allocation16] sm:$0x1]
    %v9595 = vlaneseq
    %v9596 = vshrl.u32 %v9595, 7
    %v9597 = vsub.s32 0, %v9596
    %v9598 = vrot.slane %v9593, %v9597
    %v9600 = vadd.f32 %v9592, %v9598
    %9601 = vst [vmem:[#allocation17] sm:$0x3] %v9600
    // Predicated region
    $region74: #{tpu_custom_call.1} parent=1 // pred_check
      _
    $region75: #{tpu_custom_call.1} parent=1 // pred_check_branch
      %9603 = sbr.rel (0) target = $region77
    $region76: #{tpu_custom_call.1} parent=1 // pred_region
      %s9605 = ssub.s32 32, 32
      %9606 = vsyncadd [#allocation4], %s9605
      %s9608 = sshll.u32 [#allocation17], 4
      %s9609 = int_to_ptr.vmem [resolvable:$true] %s9608
      %9611 = dma.vmem_to_hbm [thread:$0]  %s9609, 32, %s9, [#allocation4]
    $region77: #{tpu_custom_call.1} parent=1 // pred_fallthru
      _
    // Predicated region
    $region78: #{tpu_custom_call.1} parent=1 // pred_check
      _
    $region79: #{tpu_custom_call.1} parent=1 // pred_check_branch
      %9613 = sbr.rel (0) target = $region81
    $region80: #{tpu_custom_call.1} parent=1 // pred_region
      %9614 = dma.done [#allocation4], 32
    $region81: #{tpu_custom_call.1} parent=1 // pred_fallthru
      _
    %9615 = vsyncpa [#allocation3], 1
    %9616 = vsyncpa [#allocation6], 1
    %9617 = vsyncpa [#allocation9], 1
    %9618 = vsyncpa [#allocation12], 1
    %9619 = vsyncpa [#allocation15], 1
    %9620 = vsyncpa [#allocation4], 1

</llo_original>
